<compile_context>
chip_gen: v6e
topology: v6e:2x2x1
jax: 0.10.0
libtpu: 0.0.40
codegen_flags: <defaults>
</compile_context>

<pallas_src>
import jax
import jax.numpy as jnp
from jax.experimental import pallas as pl
from jax.experimental.pallas import tpu as pltpu

EMBED_L = 10            # n_harmonic_functions
HIDDEN = 256            # hidden_dim
OUT_DIM = 4             # RGB + density
EMB_PAD = 64            # 2*3*EMBED_L sin/cos lanes + 3 raw-x lanes, padded to 64


def nerf_kernel(x_ref, frow_ref, prow_ref, w1_ref, b1_ref,
                w2_ref, b2_ref, w3_ref, b3_ref, w4_ref, b4_ref, o_ref):
    x = x_ref[...]                                   # [tm, 3] f32
    x0 = x[:, 0:1]
    x1 = x[:, 1:2]
    x2 = x[:, 2:3]

    # Harmonic phases (all f32): lanes 0..29 = x*f (sin), lanes 30..59 =
    # x*f + pi/2 (cos = sin(t+pi/2)), lanes 60..62 = raw x (identity freq,
    # zero phase), lane 63 = zero filler.  3 VPU broadcast-FMAs + one add.
    p2 = (x0 * frow_ref[0:1, :]
          + x1 * frow_ref[1:2, :]
          + x2 * frow_ref[2:3, :]
          + prow_ref[...])
    lane = jax.lax.broadcasted_iota(jnp.int32, p2.shape, 1)
    emb = jnp.where(lane < 6 * EMBED_L, jnp.sin(p2), p2)   # raw-x lanes pass through

    # Layer 1: single K=64 bf16 MXU matmul (x passthrough lives in w1 rows 60..62).
    h = jnp.dot(emb.astype(jnp.bfloat16), w1_ref[...],
                preferred_element_type=jnp.float32)
    h = jnp.maximum(h + b1_ref[...], 0.0)

    # Layers 2/3: dominant 256x256 matmuls, bf16 operands / f32 accumulation.
    h = jnp.maximum(
        jnp.dot(h.astype(jnp.bfloat16), w2_ref[...],
                preferred_element_type=jnp.float32) + b2_ref[...], 0.0)
    h = jnp.maximum(
        jnp.dot(h.astype(jnp.bfloat16), w3_ref[...],
                preferred_element_type=jnp.float32) + b3_ref[...], 0.0)

    # Layer 4: narrow (H x 4) bf16 matmul straight into the 4-wide output block.
    out = jnp.dot(h.astype(jnp.bfloat16), w4_ref[...],
                  preferred_element_type=jnp.float32) + b4_ref[...]
    o_ref[...] = out.astype(o_ref.dtype)


def nerf_forward(x, params, *, tile_m=2048):
    """x: [N, 3] float32.  Returns [N, 4] float32."""
    N = x.shape[0]
    # Tile rows: a multiple of 256 (full MXU rows).  Shrink for small N so the
    # grid keeps >= 2 steps (both v7x TensorCores shard the 'parallel' axis);
    # cap at tile_m so activations stay well under VMEM (v7x: 64 MiB physical).
    rows = min(tile_m, 256 * max(1, pl.cdiv(N, 2 * 256)))
    pad = (-N) % rows
    if pad:
        x = jnp.pad(x, ((0, pad), (0, 0)))           # garbage rows sliced off below
    Np = N + pad
    H = params["w2"].shape[0]

    def tiled(cols):
        return pl.BlockSpec((rows, cols), lambda i: (i, 0))

    def const(shape):
        return pl.BlockSpec(shape, lambda i: (0, 0))

    out = pl.pallas_call(
        nerf_kernel,
        out_shape=jax.ShapeDtypeStruct((Np, OUT_DIM), jnp.float32),
        grid_spec=pltpu.PrefetchScalarGridSpec(
            num_scalar_prefetch=0,
            grid=(Np // rows,),
            in_specs=[
                tiled(3),                   # x
                const((3, EMB_PAD)),        # per-lane frequency rows (+identity x lanes)
                const((1, EMB_PAD)),        # per-lane phase row (pi/2 on cos lanes)
                const((EMB_PAD, H)),        # w1 bf16 (sin|cos|x rows, zero-padded to 64)
                const((1, H)),              # b1
                const((H, H)),              # w2 bf16
                const((1, H)),              # b2
                const((H, H)),              # w3 bf16
                const((1, H)),              # b3
                const((H, OUT_DIM)),        # w4 bf16 (4 output columns)
                const((1, OUT_DIM)),        # b4
            ],
            out_specs=tiled(OUT_DIM),
        ),
        compiler_params=pltpu.CompilerParams(
            dimension_semantics=("parallel",),
            # ~15 MiB used at tile_m=2048; explicit limit covers v5e's 16 MiB
            # default scoped VMEM while staying far under v7x's 64 MiB physical.
            vmem_limit_bytes=48 * 1024 * 1024),
    )(x, params["frow"], params["prow"], params["w1"], params["b1"],
      params["w2"], params["b2"], params["w3"], params["b3"],
      params["w4"], params["b4"])
    return out[:N] if pad else out


def init_params(key, hidden=HIDDEN, n_harmonic=EMBED_L):
    """Deterministic init mimicking torch.nn.Linear (uniform +-1/sqrt(fan_in)),
    repacked into the kernel layout (merged sin|cos|x weight rows, bf16 MXU
    operands, f32 biases)."""
    L = n_harmonic
    in_dim = L * 3 * 2 + 3                           # 63
    dims = [(in_dim, hidden), (hidden, hidden), (hidden, hidden), (hidden, OUT_DIM)]
    keys = jax.random.split(key, 2 * len(dims))
    ws, bs = [], []
    for li, (fi, fo) in enumerate(dims):
        bound = 1.0 / jnp.sqrt(fi)
        ws.append(jax.random.uniform(keys[2 * li], (fi, fo), jnp.float32, -bound, bound))
        bs.append(jax.random.uniform(keys[2 * li + 1], (1, fo), jnp.float32, -bound, bound))

    freqs = 2.0 ** jnp.arange(L, dtype=jnp.float32)  # omega_0 = 1.0, logspace
    frow = jnp.zeros((3, EMB_PAD), jnp.float32)
    prow = jnp.zeros((1, EMB_PAD), jnp.float32)
    for j in range(3):
        frow = frow.at[j, j * L:(j + 1) * L].set(freqs)                  # sin lanes
        frow = frow.at[j, 3 * L + j * L:3 * L + (j + 1) * L].set(freqs)  # cos lanes
        frow = frow.at[j, 6 * L + j].set(1.0)                            # raw-x lane
    prow = prow.at[0, 3 * L:6 * L].set(jnp.pi / 2.0)                     # cos = sin(+pi/2)

    # w1 rows: [sin(30) | cos(30) | x(3)] then zero-padded to 64.
    w1 = jnp.zeros((EMB_PAD, hidden), jnp.float32).at[:in_dim, :].set(ws[0])

    return {
        "frow": frow, "prow": prow,
        "w1": w1.astype(jnp.bfloat16), "b1": bs[0],
        "w2": ws[1].astype(jnp.bfloat16), "b2": bs[1],
        "w3": ws[2].astype(jnp.bfloat16), "b3": bs[2],
        "w4": ws[3].astype(jnp.bfloat16), "b4": bs[3],
    }


def nerf_reference(x, params):
    """Pure-JAX reference of the PyTorch forward (sin|cos|x embedding + MLP),
    using the same (bf16-stored) weights in f32 math."""
    L = EMBED_L
    freqs = 2.0 ** jnp.arange(L, dtype=jnp.float32)
    p = (x[:, :, None] * freqs[None, None, :]).reshape(x.shape[0], 3 * L)
    emb = jnp.concatenate([jnp.sin(p), jnp.cos(p), x], axis=-1)          # [N, 63]
    w1 = params["w1"].astype(jnp.float32)[:6 * L + 3]
    h = jnp.maximum(emb @ w1 + params["b1"], 0.0)
    h = jnp.maximum(h @ params["w2"].astype(jnp.float32) + params["b2"], 0.0)
    h = jnp.maximum(h @ params["w3"].astype(jnp.float32) + params["b3"], 0.0)
    return h @ params["w4"].astype(jnp.float32) + params["b4"]


if __name__ == "__main__":
    key = jax.random.PRNGKey(0)
    k_param, k_x = jax.random.split(key)

    # N deliberately not a multiple of the tile to exercise the padding path;
    # the wrapper picks rows=512 -> padded N=1024 -> grid=(2,), so both v7x
    # TensorCores stay busy even at this small demo size.
    N = 1000
    params = init_params(k_param)
    x = jax.random.uniform(k_x, (N, 3), jnp.float32, -1.0, 1.0)

    out = jax.block_until_ready(nerf_forward(x, params))
    ref = nerf_reference(x, params)

    assert out.shape == (N, OUT_DIM)
    assert jnp.allclose(out, ref, atol=2e-2, rtol=2e-2), float(jnp.max(jnp.abs(out - ref)))

    print("KERNEL_OK")
</pallas_src>

<mosaic_0001>
module attributes {stable_mosaic.version = 11 : i64} {
  func.func @nerf_kernel(%arg0: i32, %arg1: memref<512x3xf32, #tpu.memory_space<vmem>>, %arg2: memref<3x64xf32, #tpu.memory_space<vmem>>, %arg3: memref<1x64xf32, #tpu.memory_space<vmem>>, %arg4: memref<64x256xbf16, #tpu.memory_space<vmem>>, %arg5: memref<1x256xf32, #tpu.memory_space<vmem>>, %arg6: memref<256x256xbf16, #tpu.memory_space<vmem>>, %arg7: memref<1x256xf32, #tpu.memory_space<vmem>>, %arg8: memref<256x256xbf16, #tpu.memory_space<vmem>>, %arg9: memref<1x256xf32, #tpu.memory_space<vmem>>, %arg10: memref<256x4xbf16, #tpu.memory_space<vmem>>, %arg11: memref<1x4xf32, #tpu.memory_space<vmem>>, %arg12: memref<512x4xf32, #tpu.memory_space<vmem>>) attributes {dimension_semantics = [#tpu.dimension_semantics<parallel>], iteration_bounds = array<i64: 2>, scalar_prefetch = 0 : i64, scratch_operands = 0 : i64, tpu.core_type = #tpu.core_type<tc>, window_params = [{transform_indices = @transform_0, window_bounds = array<i64: 512, 3>}, {pipeline_mode = #tpu.pipeline_mode<synchronous>, transform_indices = @transform_1, window_bounds = array<i64: 3, 64>}, {pipeline_mode = #tpu.pipeline_mode<synchronous>, transform_indices = @transform_2, window_bounds = array<i64: 1, 64>}, {pipeline_mode = #tpu.pipeline_mode<synchronous>, transform_indices = @transform_3, window_bounds = array<i64: 64, 256>}, {pipeline_mode = #tpu.pipeline_mode<synchronous>, transform_indices = @transform_4, window_bounds = array<i64: 1, 256>}, {pipeline_mode = #tpu.pipeline_mode<synchronous>, transform_indices = @transform_5, window_bounds = array<i64: 256, 256>}, {pipeline_mode = #tpu.pipeline_mode<synchronous>, transform_indices = @transform_6, window_bounds = array<i64: 1, 256>}, {pipeline_mode = #tpu.pipeline_mode<synchronous>, transform_indices = @transform_7, window_bounds = array<i64: 256, 256>}, {pipeline_mode = #tpu.pipeline_mode<synchronous>, transform_indices = @transform_8, window_bounds = array<i64: 1, 256>}, {pipeline_mode = #tpu.pipeline_mode<synchronous>, transform_indices = @transform_9, window_bounds = array<i64: 256, 4>}, {pipeline_mode = #tpu.pipeline_mode<synchronous>, transform_indices = @transform_10, window_bounds = array<i64: 1, 4>}, {transform_indices = @transform_11, window_bounds = array<i64: 512, 4>}]} {
    %c0 = arith.constant 0 : index
    %c0_0 = arith.constant 0 : index
    %0 = vector.load %arg1[%c0, %c0_0] : memref<512x3xf32, #tpu.memory_space<vmem>>, vector<512x3xf32>
    %1 = vector.extract_strided_slice %0 {offsets = [0, 0], sizes = [512, 1], strides = [1, 1]} : vector<512x3xf32> to vector<512x1xf32>
    %2 = vector.extract_strided_slice %0 {offsets = [0, 1], sizes = [512, 1], strides = [1, 1]} : vector<512x3xf32> to vector<512x1xf32>
    %3 = vector.extract_strided_slice %0 {offsets = [0, 2], sizes = [512, 1], strides = [1, 1]} : vector<512x3xf32> to vector<512x1xf32>
    %c0_1 = arith.constant 0 : index
    %c0_2 = arith.constant 0 : index
    %4 = vector.load %arg2[%c0_1, %c0_2] : memref<3x64xf32, #tpu.memory_space<vmem>>, vector<1x64xf32>
    %5 = vector.broadcast %1 : vector<512x1xf32> to vector<512x64xf32>
    %6 = vector.broadcast %4 : vector<1x64xf32> to vector<512x64xf32>
    %7 = arith.mulf %5, %6 : vector<512x64xf32>
    %c1 = arith.constant 1 : index
    %c0_3 = arith.constant 0 : index
    %8 = vector.load %arg2[%c1, %c0_3] : memref<3x64xf32, #tpu.memory_space<vmem>>, vector<1x64xf32>
    %9 = vector.broadcast %2 : vector<512x1xf32> to vector<512x64xf32>
    %10 = vector.broadcast %8 : vector<1x64xf32> to vector<512x64xf32>
    %11 = arith.mulf %9, %10 : vector<512x64xf32>
    %12 = arith.addf %7, %11 : vector<512x64xf32>
    %c2 = arith.constant 2 : index
    %c0_4 = arith.constant 0 : index
    %13 = vector.load %arg2[%c2, %c0_4] : memref<3x64xf32, #tpu.memory_space<vmem>>, vector<1x64xf32>
    %14 = vector.broadcast %3 : vector<512x1xf32> to vector<512x64xf32>
    %15 = vector.broadcast %13 : vector<1x64xf32> to vector<512x64xf32>
    %16 = arith.mulf %14, %15 : vector<512x64xf32>
    %17 = arith.addf %12, %16 : vector<512x64xf32>
    %c0_5 = arith.constant 0 : index
    %c0_6 = arith.constant 0 : index
    %18 = vector.load %arg3[%c0_5, %c0_6] : memref<1x64xf32, #tpu.memory_space<vmem>>, vector<1x64xf32>
    %19 = vector.broadcast %18 : vector<1x64xf32> to vector<512x64xf32>
    %20 = arith.addf %17, %19 : vector<512x64xf32>
    %21 = tpu.iota {dimensions = array<i32: 1>} : vector<512x64xi32>
    %c60_i32 = arith.constant 60 : i32
    %22 = vector.broadcast %c60_i32 : i32 to vector<512x64xi32>
    %23 = arith.cmpi slt, %21, %22 : vector<512x64xi32>
    %24 = math.sin %20 : vector<512x64xf32>
    %25 = arith.select %23, %24, %20 : vector<512x64xi1>, vector<512x64xf32>
    %26 = arith.truncf %25 : vector<512x64xf32> to vector<512x64xbf16>
    %c0_7 = arith.constant 0 : index
    %c0_8 = arith.constant 0 : index
    %27 = vector.load %arg4[%c0_7, %c0_8] : memref<64x256xbf16, #tpu.memory_space<vmem>>, vector<64x256xbf16>
    %cst = arith.constant dense<0.000000e+00> : vector<512x256xf32>
    %28 = tpu.matmul %26, %27, %cst {dimension_numbers = #tpu.dot_dimension_numbers<[1], [0], [0], [1], [0, 0, 1, 1], [], []>} : vector<512x64xbf16>, vector<64x256xbf16>, vector<512x256xf32> -> vector<512x256xf32>
    %c0_9 = arith.constant 0 : index
    %c0_10 = arith.constant 0 : index
    %29 = vector.load %arg5[%c0_9, %c0_10] : memref<1x256xf32, #tpu.memory_space<vmem>>, vector<1x256xf32>
    %30 = vector.broadcast %29 : vector<1x256xf32> to vector<512x256xf32>
    %31 = arith.addf %28, %30 : vector<512x256xf32>
    %cst_11 = arith.constant 0.000000e+00 : f32
    %32 = vector.broadcast %cst_11 : f32 to vector<512x256xf32>
    %33 = arith.maximumf %31, %32 : vector<512x256xf32>
    %34 = arith.truncf %33 : vector<512x256xf32> to vector<512x256xbf16>
    %c0_12 = arith.constant 0 : index
    %c0_13 = arith.constant 0 : index
    %35 = vector.load %arg6[%c0_12, %c0_13] : memref<256x256xbf16, #tpu.memory_space<vmem>>, vector<256x256xbf16>
    %cst_14 = arith.constant dense<0.000000e+00> : vector<512x256xf32>
    %36 = tpu.matmul %34, %35, %cst_14 {dimension_numbers = #tpu.dot_dimension_numbers<[1], [0], [0], [1], [0, 0, 1, 1], [], []>} : vector<512x256xbf16>, vector<256x256xbf16>, vector<512x256xf32> -> vector<512x256xf32>
    %c0_15 = arith.constant 0 : index
    %c0_16 = arith.constant 0 : index
    %37 = vector.load %arg7[%c0_15, %c0_16] : memref<1x256xf32, #tpu.memory_space<vmem>>, vector<1x256xf32>
    %38 = vector.broadcast %37 : vector<1x256xf32> to vector<512x256xf32>
    %39 = arith.addf %36, %38 : vector<512x256xf32>
    %cst_17 = arith.constant 0.000000e+00 : f32
    %40 = vector.broadcast %cst_17 : f32 to vector<512x256xf32>
    %41 = arith.maximumf %39, %40 : vector<512x256xf32>
    %42 = arith.truncf %41 : vector<512x256xf32> to vector<512x256xbf16>
    %c0_18 = arith.constant 0 : index
    %c0_19 = arith.constant 0 : index
    %43 = vector.load %arg8[%c0_18, %c0_19] : memref<256x256xbf16, #tpu.memory_space<vmem>>, vector<256x256xbf16>
    %cst_20 = arith.constant dense<0.000000e+00> : vector<512x256xf32>
    %44 = tpu.matmul %42, %43, %cst_20 {dimension_numbers = #tpu.dot_dimension_numbers<[1], [0], [0], [1], [0, 0, 1, 1], [], []>} : vector<512x256xbf16>, vector<256x256xbf16>, vector<512x256xf32> -> vector<512x256xf32>
    %c0_21 = arith.constant 0 : index
    %c0_22 = arith.constant 0 : index
    %45 = vector.load %arg9[%c0_21, %c0_22] : memref<1x256xf32, #tpu.memory_space<vmem>>, vector<1x256xf32>
    %46 = vector.broadcast %45 : vector<1x256xf32> to vector<512x256xf32>
    %47 = arith.addf %44, %46 : vector<512x256xf32>
    %cst_23 = arith.constant 0.000000e+00 : f32
    %48 = vector.broadcast %cst_23 : f32 to vector<512x256xf32>
    %49 = arith.maximumf %47, %48 : vector<512x256xf32>
    %50 = arith.truncf %49 : vector<512x256xf32> to vector<512x256xbf16>
    %c0_24 = arith.constant 0 : index
    %c0_25 = arith.constant 0 : index
    %51 = vector.load %arg10[%c0_24, %c0_25] : memref<256x4xbf16, #tpu.memory_space<vmem>>, vector<256x4xbf16>
    %cst_26 = arith.constant dense<0.000000e+00> : vector<512x4xf32>
    %52 = tpu.matmul %50, %51, %cst_26 {dimension_numbers = #tpu.dot_dimension_numbers<[1], [0], [0], [1], [0, 0, 1, 1], [], []>} : vector<512x256xbf16>, vector<256x4xbf16>, vector<512x4xf32> -> vector<512x4xf32>
    %c0_27 = arith.constant 0 : index
    %c0_28 = arith.constant 0 : index
    %53 = vector.load %arg11[%c0_27, %c0_28] : memref<1x4xf32, #tpu.memory_space<vmem>>, vector<1x4xf32>
    %54 = vector.broadcast %53 : vector<1x4xf32> to vector<512x4xf32>
    %55 = arith.addf %52, %54 : vector<512x4xf32>
    %c0_29 = arith.constant 0 : index
    %c0_30 = arith.constant 0 : index
    %56 = vector.load %arg12[%c0_29, %c0_30] : memref<512x4xf32, #tpu.memory_space<vmem>>, vector<512x4xf32>
    tpu.vector_store %arg12[%c0_29, %c0_30], %55 {strides = array<i32>} : memref<512x4xf32, #tpu.memory_space<vmem>>, vector<512x4xf32>,
    return
  }
  func.func @transform_0(%arg0: i32) -> (i32, i32) {
    %c0_i32 = arith.constant 0 : i32
    %c0_i32_0 = arith.constant 0 : i32
    return %arg0, %c0_i32 : i32, i32
  }
  func.func @transform_1(%arg0: i32) -> (i32, i32) {
    %c0_i32 = arith.constant 0 : i32
    %c0_i32_0 = arith.constant 0 : i32
    %c0_i32_1 = arith.constant 0 : i32
    return %c0_i32, %c0_i32_0 : i32, i32
  }
  func.func @transform_2(%arg0: i32) -> (i32, i32) {
    %c0_i32 = arith.constant 0 : i32
    %c0_i32_0 = arith.constant 0 : i32
    %c0_i32_1 = arith.constant 0 : i32
    return %c0_i32, %c0_i32_0 : i32, i32
  }
  func.func @transform_3(%arg0: i32) -> (i32, i32) {
    %c0_i32 = arith.constant 0 : i32
    %c0_i32_0 = arith.constant 0 : i32
    %c0_i32_1 = arith.constant 0 : i32
    return %c0_i32, %c0_i32_0 : i32, i32
  }
  func.func @transform_4(%arg0: i32) -> (i32, i32) {
    %c0_i32 = arith.constant 0 : i32
    %c0_i32_0 = arith.constant 0 : i32
    %c0_i32_1 = arith.constant 0 : i32
    return %c0_i32, %c0_i32_0 : i32, i32
  }
  func.func @transform_5(%arg0: i32) -> (i32, i32) {
    %c0_i32 = arith.constant 0 : i32
    %c0_i32_0 = arith.constant 0 : i32
    %c0_i32_1 = arith.constant 0 : i32
    return %c0_i32, %c0_i32_0 : i32, i32
  }
  func.func @transform_6(%arg0: i32) -> (i32, i32) {
    %c0_i32 = arith.constant 0 : i32
    %c0_i32_0 = arith.constant 0 : i32
    %c0_i32_1 = arith.constant 0 : i32
    return %c0_i32, %c0_i32_0 : i32, i32
  }
  func.func @transform_7(%arg0: i32) -> (i32, i32) {
    %c0_i32 = arith.constant 0 : i32
    %c0_i32_0 = arith.constant 0 : i32
    %c0_i32_1 = arith.constant 0 : i32
    return %c0_i32, %c0_i32_0 : i32, i32
  }
  func.func @transform_8(%arg0: i32) -> (i32, i32) {
    %c0_i32 = arith.constant 0 : i32
    %c0_i32_0 = arith.constant 0 : i32
    %c0_i32_1 = arith.constant 0 : i32
    return %c0_i32, %c0_i32_0 : i32, i32
  }
  func.func @transform_9(%arg0: i32) -> (i32, i32) {
    %c0_i32 = arith.constant 0 : i32
    %c0_i32_0 = arith.constant 0 : i32
    %c0_i32_1 = arith.constant 0 : i32
    return %c0_i32, %c0_i32_0 : i32, i32
  }
  func.func @transform_10(%arg0: i32) -> (i32, i32) {
    %c0_i32 = arith.constant 0 : i32
    %c0_i32_0 = arith.constant 0 : i32
    %c0_i32_1 = arith.constant 0 : i32
    return %c0_i32, %c0_i32_0 : i32, i32
  }
  func.func @transform_11(%arg0: i32) -> (i32, i32) {
    %c0_i32 = arith.constant 0 : i32
    %c0_i32_0 = arith.constant 0 : i32
    return %arg0, %c0_i32 : i32, i32
  }
}

</mosaic_0001>

<llo_original>
// kernel: tpu_custom_call.1
$region0: #{tpu_custom_call.1}
  #allocation0 [shape = 'u32[]', space=smem, size = 0x4, offset = 0x4, fixed_abs, tag = 'smem constant byte address 0x4 - core index']
  #allocation1 [shape = 'u32[144,128]{1,0:T(1,128)}', space=vmem, size = 0x12000, scoped, tag = 'internal scratch']
  %s0 = inlined_call_operand.vmem [shape: f32[1024,3], index: 0, kind: input, shape index: {}]
  %s1 = inlined_call_operand.vmem [shape: f32[3,64], index: 1, kind: input, shape index: {}]
  %s2 = inlined_call_operand.vmem [shape: f32[1,64], index: 2, kind: input, shape index: {}]
  %s3 = inlined_call_operand.vmem [shape: bf16[64,256], index: 3, kind: input, shape index: {}]
  %s4 = inlined_call_operand.vmem [shape: f32[1,256], index: 4, kind: input, shape index: {}]
  %s5 = inlined_call_operand.vmem [shape: bf16[256,256], index: 5, kind: input, shape index: {}]
  %s6 = inlined_call_operand.vmem [shape: f32[1,256], index: 6, kind: input, shape index: {}]
  %s7 = inlined_call_operand.vmem [shape: bf16[256,256], index: 7, kind: input, shape index: {}]
  %s8 = inlined_call_operand.vmem [shape: f32[1,256], index: 8, kind: input, shape index: {}]
  %s9 = inlined_call_operand.vmem [shape: bf16[256,4], index: 9, kind: input, shape index: {}]
  %s10 = inlined_call_operand.vmem [shape: f32[1,4], index: 10, kind: input, shape index: {}]
  %s11 = inlined_call_operand.vmem [shape: f32[1024,4], index: 11, kind: output, shape index: {}]
  %s12 = sld [smem:[#allocation0]]
  $region77: #{tpu_custom_call.1} parent=0
    _
  %s14 = ssub.s32 1, %s12
  %s15 = scalar_select 0, %s14, %s12
  loop: start=0, step=1, limit=4
  $region2: #{tpu_custom_call.1} parent=0 // loop_pre_header
    _
  $region3: #{tpu_custom_call.1} parent=0 // loop_header
    %s17 = sphi 0, %s21
    %p18 = scmp.ge.s32.totalorder %s17, 4
    %s27 = sphi 0, %s29
    %s30 = sphi 0, %s27
    %s31 = sphi 0, %s30
    %s47 = sphi 0, %s31
    %s51 = sphi 0, %s51
    %s53 = sphi 0, %s51
    %s54 = sphi 0, %s53
    %s68 = sphi 0, %s54
    %s72 = sphi 0, %s72
    %s74 = sphi 0, %s72
    %s75 = sphi 0, %s74
    %s89 = sphi 0, %s75
    %s93 = sphi 0, %s93
    %s95 = sphi 0, %s93
    %s96 = sphi 0, %s95
    %s110 = sphi 0, %s96
    %s114 = sphi 0, %s114
    %s116 = sphi 0, %s114
    %s117 = sphi 0, %s116
    %s131 = sphi 0, %s117
    %s135 = sphi 0, %s135
    %s137 = sphi 0, %s135
    %s138 = sphi 0, %s137
    %s152 = sphi 0, %s138
    %s156 = sphi 0, %s156
    %s158 = sphi 0, %s156
    %s159 = sphi 0, %s158
    %s173 = sphi 0, %s159
    %s177 = sphi 0, %s177
    %s179 = sphi 0, %s177
    %s180 = sphi 0, %s179
    %s194 = sphi 0, %s180
    %s198 = sphi 0, %s198
    %s200 = sphi 0, %s198
    %s201 = sphi 0, %s200
    %s215 = sphi 0, %s201
    %s219 = sphi 0, %s219
    %s221 = sphi 0, %s219
    %s222 = sphi 0, %s221
    %s236 = sphi 0, %s222
    %s240 = sphi 0, %s240
    %s242 = sphi 0, %s240
    %s243 = sphi 0, %s242
    %s257 = sphi 0, %s243
    %s263 = sphi 0, %s265
    %s266 = sphi 0, %s263
    %s267 = sphi 0, %s266
    %s283 = sphi 0, %s267
  $region4: #{tpu_custom_call.1} parent=0 // loop_header_branch
    %20 = sbr.rel (%p18) target = $region8
  $region5: #{tpu_custom_call.1} parent=0 // loop_body
    %s22 = ssub.s32 %s17, 1
    %s23 = ssub.s32 %s17, 2
    %s24 = sadd.s32 %s17, 1
    %s25 = ssub.s32 %s17, %s24
    %p26 = scmp.eq.s32.totalorder %s25, 0
    %s28 = sadd.s32 %s27, 1
    %s29 = scalar_select %p26, %s27, %s28
    %p32 = pneg %p26
    %p33 = scmp.eq.s32.totalorder %s17, 1
    %p34 = por %p32, %p33
    %p35 = scmp.ne.s32.totalorder %s27, %s30
    %p36 = scmp.eq.s32.totalorder %s17, 0
    %p37 = por %p35, %p36
    %p38 = scmp.ne.s32.totalorder %s27, %s30
    %p39 = scmp.eq.s32.totalorder %s22, 1
    %p40 = por %p38, %p39
    %p41 = scmp.ne.s32.totalorder %s30, %s31
    %p42 = scmp.eq.s32.totalorder %s22, 0
    %p43 = por %p41, %p42
    %p44 = scmp.ne.s32.totalorder %s30, %s31
    %p45 = scmp.eq.s32.totalorder %s23, 1
    %p46 = por %p44, %p45
    %p48 = scmp.ne.s32.totalorder %s31, %s47
    %p49 = scmp.eq.s32.totalorder %s23, 0
    %p50 = por %p48, %p49
    %s52 = sadd.s32 %s51, 1
    %p55 = scmp.eq.s32.totalorder %s17, 1
    %p56 = scmp.ne.s32.totalorder %s51, %s53
    %p57 = scmp.eq.s32.totalorder %s17, 0
    %p58 = por %p56, %p57
    %p59 = scmp.ne.s32.totalorder %s51, %s53
    %p60 = scmp.eq.s32.totalorder %s22, 1
    %p61 = por %p59, %p60
    %p62 = scmp.ne.s32.totalorder %s53, %s54
    %p63 = scmp.eq.s32.totalorder %s22, 0
    %p64 = por %p62, %p63
    %p65 = scmp.ne.s32.totalorder %s53, %s54
    %p66 = scmp.eq.s32.totalorder %s23, 1
    %p67 = por %p65, %p66
    %p69 = scmp.ne.s32.totalorder %s54, %s68
    %p70 = scmp.eq.s32.totalorder %s23, 0
    %p71 = por %p69, %p70
    %s73 = sadd.s32 %s72, 1
    %p76 = scmp.eq.s32.totalorder %s17, 1
    %p77 = scmp.ne.s32.totalorder %s72, %s74
    %p78 = scmp.eq.s32.totalorder %s17, 0
    %p79 = por %p77, %p78
    %p80 = scmp.ne.s32.totalorder %s72, %s74
    %p81 = scmp.eq.s32.totalorder %s22, 1
    %p82 = por %p80, %p81
    %p83 = scmp.ne.s32.totalorder %s74, %s75
    %p84 = scmp.eq.s32.totalorder %s22, 0
    %p85 = por %p83, %p84
    %p86 = scmp.ne.s32.totalorder %s74, %s75
    %p87 = scmp.eq.s32.totalorder %s23, 1
    %p88 = por %p86, %p87
    %p90 = scmp.ne.s32.totalorder %s75, %s89
    %p91 = scmp.eq.s32.totalorder %s23, 0
    %p92 = por %p90, %p91
    %s94 = sadd.s32 %s93, 1
    %p97 = scmp.eq.s32.totalorder %s17, 1
    %p98 = scmp.ne.s32.totalorder %s93, %s95
    %p99 = scmp.eq.s32.totalorder %s17, 0
    %p100 = por %p98, %p99
    %p101 = scmp.ne.s32.totalorder %s93, %s95
    %p102 = scmp.eq.s32.totalorder %s22, 1
    %p103 = por %p101, %p102
    %p104 = scmp.ne.s32.totalorder %s95, %s96
    %p105 = scmp.eq.s32.totalorder %s22, 0
    %p106 = por %p104, %p105
    %p107 = scmp.ne.s32.totalorder %s95, %s96
    %p108 = scmp.eq.s32.totalorder %s23, 1
    %p109 = por %p107, %p108
    %p111 = scmp.ne.s32.totalorder %s96, %s110
    %p112 = scmp.eq.s32.totalorder %s23, 0
    %p113 = por %p111, %p112
    %s115 = sadd.s32 %s114, 1
    %p118 = scmp.eq.s32.totalorder %s17, 1
    %p119 = scmp.ne.s32.totalorder %s114, %s116
    %p120 = scmp.eq.s32.totalorder %s17, 0
    %p121 = por %p119, %p120
    %p122 = scmp.ne.s32.totalorder %s114, %s116
    %p123 = scmp.eq.s32.totalorder %s22, 1
    %p124 = por %p122, %p123
    %p125 = scmp.ne.s32.totalorder %s116, %s117
    %p126 = scmp.eq.s32.totalorder %s22, 0
    %p127 = por %p125, %p126
    %p128 = scmp.ne.s32.totalorder %s116, %s117
    %p129 = scmp.eq.s32.totalorder %s23, 1
    %p130 = por %p128, %p129
    %p132 = scmp.ne.s32.totalorder %s117, %s131
    %p133 = scmp.eq.s32.totalorder %s23, 0
    %p134 = por %p132, %p133
    %s136 = sadd.s32 %s135, 1
    %p139 = scmp.eq.s32.totalorder %s17, 1
    %p140 = scmp.ne.s32.totalorder %s135, %s137
    %p141 = scmp.eq.s32.totalorder %s17, 0
    %p142 = por %p140, %p141
    %p143 = scmp.ne.s32.totalorder %s135, %s137
    %p144 = scmp.eq.s32.totalorder %s22, 1
    %p145 = por %p143, %p144
    %p146 = scmp.ne.s32.totalorder %s137, %s138
    %p147 = scmp.eq.s32.totalorder %s22, 0
    %p148 = por %p146, %p147
    %p149 = scmp.ne.s32.totalorder %s137, %s138
    %p150 = scmp.eq.s32.totalorder %s23, 1
    %p151 = por %p149, %p150
    %p153 = scmp.ne.s32.totalorder %s138, %s152
    %p154 = scmp.eq.s32.totalorder %s23, 0
    %p155 = por %p153, %p154
    %s157 = sadd.s32 %s156, 1
    %p160 = scmp.eq.s32.totalorder %s17, 1
    %p161 = scmp.ne.s32.totalorder %s156, %s158
    %p162 = scmp.eq.s32.totalorder %s17, 0
    %p163 = por %p161, %p162
    %p164 = scmp.ne.s32.totalorder %s156, %s158
    %p165 = scmp.eq.s32.totalorder %s22, 1
    %p166 = por %p164, %p165
    %p167 = scmp.ne.s32.totalorder %s158, %s159
    %p168 = scmp.eq.s32.totalorder %s22, 0
    %p169 = por %p167, %p168
    %p170 = scmp.ne.s32.totalorder %s158, %s159
    %p171 = scmp.eq.s32.totalorder %s23, 1
    %p172 = por %p170, %p171
    %p174 = scmp.ne.s32.totalorder %s159, %s173
    %p175 = scmp.eq.s32.totalorder %s23, 0
    %p176 = por %p174, %p175
    %s178 = sadd.s32 %s177, 1
    %p181 = scmp.eq.s32.totalorder %s17, 1
    %p182 = scmp.ne.s32.totalorder %s177, %s179
    %p183 = scmp.eq.s32.totalorder %s17, 0
    %p184 = por %p182, %p183
    %p185 = scmp.ne.s32.totalorder %s177, %s179
    %p186 = scmp.eq.s32.totalorder %s22, 1
    %p187 = por %p185, %p186
    %p188 = scmp.ne.s32.totalorder %s179, %s180
    %p189 = scmp.eq.s32.totalorder %s22, 0
    %p190 = por %p188, %p189
    %p191 = scmp.ne.s32.totalorder %s179, %s180
    %p192 = scmp.eq.s32.totalorder %s23, 1
    %p193 = por %p191, %p192
    %p195 = scmp.ne.s32.totalorder %s180, %s194
    %p196 = scmp.eq.s32.totalorder %s23, 0
    %p197 = por %p195, %p196
    %s199 = sadd.s32 %s198, 1
    %p202 = scmp.eq.s32.totalorder %s17, 1
    %p203 = scmp.ne.s32.totalorder %s198, %s200
    %p204 = scmp.eq.s32.totalorder %s17, 0
    %p205 = por %p203, %p204
    %p206 = scmp.ne.s32.totalorder %s198, %s200
    %p207 = scmp.eq.s32.totalorder %s22, 1
    %p208 = por %p206, %p207
    %p209 = scmp.ne.s32.totalorder %s200, %s201
    %p210 = scmp.eq.s32.totalorder %s22, 0
    %p211 = por %p209, %p210
    %p212 = scmp.ne.s32.totalorder %s200, %s201
    %p213 = scmp.eq.s32.totalorder %s23, 1
    %p214 = por %p212, %p213
    %p216 = scmp.ne.s32.totalorder %s201, %s215
    %p217 = scmp.eq.s32.totalorder %s23, 0
    %p218 = por %p216, %p217
    %s220 = sadd.s32 %s219, 1
    %p223 = scmp.eq.s32.totalorder %s17, 1
    %p224 = scmp.ne.s32.totalorder %s219, %s221
    %p225 = scmp.eq.s32.totalorder %s17, 0
    %p226 = por %p224, %p225
    %p227 = scmp.ne.s32.totalorder %s219, %s221
    %p228 = scmp.eq.s32.totalorder %s22, 1
    %p229 = por %p227, %p228
    %p230 = scmp.ne.s32.totalorder %s221, %s222
    %p231 = scmp.eq.s32.totalorder %s22, 0
    %p232 = por %p230, %p231
    %p233 = scmp.ne.s32.totalorder %s221, %s222
    %p234 = scmp.eq.s32.totalorder %s23, 1
    %p235 = por %p233, %p234
    %p237 = scmp.ne.s32.totalorder %s222, %s236
    %p238 = scmp.eq.s32.totalorder %s23, 0
    %p239 = por %p237, %p238
    %s241 = sadd.s32 %s240, 1
    %p244 = scmp.eq.s32.totalorder %s17, 1
    %p245 = scmp.ne.s32.totalorder %s240, %s242
    %p246 = scmp.eq.s32.totalorder %s17, 0
    %p247 = por %p245, %p246
    %p248 = scmp.ne.s32.totalorder %s240, %s242
    %p249 = scmp.eq.s32.totalorder %s22, 1
    %p250 = por %p248, %p249
    %p251 = scmp.ne.s32.totalorder %s242, %s243
    %p252 = scmp.eq.s32.totalorder %s22, 0
    %p253 = por %p251, %p252
    %p254 = scmp.ne.s32.totalorder %s242, %s243
    %p255 = scmp.eq.s32.totalorder %s23, 1
    %p256 = por %p254, %p255
    %p258 = scmp.ne.s32.totalorder %s243, %s257
    %p259 = scmp.eq.s32.totalorder %s23, 0
    %p260 = por %p258, %p259
    %s261 = ssub.s32 %s17, %s24
    %p262 = scmp.eq.s32.totalorder %s261, 0
    %s264 = sadd.s32 %s263, 1
    %s265 = scalar_select %p262, %s263, %s264
    %p268 = pneg %p262
    %p269 = scmp.eq.s32.totalorder %s17, 1
    %p270 = por %p268, %p269
    %p271 = scmp.ne.s32.totalorder %s263, %s266
    %p272 = scmp.eq.s32.totalorder %s17, 0
    %p273 = por %p271, %p272
    %p274 = scmp.ne.s32.totalorder %s263, %s266
    %p275 = scmp.eq.s32.totalorder %s22, 1
    %p276 = por %p274, %p275
    %p277 = scmp.ne.s32.totalorder %s266, %s267
    %p278 = scmp.eq.s32.totalorder %s22, 0
    %p279 = por %p277, %p278
    %p280 = scmp.ne.s32.totalorder %s266, %s267
    %p281 = scmp.eq.s32.totalorder %s23, 1
    %p282 = por %p280, %p281
    %p284 = scmp.ne.s32.totalorder %s267, %s283
    %p285 = scmp.eq.s32.totalorder %s23, 0
    %p286 = por %p284, %p285
    %p287 = scmp.le.s32.totalorder 1, %s17
    %p288 = scmp.lt.s32.totalorder %s17, 3
    %p289 = pnand %p287, %p288
    %p290 = pneg %p289
    // Predicated region
    $region9: #{tpu_custom_call.1} parent=5 // pred_check
      _
    $region10: #{tpu_custom_call.1} parent=5 // pred_check_branch
      %292 = sbr.rel (%p289) target = $region12
    $region11: #{tpu_custom_call.1} parent=5 // pred_region
      %s293 = ssub.s32 %s17, 1
      // Predicated region
      $region13: #{tpu_custom_call.1} parent=11 // pred_check
        %p294 = pneg %p64
      $region14: #{tpu_custom_call.1} parent=11 // pred_check_branch
        %296 = sbr.rel (%p294) target = $region16
      $region15: #{tpu_custom_call.1} parent=11 // pred_region
        _
      $region16: #{tpu_custom_call.1} parent=11 // pred_fallthru
        _
      // Predicated region
      $region17: #{tpu_custom_call.1} parent=11 // pred_check
        %p297 = pneg %p85
      $region18: #{tpu_custom_call.1} parent=11 // pred_check_branch
        %299 = sbr.rel (%p297) target = $region20
      $region19: #{tpu_custom_call.1} parent=11 // pred_region
        _
      $region20: #{tpu_custom_call.1} parent=11 // pred_fallthru
        _
      // Predicated region
      $region21: #{tpu_custom_call.1} parent=11 // pred_check
        %p300 = pneg %p106
      $region22: #{tpu_custom_call.1} parent=11 // pred_check_branch
        %302 = sbr.rel (%p300) target = $region24
      $region23: #{tpu_custom_call.1} parent=11 // pred_region
        _
      $region24: #{tpu_custom_call.1} parent=11 // pred_fallthru
        _
      // Predicated region
      $region25: #{tpu_custom_call.1} parent=11 // pred_check
        %p303 = pneg %p127
      $region26: #{tpu_custom_call.1} parent=11 // pred_check_branch
        %305 = sbr.rel (%p303) target = $region28
      $region27: #{tpu_custom_call.1} parent=11 // pred_region
        _
      $region28: #{tpu_custom_call.1} parent=11 // pred_fallthru
        _
      // Predicated region
      $region29: #{tpu_custom_call.1} parent=11 // pred_check
        %p306 = pneg %p148
      $region30: #{tpu_custom_call.1} parent=11 // pred_check_branch
        %308 = sbr.rel (%p306) target = $region32
      $region31: #{tpu_custom_call.1} parent=11 // pred_region
        _
      $region32: #{tpu_custom_call.1} parent=11 // pred_fallthru
        _
      // Predicated region
      $region33: #{tpu_custom_call.1} parent=11 // pred_check
        %p309 = pneg %p169
      $region34: #{tpu_custom_call.1} parent=11 // pred_check_branch
        %311 = sbr.rel (%p309) target = $region36
      $region35: #{tpu_custom_call.1} parent=11 // pred_region
        _
      $region36: #{tpu_custom_call.1} parent=11 // pred_fallthru
        _
      // Predicated region
      $region37: #{tpu_custom_call.1} parent=11 // pred_check
        %p312 = pneg %p190
      $region38: #{tpu_custom_call.1} parent=11 // pred_check_branch
        %314 = sbr.rel (%p312) target = $region40
      $region39: #{tpu_custom_call.1} parent=11 // pred_region
        _
      $region40: #{tpu_custom_call.1} parent=11 // pred_fallthru
        _
      // Predicated region
      $region41: #{tpu_custom_call.1} parent=11 // pred_check
        %p315 = pneg %p211
      $region42: #{tpu_custom_call.1} parent=11 // pred_check_branch
        %317 = sbr.rel (%p315) target = $region44
      $region43: #{tpu_custom_call.1} parent=11 // pred_region
        _
      $region44: #{tpu_custom_call.1} parent=11 // pred_fallthru
        _
      // Predicated region
      $region45: #{tpu_custom_call.1} parent=11 // pred_check
        %p318 = pneg %p232
      $region46: #{tpu_custom_call.1} parent=11 // pred_check_branch
        %320 = sbr.rel (%p318) target = $region48
      $region47: #{tpu_custom_call.1} parent=11 // pred_region
        _
      $region48: #{tpu_custom_call.1} parent=11 // pred_fallthru
        _
      // Predicated region
      $region49: #{tpu_custom_call.1} parent=11 // pred_check
        %p321 = pneg %p253
      $region50: #{tpu_custom_call.1} parent=11 // pred_check_branch
        %323 = sbr.rel (%p321) target = $region52
      $region51: #{tpu_custom_call.1} parent=11 // pred_region
        _
      $region52: #{tpu_custom_call.1} parent=11 // pred_fallthru
        _
    $region12: #{tpu_custom_call.1} parent=5 // pred_fallthru
      _
    %p324 = scmp.lt.s32.totalorder %s17, 2
    // Predicated region
    $region53: #{tpu_custom_call.1} parent=5 // pred_check
      %p325 = pneg %p324
    $region54: #{tpu_custom_call.1} parent=5 // pred_check_branch
      %327 = sbr.rel (%p325) target = $region56
    $region55: #{tpu_custom_call.1} parent=5 // pred_region
      // Predicated region
      $region57: #{tpu_custom_call.1} parent=55 // pred_check
        %p328 = pneg %p37
      $region58: #{tpu_custom_call.1} parent=55 // pred_check_branch
        %330 = sbr.rel (%p328) target = $region60
      $region59: #{tpu_custom_call.1} parent=55 // pred_region
        %s331 = smul.u32 64, %s17
        %p332 = scmp.lt.s32.totalorder %s331, 127
        %s333 = scalar_select %p332, %s331, 127
        %s334 = smul.addr %s333, 8
        %s335 = scalar_lea.vmem %s0, %s334
        %s336 = smul.u32 64, %s17
      $region60: #{tpu_custom_call.1} parent=55 // pred_fallthru
        _
    $region56: #{tpu_custom_call.1} parent=5 // pred_fallthru
      _
    %p337 = scmp.le.s32.totalorder 1, %s17
    %p338 = scmp.lt.s32.totalorder %s17, 3
    %p339 = pnand %p337, %p338
    %p340 = pneg %p339
    // Predicated region
    $region61: #{tpu_custom_call.1} parent=5 // pred_check
      _
    $region62: #{tpu_custom_call.1} parent=5 // pred_check_branch
      %342 = sbr.rel (%p339) target = $region64
    $region63: #{tpu_custom_call.1} parent=5 // pred_region
      %s343 = ssub.s32 %s17, 1
      %s344 = smul.u32 64, %s22
      %p345 = scmp.lt.s32.totalorder %s344, 127
      %s346 = scalar_select %p345, %s344, 127
      %s347 = smul.addr %s346, 8
      %s348 = scalar_lea.vmem %s0, %s347
      %p349 = pneg %p43
      %p350 = pneg %p40
      %p351 = pneg %p64
      %p352 = pneg %p61
      %p353 = pneg %p85
      %p354 = pneg %p82
      %p355 = pneg %p106
      %p356 = pneg %p103
      %p357 = pneg %p127
      %p358 = pneg %p124
      %p359 = pneg %p148
      %p360 = pneg %p145
      %p361 = pneg %p169
      %p362 = pneg %p166
      %p363 = pneg %p190
      %p364 = pneg %p187
      %p365 = pneg %p211
      %p366 = pneg %p208
      %p367 = pneg %p232
      %p368 = pneg %p229
      %p369 = pneg %p253
      %p370 = pneg %p250
      %p371 = pneg %p279
      %p372 = pneg %p276
      %s373 = smul.u32 64, %s22
      %p374 = scmp.lt.s32.totalorder %s373, 127
      %s375 = scalar_select %p374, %s373, 127
      %s376 = smul.addr %s375, 8
      %s377 = scalar_lea.vmem %s11, %s376
      %s378 = smul.u32 64, %s22
      %p379 = scmp.lt.s32.totalorder %s378, 127
      %s380 = scalar_select %p379, %s378, 127
      %s381 = smul.addr %s380, 8
      %s382 = scalar_lea.vmem %s0, %s381
      %s383 = smul.u32 64, %s22
      %s384 = smul.u32 64, %s22
      %p385 = scmp.lt.s32.totalorder %s384, 127
      %s386 = scalar_select %p385, %s384, 127
      %s387 = smul.addr %s386, 8
      %s388 = scalar_lea.vmem %s11, %s387
      %s389 = smul.u32 64, %s22
      %v391 = vld [vmem:[%s382] sm:$0xff]
      %v392 = vld [vmem:[%s382 + $0x8] sm:$0xff]
      %v393 = vld [vmem:[%s382 + $0x10] sm:$0xff]
      %v394 = vld [vmem:[%s382 + $0x18] sm:$0xff]
      %v395 = vld [vmem:[%s382 + $0x20] sm:$0xff]
      %v396 = vld [vmem:[%s382 + $0x28] sm:$0xff]
      %v397 = vld [vmem:[%s382 + $0x30] sm:$0xff]
      %v398 = vld [vmem:[%s382 + $0x38] sm:$0xff]
      %v399 = vld [vmem:[%s382 + $0x40] sm:$0xff]
      %v400 = vld [vmem:[%s382 + $0x48] sm:$0xff]
      %v401 = vld [vmem:[%s382 + $0x50] sm:$0xff]
      %v402 = vld [vmem:[%s382 + $0x58] sm:$0xff]
      %v403 = vld [vmem:[%s382 + $0x60] sm:$0xff]
      %v404 = vld [vmem:[%s382 + $0x68] sm:$0xff]
      %v405 = vld [vmem:[%s382 + $0x70] sm:$0xff]
      %v406 = vld [vmem:[%s382 + $0x78] sm:$0xff]
      %v407 = vld [vmem:[%s382 + $0x80] sm:$0xff]
      %v408 = vld [vmem:[%s382 + $0x88] sm:$0xff]
      %v409 = vld [vmem:[%s382 + $0x90] sm:$0xff]
      %v410 = vld [vmem:[%s382 + $0x98] sm:$0xff]
      %v411 = vld [vmem:[%s382 + $0xa0] sm:$0xff]
      %v412 = vld [vmem:[%s382 + $0xa8] sm:$0xff]
      %v413 = vld [vmem:[%s382 + $0xb0] sm:$0xff]
      %v414 = vld [vmem:[%s382 + $0xb8] sm:$0xff]
      %v415 = vld [vmem:[%s382 + $0xc0] sm:$0xff]
      %v416 = vld [vmem:[%s382 + $0xc8] sm:$0xff]
      %v417 = vld [vmem:[%s382 + $0xd0] sm:$0xff]
      %v418 = vld [vmem:[%s382 + $0xd8] sm:$0xff]
      %v419 = vld [vmem:[%s382 + $0xe0] sm:$0xff]
      %v420 = vld [vmem:[%s382 + $0xe8] sm:$0xff]
      %v421 = vld [vmem:[%s382 + $0xf0] sm:$0xff]
      %v422 = vld [vmem:[%s382 + $0xf8] sm:$0xff]
      %v423 = vld [vmem:[%s382 + $0x100] sm:$0xff]
      %v424 = vld [vmem:[%s382 + $0x108] sm:$0xff]
      %v425 = vld [vmem:[%s382 + $0x110] sm:$0xff]
      %v426 = vld [vmem:[%s382 + $0x118] sm:$0xff]
      %v427 = vld [vmem:[%s382 + $0x120] sm:$0xff]
      %v428 = vld [vmem:[%s382 + $0x128] sm:$0xff]
      %v429 = vld [vmem:[%s382 + $0x130] sm:$0xff]
      %v430 = vld [vmem:[%s382 + $0x138] sm:$0xff]
      %v431 = vld [vmem:[%s382 + $0x140] sm:$0xff]
      %v432 = vld [vmem:[%s382 + $0x148] sm:$0xff]
      %v433 = vld [vmem:[%s382 + $0x150] sm:$0xff]
      %v434 = vld [vmem:[%s382 + $0x158] sm:$0xff]
      %v435 = vld [vmem:[%s382 + $0x160] sm:$0xff]
      %v436 = vld [vmem:[%s382 + $0x168] sm:$0xff]
      %v437 = vld [vmem:[%s382 + $0x170] sm:$0xff]
      %v438 = vld [vmem:[%s382 + $0x178] sm:$0xff]
      %v439 = vld [vmem:[%s382 + $0x180] sm:$0xff]
      %v440 = vld [vmem:[%s382 + $0x188] sm:$0xff]
      %v441 = vld [vmem:[%s382 + $0x190] sm:$0xff]
      %v442 = vld [vmem:[%s382 + $0x198] sm:$0xff]
      %v443 = vld [vmem:[%s382 + $0x1a0] sm:$0xff]
      %v444 = vld [vmem:[%s382 + $0x1a8] sm:$0xff]
      %v445 = vld [vmem:[%s382 + $0x1b0] sm:$0xff]
      %v446 = vld [vmem:[%s382 + $0x1b8] sm:$0xff]
      %v447 = vld [vmem:[%s382 + $0x1c0] sm:$0xff]
      %v448 = vld [vmem:[%s382 + $0x1c8] sm:$0xff]
      %v449 = vld [vmem:[%s382 + $0x1d0] sm:$0xff]
      %v450 = vld [vmem:[%s382 + $0x1d8] sm:$0xff]
      %v451 = vld [vmem:[%s382 + $0x1e0] sm:$0xff]
      %v452 = vld [vmem:[%s382 + $0x1e8] sm:$0xff]
      %v453 = vld [vmem:[%s382 + $0x1f0] sm:$0xff]
      %v454 = vld [vmem:[%s382 + $0x1f8] sm:$0xff]
      %v455 = vld [vmem:[%s1] sm:$0x1]
      %457 = vset.pattern.permute.xlu0 0
      %458 = vperm.xlu0 %457, %v391
      %v459 = vpop.permute.xlu0 %458
      %462 = vset.pattern.permute.xlu0 0
      %463 = vperm.xlu0 %462, %v392
      %v464 = vpop.permute.xlu0 %463
      %467 = vset.pattern.permute.xlu0 0
      %468 = vperm.xlu0 %467, %v393
      %v469 = vpop.permute.xlu0 %468
      %472 = vset.pattern.permute.xlu0 0
      %473 = vperm.xlu0 %472, %v394
      %v474 = vpop.permute.xlu0 %473
      %477 = vset.pattern.permute.xlu0 0
      %478 = vperm.xlu0 %477, %v395
      %v479 = vpop.permute.xlu0 %478
      %482 = vset.pattern.permute.xlu0 0
      %483 = vperm.xlu0 %482, %v396
      %v484 = vpop.permute.xlu0 %483
      %487 = vset.pattern.permute.xlu0 0
      %488 = vperm.xlu0 %487, %v397
      %v489 = vpop.permute.xlu0 %488
      %492 = vset.pattern.permute.xlu0 0
      %493 = vperm.xlu0 %492, %v398
      %v494 = vpop.permute.xlu0 %493
      %497 = vset.pattern.permute.xlu0 0
      %498 = vperm.xlu0 %497, %v399
      %v499 = vpop.permute.xlu0 %498
      %502 = vset.pattern.permute.xlu0 0
      %503 = vperm.xlu0 %502, %v400
      %v504 = vpop.permute.xlu0 %503
      %507 = vset.pattern.permute.xlu0 0
      %508 = vperm.xlu0 %507, %v401
      %v509 = vpop.permute.xlu0 %508
      %512 = vset.pattern.permute.xlu0 0
      %513 = vperm.xlu0 %512, %v402
      %v514 = vpop.permute.xlu0 %513
      %517 = vset.pattern.permute.xlu0 0
      %518 = vperm.xlu0 %517, %v403
      %v519 = vpop.permute.xlu0 %518
      %522 = vset.pattern.permute.xlu0 0
      %523 = vperm.xlu0 %522, %v404
      %v524 = vpop.permute.xlu0 %523
      %527 = vset.pattern.permute.xlu0 0
      %528 = vperm.xlu0 %527, %v405
      %v529 = vpop.permute.xlu0 %528
      %532 = vset.pattern.permute.xlu0 0
      %533 = vperm.xlu0 %532, %v406
      %v534 = vpop.permute.xlu0 %533
      %537 = vset.pattern.permute.xlu0 0
      %538 = vperm.xlu0 %537, %v407
      %v539 = vpop.permute.xlu0 %538
      %542 = vset.pattern.permute.xlu0 0
      %543 = vperm.xlu0 %542, %v408
      %v544 = vpop.permute.xlu0 %543
      %547 = vset.pattern.permute.xlu0 0
      %548 = vperm.xlu0 %547, %v409
      %v549 = vpop.permute.xlu0 %548
      %552 = vset.pattern.permute.xlu0 0
      %553 = vperm.xlu0 %552, %v410
      %v554 = vpop.permute.xlu0 %553
      %557 = vset.pattern.permute.xlu0 0
      %558 = vperm.xlu0 %557, %v411
      %v559 = vpop.permute.xlu0 %558
      %562 = vset.pattern.permute.xlu0 0
      %563 = vperm.xlu0 %562, %v412
      %v564 = vpop.permute.xlu0 %563
      %567 = vset.pattern.permute.xlu0 0
      %568 = vperm.xlu0 %567, %v413
      %v569 = vpop.permute.xlu0 %568
      %572 = vset.pattern.permute.xlu0 0
      %573 = vperm.xlu0 %572, %v414
      %v574 = vpop.permute.xlu0 %573
      %577 = vset.pattern.permute.xlu0 0
      %578 = vperm.xlu0 %577, %v415
      %v579 = vpop.permute.xlu0 %578
      %582 = vset.pattern.permute.xlu0 0
      %583 = vperm.xlu0 %582, %v416
      %v584 = vpop.permute.xlu0 %583
      %587 = vset.pattern.permute.xlu0 0
      %588 = vperm.xlu0 %587, %v417
      %v589 = vpop.permute.xlu0 %588
      %592 = vset.pattern.permute.xlu0 0
      %593 = vperm.xlu0 %592, %v418
      %v594 = vpop.permute.xlu0 %593
      %597 = vset.pattern.permute.xlu0 0
      %598 = vperm.xlu0 %597, %v419
      %v599 = vpop.permute.xlu0 %598
      %602 = vset.pattern.permute.xlu0 0
      %603 = vperm.xlu0 %602, %v420
      %v604 = vpop.permute.xlu0 %603
      %607 = vset.pattern.permute.xlu0 0
      %608 = vperm.xlu0 %607, %v421
      %v609 = vpop.permute.xlu0 %608
      %612 = vset.pattern.permute.xlu0 0
      %613 = vperm.xlu0 %612, %v422
      %v614 = vpop.permute.xlu0 %613
      %617 = vset.pattern.permute.xlu0 0
      %618 = vperm.xlu0 %617, %v423
      %v619 = vpop.permute.xlu0 %618
      %622 = vset.pattern.permute.xlu0 0
      %623 = vperm.xlu0 %622, %v424
      %v624 = vpop.permute.xlu0 %623
      %627 = vset.pattern.permute.xlu0 0
      %628 = vperm.xlu0 %627, %v425
      %v629 = vpop.permute.xlu0 %628
      %632 = vset.pattern.permute.xlu0 0
      %633 = vperm.xlu0 %632, %v426
      %v634 = vpop.permute.xlu0 %633
      %637 = vset.pattern.permute.xlu0 0
      %638 = vperm.xlu0 %637, %v427
      %v639 = vpop.permute.xlu0 %638
      %642 = vset.pattern.permute.xlu0 0
      %643 = vperm.xlu0 %642, %v428
      %v644 = vpop.permute.xlu0 %643
      %647 = vset.pattern.permute.xlu0 0
      %648 = vperm.xlu0 %647, %v429
      %v649 = vpop.permute.xlu0 %648
      %652 = vset.pattern.permute.xlu0 0
      %653 = vperm.xlu0 %652, %v430
      %v654 = vpop.permute.xlu0 %653
      %657 = vset.pattern.permute.xlu0 0
      %658 = vperm.xlu0 %657, %v431
      %v659 = vpop.permute.xlu0 %658
      %662 = vset.pattern.permute.xlu0 0
      %663 = vperm.xlu0 %662, %v432
      %v664 = vpop.permute.xlu0 %663
      %667 = vset.pattern.permute.xlu0 0
      %668 = vperm.xlu0 %667, %v433
      %v669 = vpop.permute.xlu0 %668
      %672 = vset.pattern.permute.xlu0 0
      %673 = vperm.xlu0 %672, %v434
      %v674 = vpop.permute.xlu0 %673
      %677 = vset.pattern.permute.xlu0 0
      %678 = vperm.xlu0 %677, %v435
      %v679 = vpop.permute.xlu0 %678
      %682 = vset.pattern.permute.xlu0 0
      %683 = vperm.xlu0 %682, %v436
      %v684 = vpop.permute.xlu0 %683
      %687 = vset.pattern.permute.xlu0 0
      %688 = vperm.xlu0 %687, %v437
      %v689 = vpop.permute.xlu0 %688
      %692 = vset.pattern.permute.xlu0 0
      %693 = vperm.xlu0 %692, %v438
      %v694 = vpop.permute.xlu0 %693
      %697 = vset.pattern.permute.xlu0 0
      %698 = vperm.xlu0 %697, %v439
      %v699 = vpop.permute.xlu0 %698
      %702 = vset.pattern.permute.xlu0 0
      %703 = vperm.xlu0 %702, %v440
      %v704 = vpop.permute.xlu0 %703
      %707 = vset.pattern.permute.xlu0 0
      %708 = vperm.xlu0 %707, %v441
      %v709 = vpop.permute.xlu0 %708
      %712 = vset.pattern.permute.xlu0 0
      %713 = vperm.xlu0 %712, %v442
      %v714 = vpop.permute.xlu0 %713
      %717 = vset.pattern.permute.xlu0 0
      %718 = vperm.xlu0 %717, %v443
      %v719 = vpop.permute.xlu0 %718
      %722 = vset.pattern.permute.xlu0 0
      %723 = vperm.xlu0 %722, %v444
      %v724 = vpop.permute.xlu0 %723
      %727 = vset.pattern.permute.xlu0 0
      %728 = vperm.xlu0 %727, %v445
      %v729 = vpop.permute.xlu0 %728
      %732 = vset.pattern.permute.xlu0 0
      %733 = vperm.xlu0 %732, %v446
      %v734 = vpop.permute.xlu0 %733
      %737 = vset.pattern.permute.xlu0 0
      %738 = vperm.xlu0 %737, %v447
      %v739 = vpop.permute.xlu0 %738
      %742 = vset.pattern.permute.xlu0 0
      %743 = vperm.xlu0 %742, %v448
      %v744 = vpop.permute.xlu0 %743
      %747 = vset.pattern.permute.xlu0 0
      %748 = vperm.xlu0 %747, %v449
      %v749 = vpop.permute.xlu0 %748
      %752 = vset.pattern.permute.xlu0 0
      %753 = vperm.xlu0 %752, %v450
      %v754 = vpop.permute.xlu0 %753
      %757 = vset.pattern.permute.xlu0 0
      %758 = vperm.xlu0 %757, %v451
      %v759 = vpop.permute.xlu0 %758
      %762 = vset.pattern.permute.xlu0 0
      %763 = vperm.xlu0 %762, %v452
      %v764 = vpop.permute.xlu0 %763
      %767 = vset.pattern.permute.xlu0 0
      %768 = vperm.xlu0 %767, %v453
      %v769 = vpop.permute.xlu0 %768
      %772 = vset.pattern.permute.xlu0 0
      %773 = vperm.xlu0 %772, %v454
      %v774 = vpop.permute.xlu0 %773
      %v776 = vlaneseq
      %v777 = vshrl.u32 %v776, 7
      %v778 = vsub.s32 0, %v777
      %v779 = vrot.slane %v455, %v778
      %v780 = vmul.f32 %v459, %v779
      %v781 = vmul.f32 %v464, %v779
      %v782 = vmul.f32 %v469, %v779
      %v783 = vmul.f32 %v474, %v779
      %v784 = vmul.f32 %v479, %v779
      %v785 = vmul.f32 %v484, %v779
      %v786 = vmul.f32 %v489, %v779
      %v787 = vmul.f32 %v494, %v779
      %v788 = vmul.f32 %v499, %v779
      %v789 = vmul.f32 %v504, %v779
      %v790 = vmul.f32 %v509, %v779
      %v791 = vmul.f32 %v514, %v779
      %v792 = vmul.f32 %v519, %v779
      %v793 = vmul.f32 %v524, %v779
      %v794 = vmul.f32 %v529, %v779
      %v795 = vmul.f32 %v534, %v779
      %v796 = vmul.f32 %v539, %v779
      %v797 = vmul.f32 %v544, %v779
      %v798 = vmul.f32 %v549, %v779
      %v799 = vmul.f32 %v554, %v779
      %v800 = vmul.f32 %v559, %v779
      %v801 = vmul.f32 %v564, %v779
      %v802 = vmul.f32 %v569, %v779
      %v803 = vmul.f32 %v574, %v779
      %v804 = vmul.f32 %v579, %v779
      %v805 = vmul.f32 %v584, %v779
      %v806 = vmul.f32 %v589, %v779
      %v807 = vmul.f32 %v594, %v779
      %v808 = vmul.f32 %v599, %v779
      %v809 = vmul.f32 %v604, %v779
      %v810 = vmul.f32 %v609, %v779
      %v811 = vmul.f32 %v614, %v779
      %v812 = vmul.f32 %v619, %v779
      %v813 = vmul.f32 %v624, %v779
      %v814 = vmul.f32 %v629, %v779
      %v815 = vmul.f32 %v634, %v779
      %v816 = vmul.f32 %v639, %v779
      %v817 = vmul.f32 %v644, %v779
      %v818 = vmul.f32 %v649, %v779
      %v819 = vmul.f32 %v654, %v779
      %v820 = vmul.f32 %v659, %v779
      %v821 = vmul.f32 %v664, %v779
      %v822 = vmul.f32 %v669, %v779
      %v823 = vmul.f32 %v674, %v779
      %v824 = vmul.f32 %v679, %v779
      %v825 = vmul.f32 %v684, %v779
      %v826 = vmul.f32 %v689, %v779
      %v827 = vmul.f32 %v694, %v779
      %v828 = vmul.f32 %v699, %v779
      %v829 = vmul.f32 %v704, %v779
      %v830 = vmul.f32 %v709, %v779
      %v831 = vmul.f32 %v714, %v779
      %v832 = vmul.f32 %v719, %v779
      %v833 = vmul.f32 %v724, %v779
      %v834 = vmul.f32 %v729, %v779
      %v835 = vmul.f32 %v734, %v779
      %v836 = vmul.f32 %v739, %v779
      %v837 = vmul.f32 %v744, %v779
      %v838 = vmul.f32 %v749, %v779
      %v839 = vmul.f32 %v754, %v779
      %v840 = vmul.f32 %v759, %v779
      %v841 = vmul.f32 %v764, %v779
      %v842 = vmul.f32 %v769, %v779
      %v843 = vmul.f32 %v774, %v779
      %v844 = vld [vmem:[%s1 + $0x1] sm:$0x1]
      %845 = vset.pattern.permute.xlu0 1
      %846 = vperm.xlu0 %845, %v391
      %v847 = vpop.permute.xlu0 %846
      %849 = vset.pattern.permute.xlu0 1
      %850 = vperm.xlu0 %849, %v392
      %v851 = vpop.permute.xlu0 %850
      %853 = vset.pattern.permute.xlu0 1
      %854 = vperm.xlu0 %853, %v393
      %v855 = vpop.permute.xlu0 %854
      %857 = vset.pattern.permute.xlu0 1
      %858 = vperm.xlu0 %857, %v394
      %v859 = vpop.permute.xlu0 %858
      %861 = vset.pattern.permute.xlu0 1
      %862 = vperm.xlu0 %861, %v395
      %v863 = vpop.permute.xlu0 %862
      %865 = vset.pattern.permute.xlu0 1
      %866 = vperm.xlu0 %865, %v396
      %v867 = vpop.permute.xlu0 %866
      %869 = vset.pattern.permute.xlu0 1
      %870 = vperm.xlu0 %869, %v397
      %v871 = vpop.permute.xlu0 %870
      %873 = vset.pattern.permute.xlu0 1
      %874 = vperm.xlu0 %873, %v398
      %v875 = vpop.permute.xlu0 %874
      %877 = vset.pattern.permute.xlu0 1
      %878 = vperm.xlu0 %877, %v399
      %v879 = vpop.permute.xlu0 %878
      %881 = vset.pattern.permute.xlu0 1
      %882 = vperm.xlu0 %881, %v400
      %v883 = vpop.permute.xlu0 %882
      %885 = vset.pattern.permute.xlu0 1
      %886 = vperm.xlu0 %885, %v401
      %v887 = vpop.permute.xlu0 %886
      %889 = vset.pattern.permute.xlu0 1
      %890 = vperm.xlu0 %889, %v402
      %v891 = vpop.permute.xlu0 %890
      %893 = vset.pattern.permute.xlu0 1
      %894 = vperm.xlu0 %893, %v403
      %v895 = vpop.permute.xlu0 %894
      %897 = vset.pattern.permute.xlu0 1
      %898 = vperm.xlu0 %897, %v404
      %v899 = vpop.permute.xlu0 %898
      %901 = vset.pattern.permute.xlu0 1
      %902 = vperm.xlu0 %901, %v405
      %v903 = vpop.permute.xlu0 %902
      %905 = vset.pattern.permute.xlu0 1
      %906 = vperm.xlu0 %905, %v406
      %v907 = vpop.permute.xlu0 %906
      %909 = vset.pattern.permute.xlu0 1
      %910 = vperm.xlu0 %909, %v407
      %v911 = vpop.permute.xlu0 %910
      %913 = vset.pattern.permute.xlu0 1
      %914 = vperm.xlu0 %913, %v408
      %v915 = vpop.permute.xlu0 %914
      %917 = vset.pattern.permute.xlu0 1
      %918 = vperm.xlu0 %917, %v409
      %v919 = vpop.permute.xlu0 %918
      %921 = vset.pattern.permute.xlu0 1
      %922 = vperm.xlu0 %921, %v410
      %v923 = vpop.permute.xlu0 %922
      %925 = vset.pattern.permute.xlu0 1
      %926 = vperm.xlu0 %925, %v411
      %v927 = vpop.permute.xlu0 %926
      %929 = vset.pattern.permute.xlu0 1
      %930 = vperm.xlu0 %929, %v412
      %v931 = vpop.permute.xlu0 %930
      %933 = vset.pattern.permute.xlu0 1
      %934 = vperm.xlu0 %933, %v413
      %v935 = vpop.permute.xlu0 %934
      %937 = vset.pattern.permute.xlu0 1
      %938 = vperm.xlu0 %937, %v414
      %v939 = vpop.permute.xlu0 %938
      %941 = vset.pattern.permute.xlu0 1
      %942 = vperm.xlu0 %941, %v415
      %v943 = vpop.permute.xlu0 %942
      %945 = vset.pattern.permute.xlu0 1
      %946 = vperm.xlu0 %945, %v416
      %v947 = vpop.permute.xlu0 %946
      %949 = vset.pattern.permute.xlu0 1
      %950 = vperm.xlu0 %949, %v417
      %v951 = vpop.permute.xlu0 %950
      %953 = vset.pattern.permute.xlu0 1
      %954 = vperm.xlu0 %953, %v418
      %v955 = vpop.permute.xlu0 %954
      %957 = vset.pattern.permute.xlu0 1
      %958 = vperm.xlu0 %957, %v419
      %v959 = vpop.permute.xlu0 %958
      %961 = vset.pattern.permute.xlu0 1
      %962 = vperm.xlu0 %961, %v420
      %v963 = vpop.permute.xlu0 %962
      %965 = vset.pattern.permute.xlu0 1
      %966 = vperm.xlu0 %965, %v421
      %v967 = vpop.permute.xlu0 %966
      %969 = vset.pattern.permute.xlu0 1
      %970 = vperm.xlu0 %969, %v422
      %v971 = vpop.permute.xlu0 %970
      %973 = vset.pattern.permute.xlu0 1
      %974 = vperm.xlu0 %973, %v423
      %v975 = vpop.permute.xlu0 %974
      %977 = vset.pattern.permute.xlu0 1
      %978 = vperm.xlu0 %977, %v424
      %v979 = vpop.permute.xlu0 %978
      %981 = vset.pattern.permute.xlu0 1
      %982 = vperm.xlu0 %981, %v425
      %v983 = vpop.permute.xlu0 %982
      %985 = vset.pattern.permute.xlu0 1
      %986 = vperm.xlu0 %985, %v426
      %v987 = vpop.permute.xlu0 %986
      %989 = vset.pattern.permute.xlu0 1
      %990 = vperm.xlu0 %989, %v427
      %v991 = vpop.permute.xlu0 %990
      %993 = vset.pattern.permute.xlu0 1
      %994 = vperm.xlu0 %993, %v428
      %v995 = vpop.permute.xlu0 %994
      %997 = vset.pattern.permute.xlu0 1
      %998 = vperm.xlu0 %997, %v429
      %v999 = vpop.permute.xlu0 %998
      %1001 = vset.pattern.permute.xlu0 1
      %1002 = vperm.xlu0 %1001, %v430
      %v1003 = vpop.permute.xlu0 %1002
      %1005 = vset.pattern.permute.xlu0 1
      %1006 = vperm.xlu0 %1005, %v431
      %v1007 = vpop.permute.xlu0 %1006
      %1009 = vset.pattern.permute.xlu0 1
      %1010 = vperm.xlu0 %1009, %v432
      %v1011 = vpop.permute.xlu0 %1010
      %1013 = vset.pattern.permute.xlu0 1
      %1014 = vperm.xlu0 %1013, %v433
      %v1015 = vpop.permute.xlu0 %1014
      %1017 = vset.pattern.permute.xlu0 1
      %1018 = vperm.xlu0 %1017, %v434
      %v1019 = vpop.permute.xlu0 %1018
      %1021 = vset.pattern.permute.xlu0 1
      %1022 = vperm.xlu0 %1021, %v435
      %v1023 = vpop.permute.xlu0 %1022
      %1025 = vset.pattern.permute.xlu0 1
      %1026 = vperm.xlu0 %1025, %v436
      %v1027 = vpop.permute.xlu0 %1026
      %1029 = vset.pattern.permute.xlu0 1
      %1030 = vperm.xlu0 %1029, %v437
      %v1031 = vpop.permute.xlu0 %1030
      %1033 = vset.pattern.permute.xlu0 1
      %1034 = vperm.xlu0 %1033, %v438
      %v1035 = vpop.permute.xlu0 %1034
      %1037 = vset.pattern.permute.xlu0 1
      %1038 = vperm.xlu0 %1037, %v439
      %v1039 = vpop.permute.xlu0 %1038
      %1041 = vset.pattern.permute.xlu0 1
      %1042 = vperm.xlu0 %1041, %v440
      %v1043 = vpop.permute.xlu0 %1042
      %1045 = vset.pattern.permute.xlu0 1
      %1046 = vperm.xlu0 %1045, %v441
      %v1047 = vpop.permute.xlu0 %1046
      %1049 = vset.pattern.permute.xlu0 1
      %1050 = vperm.xlu0 %1049, %v442
      %v1051 = vpop.permute.xlu0 %1050
      %1053 = vset.pattern.permute.xlu0 1
      %1054 = vperm.xlu0 %1053, %v443
      %v1055 = vpop.permute.xlu0 %1054
      %1057 = vset.pattern.permute.xlu0 1
      %1058 = vperm.xlu0 %1057, %v444
      %v1059 = vpop.permute.xlu0 %1058
      %1061 = vset.pattern.permute.xlu0 1
      %1062 = vperm.xlu0 %1061, %v445
      %v1063 = vpop.permute.xlu0 %1062
      %1065 = vset.pattern.permute.xlu0 1
      %1066 = vperm.xlu0 %1065, %v446
      %v1067 = vpop.permute.xlu0 %1066
      %1069 = vset.pattern.permute.xlu0 1
      %1070 = vperm.xlu0 %1069, %v447
      %v1071 = vpop.permute.xlu0 %1070
      %1073 = vset.pattern.permute.xlu0 1
      %1074 = vperm.xlu0 %1073, %v448
      %v1075 = vpop.permute.xlu0 %1074
      %1077 = vset.pattern.permute.xlu0 1
      %1078 = vperm.xlu0 %1077, %v449
      %v1079 = vpop.permute.xlu0 %1078
      %1081 = vset.pattern.permute.xlu0 1
      %1082 = vperm.xlu0 %1081, %v450
      %v1083 = vpop.permute.xlu0 %1082
      %1085 = vset.pattern.permute.xlu0 1
      %1086 = vperm.xlu0 %1085, %v451
      %v1087 = vpop.permute.xlu0 %1086
      %1089 = vset.pattern.permute.xlu0 1
      %1090 = vperm.xlu0 %1089, %v452
      %v1091 = vpop.permute.xlu0 %1090
      %1093 = vset.pattern.permute.xlu0 1
      %1094 = vperm.xlu0 %1093, %v453
      %v1095 = vpop.permute.xlu0 %1094
      %1097 = vset.pattern.permute.xlu0 1
      %1098 = vperm.xlu0 %1097, %v454
      %v1099 = vpop.permute.xlu0 %1098
      %v1101 = vlaneseq
      %v1102 = vshrl.u32 %v1101, 7
      %v1103 = vsub.s32 0, %v1102
      %v1104 = vrot.slane %v844, %v1103
      %v1105 = vmul.f32 %v847, %v1104
      %v1106 = vmul.f32 %v851, %v1104
      %v1107 = vmul.f32 %v855, %v1104
      %v1108 = vmul.f32 %v859, %v1104
      %v1109 = vmul.f32 %v863, %v1104
      %v1110 = vmul.f32 %v867, %v1104
      %v1111 = vmul.f32 %v871, %v1104
      %v1112 = vmul.f32 %v875, %v1104
      %v1113 = vmul.f32 %v879, %v1104
      %v1114 = vmul.f32 %v883, %v1104
      %v1115 = vmul.f32 %v887, %v1104
      %v1116 = vmul.f32 %v891, %v1104
      %v1117 = vmul.f32 %v895, %v1104
      %v1118 = vmul.f32 %v899, %v1104
      %v1119 = vmul.f32 %v903, %v1104
      %v1120 = vmul.f32 %v907, %v1104
      %v1121 = vmul.f32 %v911, %v1104
      %v1122 = vmul.f32 %v915, %v1104
      %v1123 = vmul.f32 %v919, %v1104
      %v1124 = vmul.f32 %v923, %v1104
      %v1125 = vmul.f32 %v927, %v1104
      %v1126 = vmul.f32 %v931, %v1104
      %v1127 = vmul.f32 %v935, %v1104
      %v1128 = vmul.f32 %v939, %v1104
      %v1129 = vmul.f32 %v943, %v1104
      %v1130 = vmul.f32 %v947, %v1104
      %v1131 = vmul.f32 %v951, %v1104
      %v1132 = vmul.f32 %v955, %v1104
      %v1133 = vmul.f32 %v959, %v1104
      %v1134 = vmul.f32 %v963, %v1104
      %v1135 = vmul.f32 %v967, %v1104
      %v1136 = vmul.f32 %v971, %v1104
      %v1137 = vmul.f32 %v975, %v1104
      %v1138 = vmul.f32 %v979, %v1104
      %v1139 = vmul.f32 %v983, %v1104
      %v1140 = vmul.f32 %v987, %v1104
      %v1141 = vmul.f32 %v991, %v1104
      %v1142 = vmul.f32 %v995, %v1104
      %v1143 = vmul.f32 %v999, %v1104
      %v1144 = vmul.f32 %v1003, %v1104
      %v1145 = vmul.f32 %v1007, %v1104
      %v1146 = vmul.f32 %v1011, %v1104
      %v1147 = vmul.f32 %v1015, %v1104
      %v1148 = vmul.f32 %v1019, %v1104
      %v1149 = vmul.f32 %v1023, %v1104
      %v1150 = vmul.f32 %v1027, %v1104
      %v1151 = vmul.f32 %v1031, %v1104
      %v1152 = vmul.f32 %v1035, %v1104
      %v1153 = vmul.f32 %v1039, %v1104
      %v1154 = vmul.f32 %v1043, %v1104
      %v1155 = vmul.f32 %v1047, %v1104
      %v1156 = vmul.f32 %v1051, %v1104
      %v1157 = vmul.f32 %v1055, %v1104
      %v1158 = vmul.f32 %v1059, %v1104
      %v1159 = vmul.f32 %v1063, %v1104
      %v1160 = vmul.f32 %v1067, %v1104
      %v1161 = vmul.f32 %v1071, %v1104
      %v1162 = vmul.f32 %v1075, %v1104
      %v1163 = vmul.f32 %v1079, %v1104
      %v1164 = vmul.f32 %v1083, %v1104
      %v1165 = vmul.f32 %v1087, %v1104
      %v1166 = vmul.f32 %v1091, %v1104
      %v1167 = vmul.f32 %v1095, %v1104
      %v1168 = vmul.f32 %v1099, %v1104
      %v1169 = vadd.f32 %v780, %v1105
      %v1170 = vadd.f32 %v781, %v1106
      %v1171 = vadd.f32 %v782, %v1107
      %v1172 = vadd.f32 %v783, %v1108
      %v1173 = vadd.f32 %v784, %v1109
      %v1174 = vadd.f32 %v785, %v1110
      %v1175 = vadd.f32 %v786, %v1111
      %v1176 = vadd.f32 %v787, %v1112
      %v1177 = vadd.f32 %v788, %v1113
      %v1178 = vadd.f32 %v789, %v1114
      %v1179 = vadd.f32 %v790, %v1115
      %v1180 = vadd.f32 %v791, %v1116
      %v1181 = vadd.f32 %v792, %v1117
      %v1182 = vadd.f32 %v793, %v1118
      %v1183 = vadd.f32 %v794, %v1119
      %v1184 = vadd.f32 %v795, %v1120
      %v1185 = vadd.f32 %v796, %v1121
      %v1186 = vadd.f32 %v797, %v1122
      %v1187 = vadd.f32 %v798, %v1123
      %v1188 = vadd.f32 %v799, %v1124
      %v1189 = vadd.f32 %v800, %v1125
      %v1190 = vadd.f32 %v801, %v1126
      %v1191 = vadd.f32 %v802, %v1127
      %v1192 = vadd.f32 %v803, %v1128
      %v1193 = vadd.f32 %v804, %v1129
      %v1194 = vadd.f32 %v805, %v1130
      %v1195 = vadd.f32 %v806, %v1131
      %v1196 = vadd.f32 %v807, %v1132
      %v1197 = vadd.f32 %v808, %v1133
      %v1198 = vadd.f32 %v809, %v1134
      %v1199 = vadd.f32 %v810, %v1135
      %v1200 = vadd.f32 %v811, %v1136
      %v1201 = vadd.f32 %v812, %v1137
      %v1202 = vadd.f32 %v813, %v1138
      %v1203 = vadd.f32 %v814, %v1139
      %v1204 = vadd.f32 %v815, %v1140
      %v1205 = vadd.f32 %v816, %v1141
      %v1206 = vadd.f32 %v817, %v1142
      %v1207 = vadd.f32 %v818, %v1143
      %v1208 = vadd.f32 %v819, %v1144
      %v1209 = vadd.f32 %v820, %v1145
      %v1210 = vadd.f32 %v821, %v1146
      %v1211 = vadd.f32 %v822, %v1147
      %v1212 = vadd.f32 %v823, %v1148
      %v1213 = vadd.f32 %v824, %v1149
      %v1214 = vadd.f32 %v825, %v1150
      %v1215 = vadd.f32 %v826, %v1151
      %v1216 = vadd.f32 %v827, %v1152
      %v1217 = vadd.f32 %v828, %v1153
      %v1218 = vadd.f32 %v829, %v1154
      %v1219 = vadd.f32 %v830, %v1155
      %v1220 = vadd.f32 %v831, %v1156
      %v1221 = vadd.f32 %v832, %v1157
      %v1222 = vadd.f32 %v833, %v1158
      %v1223 = vadd.f32 %v834, %v1159
      %v1224 = vadd.f32 %v835, %v1160
      %v1225 = vadd.f32 %v836, %v1161
      %v1226 = vadd.f32 %v837, %v1162
      %v1227 = vadd.f32 %v838, %v1163
      %v1228 = vadd.f32 %v839, %v1164
      %v1229 = vadd.f32 %v840, %v1165
      %v1230 = vadd.f32 %v841, %v1166
      %v1231 = vadd.f32 %v842, %v1167
      %v1232 = vadd.f32 %v843, %v1168
      %v1233 = vld [vmem:[%s1 + $0x2] sm:$0x1]
      %1234 = vset.pattern.permute.xlu0 2
      %1235 = vperm.xlu0 %1234, %v391
      %v1236 = vpop.permute.xlu0 %1235
      %1238 = vset.pattern.permute.xlu0 2
      %1239 = vperm.xlu0 %1238, %v392
      %v1240 = vpop.permute.xlu0 %1239
      %1242 = vset.pattern.permute.xlu0 2
      %1243 = vperm.xlu0 %1242, %v393
      %v1244 = vpop.permute.xlu0 %1243
      %1246 = vset.pattern.permute.xlu0 2
      %1247 = vperm.xlu0 %1246, %v394
      %v1248 = vpop.permute.xlu0 %1247
      %1250 = vset.pattern.permute.xlu0 2
      %1251 = vperm.xlu0 %1250, %v395
      %v1252 = vpop.permute.xlu0 %1251
      %1254 = vset.pattern.permute.xlu0 2
      %1255 = vperm.xlu0 %1254, %v396
      %v1256 = vpop.permute.xlu0 %1255
      %1258 = vset.pattern.permute.xlu0 2
      %1259 = vperm.xlu0 %1258, %v397
      %v1260 = vpop.permute.xlu0 %1259
      %1262 = vset.pattern.permute.xlu0 2
      %1263 = vperm.xlu0 %1262, %v398
      %v1264 = vpop.permute.xlu0 %1263
      %1266 = vset.pattern.permute.xlu0 2
      %1267 = vperm.xlu0 %1266, %v399
      %v1268 = vpop.permute.xlu0 %1267
      %1270 = vset.pattern.permute.xlu0 2
      %1271 = vperm.xlu0 %1270, %v400
      %v1272 = vpop.permute.xlu0 %1271
      %1274 = vset.pattern.permute.xlu0 2
      %1275 = vperm.xlu0 %1274, %v401
      %v1276 = vpop.permute.xlu0 %1275
      %1278 = vset.pattern.permute.xlu0 2
      %1279 = vperm.xlu0 %1278, %v402
      %v1280 = vpop.permute.xlu0 %1279
      %1282 = vset.pattern.permute.xlu0 2
      %1283 = vperm.xlu0 %1282, %v403
      %v1284 = vpop.permute.xlu0 %1283
      %1286 = vset.pattern.permute.xlu0 2
      %1287 = vperm.xlu0 %1286, %v404
      %v1288 = vpop.permute.xlu0 %1287
      %1290 = vset.pattern.permute.xlu0 2
      %1291 = vperm.xlu0 %1290, %v405
      %v1292 = vpop.permute.xlu0 %1291
      %1294 = vset.pattern.permute.xlu0 2
      %1295 = vperm.xlu0 %1294, %v406
      %v1296 = vpop.permute.xlu0 %1295
      %1298 = vset.pattern.permute.xlu0 2
      %1299 = vperm.xlu0 %1298, %v407
      %v1300 = vpop.permute.xlu0 %1299
      %1302 = vset.pattern.permute.xlu0 2
      %1303 = vperm.xlu0 %1302, %v408
      %v1304 = vpop.permute.xlu0 %1303
      %1306 = vset.pattern.permute.xlu0 2
      %1307 = vperm.xlu0 %1306, %v409
      %v1308 = vpop.permute.xlu0 %1307
      %1310 = vset.pattern.permute.xlu0 2
      %1311 = vperm.xlu0 %1310, %v410
      %v1312 = vpop.permute.xlu0 %1311
      %1314 = vset.pattern.permute.xlu0 2
      %1315 = vperm.xlu0 %1314, %v411
      %v1316 = vpop.permute.xlu0 %1315
      %1318 = vset.pattern.permute.xlu0 2
      %1319 = vperm.xlu0 %1318, %v412
      %v1320 = vpop.permute.xlu0 %1319
      %1322 = vset.pattern.permute.xlu0 2
      %1323 = vperm.xlu0 %1322, %v413
      %v1324 = vpop.permute.xlu0 %1323
      %1326 = vset.pattern.permute.xlu0 2
      %1327 = vperm.xlu0 %1326, %v414
      %v1328 = vpop.permute.xlu0 %1327
      %1330 = vset.pattern.permute.xlu0 2
      %1331 = vperm.xlu0 %1330, %v415
      %v1332 = vpop.permute.xlu0 %1331
      %1334 = vset.pattern.permute.xlu0 2
      %1335 = vperm.xlu0 %1334, %v416
      %v1336 = vpop.permute.xlu0 %1335
      %1338 = vset.pattern.permute.xlu0 2
      %1339 = vperm.xlu0 %1338, %v417
      %v1340 = vpop.permute.xlu0 %1339
      %1342 = vset.pattern.permute.xlu0 2
      %1343 = vperm.xlu0 %1342, %v418
      %v1344 = vpop.permute.xlu0 %1343
      %1346 = vset.pattern.permute.xlu0 2
      %1347 = vperm.xlu0 %1346, %v419
      %v1348 = vpop.permute.xlu0 %1347
      %1350 = vset.pattern.permute.xlu0 2
      %1351 = vperm.xlu0 %1350, %v420
      %v1352 = vpop.permute.xlu0 %1351
      %1354 = vset.pattern.permute.xlu0 2
      %1355 = vperm.xlu0 %1354, %v421
      %v1356 = vpop.permute.xlu0 %1355
      %1358 = vset.pattern.permute.xlu0 2
      %1359 = vperm.xlu0 %1358, %v422
      %v1360 = vpop.permute.xlu0 %1359
      %1362 = vset.pattern.permute.xlu0 2
      %1363 = vperm.xlu0 %1362, %v423
      %v1364 = vpop.permute.xlu0 %1363
      %1366 = vset.pattern.permute.xlu0 2
      %1367 = vperm.xlu0 %1366, %v424
      %v1368 = vpop.permute.xlu0 %1367
      %1370 = vset.pattern.permute.xlu0 2
      %1371 = vperm.xlu0 %1370, %v425
      %v1372 = vpop.permute.xlu0 %1371
      %1374 = vset.pattern.permute.xlu0 2
      %1375 = vperm.xlu0 %1374, %v426
      %v1376 = vpop.permute.xlu0 %1375
      %1378 = vset.pattern.permute.xlu0 2
      %1379 = vperm.xlu0 %1378, %v427
      %v1380 = vpop.permute.xlu0 %1379
      %1382 = vset.pattern.permute.xlu0 2
      %1383 = vperm.xlu0 %1382, %v428
      %v1384 = vpop.permute.xlu0 %1383
      %1386 = vset.pattern.permute.xlu0 2
      %1387 = vperm.xlu0 %1386, %v429
      %v1388 = vpop.permute.xlu0 %1387
      %1390 = vset.pattern.permute.xlu0 2
      %1391 = vperm.xlu0 %1390, %v430
      %v1392 = vpop.permute.xlu0 %1391
      %1394 = vset.pattern.permute.xlu0 2
      %1395 = vperm.xlu0 %1394, %v431
      %v1396 = vpop.permute.xlu0 %1395
      %1398 = vset.pattern.permute.xlu0 2
      %1399 = vperm.xlu0 %1398, %v432
      %v1400 = vpop.permute.xlu0 %1399
      %1402 = vset.pattern.permute.xlu0 2
      %1403 = vperm.xlu0 %1402, %v433
      %v1404 = vpop.permute.xlu0 %1403
      %1406 = vset.pattern.permute.xlu0 2
      %1407 = vperm.xlu0 %1406, %v434
      %v1408 = vpop.permute.xlu0 %1407
      %1410 = vset.pattern.permute.xlu0 2
      %1411 = vperm.xlu0 %1410, %v435
      %v1412 = vpop.permute.xlu0 %1411
      %1414 = vset.pattern.permute.xlu0 2
      %1415 = vperm.xlu0 %1414, %v436
      %v1416 = vpop.permute.xlu0 %1415
      %1418 = vset.pattern.permute.xlu0 2
      %1419 = vperm.xlu0 %1418, %v437
      %v1420 = vpop.permute.xlu0 %1419
      %1422 = vset.pattern.permute.xlu0 2
      %1423 = vperm.xlu0 %1422, %v438
      %v1424 = vpop.permute.xlu0 %1423
      %1426 = vset.pattern.permute.xlu0 2
      %1427 = vperm.xlu0 %1426, %v439
      %v1428 = vpop.permute.xlu0 %1427
      %1430 = vset.pattern.permute.xlu0 2
      %1431 = vperm.xlu0 %1430, %v440
      %v1432 = vpop.permute.xlu0 %1431
      %1434 = vset.pattern.permute.xlu0 2
      %1435 = vperm.xlu0 %1434, %v441
      %v1436 = vpop.permute.xlu0 %1435
      %1438 = vset.pattern.permute.xlu0 2
      %1439 = vperm.xlu0 %1438, %v442
      %v1440 = vpop.permute.xlu0 %1439
      %1442 = vset.pattern.permute.xlu0 2
      %1443 = vperm.xlu0 %1442, %v443
      %v1444 = vpop.permute.xlu0 %1443
      %1446 = vset.pattern.permute.xlu0 2
      %1447 = vperm.xlu0 %1446, %v444
      %v1448 = vpop.permute.xlu0 %1447
      %1450 = vset.pattern.permute.xlu0 2
      %1451 = vperm.xlu0 %1450, %v445
      %v1452 = vpop.permute.xlu0 %1451
      %1454 = vset.pattern.permute.xlu0 2
      %1455 = vperm.xlu0 %1454, %v446
      %v1456 = vpop.permute.xlu0 %1455
      %1458 = vset.pattern.permute.xlu0 2
      %1459 = vperm.xlu0 %1458, %v447
      %v1460 = vpop.permute.xlu0 %1459
      %1462 = vset.pattern.permute.xlu0 2
      %1463 = vperm.xlu0 %1462, %v448
      %v1464 = vpop.permute.xlu0 %1463
      %1466 = vset.pattern.permute.xlu0 2
      %1467 = vperm.xlu0 %1466, %v449
      %v1468 = vpop.permute.xlu0 %1467
      %1470 = vset.pattern.permute.xlu0 2
      %1471 = vperm.xlu0 %1470, %v450
      %v1472 = vpop.permute.xlu0 %1471
      %1474 = vset.pattern.permute.xlu0 2
      %1475 = vperm.xlu0 %1474, %v451
      %v1476 = vpop.permute.xlu0 %1475
      %1478 = vset.pattern.permute.xlu0 2
      %1479 = vperm.xlu0 %1478, %v452
      %v1480 = vpop.permute.xlu0 %1479
      %1482 = vset.pattern.permute.xlu0 2
      %1483 = vperm.xlu0 %1482, %v453
      %v1484 = vpop.permute.xlu0 %1483
      %1486 = vset.pattern.permute.xlu0 2
      %1487 = vperm.xlu0 %1486, %v454
      %v1488 = vpop.permute.xlu0 %1487
      %v1490 = vlaneseq
      %v1491 = vshrl.u32 %v1490, 7
      %v1492 = vsub.s32 0, %v1491
      %v1493 = vrot.slane %v1233, %v1492
      %v1494 = vmul.f32 %v1236, %v1493
      %v1495 = vmul.f32 %v1240, %v1493
      %v1496 = vmul.f32 %v1244, %v1493
      %v1497 = vmul.f32 %v1248, %v1493
      %v1498 = vmul.f32 %v1252, %v1493
      %v1499 = vmul.f32 %v1256, %v1493
      %v1500 = vmul.f32 %v1260, %v1493
      %v1501 = vmul.f32 %v1264, %v1493
      %v1502 = vmul.f32 %v1268, %v1493
      %v1503 = vmul.f32 %v1272, %v1493
      %v1504 = vmul.f32 %v1276, %v1493
      %v1505 = vmul.f32 %v1280, %v1493
      %v1506 = vmul.f32 %v1284, %v1493
      %v1507 = vmul.f32 %v1288, %v1493
      %v1508 = vmul.f32 %v1292, %v1493
      %v1509 = vmul.f32 %v1296, %v1493
      %v1510 = vmul.f32 %v1300, %v1493
      %v1511 = vmul.f32 %v1304, %v1493
      %v1512 = vmul.f32 %v1308, %v1493
      %v1513 = vmul.f32 %v1312, %v1493
      %v1514 = vmul.f32 %v1316, %v1493
      %v1515 = vmul.f32 %v1320, %v1493
      %v1516 = vmul.f32 %v1324, %v1493
      %v1517 = vmul.f32 %v1328, %v1493
      %v1518 = vmul.f32 %v1332, %v1493
      %v1519 = vmul.f32 %v1336, %v1493
      %v1520 = vmul.f32 %v1340, %v1493
      %v1521 = vmul.f32 %v1344, %v1493
      %v1522 = vmul.f32 %v1348, %v1493
      %v1523 = vmul.f32 %v1352, %v1493
      %v1524 = vmul.f32 %v1356, %v1493
      %v1525 = vmul.f32 %v1360, %v1493
      %v1526 = vmul.f32 %v1364, %v1493
      %v1527 = vmul.f32 %v1368, %v1493
      %v1528 = vmul.f32 %v1372, %v1493
      %v1529 = vmul.f32 %v1376, %v1493
      %v1530 = vmul.f32 %v1380, %v1493
      %v1531 = vmul.f32 %v1384, %v1493
      %v1532 = vmul.f32 %v1388, %v1493
      %v1533 = vmul.f32 %v1392, %v1493
      %v1534 = vmul.f32 %v1396, %v1493
      %v1535 = vmul.f32 %v1400, %v1493
      %v1536 = vmul.f32 %v1404, %v1493
      %v1537 = vmul.f32 %v1408, %v1493
      %v1538 = vmul.f32 %v1412, %v1493
      %v1539 = vmul.f32 %v1416, %v1493
      %v1540 = vmul.f32 %v1420, %v1493
      %v1541 = vmul.f32 %v1424, %v1493
      %v1542 = vmul.f32 %v1428, %v1493
      %v1543 = vmul.f32 %v1432, %v1493
      %v1544 = vmul.f32 %v1436, %v1493
      %v1545 = vmul.f32 %v1440, %v1493
      %v1546 = vmul.f32 %v1444, %v1493
      %v1547 = vmul.f32 %v1448, %v1493
      %v1548 = vmul.f32 %v1452, %v1493
      %v1549 = vmul.f32 %v1456, %v1493
      %v1550 = vmul.f32 %v1460, %v1493
      %v1551 = vmul.f32 %v1464, %v1493
      %v1552 = vmul.f32 %v1468, %v1493
      %v1553 = vmul.f32 %v1472, %v1493
      %v1554 = vmul.f32 %v1476, %v1493
      %v1555 = vmul.f32 %v1480, %v1493
      %v1556 = vmul.f32 %v1484, %v1493
      %v1557 = vmul.f32 %v1488, %v1493
      %v1558 = vadd.f32 %v1169, %v1494
      %v1559 = vadd.f32 %v1170, %v1495
      %v1560 = vadd.f32 %v1171, %v1496
      %v1561 = vadd.f32 %v1172, %v1497
      %v1562 = vadd.f32 %v1173, %v1498
      %v1563 = vadd.f32 %v1174, %v1499
      %v1564 = vadd.f32 %v1175, %v1500
      %v1565 = vadd.f32 %v1176, %v1501
      %v1566 = vadd.f32 %v1177, %v1502
      %v1567 = vadd.f32 %v1178, %v1503
      %v1568 = vadd.f32 %v1179, %v1504
      %v1569 = vadd.f32 %v1180, %v1505
      %v1570 = vadd.f32 %v1181, %v1506
      %v1571 = vadd.f32 %v1182, %v1507
      %v1572 = vadd.f32 %v1183, %v1508
      %v1573 = vadd.f32 %v1184, %v1509
      %v1574 = vadd.f32 %v1185, %v1510
      %v1575 = vadd.f32 %v1186, %v1511
      %v1576 = vadd.f32 %v1187, %v1512
      %v1577 = vadd.f32 %v1188, %v1513
      %v1578 = vadd.f32 %v1189, %v1514
      %v1579 = vadd.f32 %v1190, %v1515
      %v1580 = vadd.f32 %v1191, %v1516
      %v1581 = vadd.f32 %v1192, %v1517
      %v1582 = vadd.f32 %v1193, %v1518
      %v1583 = vadd.f32 %v1194, %v1519
      %v1584 = vadd.f32 %v1195, %v1520
      %v1585 = vadd.f32 %v1196, %v1521
      %v1586 = vadd.f32 %v1197, %v1522
      %v1587 = vadd.f32 %v1198, %v1523
      %v1588 = vadd.f32 %v1199, %v1524
      %v1589 = vadd.f32 %v1200, %v1525
      %v1590 = vadd.f32 %v1201, %v1526
      %v1591 = vadd.f32 %v1202, %v1527
      %v1592 = vadd.f32 %v1203, %v1528
      %v1593 = vadd.f32 %v1204, %v1529
      %v1594 = vadd.f32 %v1205, %v1530
      %v1595 = vadd.f32 %v1206, %v1531
      %v1596 = vadd.f32 %v1207, %v1532
      %v1597 = vadd.f32 %v1208, %v1533
      %v1598 = vadd.f32 %v1209, %v1534
      %v1599 = vadd.f32 %v1210, %v1535
      %v1600 = vadd.f32 %v1211, %v1536
      %v1601 = vadd.f32 %v1212, %v1537
      %v1602 = vadd.f32 %v1213, %v1538
      %v1603 = vadd.f32 %v1214, %v1539
      %v1604 = vadd.f32 %v1215, %v1540
      %v1605 = vadd.f32 %v1216, %v1541
      %v1606 = vadd.f32 %v1217, %v1542
      %v1607 = vadd.f32 %v1218, %v1543
      %v1608 = vadd.f32 %v1219, %v1544
      %v1609 = vadd.f32 %v1220, %v1545
      %v1610 = vadd.f32 %v1221, %v1546
      %v1611 = vadd.f32 %v1222, %v1547
      %v1612 = vadd.f32 %v1223, %v1548
      %v1613 = vadd.f32 %v1224, %v1549
      %v1614 = vadd.f32 %v1225, %v1550
      %v1615 = vadd.f32 %v1226, %v1551
      %v1616 = vadd.f32 %v1227, %v1552
      %v1617 = vadd.f32 %v1228, %v1553
      %v1618 = vadd.f32 %v1229, %v1554
      %v1619 = vadd.f32 %v1230, %v1555
      %v1620 = vadd.f32 %v1231, %v1556
      %v1621 = vadd.f32 %v1232, %v1557
      %v1622 = vld [vmem:[%s2] sm:$0x1]
      %v1624 = vlaneseq
      %v1625 = vshrl.u32 %v1624, 7
      %v1626 = vsub.s32 0, %v1625
      %v1627 = vrot.slane %v1622, %v1626
      %v1629 = vadd.f32 %v1558, %v1627
      %v1630 = vadd.f32 %v1559, %v1627
      %v1631 = vadd.f32 %v1560, %v1627
      %v1632 = vadd.f32 %v1561, %v1627
      %v1633 = vadd.f32 %v1562, %v1627
      %v1634 = vadd.f32 %v1563, %v1627
      %v1635 = vadd.f32 %v1564, %v1627
      %v1636 = vadd.f32 %v1565, %v1627
      %v1637 = vadd.f32 %v1566, %v1627
      %v1638 = vadd.f32 %v1567, %v1627
      %v1639 = vadd.f32 %v1568, %v1627
      %v1640 = vadd.f32 %v1569, %v1627
      %v1641 = vadd.f32 %v1570, %v1627
      %v1642 = vadd.f32 %v1571, %v1627
      %v1643 = vadd.f32 %v1572, %v1627
      %v1644 = vadd.f32 %v1573, %v1627
      %v1645 = vadd.f32 %v1574, %v1627
      %v1646 = vadd.f32 %v1575, %v1627
      %v1647 = vadd.f32 %v1576, %v1627
      %v1648 = vadd.f32 %v1577, %v1627
      %v1649 = vadd.f32 %v1578, %v1627
      %v1650 = vadd.f32 %v1579, %v1627
      %v1651 = vadd.f32 %v1580, %v1627
      %v1652 = vadd.f32 %v1581, %v1627
      %v1653 = vadd.f32 %v1582, %v1627
      %v1654 = vadd.f32 %v1583, %v1627
      %v1655 = vadd.f32 %v1584, %v1627
      %v1656 = vadd.f32 %v1585, %v1627
      %v1657 = vadd.f32 %v1586, %v1627
      %v1658 = vadd.f32 %v1587, %v1627
      %v1659 = vadd.f32 %v1588, %v1627
      %v1660 = vadd.f32 %v1589, %v1627
      %v1661 = vadd.f32 %v1590, %v1627
      %v1662 = vadd.f32 %v1591, %v1627
      %v1663 = vadd.f32 %v1592, %v1627
      %v1664 = vadd.f32 %v1593, %v1627
      %v1665 = vadd.f32 %v1594, %v1627
      %v1666 = vadd.f32 %v1595, %v1627
      %v1667 = vadd.f32 %v1596, %v1627
      %v1668 = vadd.f32 %v1597, %v1627
      %v1669 = vadd.f32 %v1598, %v1627
      %v1670 = vadd.f32 %v1599, %v1627
      %v1671 = vadd.f32 %v1600, %v1627
      %v1672 = vadd.f32 %v1601, %v1627
      %v1673 = vadd.f32 %v1602, %v1627
      %v1674 = vadd.f32 %v1603, %v1627
      %v1675 = vadd.f32 %v1604, %v1627
      %v1676 = vadd.f32 %v1605, %v1627
      %v1677 = vadd.f32 %v1606, %v1627
      %v1678 = vadd.f32 %v1607, %v1627
      %v1679 = vadd.f32 %v1608, %v1627
      %v1680 = vadd.f32 %v1609, %v1627
      %v1681 = vadd.f32 %v1610, %v1627
      %v1682 = vadd.f32 %v1611, %v1627
      %v1683 = vadd.f32 %v1612, %v1627
      %v1684 = vadd.f32 %v1613, %v1627
      %v1685 = vadd.f32 %v1614, %v1627
      %v1686 = vadd.f32 %v1615, %v1627
      %v1687 = vadd.f32 %v1616, %v1627
      %v1688 = vadd.f32 %v1617, %v1627
      %v1689 = vadd.f32 %v1618, %v1627
      %v1690 = vadd.f32 %v1619, %v1627
      %v1691 = vadd.f32 %v1620, %v1627
      %v1692 = vadd.f32 %v1621, %v1627
      %v1693 = vlaneseq
      %v1694 = vand.u32 %v1693, 127
      %vm1695 = vcmp.lt.s32.totalorder %v1694, 60
      %v1696 = vand.u32 2147483647, %v1629
      %vm1697 = vcmp.le.f32.partialorder %v1696, 0.7853982
      %vm1698 = vcmp.lt.s32.totalorder %v1629, 0
      %v1699 = vand.u32 %v1629, 2139095040
      %v1700 = vshrl.u32 %v1699, 23
      %v1701 = vsub.s32 %v1700, 127
      %v1702 = vand.u32 2147483647, %v1629
      %v1703 = vand.u32 %v1702, 8388607
      %v1704 = vor.u32 %v1703, 8388608
      %v1705 = vsub.s32 0, %v1704
      %v1706 = vadd.s32 %v1701, 1
      %vm1707 = vcmp.gt.s32.totalorder %v1706, 0
      %v1708 = vsel %vm1707, %v1706, 0
      %v1709 = vshrl.u32 %v1708, 5
      %v1710 = vand.u32 %v1708, 31
      %v1711 = vsub.s32 32, %v1710
      %v1712 = vshrl.u32 683565275, %v1711
      %v1713 = vshll.u32 683565275, %v1710
      %v1714 = vshrl.u32 2475754826, %v1711
      %v1715 = vor.u32 %v1713, %v1714
      %v1716 = vshll.u32 2475754826, %v1710
      %v1717 = vshrl.u32 2131351028, %v1711
      %v1718 = vor.u32 %v1716, %v1717
      %v1719 = vshll.u32 2131351028, %v1710
      %v1720 = vshrl.u32 2102212464, %v1711
      %v1721 = vor.u32 %v1719, %v1720
      %v1722 = vshll.u32 2102212464, %v1710
      %v1723 = vshrl.u32 920167782, %v1711
      %v1724 = vor.u32 %v1722, %v1723
      %v1725 = vshll.u32 920167782, %v1710
      %v1726 = vshrl.u32 1326507024, %v1711
      %v1727 = vor.u32 %v1725, %v1726
      %vm1728 = vcmp.lt.s32.totalorder %v1709, 1
      %vm1729 = vcmp.lt.s32.totalorder %v1709, 2
      %vm1730 = vcmp.lt.s32.totalorder %v1709, 3
      %vm1731 = vcmp.lt.s32.totalorder %v1709, 4
      %v1732 = vsel %vm1728, %v1712, %v1715
      %v1733 = vsel %vm1731, %v1721, 2102212464
      %v1734 = vsel %vm1730, %v1718, %v1733
      %v1735 = vsel %vm1729, %v1732, %v1734
      %v1736 = vsel %vm1728, %v1715, %v1718
      %v1737 = vsel %vm1731, %v1724, 920167782
      %v1738 = vsel %vm1730, %v1721, %v1737
      %v1739 = vsel %vm1729, %v1736, %v1738
      %v1740 = vsel %vm1728, %v1718, %v1721
      %v1741 = vsel %vm1731, %v1727, 1326507024
      %v1742 = vsel %vm1730, %v1724, %v1741
      %v1743 = vsel %vm1729, %v1740, %v1742
      %v1744 = vshll.u32 %v1704, 8
      %v1745 = vmul.u32.u64.compose %v1744, %v1743
      %v1746 = vextract.low.u32 %v1745
      %v1747 = vextract.high.u32 %v1745
      %v1748 = vmul.u32.u64.compose %v1744, %v1739
      %v1749 = vextract.low.u32 %v1748
      %v1750 = vextract.high.u32 %v1748
      %v1751 = vmul.u32 %v1744, %v1735
      %v1752 = vadd.s32 %v1747, %v1749
      %vm1753 = vc.u32 %v1747, %v1749
      %v1754 = vadd.s32 %v1750, 1
      %v1755 = vsel %vm1753, %v1754, %v1750
      %v1756 = vadd.s32 %v1751, %v1755
      %v1757 = vadd.s32 %v1756, 536870912
      %v1758 = vshrl.u32 %v1757, 30
      %v1759 = vshll.u32 %v1758, 30
      %v1760 = vsub.s32 %v1756, %v1759
      %vm1761 = vcmp.lt.s32.totalorder %v1760, 0
      %v1762 = vsub.s32 0, %v1760
      %v1763 = vsel %vm1761, %v1762, %v1760
      %v1764 = vclz %v1763
      %v1765 = vsub.s32 %v1764, 2
      %vm1766 = vcmp.gt.s32.totalorder 0, %v1765
      %v1767 = vsel %vm1766, 0, %v1765
      %v1768 = vsub.s32 32, %v1767
      %v1769 = vshll.u32 %v1760, %v1767
      %v1770 = vshrl.u32 %v1752, %v1768
      %v1771 = vor.u32 %v1769, %v1770
      %v1772 = vsub.s32 4294967266, %v1767
      %v1773 = vadd.s32 %v1772, 127
      %v1774 = vshll.u32 %v1773, 23
      %v1775 = vor.u32 4788187, %v1774
      %v1776 = vand.u32 2147483647, %v1775
      %v1778 = vcvt.s32.f32 %v1771
      %v1779 = vmul.f32 %v1778, %v1776
      %v1780 = vxor.u32 %v1779, 2147483648
      %v1781 = vsel %vm1698, %v1780, %v1779
      %v1782 = vsub.s32 4, %v1758
      %v1783 = vsel %vm1698, %v1782, %v1758
      %v1784 = vsel %vm1697, %v1629, %v1781
      %v1785 = vsel %vm1697, 0, %v1783
      %v1786 = vcosq.f32.pop %v1784
      %v1787 = vsinq.f32.pop %v1784
      %vm1788 = vweird.f32 %v1629
      %v1789 = vadd.s32 %v1785, 3
      %v1790 = vand.u32 %v1789, 3
      %vm1791 = vcmp.lt.s32.totalorder %v1790, 2
      %vm1792 = vcmp.eq.s32.totalorder %v1790, 0
      %v1793 = vxor.u32 %v1787, 2147483648
      %v1794 = vsel %vm1792, %v1786, %v1793
      %vm1795 = vcmp.eq.s32.totalorder %v1790, 2
      %v1796 = vxor.u32 %v1786, 2147483648
      %v1797 = vsel %vm1795, %v1796, %v1787
      %v1798 = vsel %vm1791, %v1794, %v1797
      %v1799 = vsel %vm1788, nan, %v1798
      %v1800 = vand.u32 2147483647, %v1630
      %vm1801 = vcmp.le.f32.partialorder %v1800, 0.7853982
      %vm1802 = vcmp.lt.s32.totalorder %v1630, 0
      %v1803 = vand.u32 %v1630, 2139095040
      %v1804 = vshrl.u32 %v1803, 23
      %v1805 = vsub.s32 %v1804, 127
      %v1806 = vand.u32 2147483647, %v1630
      %v1807 = vand.u32 %v1806, 8388607
      %v1808 = vor.u32 %v1807, 8388608
      %v1809 = vsub.s32 0, %v1808
      %v1810 = vadd.s32 %v1805, 1
      %vm1811 = vcmp.gt.s32.totalorder %v1810, 0
      %v1812 = vsel %vm1811, %v1810, 0
      %v1813 = vshrl.u32 %v1812, 5
      %v1814 = vand.u32 %v1812, 31
      %v1815 = vsub.s32 32, %v1814
      %v1816 = vshrl.u32 683565275, %v1815
      %v1817 = vshll.u32 683565275, %v1814
      %v1818 = vshrl.u32 2475754826, %v1815
      %v1819 = vor.u32 %v1817, %v1818
      %v1820 = vshll.u32 2475754826, %v1814
      %v1821 = vshrl.u32 2131351028, %v1815
      %v1822 = vor.u32 %v1820, %v1821
      %v1823 = vshll.u32 2131351028, %v1814
      %v1824 = vshrl.u32 2102212464, %v1815
      %v1825 = vor.u32 %v1823, %v1824
      %v1826 = vshll.u32 2102212464, %v1814
      %v1827 = vshrl.u32 920167782, %v1815
      %v1828 = vor.u32 %v1826, %v1827
      %v1829 = vshll.u32 920167782, %v1814
      %v1830 = vshrl.u32 1326507024, %v1815
      %v1831 = vor.u32 %v1829, %v1830
      %vm1832 = vcmp.lt.s32.totalorder %v1813, 1
      %vm1833 = vcmp.lt.s32.totalorder %v1813, 2
      %vm1834 = vcmp.lt.s32.totalorder %v1813, 3
      %vm1835 = vcmp.lt.s32.totalorder %v1813, 4
      %v1836 = vsel %vm1832, %v1816, %v1819
      %v1837 = vsel %vm1835, %v1825, 2102212464
      %v1838 = vsel %vm1834, %v1822, %v1837
      %v1839 = vsel %vm1833, %v1836, %v1838
      %v1840 = vsel %vm1832, %v1819, %v1822
      %v1841 = vsel %vm1835, %v1828, 920167782
      %v1842 = vsel %vm1834, %v1825, %v1841
      %v1843 = vsel %vm1833, %v1840, %v1842
      %v1844 = vsel %vm1832, %v1822, %v1825
      %v1845 = vsel %vm1835, %v1831, 1326507024
      %v1846 = vsel %vm1834, %v1828, %v1845
      %v1847 = vsel %vm1833, %v1844, %v1846
      %v1848 = vshll.u32 %v1808, 8
      %v1849 = vmul.u32.u64.compose %v1848, %v1847
      %v1850 = vextract.low.u32 %v1849
      %v1851 = vextract.high.u32 %v1849
      %v1852 = vmul.u32.u64.compose %v1848, %v1843
      %v1853 = vextract.low.u32 %v1852
      %v1854 = vextract.high.u32 %v1852
      %v1855 = vmul.u32 %v1848, %v1839
      %v1856 = vadd.s32 %v1851, %v1853
      %vm1857 = vc.u32 %v1851, %v1853
      %v1858 = vadd.s32 %v1854, 1
      %v1859 = vsel %vm1857, %v1858, %v1854
      %v1860 = vadd.s32 %v1855, %v1859
      %v1861 = vadd.s32 %v1860, 536870912
      %v1862 = vshrl.u32 %v1861, 30
      %v1863 = vshll.u32 %v1862, 30
      %v1864 = vsub.s32 %v1860, %v1863
      %vm1865 = vcmp.lt.s32.totalorder %v1864, 0
      %v1866 = vsub.s32 0, %v1864
      %v1867 = vsel %vm1865, %v1866, %v1864
      %v1868 = vclz %v1867
      %v1869 = vsub.s32 %v1868, 2
      %vm1870 = vcmp.gt.s32.totalorder 0, %v1869
      %v1871 = vsel %vm1870, 0, %v1869
      %v1872 = vsub.s32 32, %v1871
      %v1873 = vshll.u32 %v1864, %v1871
      %v1874 = vshrl.u32 %v1856, %v1872
      %v1875 = vor.u32 %v1873, %v1874
      %v1876 = vsub.s32 4294967266, %v1871
      %v1877 = vadd.s32 %v1876, 127
      %v1878 = vshll.u32 %v1877, 23
      %v1879 = vor.u32 4788187, %v1878
      %v1880 = vand.u32 2147483647, %v1879
      %v1882 = vcvt.s32.f32 %v1875
      %v1883 = vmul.f32 %v1882, %v1880
      %v1884 = vxor.u32 %v1883, 2147483648
      %v1885 = vsel %vm1802, %v1884, %v1883
      %v1886 = vsub.s32 4, %v1862
      %v1887 = vsel %vm1802, %v1886, %v1862
      %v1888 = vsel %vm1801, %v1630, %v1885
      %v1889 = vsel %vm1801, 0, %v1887
      %v1890 = vcosq.f32.pop %v1888
      %v1891 = vsinq.f32.pop %v1888
      %vm1892 = vweird.f32 %v1630
      %v1893 = vadd.s32 %v1889, 3
      %v1894 = vand.u32 %v1893, 3
      %vm1895 = vcmp.lt.s32.totalorder %v1894, 2
      %vm1896 = vcmp.eq.s32.totalorder %v1894, 0
      %v1897 = vxor.u32 %v1891, 2147483648
      %v1898 = vsel %vm1896, %v1890, %v1897
      %vm1899 = vcmp.eq.s32.totalorder %v1894, 2
      %v1900 = vxor.u32 %v1890, 2147483648
      %v1901 = vsel %vm1899, %v1900, %v1891
      %v1902 = vsel %vm1895, %v1898, %v1901
      %v1903 = vsel %vm1892, nan, %v1902
      %v1904 = vand.u32 2147483647, %v1631
      %vm1905 = vcmp.le.f32.partialorder %v1904, 0.7853982
      %vm1906 = vcmp.lt.s32.totalorder %v1631, 0
      %v1907 = vand.u32 %v1631, 2139095040
      %v1908 = vshrl.u32 %v1907, 23
      %v1909 = vsub.s32 %v1908, 127
      %v1910 = vand.u32 2147483647, %v1631
      %v1911 = vand.u32 %v1910, 8388607
      %v1912 = vor.u32 %v1911, 8388608
      %v1913 = vsub.s32 0, %v1912
      %v1914 = vadd.s32 %v1909, 1
      %vm1915 = vcmp.gt.s32.totalorder %v1914, 0
      %v1916 = vsel %vm1915, %v1914, 0
      %v1917 = vshrl.u32 %v1916, 5
      %v1918 = vand.u32 %v1916, 31
      %v1919 = vsub.s32 32, %v1918
      %v1920 = vshrl.u32 683565275, %v1919
      %v1921 = vshll.u32 683565275, %v1918
      %v1922 = vshrl.u32 2475754826, %v1919
      %v1923 = vor.u32 %v1921, %v1922
      %v1924 = vshll.u32 2475754826, %v1918
      %v1925 = vshrl.u32 2131351028, %v1919
      %v1926 = vor.u32 %v1924, %v1925
      %v1927 = vshll.u32 2131351028, %v1918
      %v1928 = vshrl.u32 2102212464, %v1919
      %v1929 = vor.u32 %v1927, %v1928
      %v1930 = vshll.u32 2102212464, %v1918
      %v1931 = vshrl.u32 920167782, %v1919
      %v1932 = vor.u32 %v1930, %v1931
      %v1933 = vshll.u32 920167782, %v1918
      %v1934 = vshrl.u32 1326507024, %v1919
      %v1935 = vor.u32 %v1933, %v1934
      %vm1936 = vcmp.lt.s32.totalorder %v1917, 1
      %vm1937 = vcmp.lt.s32.totalorder %v1917, 2
      %vm1938 = vcmp.lt.s32.totalorder %v1917, 3
      %vm1939 = vcmp.lt.s32.totalorder %v1917, 4
      %v1940 = vsel %vm1936, %v1920, %v1923
      %v1941 = vsel %vm1939, %v1929, 2102212464
      %v1942 = vsel %vm1938, %v1926, %v1941
      %v1943 = vsel %vm1937, %v1940, %v1942
      %v1944 = vsel %vm1936, %v1923, %v1926
      %v1945 = vsel %vm1939, %v1932, 920167782
      %v1946 = vsel %vm1938, %v1929, %v1945
      %v1947 = vsel %vm1937, %v1944, %v1946
      %v1948 = vsel %vm1936, %v1926, %v1929
      %v1949 = vsel %vm1939, %v1935, 1326507024
      %v1950 = vsel %vm1938, %v1932, %v1949
      %v1951 = vsel %vm1937, %v1948, %v1950
      %v1952 = vshll.u32 %v1912, 8
      %v1953 = vmul.u32.u64.compose %v1952, %v1951
      %v1954 = vextract.low.u32 %v1953
      %v1955 = vextract.high.u32 %v1953
      %v1956 = vmul.u32.u64.compose %v1952, %v1947
      %v1957 = vextract.low.u32 %v1956
      %v1958 = vextract.high.u32 %v1956
      %v1959 = vmul.u32 %v1952, %v1943
      %v1960 = vadd.s32 %v1955, %v1957
      %vm1961 = vc.u32 %v1955, %v1957
      %v1962 = vadd.s32 %v1958, 1
      %v1963 = vsel %vm1961, %v1962, %v1958
      %v1964 = vadd.s32 %v1959, %v1963
      %v1965 = vadd.s32 %v1964, 536870912
      %v1966 = vshrl.u32 %v1965, 30
      %v1967 = vshll.u32 %v1966, 30
      %v1968 = vsub.s32 %v1964, %v1967
      %vm1969 = vcmp.lt.s32.totalorder %v1968, 0
      %v1970 = vsub.s32 0, %v1968
      %v1971 = vsel %vm1969, %v1970, %v1968
      %v1972 = vclz %v1971
      %v1973 = vsub.s32 %v1972, 2
      %vm1974 = vcmp.gt.s32.totalorder 0, %v1973
      %v1975 = vsel %vm1974, 0, %v1973
      %v1976 = vsub.s32 32, %v1975
      %v1977 = vshll.u32 %v1968, %v1975
      %v1978 = vshrl.u32 %v1960, %v1976
      %v1979 = vor.u32 %v1977, %v1978
      %v1980 = vsub.s32 4294967266, %v1975
      %v1981 = vadd.s32 %v1980, 127
      %v1982 = vshll.u32 %v1981, 23
      %v1983 = vor.u32 4788187, %v1982
      %v1984 = vand.u32 2147483647, %v1983
      %v1986 = vcvt.s32.f32 %v1979
      %v1987 = vmul.f32 %v1986, %v1984
      %v1988 = vxor.u32 %v1987, 2147483648
      %v1989 = vsel %vm1906, %v1988, %v1987
      %v1990 = vsub.s32 4, %v1966
      %v1991 = vsel %vm1906, %v1990, %v1966
      %v1992 = vsel %vm1905, %v1631, %v1989
      %v1993 = vsel %vm1905, 0, %v1991
      %v1994 = vcosq.f32.pop %v1992
      %v1995 = vsinq.f32.pop %v1992
      %vm1996 = vweird.f32 %v1631
      %v1997 = vadd.s32 %v1993, 3
      %v1998 = vand.u32 %v1997, 3
      %vm1999 = vcmp.lt.s32.totalorder %v1998, 2
      %vm2000 = vcmp.eq.s32.totalorder %v1998, 0
      %v2001 = vxor.u32 %v1995, 2147483648
      %v2002 = vsel %vm2000, %v1994, %v2001
      %vm2003 = vcmp.eq.s32.totalorder %v1998, 2
      %v2004 = vxor.u32 %v1994, 2147483648
      %v2005 = vsel %vm2003, %v2004, %v1995
      %v2006 = vsel %vm1999, %v2002, %v2005
      %v2007 = vsel %vm1996, nan, %v2006
      %v2008 = vand.u32 2147483647, %v1632
      %vm2009 = vcmp.le.f32.partialorder %v2008, 0.7853982
      %vm2010 = vcmp.lt.s32.totalorder %v1632, 0
      %v2011 = vand.u32 %v1632, 2139095040
      %v2012 = vshrl.u32 %v2011, 23
      %v2013 = vsub.s32 %v2012, 127
      %v2014 = vand.u32 2147483647, %v1632
      %v2015 = vand.u32 %v2014, 8388607
      %v2016 = vor.u32 %v2015, 8388608
      %v2017 = vsub.s32 0, %v2016
      %v2018 = vadd.s32 %v2013, 1
      %vm2019 = vcmp.gt.s32.totalorder %v2018, 0
      %v2020 = vsel %vm2019, %v2018, 0
      %v2021 = vshrl.u32 %v2020, 5
      %v2022 = vand.u32 %v2020, 31
      %v2023 = vsub.s32 32, %v2022
      %v2024 = vshrl.u32 683565275, %v2023
      %v2025 = vshll.u32 683565275, %v2022
      %v2026 = vshrl.u32 2475754826, %v2023
      %v2027 = vor.u32 %v2025, %v2026
      %v2028 = vshll.u32 2475754826, %v2022
      %v2029 = vshrl.u32 2131351028, %v2023
      %v2030 = vor.u32 %v2028, %v2029
      %v2031 = vshll.u32 2131351028, %v2022
      %v2032 = vshrl.u32 2102212464, %v2023
      %v2033 = vor.u32 %v2031, %v2032
      %v2034 = vshll.u32 2102212464, %v2022
      %v2035 = vshrl.u32 920167782, %v2023
      %v2036 = vor.u32 %v2034, %v2035
      %v2037 = vshll.u32 920167782, %v2022
      %v2038 = vshrl.u32 1326507024, %v2023
      %v2039 = vor.u32 %v2037, %v2038
      %vm2040 = vcmp.lt.s32.totalorder %v2021, 1
      %vm2041 = vcmp.lt.s32.totalorder %v2021, 2
      %vm2042 = vcmp.lt.s32.totalorder %v2021, 3
      %vm2043 = vcmp.lt.s32.totalorder %v2021, 4
      %v2044 = vsel %vm2040, %v2024, %v2027
      %v2045 = vsel %vm2043, %v2033, 2102212464
      %v2046 = vsel %vm2042, %v2030, %v2045
      %v2047 = vsel %vm2041, %v2044, %v2046
      %v2048 = vsel %vm2040, %v2027, %v2030
      %v2049 = vsel %vm2043, %v2036, 920167782
      %v2050 = vsel %vm2042, %v2033, %v2049
      %v2051 = vsel %vm2041, %v2048, %v2050
      %v2052 = vsel %vm2040, %v2030, %v2033
      %v2053 = vsel %vm2043, %v2039, 1326507024
      %v2054 = vsel %vm2042, %v2036, %v2053
      %v2055 = vsel %vm2041, %v2052, %v2054
      %v2056 = vshll.u32 %v2016, 8
      %v2057 = vmul.u32.u64.compose %v2056, %v2055
      %v2058 = vextract.low.u32 %v2057
      %v2059 = vextract.high.u32 %v2057
      %v2060 = vmul.u32.u64.compose %v2056, %v2051
      %v2061 = vextract.low.u32 %v2060
      %v2062 = vextract.high.u32 %v2060
      %v2063 = vmul.u32 %v2056, %v2047
      %v2064 = vadd.s32 %v2059, %v2061
      %vm2065 = vc.u32 %v2059, %v2061
      %v2066 = vadd.s32 %v2062, 1
      %v2067 = vsel %vm2065, %v2066, %v2062
      %v2068 = vadd.s32 %v2063, %v2067
      %v2069 = vadd.s32 %v2068, 536870912
      %v2070 = vshrl.u32 %v2069, 30
      %v2071 = vshll.u32 %v2070, 30
      %v2072 = vsub.s32 %v2068, %v2071
      %vm2073 = vcmp.lt.s32.totalorder %v2072, 0
      %v2074 = vsub.s32 0, %v2072
      %v2075 = vsel %vm2073, %v2074, %v2072
      %v2076 = vclz %v2075
      %v2077 = vsub.s32 %v2076, 2
      %vm2078 = vcmp.gt.s32.totalorder 0, %v2077
      %v2079 = vsel %vm2078, 0, %v2077
      %v2080 = vsub.s32 32, %v2079
      %v2081 = vshll.u32 %v2072, %v2079
      %v2082 = vshrl.u32 %v2064, %v2080
      %v2083 = vor.u32 %v2081, %v2082
      %v2084 = vsub.s32 4294967266, %v2079
      %v2085 = vadd.s32 %v2084, 127
      %v2086 = vshll.u32 %v2085, 23
      %v2087 = vor.u32 4788187, %v2086
      %v2088 = vand.u32 2147483647, %v2087
      %v2090 = vcvt.s32.f32 %v2083
      %v2091 = vmul.f32 %v2090, %v2088
      %v2092 = vxor.u32 %v2091, 2147483648
      %v2093 = vsel %vm2010, %v2092, %v2091
      %v2094 = vsub.s32 4, %v2070
      %v2095 = vsel %vm2010, %v2094, %v2070
      %v2096 = vsel %vm2009, %v1632, %v2093
      %v2097 = vsel %vm2009, 0, %v2095
      %v2098 = vcosq.f32.pop %v2096
      %v2099 = vsinq.f32.pop %v2096
      %vm2100 = vweird.f32 %v1632
      %v2101 = vadd.s32 %v2097, 3
      %v2102 = vand.u32 %v2101, 3
      %vm2103 = vcmp.lt.s32.totalorder %v2102, 2
      %vm2104 = vcmp.eq.s32.totalorder %v2102, 0
      %v2105 = vxor.u32 %v2099, 2147483648
      %v2106 = vsel %vm2104, %v2098, %v2105
      %vm2107 = vcmp.eq.s32.totalorder %v2102, 2
      %v2108 = vxor.u32 %v2098, 2147483648
      %v2109 = vsel %vm2107, %v2108, %v2099
      %v2110 = vsel %vm2103, %v2106, %v2109
      %v2111 = vsel %vm2100, nan, %v2110
      %v2112 = vand.u32 2147483647, %v1633
      %vm2113 = vcmp.le.f32.partialorder %v2112, 0.7853982
      %vm2114 = vcmp.lt.s32.totalorder %v1633, 0
      %v2115 = vand.u32 %v1633, 2139095040
      %v2116 = vshrl.u32 %v2115, 23
      %v2117 = vsub.s32 %v2116, 127
      %v2118 = vand.u32 2147483647, %v1633
      %v2119 = vand.u32 %v2118, 8388607
      %v2120 = vor.u32 %v2119, 8388608
      %v2121 = vsub.s32 0, %v2120
      %v2122 = vadd.s32 %v2117, 1
      %vm2123 = vcmp.gt.s32.totalorder %v2122, 0
      %v2124 = vsel %vm2123, %v2122, 0
      %v2125 = vshrl.u32 %v2124, 5
      %v2126 = vand.u32 %v2124, 31
      %v2127 = vsub.s32 32, %v2126
      %v2128 = vshrl.u32 683565275, %v2127
      %v2129 = vshll.u32 683565275, %v2126
      %v2130 = vshrl.u32 2475754826, %v2127
      %v2131 = vor.u32 %v2129, %v2130
      %v2132 = vshll.u32 2475754826, %v2126
      %v2133 = vshrl.u32 2131351028, %v2127
      %v2134 = vor.u32 %v2132, %v2133
      %v2135 = vshll.u32 2131351028, %v2126
      %v2136 = vshrl.u32 2102212464, %v2127
      %v2137 = vor.u32 %v2135, %v2136
      %v2138 = vshll.u32 2102212464, %v2126
      %v2139 = vshrl.u32 920167782, %v2127
      %v2140 = vor.u32 %v2138, %v2139
      %v2141 = vshll.u32 920167782, %v2126
      %v2142 = vshrl.u32 1326507024, %v2127
      %v2143 = vor.u32 %v2141, %v2142
      %vm2144 = vcmp.lt.s32.totalorder %v2125, 1
      %vm2145 = vcmp.lt.s32.totalorder %v2125, 2
      %vm2146 = vcmp.lt.s32.totalorder %v2125, 3
      %vm2147 = vcmp.lt.s32.totalorder %v2125, 4
      %v2148 = vsel %vm2144, %v2128, %v2131
      %v2149 = vsel %vm2147, %v2137, 2102212464
      %v2150 = vsel %vm2146, %v2134, %v2149
      %v2151 = vsel %vm2145, %v2148, %v2150
      %v2152 = vsel %vm2144, %v2131, %v2134
      %v2153 = vsel %vm2147, %v2140, 920167782
      %v2154 = vsel %vm2146, %v2137, %v2153
      %v2155 = vsel %vm2145, %v2152, %v2154
      %v2156 = vsel %vm2144, %v2134, %v2137
      %v2157 = vsel %vm2147, %v2143, 1326507024
      %v2158 = vsel %vm2146, %v2140, %v2157
      %v2159 = vsel %vm2145, %v2156, %v2158
      %v2160 = vshll.u32 %v2120, 8
      %v2161 = vmul.u32.u64.compose %v2160, %v2159
      %v2162 = vextract.low.u32 %v2161
      %v2163 = vextract.high.u32 %v2161
      %v2164 = vmul.u32.u64.compose %v2160, %v2155
      %v2165 = vextract.low.u32 %v2164
      %v2166 = vextract.high.u32 %v2164
      %v2167 = vmul.u32 %v2160, %v2151
      %v2168 = vadd.s32 %v2163, %v2165
      %vm2169 = vc.u32 %v2163, %v2165
      %v2170 = vadd.s32 %v2166, 1
      %v2171 = vsel %vm2169, %v2170, %v2166
      %v2172 = vadd.s32 %v2167, %v2171
      %v2173 = vadd.s32 %v2172, 536870912
      %v2174 = vshrl.u32 %v2173, 30
      %v2175 = vshll.u32 %v2174, 30
      %v2176 = vsub.s32 %v2172, %v2175
      %vm2177 = vcmp.lt.s32.totalorder %v2176, 0
      %v2178 = vsub.s32 0, %v2176
      %v2179 = vsel %vm2177, %v2178, %v2176
      %v2180 = vclz %v2179
      %v2181 = vsub.s32 %v2180, 2
      %vm2182 = vcmp.gt.s32.totalorder 0, %v2181
      %v2183 = vsel %vm2182, 0, %v2181
      %v2184 = vsub.s32 32, %v2183
      %v2185 = vshll.u32 %v2176, %v2183
      %v2186 = vshrl.u32 %v2168, %v2184
      %v2187 = vor.u32 %v2185, %v2186
      %v2188 = vsub.s32 4294967266, %v2183
      %v2189 = vadd.s32 %v2188, 127
      %v2190 = vshll.u32 %v2189, 23
      %v2191 = vor.u32 4788187, %v2190
      %v2192 = vand.u32 2147483647, %v2191
      %v2194 = vcvt.s32.f32 %v2187
      %v2195 = vmul.f32 %v2194, %v2192
      %v2196 = vxor.u32 %v2195, 2147483648
      %v2197 = vsel %vm2114, %v2196, %v2195
      %v2198 = vsub.s32 4, %v2174
      %v2199 = vsel %vm2114, %v2198, %v2174
      %v2200 = vsel %vm2113, %v1633, %v2197
      %v2201 = vsel %vm2113, 0, %v2199
      %v2202 = vcosq.f32.pop %v2200
      %v2203 = vsinq.f32.pop %v2200
      %vm2204 = vweird.f32 %v1633
      %v2205 = vadd.s32 %v2201, 3
      %v2206 = vand.u32 %v2205, 3
      %vm2207 = vcmp.lt.s32.totalorder %v2206, 2
      %vm2208 = vcmp.eq.s32.totalorder %v2206, 0
      %v2209 = vxor.u32 %v2203, 2147483648
      %v2210 = vsel %vm2208, %v2202, %v2209
      %vm2211 = vcmp.eq.s32.totalorder %v2206, 2
      %v2212 = vxor.u32 %v2202, 2147483648
      %v2213 = vsel %vm2211, %v2212, %v2203
      %v2214 = vsel %vm2207, %v2210, %v2213
      %v2215 = vsel %vm2204, nan, %v2214
      %v2216 = vand.u32 2147483647, %v1634
      %vm2217 = vcmp.le.f32.partialorder %v2216, 0.7853982
      %vm2218 = vcmp.lt.s32.totalorder %v1634, 0
      %v2219 = vand.u32 %v1634, 2139095040
      %v2220 = vshrl.u32 %v2219, 23
      %v2221 = vsub.s32 %v2220, 127
      %v2222 = vand.u32 2147483647, %v1634
      %v2223 = vand.u32 %v2222, 8388607
      %v2224 = vor.u32 %v2223, 8388608
      %v2225 = vsub.s32 0, %v2224
      %v2226 = vadd.s32 %v2221, 1
      %vm2227 = vcmp.gt.s32.totalorder %v2226, 0
      %v2228 = vsel %vm2227, %v2226, 0
      %v2229 = vshrl.u32 %v2228, 5
      %v2230 = vand.u32 %v2228, 31
      %v2231 = vsub.s32 32, %v2230
      %v2232 = vshrl.u32 683565275, %v2231
      %v2233 = vshll.u32 683565275, %v2230
      %v2234 = vshrl.u32 2475754826, %v2231
      %v2235 = vor.u32 %v2233, %v2234
      %v2236 = vshll.u32 2475754826, %v2230
      %v2237 = vshrl.u32 2131351028, %v2231
      %v2238 = vor.u32 %v2236, %v2237
      %v2239 = vshll.u32 2131351028, %v2230
      %v2240 = vshrl.u32 2102212464, %v2231
      %v2241 = vor.u32 %v2239, %v2240
      %v2242 = vshll.u32 2102212464, %v2230
      %v2243 = vshrl.u32 920167782, %v2231
      %v2244 = vor.u32 %v2242, %v2243
      %v2245 = vshll.u32 920167782, %v2230
      %v2246 = vshrl.u32 1326507024, %v2231
      %v2247 = vor.u32 %v2245, %v2246
      %vm2248 = vcmp.lt.s32.totalorder %v2229, 1
      %vm2249 = vcmp.lt.s32.totalorder %v2229, 2
      %vm2250 = vcmp.lt.s32.totalorder %v2229, 3
      %vm2251 = vcmp.lt.s32.totalorder %v2229, 4
      %v2252 = vsel %vm2248, %v2232, %v2235
      %v2253 = vsel %vm2251, %v2241, 2102212464
      %v2254 = vsel %vm2250, %v2238, %v2253
      %v2255 = vsel %vm2249, %v2252, %v2254
      %v2256 = vsel %vm2248, %v2235, %v2238
      %v2257 = vsel %vm2251, %v2244, 920167782
      %v2258 = vsel %vm2250, %v2241, %v2257
      %v2259 = vsel %vm2249, %v2256, %v2258
      %v2260 = vsel %vm2248, %v2238, %v2241
      %v2261 = vsel %vm2251, %v2247, 1326507024
      %v2262 = vsel %vm2250, %v2244, %v2261
      %v2263 = vsel %vm2249, %v2260, %v2262
      %v2264 = vshll.u32 %v2224, 8
      %v2265 = vmul.u32.u64.compose %v2264, %v2263
      %v2266 = vextract.low.u32 %v2265
      %v2267 = vextract.high.u32 %v2265
      %v2268 = vmul.u32.u64.compose %v2264, %v2259
      %v2269 = vextract.low.u32 %v2268
      %v2270 = vextract.high.u32 %v2268
      %v2271 = vmul.u32 %v2264, %v2255
      %v2272 = vadd.s32 %v2267, %v2269
      %vm2273 = vc.u32 %v2267, %v2269
      %v2274 = vadd.s32 %v2270, 1
      %v2275 = vsel %vm2273, %v2274, %v2270
      %v2276 = vadd.s32 %v2271, %v2275
      %v2277 = vadd.s32 %v2276, 536870912
      %v2278 = vshrl.u32 %v2277, 30
      %v2279 = vshll.u32 %v2278, 30
      %v2280 = vsub.s32 %v2276, %v2279
      %vm2281 = vcmp.lt.s32.totalorder %v2280, 0
      %v2282 = vsub.s32 0, %v2280
      %v2283 = vsel %vm2281, %v2282, %v2280
      %v2284 = vclz %v2283
      %v2285 = vsub.s32 %v2284, 2
      %vm2286 = vcmp.gt.s32.totalorder 0, %v2285
      %v2287 = vsel %vm2286, 0, %v2285
      %v2288 = vsub.s32 32, %v2287
      %v2289 = vshll.u32 %v2280, %v2287
      %v2290 = vshrl.u32 %v2272, %v2288
      %v2291 = vor.u32 %v2289, %v2290
      %v2292 = vsub.s32 4294967266, %v2287
      %v2293 = vadd.s32 %v2292, 127
      %v2294 = vshll.u32 %v2293, 23
      %v2295 = vor.u32 4788187, %v2294
      %v2296 = vand.u32 2147483647, %v2295
      %v2298 = vcvt.s32.f32 %v2291
      %v2299 = vmul.f32 %v2298, %v2296
      %v2300 = vxor.u32 %v2299, 2147483648
      %v2301 = vsel %vm2218, %v2300, %v2299
      %v2302 = vsub.s32 4, %v2278
      %v2303 = vsel %vm2218, %v2302, %v2278
      %v2304 = vsel %vm2217, %v1634, %v2301
      %v2305 = vsel %vm2217, 0, %v2303
      %v2306 = vcosq.f32.pop %v2304
      %v2307 = vsinq.f32.pop %v2304
      %vm2308 = vweird.f32 %v1634
      %v2309 = vadd.s32 %v2305, 3
      %v2310 = vand.u32 %v2309, 3
      %vm2311 = vcmp.lt.s32.totalorder %v2310, 2
      %vm2312 = vcmp.eq.s32.totalorder %v2310, 0
      %v2313 = vxor.u32 %v2307, 2147483648
      %v2314 = vsel %vm2312, %v2306, %v2313
      %vm2315 = vcmp.eq.s32.totalorder %v2310, 2
      %v2316 = vxor.u32 %v2306, 2147483648
      %v2317 = vsel %vm2315, %v2316, %v2307
      %v2318 = vsel %vm2311, %v2314, %v2317
      %v2319 = vsel %vm2308, nan, %v2318
      %v2320 = vand.u32 2147483647, %v1635
      %vm2321 = vcmp.le.f32.partialorder %v2320, 0.7853982
      %vm2322 = vcmp.lt.s32.totalorder %v1635, 0
      %v2323 = vand.u32 %v1635, 2139095040
      %v2324 = vshrl.u32 %v2323, 23
      %v2325 = vsub.s32 %v2324, 127
      %v2326 = vand.u32 2147483647, %v1635
      %v2327 = vand.u32 %v2326, 8388607
      %v2328 = vor.u32 %v2327, 8388608
      %v2329 = vsub.s32 0, %v2328
      %v2330 = vadd.s32 %v2325, 1
      %vm2331 = vcmp.gt.s32.totalorder %v2330, 0
      %v2332 = vsel %vm2331, %v2330, 0
      %v2333 = vshrl.u32 %v2332, 5
      %v2334 = vand.u32 %v2332, 31
      %v2335 = vsub.s32 32, %v2334
      %v2336 = vshrl.u32 683565275, %v2335
      %v2337 = vshll.u32 683565275, %v2334
      %v2338 = vshrl.u32 2475754826, %v2335
      %v2339 = vor.u32 %v2337, %v2338
      %v2340 = vshll.u32 2475754826, %v2334
      %v2341 = vshrl.u32 2131351028, %v2335
      %v2342 = vor.u32 %v2340, %v2341
      %v2343 = vshll.u32 2131351028, %v2334
      %v2344 = vshrl.u32 2102212464, %v2335
      %v2345 = vor.u32 %v2343, %v2344
      %v2346 = vshll.u32 2102212464, %v2334
      %v2347 = vshrl.u32 920167782, %v2335
      %v2348 = vor.u32 %v2346, %v2347
      %v2349 = vshll.u32 920167782, %v2334
      %v2350 = vshrl.u32 1326507024, %v2335
      %v2351 = vor.u32 %v2349, %v2350
      %vm2352 = vcmp.lt.s32.totalorder %v2333, 1
      %vm2353 = vcmp.lt.s32.totalorder %v2333, 2
      %vm2354 = vcmp.lt.s32.totalorder %v2333, 3
      %vm2355 = vcmp.lt.s32.totalorder %v2333, 4
      %v2356 = vsel %vm2352, %v2336, %v2339
      %v2357 = vsel %vm2355, %v2345, 2102212464
      %v2358 = vsel %vm2354, %v2342, %v2357
      %v2359 = vsel %vm2353, %v2356, %v2358
      %v2360 = vsel %vm2352, %v2339, %v2342
      %v2361 = vsel %vm2355, %v2348, 920167782
      %v2362 = vsel %vm2354, %v2345, %v2361
      %v2363 = vsel %vm2353, %v2360, %v2362
      %v2364 = vsel %vm2352, %v2342, %v2345
      %v2365 = vsel %vm2355, %v2351, 1326507024
      %v2366 = vsel %vm2354, %v2348, %v2365
      %v2367 = vsel %vm2353, %v2364, %v2366
      %v2368 = vshll.u32 %v2328, 8
      %v2369 = vmul.u32.u64.compose %v2368, %v2367
      %v2370 = vextract.low.u32 %v2369
      %v2371 = vextract.high.u32 %v2369
      %v2372 = vmul.u32.u64.compose %v2368, %v2363
      %v2373 = vextract.low.u32 %v2372
      %v2374 = vextract.high.u32 %v2372
      %v2375 = vmul.u32 %v2368, %v2359
      %v2376 = vadd.s32 %v2371, %v2373
      %vm2377 = vc.u32 %v2371, %v2373
      %v2378 = vadd.s32 %v2374, 1
      %v2379 = vsel %vm2377, %v2378, %v2374
      %v2380 = vadd.s32 %v2375, %v2379
      %v2381 = vadd.s32 %v2380, 536870912
      %v2382 = vshrl.u32 %v2381, 30
      %v2383 = vshll.u32 %v2382, 30
      %v2384 = vsub.s32 %v2380, %v2383
      %vm2385 = vcmp.lt.s32.totalorder %v2384, 0
      %v2386 = vsub.s32 0, %v2384
      %v2387 = vsel %vm2385, %v2386, %v2384
      %v2388 = vclz %v2387
      %v2389 = vsub.s32 %v2388, 2
      %vm2390 = vcmp.gt.s32.totalorder 0, %v2389
      %v2391 = vsel %vm2390, 0, %v2389
      %v2392 = vsub.s32 32, %v2391
      %v2393 = vshll.u32 %v2384, %v2391
      %v2394 = vshrl.u32 %v2376, %v2392
      %v2395 = vor.u32 %v2393, %v2394
      %v2396 = vsub.s32 4294967266, %v2391
      %v2397 = vadd.s32 %v2396, 127
      %v2398 = vshll.u32 %v2397, 23
      %v2399 = vor.u32 4788187, %v2398
      %v2400 = vand.u32 2147483647, %v2399
      %v2402 = vcvt.s32.f32 %v2395
      %v2403 = vmul.f32 %v2402, %v2400
      %v2404 = vxor.u32 %v2403, 2147483648
      %v2405 = vsel %vm2322, %v2404, %v2403
      %v2406 = vsub.s32 4, %v2382
      %v2407 = vsel %vm2322, %v2406, %v2382
      %v2408 = vsel %vm2321, %v1635, %v2405
      %v2409 = vsel %vm2321, 0, %v2407
      %v2410 = vcosq.f32.pop %v2408
      %v2411 = vsinq.f32.pop %v2408
      %vm2412 = vweird.f32 %v1635
      %v2413 = vadd.s32 %v2409, 3
      %v2414 = vand.u32 %v2413, 3
      %vm2415 = vcmp.lt.s32.totalorder %v2414, 2
      %vm2416 = vcmp.eq.s32.totalorder %v2414, 0
      %v2417 = vxor.u32 %v2411, 2147483648
      %v2418 = vsel %vm2416, %v2410, %v2417
      %vm2419 = vcmp.eq.s32.totalorder %v2414, 2
      %v2420 = vxor.u32 %v2410, 2147483648
      %v2421 = vsel %vm2419, %v2420, %v2411
      %v2422 = vsel %vm2415, %v2418, %v2421
      %v2423 = vsel %vm2412, nan, %v2422
      %v2424 = vand.u32 2147483647, %v1636
      %vm2425 = vcmp.le.f32.partialorder %v2424, 0.7853982
      %vm2426 = vcmp.lt.s32.totalorder %v1636, 0
      %v2427 = vand.u32 %v1636, 2139095040
      %v2428 = vshrl.u32 %v2427, 23
      %v2429 = vsub.s32 %v2428, 127
      %v2430 = vand.u32 2147483647, %v1636
      %v2431 = vand.u32 %v2430, 8388607
      %v2432 = vor.u32 %v2431, 8388608
      %v2433 = vsub.s32 0, %v2432
      %v2434 = vadd.s32 %v2429, 1
      %vm2435 = vcmp.gt.s32.totalorder %v2434, 0
      %v2436 = vsel %vm2435, %v2434, 0
      %v2437 = vshrl.u32 %v2436, 5
      %v2438 = vand.u32 %v2436, 31
      %v2439 = vsub.s32 32, %v2438
      %v2440 = vshrl.u32 683565275, %v2439
      %v2441 = vshll.u32 683565275, %v2438
      %v2442 = vshrl.u32 2475754826, %v2439
      %v2443 = vor.u32 %v2441, %v2442
      %v2444 = vshll.u32 2475754826, %v2438
      %v2445 = vshrl.u32 2131351028, %v2439
      %v2446 = vor.u32 %v2444, %v2445
      %v2447 = vshll.u32 2131351028, %v2438
      %v2448 = vshrl.u32 2102212464, %v2439
      %v2449 = vor.u32 %v2447, %v2448
      %v2450 = vshll.u32 2102212464, %v2438
      %v2451 = vshrl.u32 920167782, %v2439
      %v2452 = vor.u32 %v2450, %v2451
      %v2453 = vshll.u32 920167782, %v2438
      %v2454 = vshrl.u32 1326507024, %v2439
      %v2455 = vor.u32 %v2453, %v2454
      %vm2456 = vcmp.lt.s32.totalorder %v2437, 1
      %vm2457 = vcmp.lt.s32.totalorder %v2437, 2
      %vm2458 = vcmp.lt.s32.totalorder %v2437, 3
      %vm2459 = vcmp.lt.s32.totalorder %v2437, 4
      %v2460 = vsel %vm2456, %v2440, %v2443
      %v2461 = vsel %vm2459, %v2449, 2102212464
      %v2462 = vsel %vm2458, %v2446, %v2461
      %v2463 = vsel %vm2457, %v2460, %v2462
      %v2464 = vsel %vm2456, %v2443, %v2446
      %v2465 = vsel %vm2459, %v2452, 920167782
      %v2466 = vsel %vm2458, %v2449, %v2465
      %v2467 = vsel %vm2457, %v2464, %v2466
      %v2468 = vsel %vm2456, %v2446, %v2449
      %v2469 = vsel %vm2459, %v2455, 1326507024
      %v2470 = vsel %vm2458, %v2452, %v2469
      %v2471 = vsel %vm2457, %v2468, %v2470
      %v2472 = vshll.u32 %v2432, 8
      %v2473 = vmul.u32.u64.compose %v2472, %v2471
      %v2474 = vextract.low.u32 %v2473
      %v2475 = vextract.high.u32 %v2473
      %v2476 = vmul.u32.u64.compose %v2472, %v2467
      %v2477 = vextract.low.u32 %v2476
      %v2478 = vextract.high.u32 %v2476
      %v2479 = vmul.u32 %v2472, %v2463
      %v2480 = vadd.s32 %v2475, %v2477
      %vm2481 = vc.u32 %v2475, %v2477
      %v2482 = vadd.s32 %v2478, 1
      %v2483 = vsel %vm2481, %v2482, %v2478
      %v2484 = vadd.s32 %v2479, %v2483
      %v2485 = vadd.s32 %v2484, 536870912
      %v2486 = vshrl.u32 %v2485, 30
      %v2487 = vshll.u32 %v2486, 30
      %v2488 = vsub.s32 %v2484, %v2487
      %vm2489 = vcmp.lt.s32.totalorder %v2488, 0
      %v2490 = vsub.s32 0, %v2488
      %v2491 = vsel %vm2489, %v2490, %v2488
      %v2492 = vclz %v2491
      %v2493 = vsub.s32 %v2492, 2
      %vm2494 = vcmp.gt.s32.totalorder 0, %v2493
      %v2495 = vsel %vm2494, 0, %v2493
      %v2496 = vsub.s32 32, %v2495
      %v2497 = vshll.u32 %v2488, %v2495
      %v2498 = vshrl.u32 %v2480, %v2496
      %v2499 = vor.u32 %v2497, %v2498
      %v2500 = vsub.s32 4294967266, %v2495
      %v2501 = vadd.s32 %v2500, 127
      %v2502 = vshll.u32 %v2501, 23
      %v2503 = vor.u32 4788187, %v2502
      %v2504 = vand.u32 2147483647, %v2503
      %v2506 = vcvt.s32.f32 %v2499
      %v2507 = vmul.f32 %v2506, %v2504
      %v2508 = vxor.u32 %v2507, 2147483648
      %v2509 = vsel %vm2426, %v2508, %v2507
      %v2510 = vsub.s32 4, %v2486
      %v2511 = vsel %vm2426, %v2510, %v2486
      %v2512 = vsel %vm2425, %v1636, %v2509
      %v2513 = vsel %vm2425, 0, %v2511
      %v2514 = vcosq.f32.pop %v2512
      %v2515 = vsinq.f32.pop %v2512
      %vm2516 = vweird.f32 %v1636
      %v2517 = vadd.s32 %v2513, 3
      %v2518 = vand.u32 %v2517, 3
      %vm2519 = vcmp.lt.s32.totalorder %v2518, 2
      %vm2520 = vcmp.eq.s32.totalorder %v2518, 0
      %v2521 = vxor.u32 %v2515, 2147483648
      %v2522 = vsel %vm2520, %v2514, %v2521
      %vm2523 = vcmp.eq.s32.totalorder %v2518, 2
      %v2524 = vxor.u32 %v2514, 2147483648
      %v2525 = vsel %vm2523, %v2524, %v2515
      %v2526 = vsel %vm2519, %v2522, %v2525
      %v2527 = vsel %vm2516, nan, %v2526
      %v2528 = vand.u32 2147483647, %v1637
      %vm2529 = vcmp.le.f32.partialorder %v2528, 0.7853982
      %vm2530 = vcmp.lt.s32.totalorder %v1637, 0
      %v2531 = vand.u32 %v1637, 2139095040
      %v2532 = vshrl.u32 %v2531, 23
      %v2533 = vsub.s32 %v2532, 127
      %v2534 = vand.u32 2147483647, %v1637
      %v2535 = vand.u32 %v2534, 8388607
      %v2536 = vor.u32 %v2535, 8388608
      %v2537 = vsub.s32 0, %v2536
      %v2538 = vadd.s32 %v2533, 1
      %vm2539 = vcmp.gt.s32.totalorder %v2538, 0
      %v2540 = vsel %vm2539, %v2538, 0
      %v2541 = vshrl.u32 %v2540, 5
      %v2542 = vand.u32 %v2540, 31
      %v2543 = vsub.s32 32, %v2542
      %v2544 = vshrl.u32 683565275, %v2543
      %v2545 = vshll.u32 683565275, %v2542
      %v2546 = vshrl.u32 2475754826, %v2543
      %v2547 = vor.u32 %v2545, %v2546
      %v2548 = vshll.u32 2475754826, %v2542
      %v2549 = vshrl.u32 2131351028, %v2543
      %v2550 = vor.u32 %v2548, %v2549
      %v2551 = vshll.u32 2131351028, %v2542
      %v2552 = vshrl.u32 2102212464, %v2543
      %v2553 = vor.u32 %v2551, %v2552
      %v2554 = vshll.u32 2102212464, %v2542
      %v2555 = vshrl.u32 920167782, %v2543
      %v2556 = vor.u32 %v2554, %v2555
      %v2557 = vshll.u32 920167782, %v2542
      %v2558 = vshrl.u32 1326507024, %v2543
      %v2559 = vor.u32 %v2557, %v2558
      %vm2560 = vcmp.lt.s32.totalorder %v2541, 1
      %vm2561 = vcmp.lt.s32.totalorder %v2541, 2
      %vm2562 = vcmp.lt.s32.totalorder %v2541, 3
      %vm2563 = vcmp.lt.s32.totalorder %v2541, 4
      %v2564 = vsel %vm2560, %v2544, %v2547
      %v2565 = vsel %vm2563, %v2553, 2102212464
      %v2566 = vsel %vm2562, %v2550, %v2565
      %v2567 = vsel %vm2561, %v2564, %v2566
      %v2568 = vsel %vm2560, %v2547, %v2550
      %v2569 = vsel %vm2563, %v2556, 920167782
      %v2570 = vsel %vm2562, %v2553, %v2569
      %v2571 = vsel %vm2561, %v2568, %v2570
      %v2572 = vsel %vm2560, %v2550, %v2553
      %v2573 = vsel %vm2563, %v2559, 1326507024
      %v2574 = vsel %vm2562, %v2556, %v2573
      %v2575 = vsel %vm2561, %v2572, %v2574
      %v2576 = vshll.u32 %v2536, 8
      %v2577 = vmul.u32.u64.compose %v2576, %v2575
      %v2578 = vextract.low.u32 %v2577
      %v2579 = vextract.high.u32 %v2577
      %v2580 = vmul.u32.u64.compose %v2576, %v2571
      %v2581 = vextract.low.u32 %v2580
      %v2582 = vextract.high.u32 %v2580
      %v2583 = vmul.u32 %v2576, %v2567
      %v2584 = vadd.s32 %v2579, %v2581
      %vm2585 = vc.u32 %v2579, %v2581
      %v2586 = vadd.s32 %v2582, 1
      %v2587 = vsel %vm2585, %v2586, %v2582
      %v2588 = vadd.s32 %v2583, %v2587
      %v2589 = vadd.s32 %v2588, 536870912
      %v2590 = vshrl.u32 %v2589, 30
      %v2591 = vshll.u32 %v2590, 30
      %v2592 = vsub.s32 %v2588, %v2591
      %vm2593 = vcmp.lt.s32.totalorder %v2592, 0
      %v2594 = vsub.s32 0, %v2592
      %v2595 = vsel %vm2593, %v2594, %v2592
      %v2596 = vclz %v2595
      %v2597 = vsub.s32 %v2596, 2
      %vm2598 = vcmp.gt.s32.totalorder 0, %v2597
      %v2599 = vsel %vm2598, 0, %v2597
      %v2600 = vsub.s32 32, %v2599
      %v2601 = vshll.u32 %v2592, %v2599
      %v2602 = vshrl.u32 %v2584, %v2600
      %v2603 = vor.u32 %v2601, %v2602
      %v2604 = vsub.s32 4294967266, %v2599
      %v2605 = vadd.s32 %v2604, 127
      %v2606 = vshll.u32 %v2605, 23
      %v2607 = vor.u32 4788187, %v2606
      %v2608 = vand.u32 2147483647, %v2607
      %v2610 = vcvt.s32.f32 %v2603
      %v2611 = vmul.f32 %v2610, %v2608
      %v2612 = vxor.u32 %v2611, 2147483648
      %v2613 = vsel %vm2530, %v2612, %v2611
      %v2614 = vsub.s32 4, %v2590
      %v2615 = vsel %vm2530, %v2614, %v2590
      %v2616 = vsel %vm2529, %v1637, %v2613
      %v2617 = vsel %vm2529, 0, %v2615
      %v2618 = vcosq.f32.pop %v2616
      %v2619 = vsinq.f32.pop %v2616
      %vm2620 = vweird.f32 %v1637
      %v2621 = vadd.s32 %v2617, 3
      %v2622 = vand.u32 %v2621, 3
      %vm2623 = vcmp.lt.s32.totalorder %v2622, 2
      %vm2624 = vcmp.eq.s32.totalorder %v2622, 0
      %v2625 = vxor.u32 %v2619, 2147483648
      %v2626 = vsel %vm2624, %v2618, %v2625
      %vm2627 = vcmp.eq.s32.totalorder %v2622, 2
      %v2628 = vxor.u32 %v2618, 2147483648
      %v2629 = vsel %vm2627, %v2628, %v2619
      %v2630 = vsel %vm2623, %v2626, %v2629
      %v2631 = vsel %vm2620, nan, %v2630
      %v2632 = vand.u32 2147483647, %v1638
      %vm2633 = vcmp.le.f32.partialorder %v2632, 0.7853982
      %vm2634 = vcmp.lt.s32.totalorder %v1638, 0
      %v2635 = vand.u32 %v1638, 2139095040
      %v2636 = vshrl.u32 %v2635, 23
      %v2637 = vsub.s32 %v2636, 127
      %v2638 = vand.u32 2147483647, %v1638
      %v2639 = vand.u32 %v2638, 8388607
      %v2640 = vor.u32 %v2639, 8388608
      %v2641 = vsub.s32 0, %v2640
      %v2642 = vadd.s32 %v2637, 1
      %vm2643 = vcmp.gt.s32.totalorder %v2642, 0
      %v2644 = vsel %vm2643, %v2642, 0
      %v2645 = vshrl.u32 %v2644, 5
      %v2646 = vand.u32 %v2644, 31
      %v2647 = vsub.s32 32, %v2646
      %v2648 = vshrl.u32 683565275, %v2647
      %v2649 = vshll.u32 683565275, %v2646
      %v2650 = vshrl.u32 2475754826, %v2647
      %v2651 = vor.u32 %v2649, %v2650
      %v2652 = vshll.u32 2475754826, %v2646
      %v2653 = vshrl.u32 2131351028, %v2647
      %v2654 = vor.u32 %v2652, %v2653
      %v2655 = vshll.u32 2131351028, %v2646
      %v2656 = vshrl.u32 2102212464, %v2647
      %v2657 = vor.u32 %v2655, %v2656
      %v2658 = vshll.u32 2102212464, %v2646
      %v2659 = vshrl.u32 920167782, %v2647
      %v2660 = vor.u32 %v2658, %v2659
      %v2661 = vshll.u32 920167782, %v2646
      %v2662 = vshrl.u32 1326507024, %v2647
      %v2663 = vor.u32 %v2661, %v2662
      %vm2664 = vcmp.lt.s32.totalorder %v2645, 1
      %vm2665 = vcmp.lt.s32.totalorder %v2645, 2
      %vm2666 = vcmp.lt.s32.totalorder %v2645, 3
      %vm2667 = vcmp.lt.s32.totalorder %v2645, 4
      %v2668 = vsel %vm2664, %v2648, %v2651
      %v2669 = vsel %vm2667, %v2657, 2102212464
      %v2670 = vsel %vm2666, %v2654, %v2669
      %v2671 = vsel %vm2665, %v2668, %v2670
      %v2672 = vsel %vm2664, %v2651, %v2654
      %v2673 = vsel %vm2667, %v2660, 920167782
      %v2674 = vsel %vm2666, %v2657, %v2673
      %v2675 = vsel %vm2665, %v2672, %v2674
      %v2676 = vsel %vm2664, %v2654, %v2657
      %v2677 = vsel %vm2667, %v2663, 1326507024
      %v2678 = vsel %vm2666, %v2660, %v2677
      %v2679 = vsel %vm2665, %v2676, %v2678
      %v2680 = vshll.u32 %v2640, 8
      %v2681 = vmul.u32.u64.compose %v2680, %v2679
      %v2682 = vextract.low.u32 %v2681
      %v2683 = vextract.high.u32 %v2681
      %v2684 = vmul.u32.u64.compose %v2680, %v2675
      %v2685 = vextract.low.u32 %v2684
      %v2686 = vextract.high.u32 %v2684
      %v2687 = vmul.u32 %v2680, %v2671
      %v2688 = vadd.s32 %v2683, %v2685
      %vm2689 = vc.u32 %v2683, %v2685
      %v2690 = vadd.s32 %v2686, 1
      %v2691 = vsel %vm2689, %v2690, %v2686
      %v2692 = vadd.s32 %v2687, %v2691
      %v2693 = vadd.s32 %v2692, 536870912
      %v2694 = vshrl.u32 %v2693, 30
      %v2695 = vshll.u32 %v2694, 30
      %v2696 = vsub.s32 %v2692, %v2695
      %vm2697 = vcmp.lt.s32.totalorder %v2696, 0
      %v2698 = vsub.s32 0, %v2696
      %v2699 = vsel %vm2697, %v2698, %v2696
      %v2700 = vclz %v2699
      %v2701 = vsub.s32 %v2700, 2
      %vm2702 = vcmp.gt.s32.totalorder 0, %v2701
      %v2703 = vsel %vm2702, 0, %v2701
      %v2704 = vsub.s32 32, %v2703
      %v2705 = vshll.u32 %v2696, %v2703
      %v2706 = vshrl.u32 %v2688, %v2704
      %v2707 = vor.u32 %v2705, %v2706
      %v2708 = vsub.s32 4294967266, %v2703
      %v2709 = vadd.s32 %v2708, 127
      %v2710 = vshll.u32 %v2709, 23
      %v2711 = vor.u32 4788187, %v2710
      %v2712 = vand.u32 2147483647, %v2711
      %v2714 = vcvt.s32.f32 %v2707
      %v2715 = vmul.f32 %v2714, %v2712
      %v2716 = vxor.u32 %v2715, 2147483648
      %v2717 = vsel %vm2634, %v2716, %v2715
      %v2718 = vsub.s32 4, %v2694
      %v2719 = vsel %vm2634, %v2718, %v2694
      %v2720 = vsel %vm2633, %v1638, %v2717
      %v2721 = vsel %vm2633, 0, %v2719
      %v2722 = vcosq.f32.pop %v2720
      %v2723 = vsinq.f32.pop %v2720
      %vm2724 = vweird.f32 %v1638
      %v2725 = vadd.s32 %v2721, 3
      %v2726 = vand.u32 %v2725, 3
      %vm2727 = vcmp.lt.s32.totalorder %v2726, 2
      %vm2728 = vcmp.eq.s32.totalorder %v2726, 0
      %v2729 = vxor.u32 %v2723, 2147483648
      %v2730 = vsel %vm2728, %v2722, %v2729
      %vm2731 = vcmp.eq.s32.totalorder %v2726, 2
      %v2732 = vxor.u32 %v2722, 2147483648
      %v2733 = vsel %vm2731, %v2732, %v2723
      %v2734 = vsel %vm2727, %v2730, %v2733
      %v2735 = vsel %vm2724, nan, %v2734
      %v2736 = vand.u32 2147483647, %v1639
      %vm2737 = vcmp.le.f32.partialorder %v2736, 0.7853982
      %vm2738 = vcmp.lt.s32.totalorder %v1639, 0
      %v2739 = vand.u32 %v1639, 2139095040
      %v2740 = vshrl.u32 %v2739, 23
      %v2741 = vsub.s32 %v2740, 127
      %v2742 = vand.u32 2147483647, %v1639
      %v2743 = vand.u32 %v2742, 8388607
      %v2744 = vor.u32 %v2743, 8388608
      %v2745 = vsub.s32 0, %v2744
      %v2746 = vadd.s32 %v2741, 1
      %vm2747 = vcmp.gt.s32.totalorder %v2746, 0
      %v2748 = vsel %vm2747, %v2746, 0
      %v2749 = vshrl.u32 %v2748, 5
      %v2750 = vand.u32 %v2748, 31
      %v2751 = vsub.s32 32, %v2750
      %v2752 = vshrl.u32 683565275, %v2751
      %v2753 = vshll.u32 683565275, %v2750
      %v2754 = vshrl.u32 2475754826, %v2751
      %v2755 = vor.u32 %v2753, %v2754
      %v2756 = vshll.u32 2475754826, %v2750
      %v2757 = vshrl.u32 2131351028, %v2751
      %v2758 = vor.u32 %v2756, %v2757
      %v2759 = vshll.u32 2131351028, %v2750
      %v2760 = vshrl.u32 2102212464, %v2751
      %v2761 = vor.u32 %v2759, %v2760
      %v2762 = vshll.u32 2102212464, %v2750
      %v2763 = vshrl.u32 920167782, %v2751
      %v2764 = vor.u32 %v2762, %v2763
      %v2765 = vshll.u32 920167782, %v2750
      %v2766 = vshrl.u32 1326507024, %v2751
      %v2767 = vor.u32 %v2765, %v2766
      %vm2768 = vcmp.lt.s32.totalorder %v2749, 1
      %vm2769 = vcmp.lt.s32.totalorder %v2749, 2
      %vm2770 = vcmp.lt.s32.totalorder %v2749, 3
      %vm2771 = vcmp.lt.s32.totalorder %v2749, 4
      %v2772 = vsel %vm2768, %v2752, %v2755
      %v2773 = vsel %vm2771, %v2761, 2102212464
      %v2774 = vsel %vm2770, %v2758, %v2773
      %v2775 = vsel %vm2769, %v2772, %v2774
      %v2776 = vsel %vm2768, %v2755, %v2758
      %v2777 = vsel %vm2771, %v2764, 920167782
      %v2778 = vsel %vm2770, %v2761, %v2777
      %v2779 = vsel %vm2769, %v2776, %v2778
      %v2780 = vsel %vm2768, %v2758, %v2761
      %v2781 = vsel %vm2771, %v2767, 1326507024
      %v2782 = vsel %vm2770, %v2764, %v2781
      %v2783 = vsel %vm2769, %v2780, %v2782
      %v2784 = vshll.u32 %v2744, 8
      %v2785 = vmul.u32.u64.compose %v2784, %v2783
      %v2786 = vextract.low.u32 %v2785
      %v2787 = vextract.high.u32 %v2785
      %v2788 = vmul.u32.u64.compose %v2784, %v2779
      %v2789 = vextract.low.u32 %v2788
      %v2790 = vextract.high.u32 %v2788
      %v2791 = vmul.u32 %v2784, %v2775
      %v2792 = vadd.s32 %v2787, %v2789
      %vm2793 = vc.u32 %v2787, %v2789
      %v2794 = vadd.s32 %v2790, 1
      %v2795 = vsel %vm2793, %v2794, %v2790
      %v2796 = vadd.s32 %v2791, %v2795
      %v2797 = vadd.s32 %v2796, 536870912
      %v2798 = vshrl.u32 %v2797, 30
      %v2799 = vshll.u32 %v2798, 30
      %v2800 = vsub.s32 %v2796, %v2799
      %vm2801 = vcmp.lt.s32.totalorder %v2800, 0
      %v2802 = vsub.s32 0, %v2800
      %v2803 = vsel %vm2801, %v2802, %v2800
      %v2804 = vclz %v2803
      %v2805 = vsub.s32 %v2804, 2
      %vm2806 = vcmp.gt.s32.totalorder 0, %v2805
      %v2807 = vsel %vm2806, 0, %v2805
      %v2808 = vsub.s32 32, %v2807
      %v2809 = vshll.u32 %v2800, %v2807
      %v2810 = vshrl.u32 %v2792, %v2808
      %v2811 = vor.u32 %v2809, %v2810
      %v2812 = vsub.s32 4294967266, %v2807
      %v2813 = vadd.s32 %v2812, 127
      %v2814 = vshll.u32 %v2813, 23
      %v2815 = vor.u32 4788187, %v2814
      %v2816 = vand.u32 2147483647, %v2815
      %v2818 = vcvt.s32.f32 %v2811
      %v2819 = vmul.f32 %v2818, %v2816
      %v2820 = vxor.u32 %v2819, 2147483648
      %v2821 = vsel %vm2738, %v2820, %v2819
      %v2822 = vsub.s32 4, %v2798
      %v2823 = vsel %vm2738, %v2822, %v2798
      %v2824 = vsel %vm2737, %v1639, %v2821
      %v2825 = vsel %vm2737, 0, %v2823
      %v2826 = vcosq.f32.pop %v2824
      %v2827 = vsinq.f32.pop %v2824
      %vm2828 = vweird.f32 %v1639
      %v2829 = vadd.s32 %v2825, 3
      %v2830 = vand.u32 %v2829, 3
      %vm2831 = vcmp.lt.s32.totalorder %v2830, 2
      %vm2832 = vcmp.eq.s32.totalorder %v2830, 0
      %v2833 = vxor.u32 %v2827, 2147483648
      %v2834 = vsel %vm2832, %v2826, %v2833
      %vm2835 = vcmp.eq.s32.totalorder %v2830, 2
      %v2836 = vxor.u32 %v2826, 2147483648
      %v2837 = vsel %vm2835, %v2836, %v2827
      %v2838 = vsel %vm2831, %v2834, %v2837
      %v2839 = vsel %vm2828, nan, %v2838
      %v2840 = vand.u32 2147483647, %v1640
      %vm2841 = vcmp.le.f32.partialorder %v2840, 0.7853982
      %vm2842 = vcmp.lt.s32.totalorder %v1640, 0
      %v2843 = vand.u32 %v1640, 2139095040
      %v2844 = vshrl.u32 %v2843, 23
      %v2845 = vsub.s32 %v2844, 127
      %v2846 = vand.u32 2147483647, %v1640
      %v2847 = vand.u32 %v2846, 8388607
      %v2848 = vor.u32 %v2847, 8388608
      %v2849 = vsub.s32 0, %v2848
      %v2850 = vadd.s32 %v2845, 1
      %vm2851 = vcmp.gt.s32.totalorder %v2850, 0
      %v2852 = vsel %vm2851, %v2850, 0
      %v2853 = vshrl.u32 %v2852, 5
      %v2854 = vand.u32 %v2852, 31
      %v2855 = vsub.s32 32, %v2854
      %v2856 = vshrl.u32 683565275, %v2855
      %v2857 = vshll.u32 683565275, %v2854
      %v2858 = vshrl.u32 2475754826, %v2855
      %v2859 = vor.u32 %v2857, %v2858
      %v2860 = vshll.u32 2475754826, %v2854
      %v2861 = vshrl.u32 2131351028, %v2855
      %v2862 = vor.u32 %v2860, %v2861
      %v2863 = vshll.u32 2131351028, %v2854
      %v2864 = vshrl.u32 2102212464, %v2855
      %v2865 = vor.u32 %v2863, %v2864
      %v2866 = vshll.u32 2102212464, %v2854
      %v2867 = vshrl.u32 920167782, %v2855
      %v2868 = vor.u32 %v2866, %v2867
      %v2869 = vshll.u32 920167782, %v2854
      %v2870 = vshrl.u32 1326507024, %v2855
      %v2871 = vor.u32 %v2869, %v2870
      %vm2872 = vcmp.lt.s32.totalorder %v2853, 1
      %vm2873 = vcmp.lt.s32.totalorder %v2853, 2
      %vm2874 = vcmp.lt.s32.totalorder %v2853, 3
      %vm2875 = vcmp.lt.s32.totalorder %v2853, 4
      %v2876 = vsel %vm2872, %v2856, %v2859
      %v2877 = vsel %vm2875, %v2865, 2102212464
      %v2878 = vsel %vm2874, %v2862, %v2877
      %v2879 = vsel %vm2873, %v2876, %v2878
      %v2880 = vsel %vm2872, %v2859, %v2862
      %v2881 = vsel %vm2875, %v2868, 920167782
      %v2882 = vsel %vm2874, %v2865, %v2881
      %v2883 = vsel %vm2873, %v2880, %v2882
      %v2884 = vsel %vm2872, %v2862, %v2865
      %v2885 = vsel %vm2875, %v2871, 1326507024
      %v2886 = vsel %vm2874, %v2868, %v2885
      %v2887 = vsel %vm2873, %v2884, %v2886
      %v2888 = vshll.u32 %v2848, 8
      %v2889 = vmul.u32.u64.compose %v2888, %v2887
      %v2890 = vextract.low.u32 %v2889
      %v2891 = vextract.high.u32 %v2889
      %v2892 = vmul.u32.u64.compose %v2888, %v2883
      %v2893 = vextract.low.u32 %v2892
      %v2894 = vextract.high.u32 %v2892
      %v2895 = vmul.u32 %v2888, %v2879
      %v2896 = vadd.s32 %v2891, %v2893
      %vm2897 = vc.u32 %v2891, %v2893
      %v2898 = vadd.s32 %v2894, 1
      %v2899 = vsel %vm2897, %v2898, %v2894
      %v2900 = vadd.s32 %v2895, %v2899
      %v2901 = vadd.s32 %v2900, 536870912
      %v2902 = vshrl.u32 %v2901, 30
      %v2903 = vshll.u32 %v2902, 30
      %v2904 = vsub.s32 %v2900, %v2903
      %vm2905 = vcmp.lt.s32.totalorder %v2904, 0
      %v2906 = vsub.s32 0, %v2904
      %v2907 = vsel %vm2905, %v2906, %v2904
      %v2908 = vclz %v2907
      %v2909 = vsub.s32 %v2908, 2
      %vm2910 = vcmp.gt.s32.totalorder 0, %v2909
      %v2911 = vsel %vm2910, 0, %v2909
      %v2912 = vsub.s32 32, %v2911
      %v2913 = vshll.u32 %v2904, %v2911
      %v2914 = vshrl.u32 %v2896, %v2912
      %v2915 = vor.u32 %v2913, %v2914
      %v2916 = vsub.s32 4294967266, %v2911
      %v2917 = vadd.s32 %v2916, 127
      %v2918 = vshll.u32 %v2917, 23
      %v2919 = vor.u32 4788187, %v2918
      %v2920 = vand.u32 2147483647, %v2919
      %v2922 = vcvt.s32.f32 %v2915
      %v2923 = vmul.f32 %v2922, %v2920
      %v2924 = vxor.u32 %v2923, 2147483648
      %v2925 = vsel %vm2842, %v2924, %v2923
      %v2926 = vsub.s32 4, %v2902
      %v2927 = vsel %vm2842, %v2926, %v2902
      %v2928 = vsel %vm2841, %v1640, %v2925
      %v2929 = vsel %vm2841, 0, %v2927
      %v2930 = vcosq.f32.pop %v2928
      %v2931 = vsinq.f32.pop %v2928
      %vm2932 = vweird.f32 %v1640
      %v2933 = vadd.s32 %v2929, 3
      %v2934 = vand.u32 %v2933, 3
      %vm2935 = vcmp.lt.s32.totalorder %v2934, 2
      %vm2936 = vcmp.eq.s32.totalorder %v2934, 0
      %v2937 = vxor.u32 %v2931, 2147483648
      %v2938 = vsel %vm2936, %v2930, %v2937
      %vm2939 = vcmp.eq.s32.totalorder %v2934, 2
      %v2940 = vxor.u32 %v2930, 2147483648
      %v2941 = vsel %vm2939, %v2940, %v2931
      %v2942 = vsel %vm2935, %v2938, %v2941
      %v2943 = vsel %vm2932, nan, %v2942
      %v2944 = vand.u32 2147483647, %v1641
      %vm2945 = vcmp.le.f32.partialorder %v2944, 0.7853982
      %vm2946 = vcmp.lt.s32.totalorder %v1641, 0
      %v2947 = vand.u32 %v1641, 2139095040
      %v2948 = vshrl.u32 %v2947, 23
      %v2949 = vsub.s32 %v2948, 127
      %v2950 = vand.u32 2147483647, %v1641
      %v2951 = vand.u32 %v2950, 8388607
      %v2952 = vor.u32 %v2951, 8388608
      %v2953 = vsub.s32 0, %v2952
      %v2954 = vadd.s32 %v2949, 1
      %vm2955 = vcmp.gt.s32.totalorder %v2954, 0
      %v2956 = vsel %vm2955, %v2954, 0
      %v2957 = vshrl.u32 %v2956, 5
      %v2958 = vand.u32 %v2956, 31
      %v2959 = vsub.s32 32, %v2958
      %v2960 = vshrl.u32 683565275, %v2959
      %v2961 = vshll.u32 683565275, %v2958
      %v2962 = vshrl.u32 2475754826, %v2959
      %v2963 = vor.u32 %v2961, %v2962
      %v2964 = vshll.u32 2475754826, %v2958
      %v2965 = vshrl.u32 2131351028, %v2959
      %v2966 = vor.u32 %v2964, %v2965
      %v2967 = vshll.u32 2131351028, %v2958
      %v2968 = vshrl.u32 2102212464, %v2959
      %v2969 = vor.u32 %v2967, %v2968
      %v2970 = vshll.u32 2102212464, %v2958
      %v2971 = vshrl.u32 920167782, %v2959
      %v2972 = vor.u32 %v2970, %v2971
      %v2973 = vshll.u32 920167782, %v2958
      %v2974 = vshrl.u32 1326507024, %v2959
      %v2975 = vor.u32 %v2973, %v2974
      %vm2976 = vcmp.lt.s32.totalorder %v2957, 1
      %vm2977 = vcmp.lt.s32.totalorder %v2957, 2
      %vm2978 = vcmp.lt.s32.totalorder %v2957, 3
      %vm2979 = vcmp.lt.s32.totalorder %v2957, 4
      %v2980 = vsel %vm2976, %v2960, %v2963
      %v2981 = vsel %vm2979, %v2969, 2102212464
      %v2982 = vsel %vm2978, %v2966, %v2981
      %v2983 = vsel %vm2977, %v2980, %v2982
      %v2984 = vsel %vm2976, %v2963, %v2966
      %v2985 = vsel %vm2979, %v2972, 920167782
      %v2986 = vsel %vm2978, %v2969, %v2985
      %v2987 = vsel %vm2977, %v2984, %v2986
      %v2988 = vsel %vm2976, %v2966, %v2969
      %v2989 = vsel %vm2979, %v2975, 1326507024
      %v2990 = vsel %vm2978, %v2972, %v2989
      %v2991 = vsel %vm2977, %v2988, %v2990
      %v2992 = vshll.u32 %v2952, 8
      %v2993 = vmul.u32.u64.compose %v2992, %v2991
      %v2994 = vextract.low.u32 %v2993
      %v2995 = vextract.high.u32 %v2993
      %v2996 = vmul.u32.u64.compose %v2992, %v2987
      %v2997 = vextract.low.u32 %v2996
      %v2998 = vextract.high.u32 %v2996
      %v2999 = vmul.u32 %v2992, %v2983
      %v3000 = vadd.s32 %v2995, %v2997
      %vm3001 = vc.u32 %v2995, %v2997
      %v3002 = vadd.s32 %v2998, 1
      %v3003 = vsel %vm3001, %v3002, %v2998
      %v3004 = vadd.s32 %v2999, %v3003
      %v3005 = vadd.s32 %v3004, 536870912
      %v3006 = vshrl.u32 %v3005, 30
      %v3007 = vshll.u32 %v3006, 30
      %v3008 = vsub.s32 %v3004, %v3007
      %vm3009 = vcmp.lt.s32.totalorder %v3008, 0
      %v3010 = vsub.s32 0, %v3008
      %v3011 = vsel %vm3009, %v3010, %v3008
      %v3012 = vclz %v3011
      %v3013 = vsub.s32 %v3012, 2
      %vm3014 = vcmp.gt.s32.totalorder 0, %v3013
      %v3015 = vsel %vm3014, 0, %v3013
      %v3016 = vsub.s32 32, %v3015
      %v3017 = vshll.u32 %v3008, %v3015
      %v3018 = vshrl.u32 %v3000, %v3016
      %v3019 = vor.u32 %v3017, %v3018
      %v3020 = vsub.s32 4294967266, %v3015
      %v3021 = vadd.s32 %v3020, 127
      %v3022 = vshll.u32 %v3021, 23
      %v3023 = vor.u32 4788187, %v3022
      %v3024 = vand.u32 2147483647, %v3023
      %v3026 = vcvt.s32.f32 %v3019
      %v3027 = vmul.f32 %v3026, %v3024
      %v3028 = vxor.u32 %v3027, 2147483648
      %v3029 = vsel %vm2946, %v3028, %v3027
      %v3030 = vsub.s32 4, %v3006
      %v3031 = vsel %vm2946, %v3030, %v3006
      %v3032 = vsel %vm2945, %v1641, %v3029
      %v3033 = vsel %vm2945, 0, %v3031
      %v3034 = vcosq.f32.pop %v3032
      %v3035 = vsinq.f32.pop %v3032
      %vm3036 = vweird.f32 %v1641
      %v3037 = vadd.s32 %v3033, 3
      %v3038 = vand.u32 %v3037, 3
      %vm3039 = vcmp.lt.s32.totalorder %v3038, 2
      %vm3040 = vcmp.eq.s32.totalorder %v3038, 0
      %v3041 = vxor.u32 %v3035, 2147483648
      %v3042 = vsel %vm3040, %v3034, %v3041
      %vm3043 = vcmp.eq.s32.totalorder %v3038, 2
      %v3044 = vxor.u32 %v3034, 2147483648
      %v3045 = vsel %vm3043, %v3044, %v3035
      %v3046 = vsel %vm3039, %v3042, %v3045
      %v3047 = vsel %vm3036, nan, %v3046
      %v3048 = vand.u32 2147483647, %v1642
      %vm3049 = vcmp.le.f32.partialorder %v3048, 0.7853982
      %vm3050 = vcmp.lt.s32.totalorder %v1642, 0
      %v3051 = vand.u32 %v1642, 2139095040
      %v3052 = vshrl.u32 %v3051, 23
      %v3053 = vsub.s32 %v3052, 127
      %v3054 = vand.u32 2147483647, %v1642
      %v3055 = vand.u32 %v3054, 8388607
      %v3056 = vor.u32 %v3055, 8388608
      %v3057 = vsub.s32 0, %v3056
      %v3058 = vadd.s32 %v3053, 1
      %vm3059 = vcmp.gt.s32.totalorder %v3058, 0
      %v3060 = vsel %vm3059, %v3058, 0
      %v3061 = vshrl.u32 %v3060, 5
      %v3062 = vand.u32 %v3060, 31
      %v3063 = vsub.s32 32, %v3062
      %v3064 = vshrl.u32 683565275, %v3063
      %v3065 = vshll.u32 683565275, %v3062
      %v3066 = vshrl.u32 2475754826, %v3063
      %v3067 = vor.u32 %v3065, %v3066
      %v3068 = vshll.u32 2475754826, %v3062
      %v3069 = vshrl.u32 2131351028, %v3063
      %v3070 = vor.u32 %v3068, %v3069
      %v3071 = vshll.u32 2131351028, %v3062
      %v3072 = vshrl.u32 2102212464, %v3063
      %v3073 = vor.u32 %v3071, %v3072
      %v3074 = vshll.u32 2102212464, %v3062
      %v3075 = vshrl.u32 920167782, %v3063
      %v3076 = vor.u32 %v3074, %v3075
      %v3077 = vshll.u32 920167782, %v3062
      %v3078 = vshrl.u32 1326507024, %v3063
      %v3079 = vor.u32 %v3077, %v3078
      %vm3080 = vcmp.lt.s32.totalorder %v3061, 1
      %vm3081 = vcmp.lt.s32.totalorder %v3061, 2
      %vm3082 = vcmp.lt.s32.totalorder %v3061, 3
      %vm3083 = vcmp.lt.s32.totalorder %v3061, 4
      %v3084 = vsel %vm3080, %v3064, %v3067
      %v3085 = vsel %vm3083, %v3073, 2102212464
      %v3086 = vsel %vm3082, %v3070, %v3085
      %v3087 = vsel %vm3081, %v3084, %v3086
      %v3088 = vsel %vm3080, %v3067, %v3070
      %v3089 = vsel %vm3083, %v3076, 920167782
      %v3090 = vsel %vm3082, %v3073, %v3089
      %v3091 = vsel %vm3081, %v3088, %v3090
      %v3092 = vsel %vm3080, %v3070, %v3073
      %v3093 = vsel %vm3083, %v3079, 1326507024
      %v3094 = vsel %vm3082, %v3076, %v3093
      %v3095 = vsel %vm3081, %v3092, %v3094
      %v3096 = vshll.u32 %v3056, 8
      %v3097 = vmul.u32.u64.compose %v3096, %v3095
      %v3098 = vextract.low.u32 %v3097
      %v3099 = vextract.high.u32 %v3097
      %v3100 = vmul.u32.u64.compose %v3096, %v3091
      %v3101 = vextract.low.u32 %v3100
      %v3102 = vextract.high.u32 %v3100
      %v3103 = vmul.u32 %v3096, %v3087
      %v3104 = vadd.s32 %v3099, %v3101
      %vm3105 = vc.u32 %v3099, %v3101
      %v3106 = vadd.s32 %v3102, 1
      %v3107 = vsel %vm3105, %v3106, %v3102
      %v3108 = vadd.s32 %v3103, %v3107
      %v3109 = vadd.s32 %v3108, 536870912
      %v3110 = vshrl.u32 %v3109, 30
      %v3111 = vshll.u32 %v3110, 30
      %v3112 = vsub.s32 %v3108, %v3111
      %vm3113 = vcmp.lt.s32.totalorder %v3112, 0
      %v3114 = vsub.s32 0, %v3112
      %v3115 = vsel %vm3113, %v3114, %v3112
      %v3116 = vclz %v3115
      %v3117 = vsub.s32 %v3116, 2
      %vm3118 = vcmp.gt.s32.totalorder 0, %v3117
      %v3119 = vsel %vm3118, 0, %v3117
      %v3120 = vsub.s32 32, %v3119
      %v3121 = vshll.u32 %v3112, %v3119
      %v3122 = vshrl.u32 %v3104, %v3120
      %v3123 = vor.u32 %v3121, %v3122
      %v3124 = vsub.s32 4294967266, %v3119
      %v3125 = vadd.s32 %v3124, 127
      %v3126 = vshll.u32 %v3125, 23
      %v3127 = vor.u32 4788187, %v3126
      %v3128 = vand.u32 2147483647, %v3127
      %v3130 = vcvt.s32.f32 %v3123
      %v3131 = vmul.f32 %v3130, %v3128
      %v3132 = vxor.u32 %v3131, 2147483648
      %v3133 = vsel %vm3050, %v3132, %v3131
      %v3134 = vsub.s32 4, %v3110
      %v3135 = vsel %vm3050, %v3134, %v3110
      %v3136 = vsel %vm3049, %v1642, %v3133
      %v3137 = vsel %vm3049, 0, %v3135
      %v3138 = vcosq.f32.pop %v3136
      %v3139 = vsinq.f32.pop %v3136
      %vm3140 = vweird.f32 %v1642
      %v3141 = vadd.s32 %v3137, 3
      %v3142 = vand.u32 %v3141, 3
      %vm3143 = vcmp.lt.s32.totalorder %v3142, 2
      %vm3144 = vcmp.eq.s32.totalorder %v3142, 0
      %v3145 = vxor.u32 %v3139, 2147483648
      %v3146 = vsel %vm3144, %v3138, %v3145
      %vm3147 = vcmp.eq.s32.totalorder %v3142, 2
      %v3148 = vxor.u32 %v3138, 2147483648
      %v3149 = vsel %vm3147, %v3148, %v3139
      %v3150 = vsel %vm3143, %v3146, %v3149
      %v3151 = vsel %vm3140, nan, %v3150
      %v3152 = vand.u32 2147483647, %v1643
      %vm3153 = vcmp.le.f32.partialorder %v3152, 0.7853982
      %vm3154 = vcmp.lt.s32.totalorder %v1643, 0
      %v3155 = vand.u32 %v1643, 2139095040
      %v3156 = vshrl.u32 %v3155, 23
      %v3157 = vsub.s32 %v3156, 127
      %v3158 = vand.u32 2147483647, %v1643
      %v3159 = vand.u32 %v3158, 8388607
      %v3160 = vor.u32 %v3159, 8388608
      %v3161 = vsub.s32 0, %v3160
      %v3162 = vadd.s32 %v3157, 1
      %vm3163 = vcmp.gt.s32.totalorder %v3162, 0
      %v3164 = vsel %vm3163, %v3162, 0
      %v3165 = vshrl.u32 %v3164, 5
      %v3166 = vand.u32 %v3164, 31
      %v3167 = vsub.s32 32, %v3166
      %v3168 = vshrl.u32 683565275, %v3167
      %v3169 = vshll.u32 683565275, %v3166
      %v3170 = vshrl.u32 2475754826, %v3167
      %v3171 = vor.u32 %v3169, %v3170
      %v3172 = vshll.u32 2475754826, %v3166
      %v3173 = vshrl.u32 2131351028, %v3167
      %v3174 = vor.u32 %v3172, %v3173
      %v3175 = vshll.u32 2131351028, %v3166
      %v3176 = vshrl.u32 2102212464, %v3167
      %v3177 = vor.u32 %v3175, %v3176
      %v3178 = vshll.u32 2102212464, %v3166
      %v3179 = vshrl.u32 920167782, %v3167
      %v3180 = vor.u32 %v3178, %v3179
      %v3181 = vshll.u32 920167782, %v3166
      %v3182 = vshrl.u32 1326507024, %v3167
      %v3183 = vor.u32 %v3181, %v3182
      %vm3184 = vcmp.lt.s32.totalorder %v3165, 1
      %vm3185 = vcmp.lt.s32.totalorder %v3165, 2
      %vm3186 = vcmp.lt.s32.totalorder %v3165, 3
      %vm3187 = vcmp.lt.s32.totalorder %v3165, 4
      %v3188 = vsel %vm3184, %v3168, %v3171
      %v3189 = vsel %vm3187, %v3177, 2102212464
      %v3190 = vsel %vm3186, %v3174, %v3189
      %v3191 = vsel %vm3185, %v3188, %v3190
      %v3192 = vsel %vm3184, %v3171, %v3174
      %v3193 = vsel %vm3187, %v3180, 920167782
      %v3194 = vsel %vm3186, %v3177, %v3193
      %v3195 = vsel %vm3185, %v3192, %v3194
      %v3196 = vsel %vm3184, %v3174, %v3177
      %v3197 = vsel %vm3187, %v3183, 1326507024
      %v3198 = vsel %vm3186, %v3180, %v3197
      %v3199 = vsel %vm3185, %v3196, %v3198
      %v3200 = vshll.u32 %v3160, 8
      %v3201 = vmul.u32.u64.compose %v3200, %v3199
      %v3202 = vextract.low.u32 %v3201
      %v3203 = vextract.high.u32 %v3201
      %v3204 = vmul.u32.u64.compose %v3200, %v3195
      %v3205 = vextract.low.u32 %v3204
      %v3206 = vextract.high.u32 %v3204
      %v3207 = vmul.u32 %v3200, %v3191
      %v3208 = vadd.s32 %v3203, %v3205
      %vm3209 = vc.u32 %v3203, %v3205
      %v3210 = vadd.s32 %v3206, 1
      %v3211 = vsel %vm3209, %v3210, %v3206
      %v3212 = vadd.s32 %v3207, %v3211
      %v3213 = vadd.s32 %v3212, 536870912
      %v3214 = vshrl.u32 %v3213, 30
      %v3215 = vshll.u32 %v3214, 30
      %v3216 = vsub.s32 %v3212, %v3215
      %vm3217 = vcmp.lt.s32.totalorder %v3216, 0
      %v3218 = vsub.s32 0, %v3216
      %v3219 = vsel %vm3217, %v3218, %v3216
      %v3220 = vclz %v3219
      %v3221 = vsub.s32 %v3220, 2
      %vm3222 = vcmp.gt.s32.totalorder 0, %v3221
      %v3223 = vsel %vm3222, 0, %v3221
      %v3224 = vsub.s32 32, %v3223
      %v3225 = vshll.u32 %v3216, %v3223
      %v3226 = vshrl.u32 %v3208, %v3224
      %v3227 = vor.u32 %v3225, %v3226
      %v3228 = vsub.s32 4294967266, %v3223
      %v3229 = vadd.s32 %v3228, 127
      %v3230 = vshll.u32 %v3229, 23
      %v3231 = vor.u32 4788187, %v3230
      %v3232 = vand.u32 2147483647, %v3231
      %v3234 = vcvt.s32.f32 %v3227
      %v3235 = vmul.f32 %v3234, %v3232
      %v3236 = vxor.u32 %v3235, 2147483648
      %v3237 = vsel %vm3154, %v3236, %v3235
      %v3238 = vsub.s32 4, %v3214
      %v3239 = vsel %vm3154, %v3238, %v3214
      %v3240 = vsel %vm3153, %v1643, %v3237
      %v3241 = vsel %vm3153, 0, %v3239
      %v3242 = vcosq.f32.pop %v3240
      %v3243 = vsinq.f32.pop %v3240
      %vm3244 = vweird.f32 %v1643
      %v3245 = vadd.s32 %v3241, 3
      %v3246 = vand.u32 %v3245, 3
      %vm3247 = vcmp.lt.s32.totalorder %v3246, 2
      %vm3248 = vcmp.eq.s32.totalorder %v3246, 0
      %v3249 = vxor.u32 %v3243, 2147483648
      %v3250 = vsel %vm3248, %v3242, %v3249
      %vm3251 = vcmp.eq.s32.totalorder %v3246, 2
      %v3252 = vxor.u32 %v3242, 2147483648
      %v3253 = vsel %vm3251, %v3252, %v3243
      %v3254 = vsel %vm3247, %v3250, %v3253
      %v3255 = vsel %vm3244, nan, %v3254
      %v3256 = vand.u32 2147483647, %v1644
      %vm3257 = vcmp.le.f32.partialorder %v3256, 0.7853982
      %vm3258 = vcmp.lt.s32.totalorder %v1644, 0
      %v3259 = vand.u32 %v1644, 2139095040
      %v3260 = vshrl.u32 %v3259, 23
      %v3261 = vsub.s32 %v3260, 127
      %v3262 = vand.u32 2147483647, %v1644
      %v3263 = vand.u32 %v3262, 8388607
      %v3264 = vor.u32 %v3263, 8388608
      %v3265 = vsub.s32 0, %v3264
      %v3266 = vadd.s32 %v3261, 1
      %vm3267 = vcmp.gt.s32.totalorder %v3266, 0
      %v3268 = vsel %vm3267, %v3266, 0
      %v3269 = vshrl.u32 %v3268, 5
      %v3270 = vand.u32 %v3268, 31
      %v3271 = vsub.s32 32, %v3270
      %v3272 = vshrl.u32 683565275, %v3271
      %v3273 = vshll.u32 683565275, %v3270
      %v3274 = vshrl.u32 2475754826, %v3271
      %v3275 = vor.u32 %v3273, %v3274
      %v3276 = vshll.u32 2475754826, %v3270
      %v3277 = vshrl.u32 2131351028, %v3271
      %v3278 = vor.u32 %v3276, %v3277
      %v3279 = vshll.u32 2131351028, %v3270
      %v3280 = vshrl.u32 2102212464, %v3271
      %v3281 = vor.u32 %v3279, %v3280
      %v3282 = vshll.u32 2102212464, %v3270
      %v3283 = vshrl.u32 920167782, %v3271
      %v3284 = vor.u32 %v3282, %v3283
      %v3285 = vshll.u32 920167782, %v3270
      %v3286 = vshrl.u32 1326507024, %v3271
      %v3287 = vor.u32 %v3285, %v3286
      %vm3288 = vcmp.lt.s32.totalorder %v3269, 1
      %vm3289 = vcmp.lt.s32.totalorder %v3269, 2
      %vm3290 = vcmp.lt.s32.totalorder %v3269, 3
      %vm3291 = vcmp.lt.s32.totalorder %v3269, 4
      %v3292 = vsel %vm3288, %v3272, %v3275
      %v3293 = vsel %vm3291, %v3281, 2102212464
      %v3294 = vsel %vm3290, %v3278, %v3293
      %v3295 = vsel %vm3289, %v3292, %v3294
      %v3296 = vsel %vm3288, %v3275, %v3278
      %v3297 = vsel %vm3291, %v3284, 920167782
      %v3298 = vsel %vm3290, %v3281, %v3297
      %v3299 = vsel %vm3289, %v3296, %v3298
      %v3300 = vsel %vm3288, %v3278, %v3281
      %v3301 = vsel %vm3291, %v3287, 1326507024
      %v3302 = vsel %vm3290, %v3284, %v3301
      %v3303 = vsel %vm3289, %v3300, %v3302
      %v3304 = vshll.u32 %v3264, 8
      %v3305 = vmul.u32.u64.compose %v3304, %v3303
      %v3306 = vextract.low.u32 %v3305
      %v3307 = vextract.high.u32 %v3305
      %v3308 = vmul.u32.u64.compose %v3304, %v3299
      %v3309 = vextract.low.u32 %v3308
      %v3310 = vextract.high.u32 %v3308
      %v3311 = vmul.u32 %v3304, %v3295
      %v3312 = vadd.s32 %v3307, %v3309
      %vm3313 = vc.u32 %v3307, %v3309
      %v3314 = vadd.s32 %v3310, 1
      %v3315 = vsel %vm3313, %v3314, %v3310
      %v3316 = vadd.s32 %v3311, %v3315
      %v3317 = vadd.s32 %v3316, 536870912
      %v3318 = vshrl.u32 %v3317, 30
      %v3319 = vshll.u32 %v3318, 30
      %v3320 = vsub.s32 %v3316, %v3319
      %vm3321 = vcmp.lt.s32.totalorder %v3320, 0
      %v3322 = vsub.s32 0, %v3320
      %v3323 = vsel %vm3321, %v3322, %v3320
      %v3324 = vclz %v3323
      %v3325 = vsub.s32 %v3324, 2
      %vm3326 = vcmp.gt.s32.totalorder 0, %v3325
      %v3327 = vsel %vm3326, 0, %v3325
      %v3328 = vsub.s32 32, %v3327
      %v3329 = vshll.u32 %v3320, %v3327
      %v3330 = vshrl.u32 %v3312, %v3328
      %v3331 = vor.u32 %v3329, %v3330
      %v3332 = vsub.s32 4294967266, %v3327
      %v3333 = vadd.s32 %v3332, 127
      %v3334 = vshll.u32 %v3333, 23
      %v3335 = vor.u32 4788187, %v3334
      %v3336 = vand.u32 2147483647, %v3335
      %v3338 = vcvt.s32.f32 %v3331
      %v3339 = vmul.f32 %v3338, %v3336
      %v3340 = vxor.u32 %v3339, 2147483648
      %v3341 = vsel %vm3258, %v3340, %v3339
      %v3342 = vsub.s32 4, %v3318
      %v3343 = vsel %vm3258, %v3342, %v3318
      %v3344 = vsel %vm3257, %v1644, %v3341
      %v3345 = vsel %vm3257, 0, %v3343
      %v3346 = vcosq.f32.pop %v3344
      %v3347 = vsinq.f32.pop %v3344
      %vm3348 = vweird.f32 %v1644
      %v3349 = vadd.s32 %v3345, 3
      %v3350 = vand.u32 %v3349, 3
      %vm3351 = vcmp.lt.s32.totalorder %v3350, 2
      %vm3352 = vcmp.eq.s32.totalorder %v3350, 0
      %v3353 = vxor.u32 %v3347, 2147483648
      %v3354 = vsel %vm3352, %v3346, %v3353
      %vm3355 = vcmp.eq.s32.totalorder %v3350, 2
      %v3356 = vxor.u32 %v3346, 2147483648
      %v3357 = vsel %vm3355, %v3356, %v3347
      %v3358 = vsel %vm3351, %v3354, %v3357
      %v3359 = vsel %vm3348, nan, %v3358
      %v3360 = vand.u32 2147483647, %v1645
      %vm3361 = vcmp.le.f32.partialorder %v3360, 0.7853982
      %vm3362 = vcmp.lt.s32.totalorder %v1645, 0
      %v3363 = vand.u32 %v1645, 2139095040
      %v3364 = vshrl.u32 %v3363, 23
      %v3365 = vsub.s32 %v3364, 127
      %v3366 = vand.u32 2147483647, %v1645
      %v3367 = vand.u32 %v3366, 8388607
      %v3368 = vor.u32 %v3367, 8388608
      %v3369 = vsub.s32 0, %v3368
      %v3370 = vadd.s32 %v3365, 1
      %vm3371 = vcmp.gt.s32.totalorder %v3370, 0
      %v3372 = vsel %vm3371, %v3370, 0
      %v3373 = vshrl.u32 %v3372, 5
      %v3374 = vand.u32 %v3372, 31
      %v3375 = vsub.s32 32, %v3374
      %v3376 = vshrl.u32 683565275, %v3375
      %v3377 = vshll.u32 683565275, %v3374
      %v3378 = vshrl.u32 2475754826, %v3375
      %v3379 = vor.u32 %v3377, %v3378
      %v3380 = vshll.u32 2475754826, %v3374
      %v3381 = vshrl.u32 2131351028, %v3375
      %v3382 = vor.u32 %v3380, %v3381
      %v3383 = vshll.u32 2131351028, %v3374
      %v3384 = vshrl.u32 2102212464, %v3375
      %v3385 = vor.u32 %v3383, %v3384
      %v3386 = vshll.u32 2102212464, %v3374
      %v3387 = vshrl.u32 920167782, %v3375
      %v3388 = vor.u32 %v3386, %v3387
      %v3389 = vshll.u32 920167782, %v3374
      %v3390 = vshrl.u32 1326507024, %v3375
      %v3391 = vor.u32 %v3389, %v3390
      %vm3392 = vcmp.lt.s32.totalorder %v3373, 1
      %vm3393 = vcmp.lt.s32.totalorder %v3373, 2
      %vm3394 = vcmp.lt.s32.totalorder %v3373, 3
      %vm3395 = vcmp.lt.s32.totalorder %v3373, 4
      %v3396 = vsel %vm3392, %v3376, %v3379
      %v3397 = vsel %vm3395, %v3385, 2102212464
      %v3398 = vsel %vm3394, %v3382, %v3397
      %v3399 = vsel %vm3393, %v3396, %v3398
      %v3400 = vsel %vm3392, %v3379, %v3382
      %v3401 = vsel %vm3395, %v3388, 920167782
      %v3402 = vsel %vm3394, %v3385, %v3401
      %v3403 = vsel %vm3393, %v3400, %v3402
      %v3404 = vsel %vm3392, %v3382, %v3385
      %v3405 = vsel %vm3395, %v3391, 1326507024
      %v3406 = vsel %vm3394, %v3388, %v3405
      %v3407 = vsel %vm3393, %v3404, %v3406
      %v3408 = vshll.u32 %v3368, 8
      %v3409 = vmul.u32.u64.compose %v3408, %v3407
      %v3410 = vextract.low.u32 %v3409
      %v3411 = vextract.high.u32 %v3409
      %v3412 = vmul.u32.u64.compose %v3408, %v3403
      %v3413 = vextract.low.u32 %v3412
      %v3414 = vextract.high.u32 %v3412
      %v3415 = vmul.u32 %v3408, %v3399
      %v3416 = vadd.s32 %v3411, %v3413
      %vm3417 = vc.u32 %v3411, %v3413
      %v3418 = vadd.s32 %v3414, 1
      %v3419 = vsel %vm3417, %v3418, %v3414
      %v3420 = vadd.s32 %v3415, %v3419
      %v3421 = vadd.s32 %v3420, 536870912
      %v3422 = vshrl.u32 %v3421, 30
      %v3423 = vshll.u32 %v3422, 30
      %v3424 = vsub.s32 %v3420, %v3423
      %vm3425 = vcmp.lt.s32.totalorder %v3424, 0
      %v3426 = vsub.s32 0, %v3424
      %v3427 = vsel %vm3425, %v3426, %v3424
      %v3428 = vclz %v3427
      %v3429 = vsub.s32 %v3428, 2
      %vm3430 = vcmp.gt.s32.totalorder 0, %v3429
      %v3431 = vsel %vm3430, 0, %v3429
      %v3432 = vsub.s32 32, %v3431
      %v3433 = vshll.u32 %v3424, %v3431
      %v3434 = vshrl.u32 %v3416, %v3432
      %v3435 = vor.u32 %v3433, %v3434
      %v3436 = vsub.s32 4294967266, %v3431
      %v3437 = vadd.s32 %v3436, 127
      %v3438 = vshll.u32 %v3437, 23
      %v3439 = vor.u32 4788187, %v3438
      %v3440 = vand.u32 2147483647, %v3439
      %v3442 = vcvt.s32.f32 %v3435
      %v3443 = vmul.f32 %v3442, %v3440
      %v3444 = vxor.u32 %v3443, 2147483648
      %v3445 = vsel %vm3362, %v3444, %v3443
      %v3446 = vsub.s32 4, %v3422
      %v3447 = vsel %vm3362, %v3446, %v3422
      %v3448 = vsel %vm3361, %v1645, %v3445
      %v3449 = vsel %vm3361, 0, %v3447
      %v3450 = vcosq.f32.pop %v3448
      %v3451 = vsinq.f32.pop %v3448
      %vm3452 = vweird.f32 %v1645
      %v3453 = vadd.s32 %v3449, 3
      %v3454 = vand.u32 %v3453, 3
      %vm3455 = vcmp.lt.s32.totalorder %v3454, 2
      %vm3456 = vcmp.eq.s32.totalorder %v3454, 0
      %v3457 = vxor.u32 %v3451, 2147483648
      %v3458 = vsel %vm3456, %v3450, %v3457
      %vm3459 = vcmp.eq.s32.totalorder %v3454, 2
      %v3460 = vxor.u32 %v3450, 2147483648
      %v3461 = vsel %vm3459, %v3460, %v3451
      %v3462 = vsel %vm3455, %v3458, %v3461
      %v3463 = vsel %vm3452, nan, %v3462
      %v3464 = vand.u32 2147483647, %v1646
      %vm3465 = vcmp.le.f32.partialorder %v3464, 0.7853982
      %vm3466 = vcmp.lt.s32.totalorder %v1646, 0
      %v3467 = vand.u32 %v1646, 2139095040
      %v3468 = vshrl.u32 %v3467, 23
      %v3469 = vsub.s32 %v3468, 127
      %v3470 = vand.u32 2147483647, %v1646
      %v3471 = vand.u32 %v3470, 8388607
      %v3472 = vor.u32 %v3471, 8388608
      %v3473 = vsub.s32 0, %v3472
      %v3474 = vadd.s32 %v3469, 1
      %vm3475 = vcmp.gt.s32.totalorder %v3474, 0
      %v3476 = vsel %vm3475, %v3474, 0
      %v3477 = vshrl.u32 %v3476, 5
      %v3478 = vand.u32 %v3476, 31
      %v3479 = vsub.s32 32, %v3478
      %v3480 = vshrl.u32 683565275, %v3479
      %v3481 = vshll.u32 683565275, %v3478
      %v3482 = vshrl.u32 2475754826, %v3479
      %v3483 = vor.u32 %v3481, %v3482
      %v3484 = vshll.u32 2475754826, %v3478
      %v3485 = vshrl.u32 2131351028, %v3479
      %v3486 = vor.u32 %v3484, %v3485
      %v3487 = vshll.u32 2131351028, %v3478
      %v3488 = vshrl.u32 2102212464, %v3479
      %v3489 = vor.u32 %v3487, %v3488
      %v3490 = vshll.u32 2102212464, %v3478
      %v3491 = vshrl.u32 920167782, %v3479
      %v3492 = vor.u32 %v3490, %v3491
      %v3493 = vshll.u32 920167782, %v3478
      %v3494 = vshrl.u32 1326507024, %v3479
      %v3495 = vor.u32 %v3493, %v3494
      %vm3496 = vcmp.lt.s32.totalorder %v3477, 1
      %vm3497 = vcmp.lt.s32.totalorder %v3477, 2
      %vm3498 = vcmp.lt.s32.totalorder %v3477, 3
      %vm3499 = vcmp.lt.s32.totalorder %v3477, 4
      %v3500 = vsel %vm3496, %v3480, %v3483
      %v3501 = vsel %vm3499, %v3489, 2102212464
      %v3502 = vsel %vm3498, %v3486, %v3501
      %v3503 = vsel %vm3497, %v3500, %v3502
      %v3504 = vsel %vm3496, %v3483, %v3486
      %v3505 = vsel %vm3499, %v3492, 920167782
      %v3506 = vsel %vm3498, %v3489, %v3505
      %v3507 = vsel %vm3497, %v3504, %v3506
      %v3508 = vsel %vm3496, %v3486, %v3489
      %v3509 = vsel %vm3499, %v3495, 1326507024
      %v3510 = vsel %vm3498, %v3492, %v3509
      %v3511 = vsel %vm3497, %v3508, %v3510
      %v3512 = vshll.u32 %v3472, 8
      %v3513 = vmul.u32.u64.compose %v3512, %v3511
      %v3514 = vextract.low.u32 %v3513
      %v3515 = vextract.high.u32 %v3513
      %v3516 = vmul.u32.u64.compose %v3512, %v3507
      %v3517 = vextract.low.u32 %v3516
      %v3518 = vextract.high.u32 %v3516
      %v3519 = vmul.u32 %v3512, %v3503
      %v3520 = vadd.s32 %v3515, %v3517
      %vm3521 = vc.u32 %v3515, %v3517
      %v3522 = vadd.s32 %v3518, 1
      %v3523 = vsel %vm3521, %v3522, %v3518
      %v3524 = vadd.s32 %v3519, %v3523
      %v3525 = vadd.s32 %v3524, 536870912
      %v3526 = vshrl.u32 %v3525, 30
      %v3527 = vshll.u32 %v3526, 30
      %v3528 = vsub.s32 %v3524, %v3527
      %vm3529 = vcmp.lt.s32.totalorder %v3528, 0
      %v3530 = vsub.s32 0, %v3528
      %v3531 = vsel %vm3529, %v3530, %v3528
      %v3532 = vclz %v3531
      %v3533 = vsub.s32 %v3532, 2
      %vm3534 = vcmp.gt.s32.totalorder 0, %v3533
      %v3535 = vsel %vm3534, 0, %v3533
      %v3536 = vsub.s32 32, %v3535
      %v3537 = vshll.u32 %v3528, %v3535
      %v3538 = vshrl.u32 %v3520, %v3536
      %v3539 = vor.u32 %v3537, %v3538
      %v3540 = vsub.s32 4294967266, %v3535
      %v3541 = vadd.s32 %v3540, 127
      %v3542 = vshll.u32 %v3541, 23
      %v3543 = vor.u32 4788187, %v3542
      %v3544 = vand.u32 2147483647, %v3543
      %v3546 = vcvt.s32.f32 %v3539
      %v3547 = vmul.f32 %v3546, %v3544
      %v3548 = vxor.u32 %v3547, 2147483648
      %v3549 = vsel %vm3466, %v3548, %v3547
      %v3550 = vsub.s32 4, %v3526
      %v3551 = vsel %vm3466, %v3550, %v3526
      %v3552 = vsel %vm3465, %v1646, %v3549
      %v3553 = vsel %vm3465, 0, %v3551
      %v3554 = vcosq.f32.pop %v3552
      %v3555 = vsinq.f32.pop %v3552
      %vm3556 = vweird.f32 %v1646
      %v3557 = vadd.s32 %v3553, 3
      %v3558 = vand.u32 %v3557, 3
      %vm3559 = vcmp.lt.s32.totalorder %v3558, 2
      %vm3560 = vcmp.eq.s32.totalorder %v3558, 0
      %v3561 = vxor.u32 %v3555, 2147483648
      %v3562 = vsel %vm3560, %v3554, %v3561
      %vm3563 = vcmp.eq.s32.totalorder %v3558, 2
      %v3564 = vxor.u32 %v3554, 2147483648
      %v3565 = vsel %vm3563, %v3564, %v3555
      %v3566 = vsel %vm3559, %v3562, %v3565
      %v3567 = vsel %vm3556, nan, %v3566
      %v3568 = vand.u32 2147483647, %v1647
      %vm3569 = vcmp.le.f32.partialorder %v3568, 0.7853982
      %vm3570 = vcmp.lt.s32.totalorder %v1647, 0
      %v3571 = vand.u32 %v1647, 2139095040
      %v3572 = vshrl.u32 %v3571, 23
      %v3573 = vsub.s32 %v3572, 127
      %v3574 = vand.u32 2147483647, %v1647
      %v3575 = vand.u32 %v3574, 8388607
      %v3576 = vor.u32 %v3575, 8388608
      %v3577 = vsub.s32 0, %v3576
      %v3578 = vadd.s32 %v3573, 1
      %vm3579 = vcmp.gt.s32.totalorder %v3578, 0
      %v3580 = vsel %vm3579, %v3578, 0
      %v3581 = vshrl.u32 %v3580, 5
      %v3582 = vand.u32 %v3580, 31
      %v3583 = vsub.s32 32, %v3582
      %v3584 = vshrl.u32 683565275, %v3583
      %v3585 = vshll.u32 683565275, %v3582
      %v3586 = vshrl.u32 2475754826, %v3583
      %v3587 = vor.u32 %v3585, %v3586
      %v3588 = vshll.u32 2475754826, %v3582
      %v3589 = vshrl.u32 2131351028, %v3583
      %v3590 = vor.u32 %v3588, %v3589
      %v3591 = vshll.u32 2131351028, %v3582
      %v3592 = vshrl.u32 2102212464, %v3583
      %v3593 = vor.u32 %v3591, %v3592
      %v3594 = vshll.u32 2102212464, %v3582
      %v3595 = vshrl.u32 920167782, %v3583
      %v3596 = vor.u32 %v3594, %v3595
      %v3597 = vshll.u32 920167782, %v3582
      %v3598 = vshrl.u32 1326507024, %v3583
      %v3599 = vor.u32 %v3597, %v3598
      %vm3600 = vcmp.lt.s32.totalorder %v3581, 1
      %vm3601 = vcmp.lt.s32.totalorder %v3581, 2
      %vm3602 = vcmp.lt.s32.totalorder %v3581, 3
      %vm3603 = vcmp.lt.s32.totalorder %v3581, 4
      %v3604 = vsel %vm3600, %v3584, %v3587
      %v3605 = vsel %vm3603, %v3593, 2102212464
      %v3606 = vsel %vm3602, %v3590, %v3605
      %v3607 = vsel %vm3601, %v3604, %v3606
      %v3608 = vsel %vm3600, %v3587, %v3590
      %v3609 = vsel %vm3603, %v3596, 920167782
      %v3610 = vsel %vm3602, %v3593, %v3609
      %v3611 = vsel %vm3601, %v3608, %v3610
      %v3612 = vsel %vm3600, %v3590, %v3593
      %v3613 = vsel %vm3603, %v3599, 1326507024
      %v3614 = vsel %vm3602, %v3596, %v3613
      %v3615 = vsel %vm3601, %v3612, %v3614
      %v3616 = vshll.u32 %v3576, 8
      %v3617 = vmul.u32.u64.compose %v3616, %v3615
      %v3618 = vextract.low.u32 %v3617
      %v3619 = vextract.high.u32 %v3617
      %v3620 = vmul.u32.u64.compose %v3616, %v3611
      %v3621 = vextract.low.u32 %v3620
      %v3622 = vextract.high.u32 %v3620
      %v3623 = vmul.u32 %v3616, %v3607
      %v3624 = vadd.s32 %v3619, %v3621
      %vm3625 = vc.u32 %v3619, %v3621
      %v3626 = vadd.s32 %v3622, 1
      %v3627 = vsel %vm3625, %v3626, %v3622
      %v3628 = vadd.s32 %v3623, %v3627
      %v3629 = vadd.s32 %v3628, 536870912
      %v3630 = vshrl.u32 %v3629, 30
      %v3631 = vshll.u32 %v3630, 30
      %v3632 = vsub.s32 %v3628, %v3631
      %vm3633 = vcmp.lt.s32.totalorder %v3632, 0
      %v3634 = vsub.s32 0, %v3632
      %v3635 = vsel %vm3633, %v3634, %v3632
      %v3636 = vclz %v3635
      %v3637 = vsub.s32 %v3636, 2
      %vm3638 = vcmp.gt.s32.totalorder 0, %v3637
      %v3639 = vsel %vm3638, 0, %v3637
      %v3640 = vsub.s32 32, %v3639
      %v3641 = vshll.u32 %v3632, %v3639
      %v3642 = vshrl.u32 %v3624, %v3640
      %v3643 = vor.u32 %v3641, %v3642
      %v3644 = vsub.s32 4294967266, %v3639
      %v3645 = vadd.s32 %v3644, 127
      %v3646 = vshll.u32 %v3645, 23
      %v3647 = vor.u32 4788187, %v3646
      %v3648 = vand.u32 2147483647, %v3647
      %v3650 = vcvt.s32.f32 %v3643
      %v3651 = vmul.f32 %v3650, %v3648
      %v3652 = vxor.u32 %v3651, 2147483648
      %v3653 = vsel %vm3570, %v3652, %v3651
      %v3654 = vsub.s32 4, %v3630
      %v3655 = vsel %vm3570, %v3654, %v3630
      %v3656 = vsel %vm3569, %v1647, %v3653
      %v3657 = vsel %vm3569, 0, %v3655
      %v3658 = vcosq.f32.pop %v3656
      %v3659 = vsinq.f32.pop %v3656
      %vm3660 = vweird.f32 %v1647
      %v3661 = vadd.s32 %v3657, 3
      %v3662 = vand.u32 %v3661, 3
      %vm3663 = vcmp.lt.s32.totalorder %v3662, 2
      %vm3664 = vcmp.eq.s32.totalorder %v3662, 0
      %v3665 = vxor.u32 %v3659, 2147483648
      %v3666 = vsel %vm3664, %v3658, %v3665
      %vm3667 = vcmp.eq.s32.totalorder %v3662, 2
      %v3668 = vxor.u32 %v3658, 2147483648
      %v3669 = vsel %vm3667, %v3668, %v3659
      %v3670 = vsel %vm3663, %v3666, %v3669
      %v3671 = vsel %vm3660, nan, %v3670
      %v3672 = vand.u32 2147483647, %v1648
      %vm3673 = vcmp.le.f32.partialorder %v3672, 0.7853982
      %vm3674 = vcmp.lt.s32.totalorder %v1648, 0
      %v3675 = vand.u32 %v1648, 2139095040
      %v3676 = vshrl.u32 %v3675, 23
      %v3677 = vsub.s32 %v3676, 127
      %v3678 = vand.u32 2147483647, %v1648
      %v3679 = vand.u32 %v3678, 8388607
      %v3680 = vor.u32 %v3679, 8388608
      %v3681 = vsub.s32 0, %v3680
      %v3682 = vadd.s32 %v3677, 1
      %vm3683 = vcmp.gt.s32.totalorder %v3682, 0
      %v3684 = vsel %vm3683, %v3682, 0
      %v3685 = vshrl.u32 %v3684, 5
      %v3686 = vand.u32 %v3684, 31
      %v3687 = vsub.s32 32, %v3686
      %v3688 = vshrl.u32 683565275, %v3687
      %v3689 = vshll.u32 683565275, %v3686
      %v3690 = vshrl.u32 2475754826, %v3687
      %v3691 = vor.u32 %v3689, %v3690
      %v3692 = vshll.u32 2475754826, %v3686
      %v3693 = vshrl.u32 2131351028, %v3687
      %v3694 = vor.u32 %v3692, %v3693
      %v3695 = vshll.u32 2131351028, %v3686
      %v3696 = vshrl.u32 2102212464, %v3687
      %v3697 = vor.u32 %v3695, %v3696
      %v3698 = vshll.u32 2102212464, %v3686
      %v3699 = vshrl.u32 920167782, %v3687
      %v3700 = vor.u32 %v3698, %v3699
      %v3701 = vshll.u32 920167782, %v3686
      %v3702 = vshrl.u32 1326507024, %v3687
      %v3703 = vor.u32 %v3701, %v3702
      %vm3704 = vcmp.lt.s32.totalorder %v3685, 1
      %vm3705 = vcmp.lt.s32.totalorder %v3685, 2
      %vm3706 = vcmp.lt.s32.totalorder %v3685, 3
      %vm3707 = vcmp.lt.s32.totalorder %v3685, 4
      %v3708 = vsel %vm3704, %v3688, %v3691
      %v3709 = vsel %vm3707, %v3697, 2102212464
      %v3710 = vsel %vm3706, %v3694, %v3709
      %v3711 = vsel %vm3705, %v3708, %v3710
      %v3712 = vsel %vm3704, %v3691, %v3694
      %v3713 = vsel %vm3707, %v3700, 920167782
      %v3714 = vsel %vm3706, %v3697, %v3713
      %v3715 = vsel %vm3705, %v3712, %v3714
      %v3716 = vsel %vm3704, %v3694, %v3697
      %v3717 = vsel %vm3707, %v3703, 1326507024
      %v3718 = vsel %vm3706, %v3700, %v3717
      %v3719 = vsel %vm3705, %v3716, %v3718
      %v3720 = vshll.u32 %v3680, 8
      %v3721 = vmul.u32.u64.compose %v3720, %v3719
      %v3722 = vextract.low.u32 %v3721
      %v3723 = vextract.high.u32 %v3721
      %v3724 = vmul.u32.u64.compose %v3720, %v3715
      %v3725 = vextract.low.u32 %v3724
      %v3726 = vextract.high.u32 %v3724
      %v3727 = vmul.u32 %v3720, %v3711
      %v3728 = vadd.s32 %v3723, %v3725
      %vm3729 = vc.u32 %v3723, %v3725
      %v3730 = vadd.s32 %v3726, 1
      %v3731 = vsel %vm3729, %v3730, %v3726
      %v3732 = vadd.s32 %v3727, %v3731
      %v3733 = vadd.s32 %v3732, 536870912
      %v3734 = vshrl.u32 %v3733, 30
      %v3735 = vshll.u32 %v3734, 30
      %v3736 = vsub.s32 %v3732, %v3735
      %vm3737 = vcmp.lt.s32.totalorder %v3736, 0
      %v3738 = vsub.s32 0, %v3736
      %v3739 = vsel %vm3737, %v3738, %v3736
      %v3740 = vclz %v3739
      %v3741 = vsub.s32 %v3740, 2
      %vm3742 = vcmp.gt.s32.totalorder 0, %v3741
      %v3743 = vsel %vm3742, 0, %v3741
      %v3744 = vsub.s32 32, %v3743
      %v3745 = vshll.u32 %v3736, %v3743
      %v3746 = vshrl.u32 %v3728, %v3744
      %v3747 = vor.u32 %v3745, %v3746
      %v3748 = vsub.s32 4294967266, %v3743
      %v3749 = vadd.s32 %v3748, 127
      %v3750 = vshll.u32 %v3749, 23
      %v3751 = vor.u32 4788187, %v3750
      %v3752 = vand.u32 2147483647, %v3751
      %v3754 = vcvt.s32.f32 %v3747
      %v3755 = vmul.f32 %v3754, %v3752
      %v3756 = vxor.u32 %v3755, 2147483648
      %v3757 = vsel %vm3674, %v3756, %v3755
      %v3758 = vsub.s32 4, %v3734
      %v3759 = vsel %vm3674, %v3758, %v3734
      %v3760 = vsel %vm3673, %v1648, %v3757
      %v3761 = vsel %vm3673, 0, %v3759
      %v3762 = vcosq.f32.pop %v3760
      %v3763 = vsinq.f32.pop %v3760
      %vm3764 = vweird.f32 %v1648
      %v3765 = vadd.s32 %v3761, 3
      %v3766 = vand.u32 %v3765, 3
      %vm3767 = vcmp.lt.s32.totalorder %v3766, 2
      %vm3768 = vcmp.eq.s32.totalorder %v3766, 0
      %v3769 = vxor.u32 %v3763, 2147483648
      %v3770 = vsel %vm3768, %v3762, %v3769
      %vm3771 = vcmp.eq.s32.totalorder %v3766, 2
      %v3772 = vxor.u32 %v3762, 2147483648
      %v3773 = vsel %vm3771, %v3772, %v3763
      %v3774 = vsel %vm3767, %v3770, %v3773
      %v3775 = vsel %vm3764, nan, %v3774
      %v3776 = vand.u32 2147483647, %v1649
      %vm3777 = vcmp.le.f32.partialorder %v3776, 0.7853982
      %vm3778 = vcmp.lt.s32.totalorder %v1649, 0
      %v3779 = vand.u32 %v1649, 2139095040
      %v3780 = vshrl.u32 %v3779, 23
      %v3781 = vsub.s32 %v3780, 127
      %v3782 = vand.u32 2147483647, %v1649
      %v3783 = vand.u32 %v3782, 8388607
      %v3784 = vor.u32 %v3783, 8388608
      %v3785 = vsub.s32 0, %v3784
      %v3786 = vadd.s32 %v3781, 1
      %vm3787 = vcmp.gt.s32.totalorder %v3786, 0
      %v3788 = vsel %vm3787, %v3786, 0
      %v3789 = vshrl.u32 %v3788, 5
      %v3790 = vand.u32 %v3788, 31
      %v3791 = vsub.s32 32, %v3790
      %v3792 = vshrl.u32 683565275, %v3791
      %v3793 = vshll.u32 683565275, %v3790
      %v3794 = vshrl.u32 2475754826, %v3791
      %v3795 = vor.u32 %v3793, %v3794
      %v3796 = vshll.u32 2475754826, %v3790
      %v3797 = vshrl.u32 2131351028, %v3791
      %v3798 = vor.u32 %v3796, %v3797
      %v3799 = vshll.u32 2131351028, %v3790
      %v3800 = vshrl.u32 2102212464, %v3791
      %v3801 = vor.u32 %v3799, %v3800
      %v3802 = vshll.u32 2102212464, %v3790
      %v3803 = vshrl.u32 920167782, %v3791
      %v3804 = vor.u32 %v3802, %v3803
      %v3805 = vshll.u32 920167782, %v3790
      %v3806 = vshrl.u32 1326507024, %v3791
      %v3807 = vor.u32 %v3805, %v3806
      %vm3808 = vcmp.lt.s32.totalorder %v3789, 1
      %vm3809 = vcmp.lt.s32.totalorder %v3789, 2
      %vm3810 = vcmp.lt.s32.totalorder %v3789, 3
      %vm3811 = vcmp.lt.s32.totalorder %v3789, 4
      %v3812 = vsel %vm3808, %v3792, %v3795
      %v3813 = vsel %vm3811, %v3801, 2102212464
      %v3814 = vsel %vm3810, %v3798, %v3813
      %v3815 = vsel %vm3809, %v3812, %v3814
      %v3816 = vsel %vm3808, %v3795, %v3798
      %v3817 = vsel %vm3811, %v3804, 920167782
      %v3818 = vsel %vm3810, %v3801, %v3817
      %v3819 = vsel %vm3809, %v3816, %v3818
      %v3820 = vsel %vm3808, %v3798, %v3801
      %v3821 = vsel %vm3811, %v3807, 1326507024
      %v3822 = vsel %vm3810, %v3804, %v3821
      %v3823 = vsel %vm3809, %v3820, %v3822
      %v3824 = vshll.u32 %v3784, 8
      %v3825 = vmul.u32.u64.compose %v3824, %v3823
      %v3826 = vextract.low.u32 %v3825
      %v3827 = vextract.high.u32 %v3825
      %v3828 = vmul.u32.u64.compose %v3824, %v3819
      %v3829 = vextract.low.u32 %v3828
      %v3830 = vextract.high.u32 %v3828
      %v3831 = vmul.u32 %v3824, %v3815
      %v3832 = vadd.s32 %v3827, %v3829
      %vm3833 = vc.u32 %v3827, %v3829
      %v3834 = vadd.s32 %v3830, 1
      %v3835 = vsel %vm3833, %v3834, %v3830
      %v3836 = vadd.s32 %v3831, %v3835
      %v3837 = vadd.s32 %v3836, 536870912
      %v3838 = vshrl.u32 %v3837, 30
      %v3839 = vshll.u32 %v3838, 30
      %v3840 = vsub.s32 %v3836, %v3839
      %vm3841 = vcmp.lt.s32.totalorder %v3840, 0
      %v3842 = vsub.s32 0, %v3840
      %v3843 = vsel %vm3841, %v3842, %v3840
      %v3844 = vclz %v3843
      %v3845 = vsub.s32 %v3844, 2
      %vm3846 = vcmp.gt.s32.totalorder 0, %v3845
      %v3847 = vsel %vm3846, 0, %v3845
      %v3848 = vsub.s32 32, %v3847
      %v3849 = vshll.u32 %v3840, %v3847
      %v3850 = vshrl.u32 %v3832, %v3848
      %v3851 = vor.u32 %v3849, %v3850
      %v3852 = vsub.s32 4294967266, %v3847
      %v3853 = vadd.s32 %v3852, 127
      %v3854 = vshll.u32 %v3853, 23
      %v3855 = vor.u32 4788187, %v3854
      %v3856 = vand.u32 2147483647, %v3855
      %v3858 = vcvt.s32.f32 %v3851
      %v3859 = vmul.f32 %v3858, %v3856
      %v3860 = vxor.u32 %v3859, 2147483648
      %v3861 = vsel %vm3778, %v3860, %v3859
      %v3862 = vsub.s32 4, %v3838
      %v3863 = vsel %vm3778, %v3862, %v3838
      %v3864 = vsel %vm3777, %v1649, %v3861
      %v3865 = vsel %vm3777, 0, %v3863
      %v3866 = vcosq.f32.pop %v3864
      %v3867 = vsinq.f32.pop %v3864
      %vm3868 = vweird.f32 %v1649
      %v3869 = vadd.s32 %v3865, 3
      %v3870 = vand.u32 %v3869, 3
      %vm3871 = vcmp.lt.s32.totalorder %v3870, 2
      %vm3872 = vcmp.eq.s32.totalorder %v3870, 0
      %v3873 = vxor.u32 %v3867, 2147483648
      %v3874 = vsel %vm3872, %v3866, %v3873
      %vm3875 = vcmp.eq.s32.totalorder %v3870, 2
      %v3876 = vxor.u32 %v3866, 2147483648
      %v3877 = vsel %vm3875, %v3876, %v3867
      %v3878 = vsel %vm3871, %v3874, %v3877
      %v3879 = vsel %vm3868, nan, %v3878
      %v3880 = vand.u32 2147483647, %v1650
      %vm3881 = vcmp.le.f32.partialorder %v3880, 0.7853982
      %vm3882 = vcmp.lt.s32.totalorder %v1650, 0
      %v3883 = vand.u32 %v1650, 2139095040
      %v3884 = vshrl.u32 %v3883, 23
      %v3885 = vsub.s32 %v3884, 127
      %v3886 = vand.u32 2147483647, %v1650
      %v3887 = vand.u32 %v3886, 8388607
      %v3888 = vor.u32 %v3887, 8388608
      %v3889 = vsub.s32 0, %v3888
      %v3890 = vadd.s32 %v3885, 1
      %vm3891 = vcmp.gt.s32.totalorder %v3890, 0
      %v3892 = vsel %vm3891, %v3890, 0
      %v3893 = vshrl.u32 %v3892, 5
      %v3894 = vand.u32 %v3892, 31
      %v3895 = vsub.s32 32, %v3894
      %v3896 = vshrl.u32 683565275, %v3895
      %v3897 = vshll.u32 683565275, %v3894
      %v3898 = vshrl.u32 2475754826, %v3895
      %v3899 = vor.u32 %v3897, %v3898
      %v3900 = vshll.u32 2475754826, %v3894
      %v3901 = vshrl.u32 2131351028, %v3895
      %v3902 = vor.u32 %v3900, %v3901
      %v3903 = vshll.u32 2131351028, %v3894
      %v3904 = vshrl.u32 2102212464, %v3895
      %v3905 = vor.u32 %v3903, %v3904
      %v3906 = vshll.u32 2102212464, %v3894
      %v3907 = vshrl.u32 920167782, %v3895
      %v3908 = vor.u32 %v3906, %v3907
      %v3909 = vshll.u32 920167782, %v3894
      %v3910 = vshrl.u32 1326507024, %v3895
      %v3911 = vor.u32 %v3909, %v3910
      %vm3912 = vcmp.lt.s32.totalorder %v3893, 1
      %vm3913 = vcmp.lt.s32.totalorder %v3893, 2
      %vm3914 = vcmp.lt.s32.totalorder %v3893, 3
      %vm3915 = vcmp.lt.s32.totalorder %v3893, 4
      %v3916 = vsel %vm3912, %v3896, %v3899
      %v3917 = vsel %vm3915, %v3905, 2102212464
      %v3918 = vsel %vm3914, %v3902, %v3917
      %v3919 = vsel %vm3913, %v3916, %v3918
      %v3920 = vsel %vm3912, %v3899, %v3902
      %v3921 = vsel %vm3915, %v3908, 920167782
      %v3922 = vsel %vm3914, %v3905, %v3921
      %v3923 = vsel %vm3913, %v3920, %v3922
      %v3924 = vsel %vm3912, %v3902, %v3905
      %v3925 = vsel %vm3915, %v3911, 1326507024
      %v3926 = vsel %vm3914, %v3908, %v3925
      %v3927 = vsel %vm3913, %v3924, %v3926
      %v3928 = vshll.u32 %v3888, 8
      %v3929 = vmul.u32.u64.compose %v3928, %v3927
      %v3930 = vextract.low.u32 %v3929
      %v3931 = vextract.high.u32 %v3929
      %v3932 = vmul.u32.u64.compose %v3928, %v3923
      %v3933 = vextract.low.u32 %v3932
      %v3934 = vextract.high.u32 %v3932
      %v3935 = vmul.u32 %v3928, %v3919
      %v3936 = vadd.s32 %v3931, %v3933
      %vm3937 = vc.u32 %v3931, %v3933
      %v3938 = vadd.s32 %v3934, 1
      %v3939 = vsel %vm3937, %v3938, %v3934
      %v3940 = vadd.s32 %v3935, %v3939
      %v3941 = vadd.s32 %v3940, 536870912
      %v3942 = vshrl.u32 %v3941, 30
      %v3943 = vshll.u32 %v3942, 30
      %v3944 = vsub.s32 %v3940, %v3943
      %vm3945 = vcmp.lt.s32.totalorder %v3944, 0
      %v3946 = vsub.s32 0, %v3944
      %v3947 = vsel %vm3945, %v3946, %v3944
      %v3948 = vclz %v3947
      %v3949 = vsub.s32 %v3948, 2
      %vm3950 = vcmp.gt.s32.totalorder 0, %v3949
      %v3951 = vsel %vm3950, 0, %v3949
      %v3952 = vsub.s32 32, %v3951
      %v3953 = vshll.u32 %v3944, %v3951
      %v3954 = vshrl.u32 %v3936, %v3952
      %v3955 = vor.u32 %v3953, %v3954
      %v3956 = vsub.s32 4294967266, %v3951
      %v3957 = vadd.s32 %v3956, 127
      %v3958 = vshll.u32 %v3957, 23
      %v3959 = vor.u32 4788187, %v3958
      %v3960 = vand.u32 2147483647, %v3959
      %v3962 = vcvt.s32.f32 %v3955
      %v3963 = vmul.f32 %v3962, %v3960
      %v3964 = vxor.u32 %v3963, 2147483648
      %v3965 = vsel %vm3882, %v3964, %v3963
      %v3966 = vsub.s32 4, %v3942
      %v3967 = vsel %vm3882, %v3966, %v3942
      %v3968 = vsel %vm3881, %v1650, %v3965
      %v3969 = vsel %vm3881, 0, %v3967
      %v3970 = vcosq.f32.pop %v3968
      %v3971 = vsinq.f32.pop %v3968
      %vm3972 = vweird.f32 %v1650
      %v3973 = vadd.s32 %v3969, 3
      %v3974 = vand.u32 %v3973, 3
      %vm3975 = vcmp.lt.s32.totalorder %v3974, 2
      %vm3976 = vcmp.eq.s32.totalorder %v3974, 0
      %v3977 = vxor.u32 %v3971, 2147483648
      %v3978 = vsel %vm3976, %v3970, %v3977
      %vm3979 = vcmp.eq.s32.totalorder %v3974, 2
      %v3980 = vxor.u32 %v3970, 2147483648
      %v3981 = vsel %vm3979, %v3980, %v3971
      %v3982 = vsel %vm3975, %v3978, %v3981
      %v3983 = vsel %vm3972, nan, %v3982
      %v3984 = vand.u32 2147483647, %v1651
      %vm3985 = vcmp.le.f32.partialorder %v3984, 0.7853982
      %vm3986 = vcmp.lt.s32.totalorder %v1651, 0
      %v3987 = vand.u32 %v1651, 2139095040
      %v3988 = vshrl.u32 %v3987, 23
      %v3989 = vsub.s32 %v3988, 127
      %v3990 = vand.u32 2147483647, %v1651
      %v3991 = vand.u32 %v3990, 8388607
      %v3992 = vor.u32 %v3991, 8388608
      %v3993 = vsub.s32 0, %v3992
      %v3994 = vadd.s32 %v3989, 1
      %vm3995 = vcmp.gt.s32.totalorder %v3994, 0
      %v3996 = vsel %vm3995, %v3994, 0
      %v3997 = vshrl.u32 %v3996, 5
      %v3998 = vand.u32 %v3996, 31
      %v3999 = vsub.s32 32, %v3998
      %v4000 = vshrl.u32 683565275, %v3999
      %v4001 = vshll.u32 683565275, %v3998
      %v4002 = vshrl.u32 2475754826, %v3999
      %v4003 = vor.u32 %v4001, %v4002
      %v4004 = vshll.u32 2475754826, %v3998
      %v4005 = vshrl.u32 2131351028, %v3999
      %v4006 = vor.u32 %v4004, %v4005
      %v4007 = vshll.u32 2131351028, %v3998
      %v4008 = vshrl.u32 2102212464, %v3999
      %v4009 = vor.u32 %v4007, %v4008
      %v4010 = vshll.u32 2102212464, %v3998
      %v4011 = vshrl.u32 920167782, %v3999
      %v4012 = vor.u32 %v4010, %v4011
      %v4013 = vshll.u32 920167782, %v3998
      %v4014 = vshrl.u32 1326507024, %v3999
      %v4015 = vor.u32 %v4013, %v4014
      %vm4016 = vcmp.lt.s32.totalorder %v3997, 1
      %vm4017 = vcmp.lt.s32.totalorder %v3997, 2
      %vm4018 = vcmp.lt.s32.totalorder %v3997, 3
      %vm4019 = vcmp.lt.s32.totalorder %v3997, 4
      %v4020 = vsel %vm4016, %v4000, %v4003
      %v4021 = vsel %vm4019, %v4009, 2102212464
      %v4022 = vsel %vm4018, %v4006, %v4021
      %v4023 = vsel %vm4017, %v4020, %v4022
      %v4024 = vsel %vm4016, %v4003, %v4006
      %v4025 = vsel %vm4019, %v4012, 920167782
      %v4026 = vsel %vm4018, %v4009, %v4025
      %v4027 = vsel %vm4017, %v4024, %v4026
      %v4028 = vsel %vm4016, %v4006, %v4009
      %v4029 = vsel %vm4019, %v4015, 1326507024
      %v4030 = vsel %vm4018, %v4012, %v4029
      %v4031 = vsel %vm4017, %v4028, %v4030
      %v4032 = vshll.u32 %v3992, 8
      %v4033 = vmul.u32.u64.compose %v4032, %v4031
      %v4034 = vextract.low.u32 %v4033
      %v4035 = vextract.high.u32 %v4033
      %v4036 = vmul.u32.u64.compose %v4032, %v4027
      %v4037 = vextract.low.u32 %v4036
      %v4038 = vextract.high.u32 %v4036
      %v4039 = vmul.u32 %v4032, %v4023
      %v4040 = vadd.s32 %v4035, %v4037
      %vm4041 = vc.u32 %v4035, %v4037
      %v4042 = vadd.s32 %v4038, 1
      %v4043 = vsel %vm4041, %v4042, %v4038
      %v4044 = vadd.s32 %v4039, %v4043
      %v4045 = vadd.s32 %v4044, 536870912
      %v4046 = vshrl.u32 %v4045, 30
      %v4047 = vshll.u32 %v4046, 30
      %v4048 = vsub.s32 %v4044, %v4047
      %vm4049 = vcmp.lt.s32.totalorder %v4048, 0
      %v4050 = vsub.s32 0, %v4048
      %v4051 = vsel %vm4049, %v4050, %v4048
      %v4052 = vclz %v4051
      %v4053 = vsub.s32 %v4052, 2
      %vm4054 = vcmp.gt.s32.totalorder 0, %v4053
      %v4055 = vsel %vm4054, 0, %v4053
      %v4056 = vsub.s32 32, %v4055
      %v4057 = vshll.u32 %v4048, %v4055
      %v4058 = vshrl.u32 %v4040, %v4056
      %v4059 = vor.u32 %v4057, %v4058
      %v4060 = vsub.s32 4294967266, %v4055
      %v4061 = vadd.s32 %v4060, 127
      %v4062 = vshll.u32 %v4061, 23
      %v4063 = vor.u32 4788187, %v4062
      %v4064 = vand.u32 2147483647, %v4063
      %v4066 = vcvt.s32.f32 %v4059
      %v4067 = vmul.f32 %v4066, %v4064
      %v4068 = vxor.u32 %v4067, 2147483648
      %v4069 = vsel %vm3986, %v4068, %v4067
      %v4070 = vsub.s32 4, %v4046
      %v4071 = vsel %vm3986, %v4070, %v4046
      %v4072 = vsel %vm3985, %v1651, %v4069
      %v4073 = vsel %vm3985, 0, %v4071
      %v4074 = vcosq.f32.pop %v4072
      %v4075 = vsinq.f32.pop %v4072
      %vm4076 = vweird.f32 %v1651
      %v4077 = vadd.s32 %v4073, 3
      %v4078 = vand.u32 %v4077, 3
      %vm4079 = vcmp.lt.s32.totalorder %v4078, 2
      %vm4080 = vcmp.eq.s32.totalorder %v4078, 0
      %v4081 = vxor.u32 %v4075, 2147483648
      %v4082 = vsel %vm4080, %v4074, %v4081
      %vm4083 = vcmp.eq.s32.totalorder %v4078, 2
      %v4084 = vxor.u32 %v4074, 2147483648
      %v4085 = vsel %vm4083, %v4084, %v4075
      %v4086 = vsel %vm4079, %v4082, %v4085
      %v4087 = vsel %vm4076, nan, %v4086
      %v4088 = vand.u32 2147483647, %v1652
      %vm4089 = vcmp.le.f32.partialorder %v4088, 0.7853982
      %vm4090 = vcmp.lt.s32.totalorder %v1652, 0
      %v4091 = vand.u32 %v1652, 2139095040
      %v4092 = vshrl.u32 %v4091, 23
      %v4093 = vsub.s32 %v4092, 127
      %v4094 = vand.u32 2147483647, %v1652
      %v4095 = vand.u32 %v4094, 8388607
      %v4096 = vor.u32 %v4095, 8388608
      %v4097 = vsub.s32 0, %v4096
      %v4098 = vadd.s32 %v4093, 1
      %vm4099 = vcmp.gt.s32.totalorder %v4098, 0
      %v4100 = vsel %vm4099, %v4098, 0
      %v4101 = vshrl.u32 %v4100, 5
      %v4102 = vand.u32 %v4100, 31
      %v4103 = vsub.s32 32, %v4102
      %v4104 = vshrl.u32 683565275, %v4103
      %v4105 = vshll.u32 683565275, %v4102
      %v4106 = vshrl.u32 2475754826, %v4103
      %v4107 = vor.u32 %v4105, %v4106
      %v4108 = vshll.u32 2475754826, %v4102
      %v4109 = vshrl.u32 2131351028, %v4103
      %v4110 = vor.u32 %v4108, %v4109
      %v4111 = vshll.u32 2131351028, %v4102
      %v4112 = vshrl.u32 2102212464, %v4103
      %v4113 = vor.u32 %v4111, %v4112
      %v4114 = vshll.u32 2102212464, %v4102
      %v4115 = vshrl.u32 920167782, %v4103
      %v4116 = vor.u32 %v4114, %v4115
      %v4117 = vshll.u32 920167782, %v4102
      %v4118 = vshrl.u32 1326507024, %v4103
      %v4119 = vor.u32 %v4117, %v4118
      %vm4120 = vcmp.lt.s32.totalorder %v4101, 1
      %vm4121 = vcmp.lt.s32.totalorder %v4101, 2
      %vm4122 = vcmp.lt.s32.totalorder %v4101, 3
      %vm4123 = vcmp.lt.s32.totalorder %v4101, 4
      %v4124 = vsel %vm4120, %v4104, %v4107
      %v4125 = vsel %vm4123, %v4113, 2102212464
      %v4126 = vsel %vm4122, %v4110, %v4125
      %v4127 = vsel %vm4121, %v4124, %v4126
      %v4128 = vsel %vm4120, %v4107, %v4110
      %v4129 = vsel %vm4123, %v4116, 920167782
      %v4130 = vsel %vm4122, %v4113, %v4129
      %v4131 = vsel %vm4121, %v4128, %v4130
      %v4132 = vsel %vm4120, %v4110, %v4113
      %v4133 = vsel %vm4123, %v4119, 1326507024
      %v4134 = vsel %vm4122, %v4116, %v4133
      %v4135 = vsel %vm4121, %v4132, %v4134
      %v4136 = vshll.u32 %v4096, 8
      %v4137 = vmul.u32.u64.compose %v4136, %v4135
      %v4138 = vextract.low.u32 %v4137
      %v4139 = vextract.high.u32 %v4137
      %v4140 = vmul.u32.u64.compose %v4136, %v4131
      %v4141 = vextract.low.u32 %v4140
      %v4142 = vextract.high.u32 %v4140
      %v4143 = vmul.u32 %v4136, %v4127
      %v4144 = vadd.s32 %v4139, %v4141
      %vm4145 = vc.u32 %v4139, %v4141
      %v4146 = vadd.s32 %v4142, 1
      %v4147 = vsel %vm4145, %v4146, %v4142
      %v4148 = vadd.s32 %v4143, %v4147
      %v4149 = vadd.s32 %v4148, 536870912
      %v4150 = vshrl.u32 %v4149, 30
      %v4151 = vshll.u32 %v4150, 30
      %v4152 = vsub.s32 %v4148, %v4151
      %vm4153 = vcmp.lt.s32.totalorder %v4152, 0
      %v4154 = vsub.s32 0, %v4152
      %v4155 = vsel %vm4153, %v4154, %v4152
      %v4156 = vclz %v4155
      %v4157 = vsub.s32 %v4156, 2
      %vm4158 = vcmp.gt.s32.totalorder 0, %v4157
      %v4159 = vsel %vm4158, 0, %v4157
      %v4160 = vsub.s32 32, %v4159
      %v4161 = vshll.u32 %v4152, %v4159
      %v4162 = vshrl.u32 %v4144, %v4160
      %v4163 = vor.u32 %v4161, %v4162
      %v4164 = vsub.s32 4294967266, %v4159
      %v4165 = vadd.s32 %v4164, 127
      %v4166 = vshll.u32 %v4165, 23
      %v4167 = vor.u32 4788187, %v4166
      %v4168 = vand.u32 2147483647, %v4167
      %v4170 = vcvt.s32.f32 %v4163
      %v4171 = vmul.f32 %v4170, %v4168
      %v4172 = vxor.u32 %v4171, 2147483648
      %v4173 = vsel %vm4090, %v4172, %v4171
      %v4174 = vsub.s32 4, %v4150
      %v4175 = vsel %vm4090, %v4174, %v4150
      %v4176 = vsel %vm4089, %v1652, %v4173
      %v4177 = vsel %vm4089, 0, %v4175
      %v4178 = vcosq.f32.pop %v4176
      %v4179 = vsinq.f32.pop %v4176
      %vm4180 = vweird.f32 %v1652
      %v4181 = vadd.s32 %v4177, 3
      %v4182 = vand.u32 %v4181, 3
      %vm4183 = vcmp.lt.s32.totalorder %v4182, 2
      %vm4184 = vcmp.eq.s32.totalorder %v4182, 0
      %v4185 = vxor.u32 %v4179, 2147483648
      %v4186 = vsel %vm4184, %v4178, %v4185
      %vm4187 = vcmp.eq.s32.totalorder %v4182, 2
      %v4188 = vxor.u32 %v4178, 2147483648
      %v4189 = vsel %vm4187, %v4188, %v4179
      %v4190 = vsel %vm4183, %v4186, %v4189
      %v4191 = vsel %vm4180, nan, %v4190
      %v4192 = vand.u32 2147483647, %v1653
      %vm4193 = vcmp.le.f32.partialorder %v4192, 0.7853982
      %vm4194 = vcmp.lt.s32.totalorder %v1653, 0
      %v4195 = vand.u32 %v1653, 2139095040
      %v4196 = vshrl.u32 %v4195, 23
      %v4197 = vsub.s32 %v4196, 127
      %v4198 = vand.u32 2147483647, %v1653
      %v4199 = vand.u32 %v4198, 8388607
      %v4200 = vor.u32 %v4199, 8388608
      %v4201 = vsub.s32 0, %v4200
      %v4202 = vadd.s32 %v4197, 1
      %vm4203 = vcmp.gt.s32.totalorder %v4202, 0
      %v4204 = vsel %vm4203, %v4202, 0
      %v4205 = vshrl.u32 %v4204, 5
      %v4206 = vand.u32 %v4204, 31
      %v4207 = vsub.s32 32, %v4206
      %v4208 = vshrl.u32 683565275, %v4207
      %v4209 = vshll.u32 683565275, %v4206
      %v4210 = vshrl.u32 2475754826, %v4207
      %v4211 = vor.u32 %v4209, %v4210
      %v4212 = vshll.u32 2475754826, %v4206
      %v4213 = vshrl.u32 2131351028, %v4207
      %v4214 = vor.u32 %v4212, %v4213
      %v4215 = vshll.u32 2131351028, %v4206
      %v4216 = vshrl.u32 2102212464, %v4207
      %v4217 = vor.u32 %v4215, %v4216
      %v4218 = vshll.u32 2102212464, %v4206
      %v4219 = vshrl.u32 920167782, %v4207
      %v4220 = vor.u32 %v4218, %v4219
      %v4221 = vshll.u32 920167782, %v4206
      %v4222 = vshrl.u32 1326507024, %v4207
      %v4223 = vor.u32 %v4221, %v4222
      %vm4224 = vcmp.lt.s32.totalorder %v4205, 1
      %vm4225 = vcmp.lt.s32.totalorder %v4205, 2
      %vm4226 = vcmp.lt.s32.totalorder %v4205, 3
      %vm4227 = vcmp.lt.s32.totalorder %v4205, 4
      %v4228 = vsel %vm4224, %v4208, %v4211
      %v4229 = vsel %vm4227, %v4217, 2102212464
      %v4230 = vsel %vm4226, %v4214, %v4229
      %v4231 = vsel %vm4225, %v4228, %v4230
      %v4232 = vsel %vm4224, %v4211, %v4214
      %v4233 = vsel %vm4227, %v4220, 920167782
      %v4234 = vsel %vm4226, %v4217, %v4233
      %v4235 = vsel %vm4225, %v4232, %v4234
      %v4236 = vsel %vm4224, %v4214, %v4217
      %v4237 = vsel %vm4227, %v4223, 1326507024
      %v4238 = vsel %vm4226, %v4220, %v4237
      %v4239 = vsel %vm4225, %v4236, %v4238
      %v4240 = vshll.u32 %v4200, 8
      %v4241 = vmul.u32.u64.compose %v4240, %v4239
      %v4242 = vextract.low.u32 %v4241
      %v4243 = vextract.high.u32 %v4241
      %v4244 = vmul.u32.u64.compose %v4240, %v4235
      %v4245 = vextract.low.u32 %v4244
      %v4246 = vextract.high.u32 %v4244
      %v4247 = vmul.u32 %v4240, %v4231
      %v4248 = vadd.s32 %v4243, %v4245
      %vm4249 = vc.u32 %v4243, %v4245
      %v4250 = vadd.s32 %v4246, 1
      %v4251 = vsel %vm4249, %v4250, %v4246
      %v4252 = vadd.s32 %v4247, %v4251
      %v4253 = vadd.s32 %v4252, 536870912
      %v4254 = vshrl.u32 %v4253, 30
      %v4255 = vshll.u32 %v4254, 30
      %v4256 = vsub.s32 %v4252, %v4255
      %vm4257 = vcmp.lt.s32.totalorder %v4256, 0
      %v4258 = vsub.s32 0, %v4256
      %v4259 = vsel %vm4257, %v4258, %v4256
      %v4260 = vclz %v4259
      %v4261 = vsub.s32 %v4260, 2
      %vm4262 = vcmp.gt.s32.totalorder 0, %v4261
      %v4263 = vsel %vm4262, 0, %v4261
      %v4264 = vsub.s32 32, %v4263
      %v4265 = vshll.u32 %v4256, %v4263
      %v4266 = vshrl.u32 %v4248, %v4264
      %v4267 = vor.u32 %v4265, %v4266
      %v4268 = vsub.s32 4294967266, %v4263
      %v4269 = vadd.s32 %v4268, 127
      %v4270 = vshll.u32 %v4269, 23
      %v4271 = vor.u32 4788187, %v4270
      %v4272 = vand.u32 2147483647, %v4271
      %v4274 = vcvt.s32.f32 %v4267
      %v4275 = vmul.f32 %v4274, %v4272
      %v4276 = vxor.u32 %v4275, 2147483648
      %v4277 = vsel %vm4194, %v4276, %v4275
      %v4278 = vsub.s32 4, %v4254
      %v4279 = vsel %vm4194, %v4278, %v4254
      %v4280 = vsel %vm4193, %v1653, %v4277
      %v4281 = vsel %vm4193, 0, %v4279
      %v4282 = vcosq.f32.pop %v4280
      %v4283 = vsinq.f32.pop %v4280
      %vm4284 = vweird.f32 %v1653
      %v4285 = vadd.s32 %v4281, 3
      %v4286 = vand.u32 %v4285, 3
      %vm4287 = vcmp.lt.s32.totalorder %v4286, 2
      %vm4288 = vcmp.eq.s32.totalorder %v4286, 0
      %v4289 = vxor.u32 %v4283, 2147483648
      %v4290 = vsel %vm4288, %v4282, %v4289
      %vm4291 = vcmp.eq.s32.totalorder %v4286, 2
      %v4292 = vxor.u32 %v4282, 2147483648
      %v4293 = vsel %vm4291, %v4292, %v4283
      %v4294 = vsel %vm4287, %v4290, %v4293
      %v4295 = vsel %vm4284, nan, %v4294
      %v4296 = vand.u32 2147483647, %v1654
      %vm4297 = vcmp.le.f32.partialorder %v4296, 0.7853982
      %vm4298 = vcmp.lt.s32.totalorder %v1654, 0
      %v4299 = vand.u32 %v1654, 2139095040
      %v4300 = vshrl.u32 %v4299, 23
      %v4301 = vsub.s32 %v4300, 127
      %v4302 = vand.u32 2147483647, %v1654
      %v4303 = vand.u32 %v4302, 8388607
      %v4304 = vor.u32 %v4303, 8388608
      %v4305 = vsub.s32 0, %v4304
      %v4306 = vadd.s32 %v4301, 1
      %vm4307 = vcmp.gt.s32.totalorder %v4306, 0
      %v4308 = vsel %vm4307, %v4306, 0
      %v4309 = vshrl.u32 %v4308, 5
      %v4310 = vand.u32 %v4308, 31
      %v4311 = vsub.s32 32, %v4310
      %v4312 = vshrl.u32 683565275, %v4311
      %v4313 = vshll.u32 683565275, %v4310
      %v4314 = vshrl.u32 2475754826, %v4311
      %v4315 = vor.u32 %v4313, %v4314
      %v4316 = vshll.u32 2475754826, %v4310
      %v4317 = vshrl.u32 2131351028, %v4311
      %v4318 = vor.u32 %v4316, %v4317
      %v4319 = vshll.u32 2131351028, %v4310
      %v4320 = vshrl.u32 2102212464, %v4311
      %v4321 = vor.u32 %v4319, %v4320
      %v4322 = vshll.u32 2102212464, %v4310
      %v4323 = vshrl.u32 920167782, %v4311
      %v4324 = vor.u32 %v4322, %v4323
      %v4325 = vshll.u32 920167782, %v4310
      %v4326 = vshrl.u32 1326507024, %v4311
      %v4327 = vor.u32 %v4325, %v4326
      %vm4328 = vcmp.lt.s32.totalorder %v4309, 1
      %vm4329 = vcmp.lt.s32.totalorder %v4309, 2
      %vm4330 = vcmp.lt.s32.totalorder %v4309, 3
      %vm4331 = vcmp.lt.s32.totalorder %v4309, 4
      %v4332 = vsel %vm4328, %v4312, %v4315
      %v4333 = vsel %vm4331, %v4321, 2102212464
      %v4334 = vsel %vm4330, %v4318, %v4333
      %v4335 = vsel %vm4329, %v4332, %v4334
      %v4336 = vsel %vm4328, %v4315, %v4318
      %v4337 = vsel %vm4331, %v4324, 920167782
      %v4338 = vsel %vm4330, %v4321, %v4337
      %v4339 = vsel %vm4329, %v4336, %v4338
      %v4340 = vsel %vm4328, %v4318, %v4321
      %v4341 = vsel %vm4331, %v4327, 1326507024
      %v4342 = vsel %vm4330, %v4324, %v4341
      %v4343 = vsel %vm4329, %v4340, %v4342
      %v4344 = vshll.u32 %v4304, 8
      %v4345 = vmul.u32.u64.compose %v4344, %v4343
      %v4346 = vextract.low.u32 %v4345
      %v4347 = vextract.high.u32 %v4345
      %v4348 = vmul.u32.u64.compose %v4344, %v4339
      %v4349 = vextract.low.u32 %v4348
      %v4350 = vextract.high.u32 %v4348
      %v4351 = vmul.u32 %v4344, %v4335
      %v4352 = vadd.s32 %v4347, %v4349
      %vm4353 = vc.u32 %v4347, %v4349
      %v4354 = vadd.s32 %v4350, 1
      %v4355 = vsel %vm4353, %v4354, %v4350
      %v4356 = vadd.s32 %v4351, %v4355
      %v4357 = vadd.s32 %v4356, 536870912
      %v4358 = vshrl.u32 %v4357, 30
      %v4359 = vshll.u32 %v4358, 30
      %v4360 = vsub.s32 %v4356, %v4359
      %vm4361 = vcmp.lt.s32.totalorder %v4360, 0
      %v4362 = vsub.s32 0, %v4360
      %v4363 = vsel %vm4361, %v4362, %v4360
      %v4364 = vclz %v4363
      %v4365 = vsub.s32 %v4364, 2
      %vm4366 = vcmp.gt.s32.totalorder 0, %v4365
      %v4367 = vsel %vm4366, 0, %v4365
      %v4368 = vsub.s32 32, %v4367
      %v4369 = vshll.u32 %v4360, %v4367
      %v4370 = vshrl.u32 %v4352, %v4368
      %v4371 = vor.u32 %v4369, %v4370
      %v4372 = vsub.s32 4294967266, %v4367
      %v4373 = vadd.s32 %v4372, 127
      %v4374 = vshll.u32 %v4373, 23
      %v4375 = vor.u32 4788187, %v4374
      %v4376 = vand.u32 2147483647, %v4375
      %v4378 = vcvt.s32.f32 %v4371
      %v4379 = vmul.f32 %v4378, %v4376
      %v4380 = vxor.u32 %v4379, 2147483648
      %v4381 = vsel %vm4298, %v4380, %v4379
      %v4382 = vsub.s32 4, %v4358
      %v4383 = vsel %vm4298, %v4382, %v4358
      %v4384 = vsel %vm4297, %v1654, %v4381
      %v4385 = vsel %vm4297, 0, %v4383
      %v4386 = vcosq.f32.pop %v4384
      %v4387 = vsinq.f32.pop %v4384
      %vm4388 = vweird.f32 %v1654
      %v4389 = vadd.s32 %v4385, 3
      %v4390 = vand.u32 %v4389, 3
      %vm4391 = vcmp.lt.s32.totalorder %v4390, 2
      %vm4392 = vcmp.eq.s32.totalorder %v4390, 0
      %v4393 = vxor.u32 %v4387, 2147483648
      %v4394 = vsel %vm4392, %v4386, %v4393
      %vm4395 = vcmp.eq.s32.totalorder %v4390, 2
      %v4396 = vxor.u32 %v4386, 2147483648
      %v4397 = vsel %vm4395, %v4396, %v4387
      %v4398 = vsel %vm4391, %v4394, %v4397
      %v4399 = vsel %vm4388, nan, %v4398
      %v4400 = vand.u32 2147483647, %v1655
      %vm4401 = vcmp.le.f32.partialorder %v4400, 0.7853982
      %vm4402 = vcmp.lt.s32.totalorder %v1655, 0
      %v4403 = vand.u32 %v1655, 2139095040
      %v4404 = vshrl.u32 %v4403, 23
      %v4405 = vsub.s32 %v4404, 127
      %v4406 = vand.u32 2147483647, %v1655
      %v4407 = vand.u32 %v4406, 8388607
      %v4408 = vor.u32 %v4407, 8388608
      %v4409 = vsub.s32 0, %v4408
      %v4410 = vadd.s32 %v4405, 1
      %vm4411 = vcmp.gt.s32.totalorder %v4410, 0
      %v4412 = vsel %vm4411, %v4410, 0
      %v4413 = vshrl.u32 %v4412, 5
      %v4414 = vand.u32 %v4412, 31
      %v4415 = vsub.s32 32, %v4414
      %v4416 = vshrl.u32 683565275, %v4415
      %v4417 = vshll.u32 683565275, %v4414
      %v4418 = vshrl.u32 2475754826, %v4415
      %v4419 = vor.u32 %v4417, %v4418
      %v4420 = vshll.u32 2475754826, %v4414
      %v4421 = vshrl.u32 2131351028, %v4415
      %v4422 = vor.u32 %v4420, %v4421
      %v4423 = vshll.u32 2131351028, %v4414
      %v4424 = vshrl.u32 2102212464, %v4415
      %v4425 = vor.u32 %v4423, %v4424
      %v4426 = vshll.u32 2102212464, %v4414
      %v4427 = vshrl.u32 920167782, %v4415
      %v4428 = vor.u32 %v4426, %v4427
      %v4429 = vshll.u32 920167782, %v4414
      %v4430 = vshrl.u32 1326507024, %v4415
      %v4431 = vor.u32 %v4429, %v4430
      %vm4432 = vcmp.lt.s32.totalorder %v4413, 1
      %vm4433 = vcmp.lt.s32.totalorder %v4413, 2
      %vm4434 = vcmp.lt.s32.totalorder %v4413, 3
      %vm4435 = vcmp.lt.s32.totalorder %v4413, 4
      %v4436 = vsel %vm4432, %v4416, %v4419
      %v4437 = vsel %vm4435, %v4425, 2102212464
      %v4438 = vsel %vm4434, %v4422, %v4437
      %v4439 = vsel %vm4433, %v4436, %v4438
      %v4440 = vsel %vm4432, %v4419, %v4422
      %v4441 = vsel %vm4435, %v4428, 920167782
      %v4442 = vsel %vm4434, %v4425, %v4441
      %v4443 = vsel %vm4433, %v4440, %v4442
      %v4444 = vsel %vm4432, %v4422, %v4425
      %v4445 = vsel %vm4435, %v4431, 1326507024
      %v4446 = vsel %vm4434, %v4428, %v4445
      %v4447 = vsel %vm4433, %v4444, %v4446
      %v4448 = vshll.u32 %v4408, 8
      %v4449 = vmul.u32.u64.compose %v4448, %v4447
      %v4450 = vextract.low.u32 %v4449
      %v4451 = vextract.high.u32 %v4449
      %v4452 = vmul.u32.u64.compose %v4448, %v4443
      %v4453 = vextract.low.u32 %v4452
      %v4454 = vextract.high.u32 %v4452
      %v4455 = vmul.u32 %v4448, %v4439
      %v4456 = vadd.s32 %v4451, %v4453
      %vm4457 = vc.u32 %v4451, %v4453
      %v4458 = vadd.s32 %v4454, 1
      %v4459 = vsel %vm4457, %v4458, %v4454
      %v4460 = vadd.s32 %v4455, %v4459
      %v4461 = vadd.s32 %v4460, 536870912
      %v4462 = vshrl.u32 %v4461, 30
      %v4463 = vshll.u32 %v4462, 30
      %v4464 = vsub.s32 %v4460, %v4463
      %vm4465 = vcmp.lt.s32.totalorder %v4464, 0
      %v4466 = vsub.s32 0, %v4464
      %v4467 = vsel %vm4465, %v4466, %v4464
      %v4468 = vclz %v4467
      %v4469 = vsub.s32 %v4468, 2
      %vm4470 = vcmp.gt.s32.totalorder 0, %v4469
      %v4471 = vsel %vm4470, 0, %v4469
      %v4472 = vsub.s32 32, %v4471
      %v4473 = vshll.u32 %v4464, %v4471
      %v4474 = vshrl.u32 %v4456, %v4472
      %v4475 = vor.u32 %v4473, %v4474
      %v4476 = vsub.s32 4294967266, %v4471
      %v4477 = vadd.s32 %v4476, 127
      %v4478 = vshll.u32 %v4477, 23
      %v4479 = vor.u32 4788187, %v4478
      %v4480 = vand.u32 2147483647, %v4479
      %v4482 = vcvt.s32.f32 %v4475
      %v4483 = vmul.f32 %v4482, %v4480
      %v4484 = vxor.u32 %v4483, 2147483648
      %v4485 = vsel %vm4402, %v4484, %v4483
      %v4486 = vsub.s32 4, %v4462
      %v4487 = vsel %vm4402, %v4486, %v4462
      %v4488 = vsel %vm4401, %v1655, %v4485
      %v4489 = vsel %vm4401, 0, %v4487
      %v4490 = vcosq.f32.pop %v4488
      %v4491 = vsinq.f32.pop %v4488
      %vm4492 = vweird.f32 %v1655
      %v4493 = vadd.s32 %v4489, 3
      %v4494 = vand.u32 %v4493, 3
      %vm4495 = vcmp.lt.s32.totalorder %v4494, 2
      %vm4496 = vcmp.eq.s32.totalorder %v4494, 0
      %v4497 = vxor.u32 %v4491, 2147483648
      %v4498 = vsel %vm4496, %v4490, %v4497
      %vm4499 = vcmp.eq.s32.totalorder %v4494, 2
      %v4500 = vxor.u32 %v4490, 2147483648
      %v4501 = vsel %vm4499, %v4500, %v4491
      %v4502 = vsel %vm4495, %v4498, %v4501
      %v4503 = vsel %vm4492, nan, %v4502
      %v4504 = vand.u32 2147483647, %v1656
      %vm4505 = vcmp.le.f32.partialorder %v4504, 0.7853982
      %vm4506 = vcmp.lt.s32.totalorder %v1656, 0
      %v4507 = vand.u32 %v1656, 2139095040
      %v4508 = vshrl.u32 %v4507, 23
      %v4509 = vsub.s32 %v4508, 127
      %v4510 = vand.u32 2147483647, %v1656
      %v4511 = vand.u32 %v4510, 8388607
      %v4512 = vor.u32 %v4511, 8388608
      %v4513 = vsub.s32 0, %v4512
      %v4514 = vadd.s32 %v4509, 1
      %vm4515 = vcmp.gt.s32.totalorder %v4514, 0
      %v4516 = vsel %vm4515, %v4514, 0
      %v4517 = vshrl.u32 %v4516, 5
      %v4518 = vand.u32 %v4516, 31
      %v4519 = vsub.s32 32, %v4518
      %v4520 = vshrl.u32 683565275, %v4519
      %v4521 = vshll.u32 683565275, %v4518
      %v4522 = vshrl.u32 2475754826, %v4519
      %v4523 = vor.u32 %v4521, %v4522
      %v4524 = vshll.u32 2475754826, %v4518
      %v4525 = vshrl.u32 2131351028, %v4519
      %v4526 = vor.u32 %v4524, %v4525
      %v4527 = vshll.u32 2131351028, %v4518
      %v4528 = vshrl.u32 2102212464, %v4519
      %v4529 = vor.u32 %v4527, %v4528
      %v4530 = vshll.u32 2102212464, %v4518
      %v4531 = vshrl.u32 920167782, %v4519
      %v4532 = vor.u32 %v4530, %v4531
      %v4533 = vshll.u32 920167782, %v4518
      %v4534 = vshrl.u32 1326507024, %v4519
      %v4535 = vor.u32 %v4533, %v4534
      %vm4536 = vcmp.lt.s32.totalorder %v4517, 1
      %vm4537 = vcmp.lt.s32.totalorder %v4517, 2
      %vm4538 = vcmp.lt.s32.totalorder %v4517, 3
      %vm4539 = vcmp.lt.s32.totalorder %v4517, 4
      %v4540 = vsel %vm4536, %v4520, %v4523
      %v4541 = vsel %vm4539, %v4529, 2102212464
      %v4542 = vsel %vm4538, %v4526, %v4541
      %v4543 = vsel %vm4537, %v4540, %v4542
      %v4544 = vsel %vm4536, %v4523, %v4526
      %v4545 = vsel %vm4539, %v4532, 920167782
      %v4546 = vsel %vm4538, %v4529, %v4545
      %v4547 = vsel %vm4537, %v4544, %v4546
      %v4548 = vsel %vm4536, %v4526, %v4529
      %v4549 = vsel %vm4539, %v4535, 1326507024
      %v4550 = vsel %vm4538, %v4532, %v4549
      %v4551 = vsel %vm4537, %v4548, %v4550
      %v4552 = vshll.u32 %v4512, 8
      %v4553 = vmul.u32.u64.compose %v4552, %v4551
      %v4554 = vextract.low.u32 %v4553
      %v4555 = vextract.high.u32 %v4553
      %v4556 = vmul.u32.u64.compose %v4552, %v4547
      %v4557 = vextract.low.u32 %v4556
      %v4558 = vextract.high.u32 %v4556
      %v4559 = vmul.u32 %v4552, %v4543
      %v4560 = vadd.s32 %v4555, %v4557
      %vm4561 = vc.u32 %v4555, %v4557
      %v4562 = vadd.s32 %v4558, 1
      %v4563 = vsel %vm4561, %v4562, %v4558
      %v4564 = vadd.s32 %v4559, %v4563
      %v4565 = vadd.s32 %v4564, 536870912
      %v4566 = vshrl.u32 %v4565, 30
      %v4567 = vshll.u32 %v4566, 30
      %v4568 = vsub.s32 %v4564, %v4567
      %vm4569 = vcmp.lt.s32.totalorder %v4568, 0
      %v4570 = vsub.s32 0, %v4568
      %v4571 = vsel %vm4569, %v4570, %v4568
      %v4572 = vclz %v4571
      %v4573 = vsub.s32 %v4572, 2
      %vm4574 = vcmp.gt.s32.totalorder 0, %v4573
      %v4575 = vsel %vm4574, 0, %v4573
      %v4576 = vsub.s32 32, %v4575
      %v4577 = vshll.u32 %v4568, %v4575
      %v4578 = vshrl.u32 %v4560, %v4576
      %v4579 = vor.u32 %v4577, %v4578
      %v4580 = vsub.s32 4294967266, %v4575
      %v4581 = vadd.s32 %v4580, 127
      %v4582 = vshll.u32 %v4581, 23
      %v4583 = vor.u32 4788187, %v4582
      %v4584 = vand.u32 2147483647, %v4583
      %v4586 = vcvt.s32.f32 %v4579
      %v4587 = vmul.f32 %v4586, %v4584
      %v4588 = vxor.u32 %v4587, 2147483648
      %v4589 = vsel %vm4506, %v4588, %v4587
      %v4590 = vsub.s32 4, %v4566
      %v4591 = vsel %vm4506, %v4590, %v4566
      %v4592 = vsel %vm4505, %v1656, %v4589
      %v4593 = vsel %vm4505, 0, %v4591
      %v4594 = vcosq.f32.pop %v4592
      %v4595 = vsinq.f32.pop %v4592
      %vm4596 = vweird.f32 %v1656
      %v4597 = vadd.s32 %v4593, 3
      %v4598 = vand.u32 %v4597, 3
      %vm4599 = vcmp.lt.s32.totalorder %v4598, 2
      %vm4600 = vcmp.eq.s32.totalorder %v4598, 0
      %v4601 = vxor.u32 %v4595, 2147483648
      %v4602 = vsel %vm4600, %v4594, %v4601
      %vm4603 = vcmp.eq.s32.totalorder %v4598, 2
      %v4604 = vxor.u32 %v4594, 2147483648
      %v4605 = vsel %vm4603, %v4604, %v4595
      %v4606 = vsel %vm4599, %v4602, %v4605
      %v4607 = vsel %vm4596, nan, %v4606
      %v4608 = vand.u32 2147483647, %v1657
      %vm4609 = vcmp.le.f32.partialorder %v4608, 0.7853982
      %vm4610 = vcmp.lt.s32.totalorder %v1657, 0
      %v4611 = vand.u32 %v1657, 2139095040
      %v4612 = vshrl.u32 %v4611, 23
      %v4613 = vsub.s32 %v4612, 127
      %v4614 = vand.u32 2147483647, %v1657
      %v4615 = vand.u32 %v4614, 8388607
      %v4616 = vor.u32 %v4615, 8388608
      %v4617 = vsub.s32 0, %v4616
      %v4618 = vadd.s32 %v4613, 1
      %vm4619 = vcmp.gt.s32.totalorder %v4618, 0
      %v4620 = vsel %vm4619, %v4618, 0
      %v4621 = vshrl.u32 %v4620, 5
      %v4622 = vand.u32 %v4620, 31
      %v4623 = vsub.s32 32, %v4622
      %v4624 = vshrl.u32 683565275, %v4623
      %v4625 = vshll.u32 683565275, %v4622
      %v4626 = vshrl.u32 2475754826, %v4623
      %v4627 = vor.u32 %v4625, %v4626
      %v4628 = vshll.u32 2475754826, %v4622
      %v4629 = vshrl.u32 2131351028, %v4623
      %v4630 = vor.u32 %v4628, %v4629
      %v4631 = vshll.u32 2131351028, %v4622
      %v4632 = vshrl.u32 2102212464, %v4623
      %v4633 = vor.u32 %v4631, %v4632
      %v4634 = vshll.u32 2102212464, %v4622
      %v4635 = vshrl.u32 920167782, %v4623
      %v4636 = vor.u32 %v4634, %v4635
      %v4637 = vshll.u32 920167782, %v4622
      %v4638 = vshrl.u32 1326507024, %v4623
      %v4639 = vor.u32 %v4637, %v4638
      %vm4640 = vcmp.lt.s32.totalorder %v4621, 1
      %vm4641 = vcmp.lt.s32.totalorder %v4621, 2
      %vm4642 = vcmp.lt.s32.totalorder %v4621, 3
      %vm4643 = vcmp.lt.s32.totalorder %v4621, 4
      %v4644 = vsel %vm4640, %v4624, %v4627
      %v4645 = vsel %vm4643, %v4633, 2102212464
      %v4646 = vsel %vm4642, %v4630, %v4645
      %v4647 = vsel %vm4641, %v4644, %v4646
      %v4648 = vsel %vm4640, %v4627, %v4630
      %v4649 = vsel %vm4643, %v4636, 920167782
      %v4650 = vsel %vm4642, %v4633, %v4649
      %v4651 = vsel %vm4641, %v4648, %v4650
      %v4652 = vsel %vm4640, %v4630, %v4633
      %v4653 = vsel %vm4643, %v4639, 1326507024
      %v4654 = vsel %vm4642, %v4636, %v4653
      %v4655 = vsel %vm4641, %v4652, %v4654
      %v4656 = vshll.u32 %v4616, 8
      %v4657 = vmul.u32.u64.compose %v4656, %v4655
      %v4658 = vextract.low.u32 %v4657
      %v4659 = vextract.high.u32 %v4657
      %v4660 = vmul.u32.u64.compose %v4656, %v4651
      %v4661 = vextract.low.u32 %v4660
      %v4662 = vextract.high.u32 %v4660
      %v4663 = vmul.u32 %v4656, %v4647
      %v4664 = vadd.s32 %v4659, %v4661
      %vm4665 = vc.u32 %v4659, %v4661
      %v4666 = vadd.s32 %v4662, 1
      %v4667 = vsel %vm4665, %v4666, %v4662
      %v4668 = vadd.s32 %v4663, %v4667
      %v4669 = vadd.s32 %v4668, 536870912
      %v4670 = vshrl.u32 %v4669, 30
      %v4671 = vshll.u32 %v4670, 30
      %v4672 = vsub.s32 %v4668, %v4671
      %vm4673 = vcmp.lt.s32.totalorder %v4672, 0
      %v4674 = vsub.s32 0, %v4672
      %v4675 = vsel %vm4673, %v4674, %v4672
      %v4676 = vclz %v4675
      %v4677 = vsub.s32 %v4676, 2
      %vm4678 = vcmp.gt.s32.totalorder 0, %v4677
      %v4679 = vsel %vm4678, 0, %v4677
      %v4680 = vsub.s32 32, %v4679
      %v4681 = vshll.u32 %v4672, %v4679
      %v4682 = vshrl.u32 %v4664, %v4680
      %v4683 = vor.u32 %v4681, %v4682
      %v4684 = vsub.s32 4294967266, %v4679
      %v4685 = vadd.s32 %v4684, 127
      %v4686 = vshll.u32 %v4685, 23
      %v4687 = vor.u32 4788187, %v4686
      %v4688 = vand.u32 2147483647, %v4687
      %v4690 = vcvt.s32.f32 %v4683
      %v4691 = vmul.f32 %v4690, %v4688
      %v4692 = vxor.u32 %v4691, 2147483648
      %v4693 = vsel %vm4610, %v4692, %v4691
      %v4694 = vsub.s32 4, %v4670
      %v4695 = vsel %vm4610, %v4694, %v4670
      %v4696 = vsel %vm4609, %v1657, %v4693
      %v4697 = vsel %vm4609, 0, %v4695
      %v4698 = vcosq.f32.pop %v4696
      %v4699 = vsinq.f32.pop %v4696
      %vm4700 = vweird.f32 %v1657
      %v4701 = vadd.s32 %v4697, 3
      %v4702 = vand.u32 %v4701, 3
      %vm4703 = vcmp.lt.s32.totalorder %v4702, 2
      %vm4704 = vcmp.eq.s32.totalorder %v4702, 0
      %v4705 = vxor.u32 %v4699, 2147483648
      %v4706 = vsel %vm4704, %v4698, %v4705
      %vm4707 = vcmp.eq.s32.totalorder %v4702, 2
      %v4708 = vxor.u32 %v4698, 2147483648
      %v4709 = vsel %vm4707, %v4708, %v4699
      %v4710 = vsel %vm4703, %v4706, %v4709
      %v4711 = vsel %vm4700, nan, %v4710
      %v4712 = vand.u32 2147483647, %v1658
      %vm4713 = vcmp.le.f32.partialorder %v4712, 0.7853982
      %vm4714 = vcmp.lt.s32.totalorder %v1658, 0
      %v4715 = vand.u32 %v1658, 2139095040
      %v4716 = vshrl.u32 %v4715, 23
      %v4717 = vsub.s32 %v4716, 127
      %v4718 = vand.u32 2147483647, %v1658
      %v4719 = vand.u32 %v4718, 8388607
      %v4720 = vor.u32 %v4719, 8388608
      %v4721 = vsub.s32 0, %v4720
      %v4722 = vadd.s32 %v4717, 1
      %vm4723 = vcmp.gt.s32.totalorder %v4722, 0
      %v4724 = vsel %vm4723, %v4722, 0
      %v4725 = vshrl.u32 %v4724, 5
      %v4726 = vand.u32 %v4724, 31
      %v4727 = vsub.s32 32, %v4726
      %v4728 = vshrl.u32 683565275, %v4727
      %v4729 = vshll.u32 683565275, %v4726
      %v4730 = vshrl.u32 2475754826, %v4727
      %v4731 = vor.u32 %v4729, %v4730
      %v4732 = vshll.u32 2475754826, %v4726
      %v4733 = vshrl.u32 2131351028, %v4727
      %v4734 = vor.u32 %v4732, %v4733
      %v4735 = vshll.u32 2131351028, %v4726
      %v4736 = vshrl.u32 2102212464, %v4727
      %v4737 = vor.u32 %v4735, %v4736
      %v4738 = vshll.u32 2102212464, %v4726
      %v4739 = vshrl.u32 920167782, %v4727
      %v4740 = vor.u32 %v4738, %v4739
      %v4741 = vshll.u32 920167782, %v4726
      %v4742 = vshrl.u32 1326507024, %v4727
      %v4743 = vor.u32 %v4741, %v4742
      %vm4744 = vcmp.lt.s32.totalorder %v4725, 1
      %vm4745 = vcmp.lt.s32.totalorder %v4725, 2
      %vm4746 = vcmp.lt.s32.totalorder %v4725, 3
      %vm4747 = vcmp.lt.s32.totalorder %v4725, 4
      %v4748 = vsel %vm4744, %v4728, %v4731
      %v4749 = vsel %vm4747, %v4737, 2102212464
      %v4750 = vsel %vm4746, %v4734, %v4749
      %v4751 = vsel %vm4745, %v4748, %v4750
      %v4752 = vsel %vm4744, %v4731, %v4734
      %v4753 = vsel %vm4747, %v4740, 920167782
      %v4754 = vsel %vm4746, %v4737, %v4753
      %v4755 = vsel %vm4745, %v4752, %v4754
      %v4756 = vsel %vm4744, %v4734, %v4737
      %v4757 = vsel %vm4747, %v4743, 1326507024
      %v4758 = vsel %vm4746, %v4740, %v4757
      %v4759 = vsel %vm4745, %v4756, %v4758
      %v4760 = vshll.u32 %v4720, 8
      %v4761 = vmul.u32.u64.compose %v4760, %v4759
      %v4762 = vextract.low.u32 %v4761
      %v4763 = vextract.high.u32 %v4761
      %v4764 = vmul.u32.u64.compose %v4760, %v4755
      %v4765 = vextract.low.u32 %v4764
      %v4766 = vextract.high.u32 %v4764
      %v4767 = vmul.u32 %v4760, %v4751
      %v4768 = vadd.s32 %v4763, %v4765
      %vm4769 = vc.u32 %v4763, %v4765
      %v4770 = vadd.s32 %v4766, 1
      %v4771 = vsel %vm4769, %v4770, %v4766
      %v4772 = vadd.s32 %v4767, %v4771
      %v4773 = vadd.s32 %v4772, 536870912
      %v4774 = vshrl.u32 %v4773, 30
      %v4775 = vshll.u32 %v4774, 30
      %v4776 = vsub.s32 %v4772, %v4775
      %vm4777 = vcmp.lt.s32.totalorder %v4776, 0
      %v4778 = vsub.s32 0, %v4776
      %v4779 = vsel %vm4777, %v4778, %v4776
      %v4780 = vclz %v4779
      %v4781 = vsub.s32 %v4780, 2
      %vm4782 = vcmp.gt.s32.totalorder 0, %v4781
      %v4783 = vsel %vm4782, 0, %v4781
      %v4784 = vsub.s32 32, %v4783
      %v4785 = vshll.u32 %v4776, %v4783
      %v4786 = vshrl.u32 %v4768, %v4784
      %v4787 = vor.u32 %v4785, %v4786
      %v4788 = vsub.s32 4294967266, %v4783
      %v4789 = vadd.s32 %v4788, 127
      %v4790 = vshll.u32 %v4789, 23
      %v4791 = vor.u32 4788187, %v4790
      %v4792 = vand.u32 2147483647, %v4791
      %v4794 = vcvt.s32.f32 %v4787
      %v4795 = vmul.f32 %v4794, %v4792
      %v4796 = vxor.u32 %v4795, 2147483648
      %v4797 = vsel %vm4714, %v4796, %v4795
      %v4798 = vsub.s32 4, %v4774
      %v4799 = vsel %vm4714, %v4798, %v4774
      %v4800 = vsel %vm4713, %v1658, %v4797
      %v4801 = vsel %vm4713, 0, %v4799
      %v4802 = vcosq.f32.pop %v4800
      %v4803 = vsinq.f32.pop %v4800
      %vm4804 = vweird.f32 %v1658
      %v4805 = vadd.s32 %v4801, 3
      %v4806 = vand.u32 %v4805, 3
      %vm4807 = vcmp.lt.s32.totalorder %v4806, 2
      %vm4808 = vcmp.eq.s32.totalorder %v4806, 0
      %v4809 = vxor.u32 %v4803, 2147483648
      %v4810 = vsel %vm4808, %v4802, %v4809
      %vm4811 = vcmp.eq.s32.totalorder %v4806, 2
      %v4812 = vxor.u32 %v4802, 2147483648
      %v4813 = vsel %vm4811, %v4812, %v4803
      %v4814 = vsel %vm4807, %v4810, %v4813
      %v4815 = vsel %vm4804, nan, %v4814
      %v4816 = vand.u32 2147483647, %v1659
      %vm4817 = vcmp.le.f32.partialorder %v4816, 0.7853982
      %vm4818 = vcmp.lt.s32.totalorder %v1659, 0
      %v4819 = vand.u32 %v1659, 2139095040
      %v4820 = vshrl.u32 %v4819, 23
      %v4821 = vsub.s32 %v4820, 127
      %v4822 = vand.u32 2147483647, %v1659
      %v4823 = vand.u32 %v4822, 8388607
      %v4824 = vor.u32 %v4823, 8388608
      %v4825 = vsub.s32 0, %v4824
      %v4826 = vadd.s32 %v4821, 1
      %vm4827 = vcmp.gt.s32.totalorder %v4826, 0
      %v4828 = vsel %vm4827, %v4826, 0
      %v4829 = vshrl.u32 %v4828, 5
      %v4830 = vand.u32 %v4828, 31
      %v4831 = vsub.s32 32, %v4830
      %v4832 = vshrl.u32 683565275, %v4831
      %v4833 = vshll.u32 683565275, %v4830
      %v4834 = vshrl.u32 2475754826, %v4831
      %v4835 = vor.u32 %v4833, %v4834
      %v4836 = vshll.u32 2475754826, %v4830
      %v4837 = vshrl.u32 2131351028, %v4831
      %v4838 = vor.u32 %v4836, %v4837
      %v4839 = vshll.u32 2131351028, %v4830
      %v4840 = vshrl.u32 2102212464, %v4831
      %v4841 = vor.u32 %v4839, %v4840
      %v4842 = vshll.u32 2102212464, %v4830
      %v4843 = vshrl.u32 920167782, %v4831
      %v4844 = vor.u32 %v4842, %v4843
      %v4845 = vshll.u32 920167782, %v4830
      %v4846 = vshrl.u32 1326507024, %v4831
      %v4847 = vor.u32 %v4845, %v4846
      %vm4848 = vcmp.lt.s32.totalorder %v4829, 1
      %vm4849 = vcmp.lt.s32.totalorder %v4829, 2
      %vm4850 = vcmp.lt.s32.totalorder %v4829, 3
      %vm4851 = vcmp.lt.s32.totalorder %v4829, 4
      %v4852 = vsel %vm4848, %v4832, %v4835
      %v4853 = vsel %vm4851, %v4841, 2102212464
      %v4854 = vsel %vm4850, %v4838, %v4853
      %v4855 = vsel %vm4849, %v4852, %v4854
      %v4856 = vsel %vm4848, %v4835, %v4838
      %v4857 = vsel %vm4851, %v4844, 920167782
      %v4858 = vsel %vm4850, %v4841, %v4857
      %v4859 = vsel %vm4849, %v4856, %v4858
      %v4860 = vsel %vm4848, %v4838, %v4841
      %v4861 = vsel %vm4851, %v4847, 1326507024
      %v4862 = vsel %vm4850, %v4844, %v4861
      %v4863 = vsel %vm4849, %v4860, %v4862
      %v4864 = vshll.u32 %v4824, 8
      %v4865 = vmul.u32.u64.compose %v4864, %v4863
      %v4866 = vextract.low.u32 %v4865
      %v4867 = vextract.high.u32 %v4865
      %v4868 = vmul.u32.u64.compose %v4864, %v4859
      %v4869 = vextract.low.u32 %v4868
      %v4870 = vextract.high.u32 %v4868
      %v4871 = vmul.u32 %v4864, %v4855
      %v4872 = vadd.s32 %v4867, %v4869
      %vm4873 = vc.u32 %v4867, %v4869
      %v4874 = vadd.s32 %v4870, 1
      %v4875 = vsel %vm4873, %v4874, %v4870
      %v4876 = vadd.s32 %v4871, %v4875
      %v4877 = vadd.s32 %v4876, 536870912
      %v4878 = vshrl.u32 %v4877, 30
      %v4879 = vshll.u32 %v4878, 30
      %v4880 = vsub.s32 %v4876, %v4879
      %vm4881 = vcmp.lt.s32.totalorder %v4880, 0
      %v4882 = vsub.s32 0, %v4880
      %v4883 = vsel %vm4881, %v4882, %v4880
      %v4884 = vclz %v4883
      %v4885 = vsub.s32 %v4884, 2
      %vm4886 = vcmp.gt.s32.totalorder 0, %v4885
      %v4887 = vsel %vm4886, 0, %v4885
      %v4888 = vsub.s32 32, %v4887
      %v4889 = vshll.u32 %v4880, %v4887
      %v4890 = vshrl.u32 %v4872, %v4888
      %v4891 = vor.u32 %v4889, %v4890
      %v4892 = vsub.s32 4294967266, %v4887
      %v4893 = vadd.s32 %v4892, 127
      %v4894 = vshll.u32 %v4893, 23
      %v4895 = vor.u32 4788187, %v4894
      %v4896 = vand.u32 2147483647, %v4895
      %v4898 = vcvt.s32.f32 %v4891
      %v4899 = vmul.f32 %v4898, %v4896
      %v4900 = vxor.u32 %v4899, 2147483648
      %v4901 = vsel %vm4818, %v4900, %v4899
      %v4902 = vsub.s32 4, %v4878
      %v4903 = vsel %vm4818, %v4902, %v4878
      %v4904 = vsel %vm4817, %v1659, %v4901
      %v4905 = vsel %vm4817, 0, %v4903
      %v4906 = vcosq.f32.pop %v4904
      %v4907 = vsinq.f32.pop %v4904
      %vm4908 = vweird.f32 %v1659
      %v4909 = vadd.s32 %v4905, 3
      %v4910 = vand.u32 %v4909, 3
      %vm4911 = vcmp.lt.s32.totalorder %v4910, 2
      %vm4912 = vcmp.eq.s32.totalorder %v4910, 0
      %v4913 = vxor.u32 %v4907, 2147483648
      %v4914 = vsel %vm4912, %v4906, %v4913
      %vm4915 = vcmp.eq.s32.totalorder %v4910, 2
      %v4916 = vxor.u32 %v4906, 2147483648
      %v4917 = vsel %vm4915, %v4916, %v4907
      %v4918 = vsel %vm4911, %v4914, %v4917
      %v4919 = vsel %vm4908, nan, %v4918
      %v4920 = vand.u32 2147483647, %v1660
      %vm4921 = vcmp.le.f32.partialorder %v4920, 0.7853982
      %vm4922 = vcmp.lt.s32.totalorder %v1660, 0
      %v4923 = vand.u32 %v1660, 2139095040
      %v4924 = vshrl.u32 %v4923, 23
      %v4925 = vsub.s32 %v4924, 127
      %v4926 = vand.u32 2147483647, %v1660
      %v4927 = vand.u32 %v4926, 8388607
      %v4928 = vor.u32 %v4927, 8388608
      %v4929 = vsub.s32 0, %v4928
      %v4930 = vadd.s32 %v4925, 1
      %vm4931 = vcmp.gt.s32.totalorder %v4930, 0
      %v4932 = vsel %vm4931, %v4930, 0
      %v4933 = vshrl.u32 %v4932, 5
      %v4934 = vand.u32 %v4932, 31
      %v4935 = vsub.s32 32, %v4934
      %v4936 = vshrl.u32 683565275, %v4935
      %v4937 = vshll.u32 683565275, %v4934
      %v4938 = vshrl.u32 2475754826, %v4935
      %v4939 = vor.u32 %v4937, %v4938
      %v4940 = vshll.u32 2475754826, %v4934
      %v4941 = vshrl.u32 2131351028, %v4935
      %v4942 = vor.u32 %v4940, %v4941
      %v4943 = vshll.u32 2131351028, %v4934
      %v4944 = vshrl.u32 2102212464, %v4935
      %v4945 = vor.u32 %v4943, %v4944
      %v4946 = vshll.u32 2102212464, %v4934
      %v4947 = vshrl.u32 920167782, %v4935
      %v4948 = vor.u32 %v4946, %v4947
      %v4949 = vshll.u32 920167782, %v4934
      %v4950 = vshrl.u32 1326507024, %v4935
      %v4951 = vor.u32 %v4949, %v4950
      %vm4952 = vcmp.lt.s32.totalorder %v4933, 1
      %vm4953 = vcmp.lt.s32.totalorder %v4933, 2
      %vm4954 = vcmp.lt.s32.totalorder %v4933, 3
      %vm4955 = vcmp.lt.s32.totalorder %v4933, 4
      %v4956 = vsel %vm4952, %v4936, %v4939
      %v4957 = vsel %vm4955, %v4945, 2102212464
      %v4958 = vsel %vm4954, %v4942, %v4957
      %v4959 = vsel %vm4953, %v4956, %v4958
      %v4960 = vsel %vm4952, %v4939, %v4942
      %v4961 = vsel %vm4955, %v4948, 920167782
      %v4962 = vsel %vm4954, %v4945, %v4961
      %v4963 = vsel %vm4953, %v4960, %v4962
      %v4964 = vsel %vm4952, %v4942, %v4945
      %v4965 = vsel %vm4955, %v4951, 1326507024
      %v4966 = vsel %vm4954, %v4948, %v4965
      %v4967 = vsel %vm4953, %v4964, %v4966
      %v4968 = vshll.u32 %v4928, 8
      %v4969 = vmul.u32.u64.compose %v4968, %v4967
      %v4970 = vextract.low.u32 %v4969
      %v4971 = vextract.high.u32 %v4969
      %v4972 = vmul.u32.u64.compose %v4968, %v4963
      %v4973 = vextract.low.u32 %v4972
      %v4974 = vextract.high.u32 %v4972
      %v4975 = vmul.u32 %v4968, %v4959
      %v4976 = vadd.s32 %v4971, %v4973
      %vm4977 = vc.u32 %v4971, %v4973
      %v4978 = vadd.s32 %v4974, 1
      %v4979 = vsel %vm4977, %v4978, %v4974
      %v4980 = vadd.s32 %v4975, %v4979
      %v4981 = vadd.s32 %v4980, 536870912
      %v4982 = vshrl.u32 %v4981, 30
      %v4983 = vshll.u32 %v4982, 30
      %v4984 = vsub.s32 %v4980, %v4983
      %vm4985 = vcmp.lt.s32.totalorder %v4984, 0
      %v4986 = vsub.s32 0, %v4984
      %v4987 = vsel %vm4985, %v4986, %v4984
      %v4988 = vclz %v4987
      %v4989 = vsub.s32 %v4988, 2
      %vm4990 = vcmp.gt.s32.totalorder 0, %v4989
      %v4991 = vsel %vm4990, 0, %v4989
      %v4992 = vsub.s32 32, %v4991
      %v4993 = vshll.u32 %v4984, %v4991
      %v4994 = vshrl.u32 %v4976, %v4992
      %v4995 = vor.u32 %v4993, %v4994
      %v4996 = vsub.s32 4294967266, %v4991
      %v4997 = vadd.s32 %v4996, 127
      %v4998 = vshll.u32 %v4997, 23
      %v4999 = vor.u32 4788187, %v4998
      %v5000 = vand.u32 2147483647, %v4999
      %v5002 = vcvt.s32.f32 %v4995
      %v5003 = vmul.f32 %v5002, %v5000
      %v5004 = vxor.u32 %v5003, 2147483648
      %v5005 = vsel %vm4922, %v5004, %v5003
      %v5006 = vsub.s32 4, %v4982
      %v5007 = vsel %vm4922, %v5006, %v4982
      %v5008 = vsel %vm4921, %v1660, %v5005
      %v5009 = vsel %vm4921, 0, %v5007
      %v5010 = vcosq.f32.pop %v5008
      %v5011 = vsinq.f32.pop %v5008
      %vm5012 = vweird.f32 %v1660
      %v5013 = vadd.s32 %v5009, 3
      %v5014 = vand.u32 %v5013, 3
      %vm5015 = vcmp.lt.s32.totalorder %v5014, 2
      %vm5016 = vcmp.eq.s32.totalorder %v5014, 0
      %v5017 = vxor.u32 %v5011, 2147483648
      %v5018 = vsel %vm5016, %v5010, %v5017
      %vm5019 = vcmp.eq.s32.totalorder %v5014, 2
      %v5020 = vxor.u32 %v5010, 2147483648
      %v5021 = vsel %vm5019, %v5020, %v5011
      %v5022 = vsel %vm5015, %v5018, %v5021
      %v5023 = vsel %vm5012, nan, %v5022
      %v5024 = vand.u32 2147483647, %v1661
      %vm5025 = vcmp.le.f32.partialorder %v5024, 0.7853982
      %vm5026 = vcmp.lt.s32.totalorder %v1661, 0
      %v5027 = vand.u32 %v1661, 2139095040
      %v5028 = vshrl.u32 %v5027, 23
      %v5029 = vsub.s32 %v5028, 127
      %v5030 = vand.u32 2147483647, %v1661
      %v5031 = vand.u32 %v5030, 8388607
      %v5032 = vor.u32 %v5031, 8388608
      %v5033 = vsub.s32 0, %v5032
      %v5034 = vadd.s32 %v5029, 1
      %vm5035 = vcmp.gt.s32.totalorder %v5034, 0
      %v5036 = vsel %vm5035, %v5034, 0
      %v5037 = vshrl.u32 %v5036, 5
      %v5038 = vand.u32 %v5036, 31
      %v5039 = vsub.s32 32, %v5038
      %v5040 = vshrl.u32 683565275, %v5039
      %v5041 = vshll.u32 683565275, %v5038
      %v5042 = vshrl.u32 2475754826, %v5039
      %v5043 = vor.u32 %v5041, %v5042
      %v5044 = vshll.u32 2475754826, %v5038
      %v5045 = vshrl.u32 2131351028, %v5039
      %v5046 = vor.u32 %v5044, %v5045
      %v5047 = vshll.u32 2131351028, %v5038
      %v5048 = vshrl.u32 2102212464, %v5039
      %v5049 = vor.u32 %v5047, %v5048
      %v5050 = vshll.u32 2102212464, %v5038
      %v5051 = vshrl.u32 920167782, %v5039
      %v5052 = vor.u32 %v5050, %v5051
      %v5053 = vshll.u32 920167782, %v5038
      %v5054 = vshrl.u32 1326507024, %v5039
      %v5055 = vor.u32 %v5053, %v5054
      %vm5056 = vcmp.lt.s32.totalorder %v5037, 1
      %vm5057 = vcmp.lt.s32.totalorder %v5037, 2
      %vm5058 = vcmp.lt.s32.totalorder %v5037, 3
      %vm5059 = vcmp.lt.s32.totalorder %v5037, 4
      %v5060 = vsel %vm5056, %v5040, %v5043
      %v5061 = vsel %vm5059, %v5049, 2102212464
      %v5062 = vsel %vm5058, %v5046, %v5061
      %v5063 = vsel %vm5057, %v5060, %v5062
      %v5064 = vsel %vm5056, %v5043, %v5046
      %v5065 = vsel %vm5059, %v5052, 920167782
      %v5066 = vsel %vm5058, %v5049, %v5065
      %v5067 = vsel %vm5057, %v5064, %v5066
      %v5068 = vsel %vm5056, %v5046, %v5049
      %v5069 = vsel %vm5059, %v5055, 1326507024
      %v5070 = vsel %vm5058, %v5052, %v5069
      %v5071 = vsel %vm5057, %v5068, %v5070
      %v5072 = vshll.u32 %v5032, 8
      %v5073 = vmul.u32.u64.compose %v5072, %v5071
      %v5074 = vextract.low.u32 %v5073
      %v5075 = vextract.high.u32 %v5073
      %v5076 = vmul.u32.u64.compose %v5072, %v5067
      %v5077 = vextract.low.u32 %v5076
      %v5078 = vextract.high.u32 %v5076
      %v5079 = vmul.u32 %v5072, %v5063
      %v5080 = vadd.s32 %v5075, %v5077
      %vm5081 = vc.u32 %v5075, %v5077
      %v5082 = vadd.s32 %v5078, 1
      %v5083 = vsel %vm5081, %v5082, %v5078
      %v5084 = vadd.s32 %v5079, %v5083
      %v5085 = vadd.s32 %v5084, 536870912
      %v5086 = vshrl.u32 %v5085, 30
      %v5087 = vshll.u32 %v5086, 30
      %v5088 = vsub.s32 %v5084, %v5087
      %vm5089 = vcmp.lt.s32.totalorder %v5088, 0
      %v5090 = vsub.s32 0, %v5088
      %v5091 = vsel %vm5089, %v5090, %v5088
      %v5092 = vclz %v5091
      %v5093 = vsub.s32 %v5092, 2
      %vm5094 = vcmp.gt.s32.totalorder 0, %v5093
      %v5095 = vsel %vm5094, 0, %v5093
      %v5096 = vsub.s32 32, %v5095
      %v5097 = vshll.u32 %v5088, %v5095
      %v5098 = vshrl.u32 %v5080, %v5096
      %v5099 = vor.u32 %v5097, %v5098
      %v5100 = vsub.s32 4294967266, %v5095
      %v5101 = vadd.s32 %v5100, 127
      %v5102 = vshll.u32 %v5101, 23
      %v5103 = vor.u32 4788187, %v5102
      %v5104 = vand.u32 2147483647, %v5103
      %v5106 = vcvt.s32.f32 %v5099
      %v5107 = vmul.f32 %v5106, %v5104
      %v5108 = vxor.u32 %v5107, 2147483648
      %v5109 = vsel %vm5026, %v5108, %v5107
      %v5110 = vsub.s32 4, %v5086
      %v5111 = vsel %vm5026, %v5110, %v5086
      %v5112 = vsel %vm5025, %v1661, %v5109
      %v5113 = vsel %vm5025, 0, %v5111
      %v5114 = vcosq.f32.pop %v5112
      %v5115 = vsinq.f32.pop %v5112
      %vm5116 = vweird.f32 %v1661
      %v5117 = vadd.s32 %v5113, 3
      %v5118 = vand.u32 %v5117, 3
      %vm5119 = vcmp.lt.s32.totalorder %v5118, 2
      %vm5120 = vcmp.eq.s32.totalorder %v5118, 0
      %v5121 = vxor.u32 %v5115, 2147483648
      %v5122 = vsel %vm5120, %v5114, %v5121
      %vm5123 = vcmp.eq.s32.totalorder %v5118, 2
      %v5124 = vxor.u32 %v5114, 2147483648
      %v5125 = vsel %vm5123, %v5124, %v5115
      %v5126 = vsel %vm5119, %v5122, %v5125
      %v5127 = vsel %vm5116, nan, %v5126
      %v5128 = vand.u32 2147483647, %v1662
      %vm5129 = vcmp.le.f32.partialorder %v5128, 0.7853982
      %vm5130 = vcmp.lt.s32.totalorder %v1662, 0
      %v5131 = vand.u32 %v1662, 2139095040
      %v5132 = vshrl.u32 %v5131, 23
      %v5133 = vsub.s32 %v5132, 127
      %v5134 = vand.u32 2147483647, %v1662
      %v5135 = vand.u32 %v5134, 8388607
      %v5136 = vor.u32 %v5135, 8388608
      %v5137 = vsub.s32 0, %v5136
      %v5138 = vadd.s32 %v5133, 1
      %vm5139 = vcmp.gt.s32.totalorder %v5138, 0
      %v5140 = vsel %vm5139, %v5138, 0
      %v5141 = vshrl.u32 %v5140, 5
      %v5142 = vand.u32 %v5140, 31
      %v5143 = vsub.s32 32, %v5142
      %v5144 = vshrl.u32 683565275, %v5143
      %v5145 = vshll.u32 683565275, %v5142
      %v5146 = vshrl.u32 2475754826, %v5143
      %v5147 = vor.u32 %v5145, %v5146
      %v5148 = vshll.u32 2475754826, %v5142
      %v5149 = vshrl.u32 2131351028, %v5143
      %v5150 = vor.u32 %v5148, %v5149
      %v5151 = vshll.u32 2131351028, %v5142
      %v5152 = vshrl.u32 2102212464, %v5143
      %v5153 = vor.u32 %v5151, %v5152
      %v5154 = vshll.u32 2102212464, %v5142
      %v5155 = vshrl.u32 920167782, %v5143
      %v5156 = vor.u32 %v5154, %v5155
      %v5157 = vshll.u32 920167782, %v5142
      %v5158 = vshrl.u32 1326507024, %v5143
      %v5159 = vor.u32 %v5157, %v5158
      %vm5160 = vcmp.lt.s32.totalorder %v5141, 1
      %vm5161 = vcmp.lt.s32.totalorder %v5141, 2
      %vm5162 = vcmp.lt.s32.totalorder %v5141, 3
      %vm5163 = vcmp.lt.s32.totalorder %v5141, 4
      %v5164 = vsel %vm5160, %v5144, %v5147
      %v5165 = vsel %vm5163, %v5153, 2102212464
      %v5166 = vsel %vm5162, %v5150, %v5165
      %v5167 = vsel %vm5161, %v5164, %v5166
      %v5168 = vsel %vm5160, %v5147, %v5150
      %v5169 = vsel %vm5163, %v5156, 920167782
      %v5170 = vsel %vm5162, %v5153, %v5169
      %v5171 = vsel %vm5161, %v5168, %v5170
      %v5172 = vsel %vm5160, %v5150, %v5153
      %v5173 = vsel %vm5163, %v5159, 1326507024
      %v5174 = vsel %vm5162, %v5156, %v5173
      %v5175 = vsel %vm5161, %v5172, %v5174
      %v5176 = vshll.u32 %v5136, 8
      %v5177 = vmul.u32.u64.compose %v5176, %v5175
      %v5178 = vextract.low.u32 %v5177
      %v5179 = vextract.high.u32 %v5177
      %v5180 = vmul.u32.u64.compose %v5176, %v5171
      %v5181 = vextract.low.u32 %v5180
      %v5182 = vextract.high.u32 %v5180
      %v5183 = vmul.u32 %v5176, %v5167
      %v5184 = vadd.s32 %v5179, %v5181
      %vm5185 = vc.u32 %v5179, %v5181
      %v5186 = vadd.s32 %v5182, 1
      %v5187 = vsel %vm5185, %v5186, %v5182
      %v5188 = vadd.s32 %v5183, %v5187
      %v5189 = vadd.s32 %v5188, 536870912
      %v5190 = vshrl.u32 %v5189, 30
      %v5191 = vshll.u32 %v5190, 30
      %v5192 = vsub.s32 %v5188, %v5191
      %vm5193 = vcmp.lt.s32.totalorder %v5192, 0
      %v5194 = vsub.s32 0, %v5192
      %v5195 = vsel %vm5193, %v5194, %v5192
      %v5196 = vclz %v5195
      %v5197 = vsub.s32 %v5196, 2
      %vm5198 = vcmp.gt.s32.totalorder 0, %v5197
      %v5199 = vsel %vm5198, 0, %v5197
      %v5200 = vsub.s32 32, %v5199
      %v5201 = vshll.u32 %v5192, %v5199
      %v5202 = vshrl.u32 %v5184, %v5200
      %v5203 = vor.u32 %v5201, %v5202
      %v5204 = vsub.s32 4294967266, %v5199
      %v5205 = vadd.s32 %v5204, 127
      %v5206 = vshll.u32 %v5205, 23
      %v5207 = vor.u32 4788187, %v5206
      %v5208 = vand.u32 2147483647, %v5207
      %v5210 = vcvt.s32.f32 %v5203
      %v5211 = vmul.f32 %v5210, %v5208
      %v5212 = vxor.u32 %v5211, 2147483648
      %v5213 = vsel %vm5130, %v5212, %v5211
      %v5214 = vsub.s32 4, %v5190
      %v5215 = vsel %vm5130, %v5214, %v5190
      %v5216 = vsel %vm5129, %v1662, %v5213
      %v5217 = vsel %vm5129, 0, %v5215
      %v5218 = vcosq.f32.pop %v5216
      %v5219 = vsinq.f32.pop %v5216
      %vm5220 = vweird.f32 %v1662
      %v5221 = vadd.s32 %v5217, 3
      %v5222 = vand.u32 %v5221, 3
      %vm5223 = vcmp.lt.s32.totalorder %v5222, 2
      %vm5224 = vcmp.eq.s32.totalorder %v5222, 0
      %v5225 = vxor.u32 %v5219, 2147483648
      %v5226 = vsel %vm5224, %v5218, %v5225
      %vm5227 = vcmp.eq.s32.totalorder %v5222, 2
      %v5228 = vxor.u32 %v5218, 2147483648
      %v5229 = vsel %vm5227, %v5228, %v5219
      %v5230 = vsel %vm5223, %v5226, %v5229
      %v5231 = vsel %vm5220, nan, %v5230
      %v5232 = vand.u32 2147483647, %v1663
      %vm5233 = vcmp.le.f32.partialorder %v5232, 0.7853982
      %vm5234 = vcmp.lt.s32.totalorder %v1663, 0
      %v5235 = vand.u32 %v1663, 2139095040
      %v5236 = vshrl.u32 %v5235, 23
      %v5237 = vsub.s32 %v5236, 127
      %v5238 = vand.u32 2147483647, %v1663
      %v5239 = vand.u32 %v5238, 8388607
      %v5240 = vor.u32 %v5239, 8388608
      %v5241 = vsub.s32 0, %v5240
      %v5242 = vadd.s32 %v5237, 1
      %vm5243 = vcmp.gt.s32.totalorder %v5242, 0
      %v5244 = vsel %vm5243, %v5242, 0
      %v5245 = vshrl.u32 %v5244, 5
      %v5246 = vand.u32 %v5244, 31
      %v5247 = vsub.s32 32, %v5246
      %v5248 = vshrl.u32 683565275, %v5247
      %v5249 = vshll.u32 683565275, %v5246
      %v5250 = vshrl.u32 2475754826, %v5247
      %v5251 = vor.u32 %v5249, %v5250
      %v5252 = vshll.u32 2475754826, %v5246
      %v5253 = vshrl.u32 2131351028, %v5247
      %v5254 = vor.u32 %v5252, %v5253
      %v5255 = vshll.u32 2131351028, %v5246
      %v5256 = vshrl.u32 2102212464, %v5247
      %v5257 = vor.u32 %v5255, %v5256
      %v5258 = vshll.u32 2102212464, %v5246
      %v5259 = vshrl.u32 920167782, %v5247
      %v5260 = vor.u32 %v5258, %v5259
      %v5261 = vshll.u32 920167782, %v5246
      %v5262 = vshrl.u32 1326507024, %v5247
      %v5263 = vor.u32 %v5261, %v5262
      %vm5264 = vcmp.lt.s32.totalorder %v5245, 1
      %vm5265 = vcmp.lt.s32.totalorder %v5245, 2
      %vm5266 = vcmp.lt.s32.totalorder %v5245, 3
      %vm5267 = vcmp.lt.s32.totalorder %v5245, 4
      %v5268 = vsel %vm5264, %v5248, %v5251
      %v5269 = vsel %vm5267, %v5257, 2102212464
      %v5270 = vsel %vm5266, %v5254, %v5269
      %v5271 = vsel %vm5265, %v5268, %v5270
      %v5272 = vsel %vm5264, %v5251, %v5254
      %v5273 = vsel %vm5267, %v5260, 920167782
      %v5274 = vsel %vm5266, %v5257, %v5273
      %v5275 = vsel %vm5265, %v5272, %v5274
      %v5276 = vsel %vm5264, %v5254, %v5257
      %v5277 = vsel %vm5267, %v5263, 1326507024
      %v5278 = vsel %vm5266, %v5260, %v5277
      %v5279 = vsel %vm5265, %v5276, %v5278
      %v5280 = vshll.u32 %v5240, 8
      %v5281 = vmul.u32.u64.compose %v5280, %v5279
      %v5282 = vextract.low.u32 %v5281
      %v5283 = vextract.high.u32 %v5281
      %v5284 = vmul.u32.u64.compose %v5280, %v5275
      %v5285 = vextract.low.u32 %v5284
      %v5286 = vextract.high.u32 %v5284
      %v5287 = vmul.u32 %v5280, %v5271
      %v5288 = vadd.s32 %v5283, %v5285
      %vm5289 = vc.u32 %v5283, %v5285
      %v5290 = vadd.s32 %v5286, 1
      %v5291 = vsel %vm5289, %v5290, %v5286
      %v5292 = vadd.s32 %v5287, %v5291
      %v5293 = vadd.s32 %v5292, 536870912
      %v5294 = vshrl.u32 %v5293, 30
      %v5295 = vshll.u32 %v5294, 30
      %v5296 = vsub.s32 %v5292, %v5295
      %vm5297 = vcmp.lt.s32.totalorder %v5296, 0
      %v5298 = vsub.s32 0, %v5296
      %v5299 = vsel %vm5297, %v5298, %v5296
      %v5300 = vclz %v5299
      %v5301 = vsub.s32 %v5300, 2
      %vm5302 = vcmp.gt.s32.totalorder 0, %v5301
      %v5303 = vsel %vm5302, 0, %v5301
      %v5304 = vsub.s32 32, %v5303
      %v5305 = vshll.u32 %v5296, %v5303
      %v5306 = vshrl.u32 %v5288, %v5304
      %v5307 = vor.u32 %v5305, %v5306
      %v5308 = vsub.s32 4294967266, %v5303
      %v5309 = vadd.s32 %v5308, 127
      %v5310 = vshll.u32 %v5309, 23
      %v5311 = vor.u32 4788187, %v5310
      %v5312 = vand.u32 2147483647, %v5311
      %v5314 = vcvt.s32.f32 %v5307
      %v5315 = vmul.f32 %v5314, %v5312
      %v5316 = vxor.u32 %v5315, 2147483648
      %v5317 = vsel %vm5234, %v5316, %v5315
      %v5318 = vsub.s32 4, %v5294
      %v5319 = vsel %vm5234, %v5318, %v5294
      %v5320 = vsel %vm5233, %v1663, %v5317
      %v5321 = vsel %vm5233, 0, %v5319
      %v5322 = vcosq.f32.pop %v5320
      %v5323 = vsinq.f32.pop %v5320
      %vm5324 = vweird.f32 %v1663
      %v5325 = vadd.s32 %v5321, 3
      %v5326 = vand.u32 %v5325, 3
      %vm5327 = vcmp.lt.s32.totalorder %v5326, 2
      %vm5328 = vcmp.eq.s32.totalorder %v5326, 0
      %v5329 = vxor.u32 %v5323, 2147483648
      %v5330 = vsel %vm5328, %v5322, %v5329
      %vm5331 = vcmp.eq.s32.totalorder %v5326, 2
      %v5332 = vxor.u32 %v5322, 2147483648
      %v5333 = vsel %vm5331, %v5332, %v5323
      %v5334 = vsel %vm5327, %v5330, %v5333
      %v5335 = vsel %vm5324, nan, %v5334
      %v5336 = vand.u32 2147483647, %v1664
      %vm5337 = vcmp.le.f32.partialorder %v5336, 0.7853982
      %vm5338 = vcmp.lt.s32.totalorder %v1664, 0
      %v5339 = vand.u32 %v1664, 2139095040
      %v5340 = vshrl.u32 %v5339, 23
      %v5341 = vsub.s32 %v5340, 127
      %v5342 = vand.u32 2147483647, %v1664
      %v5343 = vand.u32 %v5342, 8388607
      %v5344 = vor.u32 %v5343, 8388608
      %v5345 = vsub.s32 0, %v5344
      %v5346 = vadd.s32 %v5341, 1
      %vm5347 = vcmp.gt.s32.totalorder %v5346, 0
      %v5348 = vsel %vm5347, %v5346, 0
      %v5349 = vshrl.u32 %v5348, 5
      %v5350 = vand.u32 %v5348, 31
      %v5351 = vsub.s32 32, %v5350
      %v5352 = vshrl.u32 683565275, %v5351
      %v5353 = vshll.u32 683565275, %v5350
      %v5354 = vshrl.u32 2475754826, %v5351
      %v5355 = vor.u32 %v5353, %v5354
      %v5356 = vshll.u32 2475754826, %v5350
      %v5357 = vshrl.u32 2131351028, %v5351
      %v5358 = vor.u32 %v5356, %v5357
      %v5359 = vshll.u32 2131351028, %v5350
      %v5360 = vshrl.u32 2102212464, %v5351
      %v5361 = vor.u32 %v5359, %v5360
      %v5362 = vshll.u32 2102212464, %v5350
      %v5363 = vshrl.u32 920167782, %v5351
      %v5364 = vor.u32 %v5362, %v5363
      %v5365 = vshll.u32 920167782, %v5350
      %v5366 = vshrl.u32 1326507024, %v5351
      %v5367 = vor.u32 %v5365, %v5366
      %vm5368 = vcmp.lt.s32.totalorder %v5349, 1
      %vm5369 = vcmp.lt.s32.totalorder %v5349, 2
      %vm5370 = vcmp.lt.s32.totalorder %v5349, 3
      %vm5371 = vcmp.lt.s32.totalorder %v5349, 4
      %v5372 = vsel %vm5368, %v5352, %v5355
      %v5373 = vsel %vm5371, %v5361, 2102212464
      %v5374 = vsel %vm5370, %v5358, %v5373
      %v5375 = vsel %vm5369, %v5372, %v5374
      %v5376 = vsel %vm5368, %v5355, %v5358
      %v5377 = vsel %vm5371, %v5364, 920167782
      %v5378 = vsel %vm5370, %v5361, %v5377
      %v5379 = vsel %vm5369, %v5376, %v5378
      %v5380 = vsel %vm5368, %v5358, %v5361
      %v5381 = vsel %vm5371, %v5367, 1326507024
      %v5382 = vsel %vm5370, %v5364, %v5381
      %v5383 = vsel %vm5369, %v5380, %v5382
      %v5384 = vshll.u32 %v5344, 8
      %v5385 = vmul.u32.u64.compose %v5384, %v5383
      %v5386 = vextract.low.u32 %v5385
      %v5387 = vextract.high.u32 %v5385
      %v5388 = vmul.u32.u64.compose %v5384, %v5379
      %v5389 = vextract.low.u32 %v5388
      %v5390 = vextract.high.u32 %v5388
      %v5391 = vmul.u32 %v5384, %v5375
      %v5392 = vadd.s32 %v5387, %v5389
      %vm5393 = vc.u32 %v5387, %v5389
      %v5394 = vadd.s32 %v5390, 1
      %v5395 = vsel %vm5393, %v5394, %v5390
      %v5396 = vadd.s32 %v5391, %v5395
      %v5397 = vadd.s32 %v5396, 536870912
      %v5398 = vshrl.u32 %v5397, 30
      %v5399 = vshll.u32 %v5398, 30
      %v5400 = vsub.s32 %v5396, %v5399
      %vm5401 = vcmp.lt.s32.totalorder %v5400, 0
      %v5402 = vsub.s32 0, %v5400
      %v5403 = vsel %vm5401, %v5402, %v5400
      %v5404 = vclz %v5403
      %v5405 = vsub.s32 %v5404, 2
      %vm5406 = vcmp.gt.s32.totalorder 0, %v5405
      %v5407 = vsel %vm5406, 0, %v5405
      %v5408 = vsub.s32 32, %v5407
      %v5409 = vshll.u32 %v5400, %v5407
      %v5410 = vshrl.u32 %v5392, %v5408
      %v5411 = vor.u32 %v5409, %v5410
      %v5412 = vsub.s32 4294967266, %v5407
      %v5413 = vadd.s32 %v5412, 127
      %v5414 = vshll.u32 %v5413, 23
      %v5415 = vor.u32 4788187, %v5414
      %v5416 = vand.u32 2147483647, %v5415
      %v5418 = vcvt.s32.f32 %v5411
      %v5419 = vmul.f32 %v5418, %v5416
      %v5420 = vxor.u32 %v5419, 2147483648
      %v5421 = vsel %vm5338, %v5420, %v5419
      %v5422 = vsub.s32 4, %v5398
      %v5423 = vsel %vm5338, %v5422, %v5398
      %v5424 = vsel %vm5337, %v1664, %v5421
      %v5425 = vsel %vm5337, 0, %v5423
      %v5426 = vcosq.f32.pop %v5424
      %v5427 = vsinq.f32.pop %v5424
      %vm5428 = vweird.f32 %v1664
      %v5429 = vadd.s32 %v5425, 3
      %v5430 = vand.u32 %v5429, 3
      %vm5431 = vcmp.lt.s32.totalorder %v5430, 2
      %vm5432 = vcmp.eq.s32.totalorder %v5430, 0
      %v5433 = vxor.u32 %v5427, 2147483648
      %v5434 = vsel %vm5432, %v5426, %v5433
      %vm5435 = vcmp.eq.s32.totalorder %v5430, 2
      %v5436 = vxor.u32 %v5426, 2147483648
      %v5437 = vsel %vm5435, %v5436, %v5427
      %v5438 = vsel %vm5431, %v5434, %v5437
      %v5439 = vsel %vm5428, nan, %v5438
      %v5440 = vand.u32 2147483647, %v1665
      %vm5441 = vcmp.le.f32.partialorder %v5440, 0.7853982
      %vm5442 = vcmp.lt.s32.totalorder %v1665, 0
      %v5443 = vand.u32 %v1665, 2139095040
      %v5444 = vshrl.u32 %v5443, 23
      %v5445 = vsub.s32 %v5444, 127
      %v5446 = vand.u32 2147483647, %v1665
      %v5447 = vand.u32 %v5446, 8388607
      %v5448 = vor.u32 %v5447, 8388608
      %v5449 = vsub.s32 0, %v5448
      %v5450 = vadd.s32 %v5445, 1
      %vm5451 = vcmp.gt.s32.totalorder %v5450, 0
      %v5452 = vsel %vm5451, %v5450, 0
      %v5453 = vshrl.u32 %v5452, 5
      %v5454 = vand.u32 %v5452, 31
      %v5455 = vsub.s32 32, %v5454
      %v5456 = vshrl.u32 683565275, %v5455
      %v5457 = vshll.u32 683565275, %v5454
      %v5458 = vshrl.u32 2475754826, %v5455
      %v5459 = vor.u32 %v5457, %v5458
      %v5460 = vshll.u32 2475754826, %v5454
      %v5461 = vshrl.u32 2131351028, %v5455
      %v5462 = vor.u32 %v5460, %v5461
      %v5463 = vshll.u32 2131351028, %v5454
      %v5464 = vshrl.u32 2102212464, %v5455
      %v5465 = vor.u32 %v5463, %v5464
      %v5466 = vshll.u32 2102212464, %v5454
      %v5467 = vshrl.u32 920167782, %v5455
      %v5468 = vor.u32 %v5466, %v5467
      %v5469 = vshll.u32 920167782, %v5454
      %v5470 = vshrl.u32 1326507024, %v5455
      %v5471 = vor.u32 %v5469, %v5470
      %vm5472 = vcmp.lt.s32.totalorder %v5453, 1
      %vm5473 = vcmp.lt.s32.totalorder %v5453, 2
      %vm5474 = vcmp.lt.s32.totalorder %v5453, 3
      %vm5475 = vcmp.lt.s32.totalorder %v5453, 4
      %v5476 = vsel %vm5472, %v5456, %v5459
      %v5477 = vsel %vm5475, %v5465, 2102212464
      %v5478 = vsel %vm5474, %v5462, %v5477
      %v5479 = vsel %vm5473, %v5476, %v5478
      %v5480 = vsel %vm5472, %v5459, %v5462
      %v5481 = vsel %vm5475, %v5468, 920167782
      %v5482 = vsel %vm5474, %v5465, %v5481
      %v5483 = vsel %vm5473, %v5480, %v5482
      %v5484 = vsel %vm5472, %v5462, %v5465
      %v5485 = vsel %vm5475, %v5471, 1326507024
      %v5486 = vsel %vm5474, %v5468, %v5485
      %v5487 = vsel %vm5473, %v5484, %v5486
      %v5488 = vshll.u32 %v5448, 8
      %v5489 = vmul.u32.u64.compose %v5488, %v5487
      %v5490 = vextract.low.u32 %v5489
      %v5491 = vextract.high.u32 %v5489
      %v5492 = vmul.u32.u64.compose %v5488, %v5483
      %v5493 = vextract.low.u32 %v5492
      %v5494 = vextract.high.u32 %v5492
      %v5495 = vmul.u32 %v5488, %v5479
      %v5496 = vadd.s32 %v5491, %v5493
      %vm5497 = vc.u32 %v5491, %v5493
      %v5498 = vadd.s32 %v5494, 1
      %v5499 = vsel %vm5497, %v5498, %v5494
      %v5500 = vadd.s32 %v5495, %v5499
      %v5501 = vadd.s32 %v5500, 536870912
      %v5502 = vshrl.u32 %v5501, 30
      %v5503 = vshll.u32 %v5502, 30
      %v5504 = vsub.s32 %v5500, %v5503
      %vm5505 = vcmp.lt.s32.totalorder %v5504, 0
      %v5506 = vsub.s32 0, %v5504
      %v5507 = vsel %vm5505, %v5506, %v5504
      %v5508 = vclz %v5507
      %v5509 = vsub.s32 %v5508, 2
      %vm5510 = vcmp.gt.s32.totalorder 0, %v5509
      %v5511 = vsel %vm5510, 0, %v5509
      %v5512 = vsub.s32 32, %v5511
      %v5513 = vshll.u32 %v5504, %v5511
      %v5514 = vshrl.u32 %v5496, %v5512
      %v5515 = vor.u32 %v5513, %v5514
      %v5516 = vsub.s32 4294967266, %v5511
      %v5517 = vadd.s32 %v5516, 127
      %v5518 = vshll.u32 %v5517, 23
      %v5519 = vor.u32 4788187, %v5518
      %v5520 = vand.u32 2147483647, %v5519
      %v5522 = vcvt.s32.f32 %v5515
      %v5523 = vmul.f32 %v5522, %v5520
      %v5524 = vxor.u32 %v5523, 2147483648
      %v5525 = vsel %vm5442, %v5524, %v5523
      %v5526 = vsub.s32 4, %v5502
      %v5527 = vsel %vm5442, %v5526, %v5502
      %v5528 = vsel %vm5441, %v1665, %v5525
      %v5529 = vsel %vm5441, 0, %v5527
      %v5530 = vcosq.f32.pop %v5528
      %v5531 = vsinq.f32.pop %v5528
      %vm5532 = vweird.f32 %v1665
      %v5533 = vadd.s32 %v5529, 3
      %v5534 = vand.u32 %v5533, 3
      %vm5535 = vcmp.lt.s32.totalorder %v5534, 2
      %vm5536 = vcmp.eq.s32.totalorder %v5534, 0
      %v5537 = vxor.u32 %v5531, 2147483648
      %v5538 = vsel %vm5536, %v5530, %v5537
      %vm5539 = vcmp.eq.s32.totalorder %v5534, 2
      %v5540 = vxor.u32 %v5530, 2147483648
      %v5541 = vsel %vm5539, %v5540, %v5531
      %v5542 = vsel %vm5535, %v5538, %v5541
      %v5543 = vsel %vm5532, nan, %v5542
      %v5544 = vand.u32 2147483647, %v1666
      %vm5545 = vcmp.le.f32.partialorder %v5544, 0.7853982
      %vm5546 = vcmp.lt.s32.totalorder %v1666, 0
      %v5547 = vand.u32 %v1666, 2139095040
      %v5548 = vshrl.u32 %v5547, 23
      %v5549 = vsub.s32 %v5548, 127
      %v5550 = vand.u32 2147483647, %v1666
      %v5551 = vand.u32 %v5550, 8388607
      %v5552 = vor.u32 %v5551, 8388608
      %v5553 = vsub.s32 0, %v5552
      %v5554 = vadd.s32 %v5549, 1
      %vm5555 = vcmp.gt.s32.totalorder %v5554, 0
      %v5556 = vsel %vm5555, %v5554, 0
      %v5557 = vshrl.u32 %v5556, 5
      %v5558 = vand.u32 %v5556, 31
      %v5559 = vsub.s32 32, %v5558
      %v5560 = vshrl.u32 683565275, %v5559
      %v5561 = vshll.u32 683565275, %v5558
      %v5562 = vshrl.u32 2475754826, %v5559
      %v5563 = vor.u32 %v5561, %v5562
      %v5564 = vshll.u32 2475754826, %v5558
      %v5565 = vshrl.u32 2131351028, %v5559
      %v5566 = vor.u32 %v5564, %v5565
      %v5567 = vshll.u32 2131351028, %v5558
      %v5568 = vshrl.u32 2102212464, %v5559
      %v5569 = vor.u32 %v5567, %v5568
      %v5570 = vshll.u32 2102212464, %v5558
      %v5571 = vshrl.u32 920167782, %v5559
      %v5572 = vor.u32 %v5570, %v5571
      %v5573 = vshll.u32 920167782, %v5558
      %v5574 = vshrl.u32 1326507024, %v5559
      %v5575 = vor.u32 %v5573, %v5574
      %vm5576 = vcmp.lt.s32.totalorder %v5557, 1
      %vm5577 = vcmp.lt.s32.totalorder %v5557, 2
      %vm5578 = vcmp.lt.s32.totalorder %v5557, 3
      %vm5579 = vcmp.lt.s32.totalorder %v5557, 4
      %v5580 = vsel %vm5576, %v5560, %v5563
      %v5581 = vsel %vm5579, %v5569, 2102212464
      %v5582 = vsel %vm5578, %v5566, %v5581
      %v5583 = vsel %vm5577, %v5580, %v5582
      %v5584 = vsel %vm5576, %v5563, %v5566
      %v5585 = vsel %vm5579, %v5572, 920167782
      %v5586 = vsel %vm5578, %v5569, %v5585
      %v5587 = vsel %vm5577, %v5584, %v5586
      %v5588 = vsel %vm5576, %v5566, %v5569
      %v5589 = vsel %vm5579, %v5575, 1326507024
      %v5590 = vsel %vm5578, %v5572, %v5589
      %v5591 = vsel %vm5577, %v5588, %v5590
      %v5592 = vshll.u32 %v5552, 8
      %v5593 = vmul.u32.u64.compose %v5592, %v5591
      %v5594 = vextract.low.u32 %v5593
      %v5595 = vextract.high.u32 %v5593
      %v5596 = vmul.u32.u64.compose %v5592, %v5587
      %v5597 = vextract.low.u32 %v5596
      %v5598 = vextract.high.u32 %v5596
      %v5599 = vmul.u32 %v5592, %v5583
      %v5600 = vadd.s32 %v5595, %v5597
      %vm5601 = vc.u32 %v5595, %v5597
      %v5602 = vadd.s32 %v5598, 1
      %v5603 = vsel %vm5601, %v5602, %v5598
      %v5604 = vadd.s32 %v5599, %v5603
      %v5605 = vadd.s32 %v5604, 536870912
      %v5606 = vshrl.u32 %v5605, 30
      %v5607 = vshll.u32 %v5606, 30
      %v5608 = vsub.s32 %v5604, %v5607
      %vm5609 = vcmp.lt.s32.totalorder %v5608, 0
      %v5610 = vsub.s32 0, %v5608
      %v5611 = vsel %vm5609, %v5610, %v5608
      %v5612 = vclz %v5611
      %v5613 = vsub.s32 %v5612, 2
      %vm5614 = vcmp.gt.s32.totalorder 0, %v5613
      %v5615 = vsel %vm5614, 0, %v5613
      %v5616 = vsub.s32 32, %v5615
      %v5617 = vshll.u32 %v5608, %v5615
      %v5618 = vshrl.u32 %v5600, %v5616
      %v5619 = vor.u32 %v5617, %v5618
      %v5620 = vsub.s32 4294967266, %v5615
      %v5621 = vadd.s32 %v5620, 127
      %v5622 = vshll.u32 %v5621, 23
      %v5623 = vor.u32 4788187, %v5622
      %v5624 = vand.u32 2147483647, %v5623
      %v5626 = vcvt.s32.f32 %v5619
      %v5627 = vmul.f32 %v5626, %v5624
      %v5628 = vxor.u32 %v5627, 2147483648
      %v5629 = vsel %vm5546, %v5628, %v5627
      %v5630 = vsub.s32 4, %v5606
      %v5631 = vsel %vm5546, %v5630, %v5606
      %v5632 = vsel %vm5545, %v1666, %v5629
      %v5633 = vsel %vm5545, 0, %v5631
      %v5634 = vcosq.f32.pop %v5632
      %v5635 = vsinq.f32.pop %v5632
      %vm5636 = vweird.f32 %v1666
      %v5637 = vadd.s32 %v5633, 3
      %v5638 = vand.u32 %v5637, 3
      %vm5639 = vcmp.lt.s32.totalorder %v5638, 2
      %vm5640 = vcmp.eq.s32.totalorder %v5638, 0
      %v5641 = vxor.u32 %v5635, 2147483648
      %v5642 = vsel %vm5640, %v5634, %v5641
      %vm5643 = vcmp.eq.s32.totalorder %v5638, 2
      %v5644 = vxor.u32 %v5634, 2147483648
      %v5645 = vsel %vm5643, %v5644, %v5635
      %v5646 = vsel %vm5639, %v5642, %v5645
      %v5647 = vsel %vm5636, nan, %v5646
      %v5648 = vand.u32 2147483647, %v1667
      %vm5649 = vcmp.le.f32.partialorder %v5648, 0.7853982
      %vm5650 = vcmp.lt.s32.totalorder %v1667, 0
      %v5651 = vand.u32 %v1667, 2139095040
      %v5652 = vshrl.u32 %v5651, 23
      %v5653 = vsub.s32 %v5652, 127
      %v5654 = vand.u32 2147483647, %v1667
      %v5655 = vand.u32 %v5654, 8388607
      %v5656 = vor.u32 %v5655, 8388608
      %v5657 = vsub.s32 0, %v5656
      %v5658 = vadd.s32 %v5653, 1
      %vm5659 = vcmp.gt.s32.totalorder %v5658, 0
      %v5660 = vsel %vm5659, %v5658, 0
      %v5661 = vshrl.u32 %v5660, 5
      %v5662 = vand.u32 %v5660, 31
      %v5663 = vsub.s32 32, %v5662
      %v5664 = vshrl.u32 683565275, %v5663
      %v5665 = vshll.u32 683565275, %v5662
      %v5666 = vshrl.u32 2475754826, %v5663
      %v5667 = vor.u32 %v5665, %v5666
      %v5668 = vshll.u32 2475754826, %v5662
      %v5669 = vshrl.u32 2131351028, %v5663
      %v5670 = vor.u32 %v5668, %v5669
      %v5671 = vshll.u32 2131351028, %v5662
      %v5672 = vshrl.u32 2102212464, %v5663
      %v5673 = vor.u32 %v5671, %v5672
      %v5674 = vshll.u32 2102212464, %v5662
      %v5675 = vshrl.u32 920167782, %v5663
      %v5676 = vor.u32 %v5674, %v5675
      %v5677 = vshll.u32 920167782, %v5662
      %v5678 = vshrl.u32 1326507024, %v5663
      %v5679 = vor.u32 %v5677, %v5678
      %vm5680 = vcmp.lt.s32.totalorder %v5661, 1
      %vm5681 = vcmp.lt.s32.totalorder %v5661, 2
      %vm5682 = vcmp.lt.s32.totalorder %v5661, 3
      %vm5683 = vcmp.lt.s32.totalorder %v5661, 4
      %v5684 = vsel %vm5680, %v5664, %v5667
      %v5685 = vsel %vm5683, %v5673, 2102212464
      %v5686 = vsel %vm5682, %v5670, %v5685
      %v5687 = vsel %vm5681, %v5684, %v5686
      %v5688 = vsel %vm5680, %v5667, %v5670
      %v5689 = vsel %vm5683, %v5676, 920167782
      %v5690 = vsel %vm5682, %v5673, %v5689
      %v5691 = vsel %vm5681, %v5688, %v5690
      %v5692 = vsel %vm5680, %v5670, %v5673
      %v5693 = vsel %vm5683, %v5679, 1326507024
      %v5694 = vsel %vm5682, %v5676, %v5693
      %v5695 = vsel %vm5681, %v5692, %v5694
      %v5696 = vshll.u32 %v5656, 8
      %v5697 = vmul.u32.u64.compose %v5696, %v5695
      %v5698 = vextract.low.u32 %v5697
      %v5699 = vextract.high.u32 %v5697
      %v5700 = vmul.u32.u64.compose %v5696, %v5691
      %v5701 = vextract.low.u32 %v5700
      %v5702 = vextract.high.u32 %v5700
      %v5703 = vmul.u32 %v5696, %v5687
      %v5704 = vadd.s32 %v5699, %v5701
      %vm5705 = vc.u32 %v5699, %v5701
      %v5706 = vadd.s32 %v5702, 1
      %v5707 = vsel %vm5705, %v5706, %v5702
      %v5708 = vadd.s32 %v5703, %v5707
      %v5709 = vadd.s32 %v5708, 536870912
      %v5710 = vshrl.u32 %v5709, 30
      %v5711 = vshll.u32 %v5710, 30
      %v5712 = vsub.s32 %v5708, %v5711
      %vm5713 = vcmp.lt.s32.totalorder %v5712, 0
      %v5714 = vsub.s32 0, %v5712
      %v5715 = vsel %vm5713, %v5714, %v5712
      %v5716 = vclz %v5715
      %v5717 = vsub.s32 %v5716, 2
      %vm5718 = vcmp.gt.s32.totalorder 0, %v5717
      %v5719 = vsel %vm5718, 0, %v5717
      %v5720 = vsub.s32 32, %v5719
      %v5721 = vshll.u32 %v5712, %v5719
      %v5722 = vshrl.u32 %v5704, %v5720
      %v5723 = vor.u32 %v5721, %v5722
      %v5724 = vsub.s32 4294967266, %v5719
      %v5725 = vadd.s32 %v5724, 127
      %v5726 = vshll.u32 %v5725, 23
      %v5727 = vor.u32 4788187, %v5726
      %v5728 = vand.u32 2147483647, %v5727
      %v5730 = vcvt.s32.f32 %v5723
      %v5731 = vmul.f32 %v5730, %v5728
      %v5732 = vxor.u32 %v5731, 2147483648
      %v5733 = vsel %vm5650, %v5732, %v5731
      %v5734 = vsub.s32 4, %v5710
      %v5735 = vsel %vm5650, %v5734, %v5710
      %v5736 = vsel %vm5649, %v1667, %v5733
      %v5737 = vsel %vm5649, 0, %v5735
      %v5738 = vcosq.f32.pop %v5736
      %v5739 = vsinq.f32.pop %v5736
      %vm5740 = vweird.f32 %v1667
      %v5741 = vadd.s32 %v5737, 3
      %v5742 = vand.u32 %v5741, 3
      %vm5743 = vcmp.lt.s32.totalorder %v5742, 2
      %vm5744 = vcmp.eq.s32.totalorder %v5742, 0
      %v5745 = vxor.u32 %v5739, 2147483648
      %v5746 = vsel %vm5744, %v5738, %v5745
      %vm5747 = vcmp.eq.s32.totalorder %v5742, 2
      %v5748 = vxor.u32 %v5738, 2147483648
      %v5749 = vsel %vm5747, %v5748, %v5739
      %v5750 = vsel %vm5743, %v5746, %v5749
      %v5751 = vsel %vm5740, nan, %v5750
      %v5752 = vand.u32 2147483647, %v1668
      %vm5753 = vcmp.le.f32.partialorder %v5752, 0.7853982
      %vm5754 = vcmp.lt.s32.totalorder %v1668, 0
      %v5755 = vand.u32 %v1668, 2139095040
      %v5756 = vshrl.u32 %v5755, 23
      %v5757 = vsub.s32 %v5756, 127
      %v5758 = vand.u32 2147483647, %v1668
      %v5759 = vand.u32 %v5758, 8388607
      %v5760 = vor.u32 %v5759, 8388608
      %v5761 = vsub.s32 0, %v5760
      %v5762 = vadd.s32 %v5757, 1
      %vm5763 = vcmp.gt.s32.totalorder %v5762, 0
      %v5764 = vsel %vm5763, %v5762, 0
      %v5765 = vshrl.u32 %v5764, 5
      %v5766 = vand.u32 %v5764, 31
      %v5767 = vsub.s32 32, %v5766
      %v5768 = vshrl.u32 683565275, %v5767
      %v5769 = vshll.u32 683565275, %v5766
      %v5770 = vshrl.u32 2475754826, %v5767
      %v5771 = vor.u32 %v5769, %v5770
      %v5772 = vshll.u32 2475754826, %v5766
      %v5773 = vshrl.u32 2131351028, %v5767
      %v5774 = vor.u32 %v5772, %v5773
      %v5775 = vshll.u32 2131351028, %v5766
      %v5776 = vshrl.u32 2102212464, %v5767
      %v5777 = vor.u32 %v5775, %v5776
      %v5778 = vshll.u32 2102212464, %v5766
      %v5779 = vshrl.u32 920167782, %v5767
      %v5780 = vor.u32 %v5778, %v5779
      %v5781 = vshll.u32 920167782, %v5766
      %v5782 = vshrl.u32 1326507024, %v5767
      %v5783 = vor.u32 %v5781, %v5782
      %vm5784 = vcmp.lt.s32.totalorder %v5765, 1
      %vm5785 = vcmp.lt.s32.totalorder %v5765, 2
      %vm5786 = vcmp.lt.s32.totalorder %v5765, 3
      %vm5787 = vcmp.lt.s32.totalorder %v5765, 4
      %v5788 = vsel %vm5784, %v5768, %v5771
      %v5789 = vsel %vm5787, %v5777, 2102212464
      %v5790 = vsel %vm5786, %v5774, %v5789
      %v5791 = vsel %vm5785, %v5788, %v5790
      %v5792 = vsel %vm5784, %v5771, %v5774
      %v5793 = vsel %vm5787, %v5780, 920167782
      %v5794 = vsel %vm5786, %v5777, %v5793
      %v5795 = vsel %vm5785, %v5792, %v5794
      %v5796 = vsel %vm5784, %v5774, %v5777
      %v5797 = vsel %vm5787, %v5783, 1326507024
      %v5798 = vsel %vm5786, %v5780, %v5797
      %v5799 = vsel %vm5785, %v5796, %v5798
      %v5800 = vshll.u32 %v5760, 8
      %v5801 = vmul.u32.u64.compose %v5800, %v5799
      %v5802 = vextract.low.u32 %v5801
      %v5803 = vextract.high.u32 %v5801
      %v5804 = vmul.u32.u64.compose %v5800, %v5795
      %v5805 = vextract.low.u32 %v5804
      %v5806 = vextract.high.u32 %v5804
      %v5807 = vmul.u32 %v5800, %v5791
      %v5808 = vadd.s32 %v5803, %v5805
      %vm5809 = vc.u32 %v5803, %v5805
      %v5810 = vadd.s32 %v5806, 1
      %v5811 = vsel %vm5809, %v5810, %v5806
      %v5812 = vadd.s32 %v5807, %v5811
      %v5813 = vadd.s32 %v5812, 536870912
      %v5814 = vshrl.u32 %v5813, 30
      %v5815 = vshll.u32 %v5814, 30
      %v5816 = vsub.s32 %v5812, %v5815
      %vm5817 = vcmp.lt.s32.totalorder %v5816, 0
      %v5818 = vsub.s32 0, %v5816
      %v5819 = vsel %vm5817, %v5818, %v5816
      %v5820 = vclz %v5819
      %v5821 = vsub.s32 %v5820, 2
      %vm5822 = vcmp.gt.s32.totalorder 0, %v5821
      %v5823 = vsel %vm5822, 0, %v5821
      %v5824 = vsub.s32 32, %v5823
      %v5825 = vshll.u32 %v5816, %v5823
      %v5826 = vshrl.u32 %v5808, %v5824
      %v5827 = vor.u32 %v5825, %v5826
      %v5828 = vsub.s32 4294967266, %v5823
      %v5829 = vadd.s32 %v5828, 127
      %v5830 = vshll.u32 %v5829, 23
      %v5831 = vor.u32 4788187, %v5830
      %v5832 = vand.u32 2147483647, %v5831
      %v5834 = vcvt.s32.f32 %v5827
      %v5835 = vmul.f32 %v5834, %v5832
      %v5836 = vxor.u32 %v5835, 2147483648
      %v5837 = vsel %vm5754, %v5836, %v5835
      %v5838 = vsub.s32 4, %v5814
      %v5839 = vsel %vm5754, %v5838, %v5814
      %v5840 = vsel %vm5753, %v1668, %v5837
      %v5841 = vsel %vm5753, 0, %v5839
      %v5842 = vcosq.f32.pop %v5840
      %v5843 = vsinq.f32.pop %v5840
      %vm5844 = vweird.f32 %v1668
      %v5845 = vadd.s32 %v5841, 3
      %v5846 = vand.u32 %v5845, 3
      %vm5847 = vcmp.lt.s32.totalorder %v5846, 2
      %vm5848 = vcmp.eq.s32.totalorder %v5846, 0
      %v5849 = vxor.u32 %v5843, 2147483648
      %v5850 = vsel %vm5848, %v5842, %v5849
      %vm5851 = vcmp.eq.s32.totalorder %v5846, 2
      %v5852 = vxor.u32 %v5842, 2147483648
      %v5853 = vsel %vm5851, %v5852, %v5843
      %v5854 = vsel %vm5847, %v5850, %v5853
      %v5855 = vsel %vm5844, nan, %v5854
      %v5856 = vand.u32 2147483647, %v1669
      %vm5857 = vcmp.le.f32.partialorder %v5856, 0.7853982
      %vm5858 = vcmp.lt.s32.totalorder %v1669, 0
      %v5859 = vand.u32 %v1669, 2139095040
      %v5860 = vshrl.u32 %v5859, 23
      %v5861 = vsub.s32 %v5860, 127
      %v5862 = vand.u32 2147483647, %v1669
      %v5863 = vand.u32 %v5862, 8388607
      %v5864 = vor.u32 %v5863, 8388608
      %v5865 = vsub.s32 0, %v5864
      %v5866 = vadd.s32 %v5861, 1
      %vm5867 = vcmp.gt.s32.totalorder %v5866, 0
      %v5868 = vsel %vm5867, %v5866, 0
      %v5869 = vshrl.u32 %v5868, 5
      %v5870 = vand.u32 %v5868, 31
      %v5871 = vsub.s32 32, %v5870
      %v5872 = vshrl.u32 683565275, %v5871
      %v5873 = vshll.u32 683565275, %v5870
      %v5874 = vshrl.u32 2475754826, %v5871
      %v5875 = vor.u32 %v5873, %v5874
      %v5876 = vshll.u32 2475754826, %v5870
      %v5877 = vshrl.u32 2131351028, %v5871
      %v5878 = vor.u32 %v5876, %v5877
      %v5879 = vshll.u32 2131351028, %v5870
      %v5880 = vshrl.u32 2102212464, %v5871
      %v5881 = vor.u32 %v5879, %v5880
      %v5882 = vshll.u32 2102212464, %v5870
      %v5883 = vshrl.u32 920167782, %v5871
      %v5884 = vor.u32 %v5882, %v5883
      %v5885 = vshll.u32 920167782, %v5870
      %v5886 = vshrl.u32 1326507024, %v5871
      %v5887 = vor.u32 %v5885, %v5886
      %vm5888 = vcmp.lt.s32.totalorder %v5869, 1
      %vm5889 = vcmp.lt.s32.totalorder %v5869, 2
      %vm5890 = vcmp.lt.s32.totalorder %v5869, 3
      %vm5891 = vcmp.lt.s32.totalorder %v5869, 4
      %v5892 = vsel %vm5888, %v5872, %v5875
      %v5893 = vsel %vm5891, %v5881, 2102212464
      %v5894 = vsel %vm5890, %v5878, %v5893
      %v5895 = vsel %vm5889, %v5892, %v5894
      %v5896 = vsel %vm5888, %v5875, %v5878
      %v5897 = vsel %vm5891, %v5884, 920167782
      %v5898 = vsel %vm5890, %v5881, %v5897
      %v5899 = vsel %vm5889, %v5896, %v5898
      %v5900 = vsel %vm5888, %v5878, %v5881
      %v5901 = vsel %vm5891, %v5887, 1326507024
      %v5902 = vsel %vm5890, %v5884, %v5901
      %v5903 = vsel %vm5889, %v5900, %v5902
      %v5904 = vshll.u32 %v5864, 8
      %v5905 = vmul.u32.u64.compose %v5904, %v5903
      %v5906 = vextract.low.u32 %v5905
      %v5907 = vextract.high.u32 %v5905
      %v5908 = vmul.u32.u64.compose %v5904, %v5899
      %v5909 = vextract.low.u32 %v5908
      %v5910 = vextract.high.u32 %v5908
      %v5911 = vmul.u32 %v5904, %v5895
      %v5912 = vadd.s32 %v5907, %v5909
      %vm5913 = vc.u32 %v5907, %v5909
      %v5914 = vadd.s32 %v5910, 1
      %v5915 = vsel %vm5913, %v5914, %v5910
      %v5916 = vadd.s32 %v5911, %v5915
      %v5917 = vadd.s32 %v5916, 536870912
      %v5918 = vshrl.u32 %v5917, 30
      %v5919 = vshll.u32 %v5918, 30
      %v5920 = vsub.s32 %v5916, %v5919
      %vm5921 = vcmp.lt.s32.totalorder %v5920, 0
      %v5922 = vsub.s32 0, %v5920
      %v5923 = vsel %vm5921, %v5922, %v5920
      %v5924 = vclz %v5923
      %v5925 = vsub.s32 %v5924, 2
      %vm5926 = vcmp.gt.s32.totalorder 0, %v5925
      %v5927 = vsel %vm5926, 0, %v5925
      %v5928 = vsub.s32 32, %v5927
      %v5929 = vshll.u32 %v5920, %v5927
      %v5930 = vshrl.u32 %v5912, %v5928
      %v5931 = vor.u32 %v5929, %v5930
      %v5932 = vsub.s32 4294967266, %v5927
      %v5933 = vadd.s32 %v5932, 127
      %v5934 = vshll.u32 %v5933, 23
      %v5935 = vor.u32 4788187, %v5934
      %v5936 = vand.u32 2147483647, %v5935
      %v5938 = vcvt.s32.f32 %v5931
      %v5939 = vmul.f32 %v5938, %v5936
      %v5940 = vxor.u32 %v5939, 2147483648
      %v5941 = vsel %vm5858, %v5940, %v5939
      %v5942 = vsub.s32 4, %v5918
      %v5943 = vsel %vm5858, %v5942, %v5918
      %v5944 = vsel %vm5857, %v1669, %v5941
      %v5945 = vsel %vm5857, 0, %v5943
      %v5946 = vcosq.f32.pop %v5944
      %v5947 = vsinq.f32.pop %v5944
      %vm5948 = vweird.f32 %v1669
      %v5949 = vadd.s32 %v5945, 3
      %v5950 = vand.u32 %v5949, 3
      %vm5951 = vcmp.lt.s32.totalorder %v5950, 2
      %vm5952 = vcmp.eq.s32.totalorder %v5950, 0
      %v5953 = vxor.u32 %v5947, 2147483648
      %v5954 = vsel %vm5952, %v5946, %v5953
      %vm5955 = vcmp.eq.s32.totalorder %v5950, 2
      %v5956 = vxor.u32 %v5946, 2147483648
      %v5957 = vsel %vm5955, %v5956, %v5947
      %v5958 = vsel %vm5951, %v5954, %v5957
      %v5959 = vsel %vm5948, nan, %v5958
      %v5960 = vand.u32 2147483647, %v1670
      %vm5961 = vcmp.le.f32.partialorder %v5960, 0.7853982
      %vm5962 = vcmp.lt.s32.totalorder %v1670, 0
      %v5963 = vand.u32 %v1670, 2139095040
      %v5964 = vshrl.u32 %v5963, 23
      %v5965 = vsub.s32 %v5964, 127
      %v5966 = vand.u32 2147483647, %v1670
      %v5967 = vand.u32 %v5966, 8388607
      %v5968 = vor.u32 %v5967, 8388608
      %v5969 = vsub.s32 0, %v5968
      %v5970 = vadd.s32 %v5965, 1
      %vm5971 = vcmp.gt.s32.totalorder %v5970, 0
      %v5972 = vsel %vm5971, %v5970, 0
      %v5973 = vshrl.u32 %v5972, 5
      %v5974 = vand.u32 %v5972, 31
      %v5975 = vsub.s32 32, %v5974
      %v5976 = vshrl.u32 683565275, %v5975
      %v5977 = vshll.u32 683565275, %v5974
      %v5978 = vshrl.u32 2475754826, %v5975
      %v5979 = vor.u32 %v5977, %v5978
      %v5980 = vshll.u32 2475754826, %v5974
      %v5981 = vshrl.u32 2131351028, %v5975
      %v5982 = vor.u32 %v5980, %v5981
      %v5983 = vshll.u32 2131351028, %v5974
      %v5984 = vshrl.u32 2102212464, %v5975
      %v5985 = vor.u32 %v5983, %v5984
      %v5986 = vshll.u32 2102212464, %v5974
      %v5987 = vshrl.u32 920167782, %v5975
      %v5988 = vor.u32 %v5986, %v5987
      %v5989 = vshll.u32 920167782, %v5974
      %v5990 = vshrl.u32 1326507024, %v5975
      %v5991 = vor.u32 %v5989, %v5990
      %vm5992 = vcmp.lt.s32.totalorder %v5973, 1
      %vm5993 = vcmp.lt.s32.totalorder %v5973, 2
      %vm5994 = vcmp.lt.s32.totalorder %v5973, 3
      %vm5995 = vcmp.lt.s32.totalorder %v5973, 4
      %v5996 = vsel %vm5992, %v5976, %v5979
      %v5997 = vsel %vm5995, %v5985, 2102212464
      %v5998 = vsel %vm5994, %v5982, %v5997
      %v5999 = vsel %vm5993, %v5996, %v5998
      %v6000 = vsel %vm5992, %v5979, %v5982
      %v6001 = vsel %vm5995, %v5988, 920167782
      %v6002 = vsel %vm5994, %v5985, %v6001
      %v6003 = vsel %vm5993, %v6000, %v6002
      %v6004 = vsel %vm5992, %v5982, %v5985
      %v6005 = vsel %vm5995, %v5991, 1326507024
      %v6006 = vsel %vm5994, %v5988, %v6005
      %v6007 = vsel %vm5993, %v6004, %v6006
      %v6008 = vshll.u32 %v5968, 8
      %v6009 = vmul.u32.u64.compose %v6008, %v6007
      %v6010 = vextract.low.u32 %v6009
      %v6011 = vextract.high.u32 %v6009
      %v6012 = vmul.u32.u64.compose %v6008, %v6003
      %v6013 = vextract.low.u32 %v6012
      %v6014 = vextract.high.u32 %v6012
      %v6015 = vmul.u32 %v6008, %v5999
      %v6016 = vadd.s32 %v6011, %v6013
      %vm6017 = vc.u32 %v6011, %v6013
      %v6018 = vadd.s32 %v6014, 1
      %v6019 = vsel %vm6017, %v6018, %v6014
      %v6020 = vadd.s32 %v6015, %v6019
      %v6021 = vadd.s32 %v6020, 536870912
      %v6022 = vshrl.u32 %v6021, 30
      %v6023 = vshll.u32 %v6022, 30
      %v6024 = vsub.s32 %v6020, %v6023
      %vm6025 = vcmp.lt.s32.totalorder %v6024, 0
      %v6026 = vsub.s32 0, %v6024
      %v6027 = vsel %vm6025, %v6026, %v6024
      %v6028 = vclz %v6027
      %v6029 = vsub.s32 %v6028, 2
      %vm6030 = vcmp.gt.s32.totalorder 0, %v6029
      %v6031 = vsel %vm6030, 0, %v6029
      %v6032 = vsub.s32 32, %v6031
      %v6033 = vshll.u32 %v6024, %v6031
      %v6034 = vshrl.u32 %v6016, %v6032
      %v6035 = vor.u32 %v6033, %v6034
      %v6036 = vsub.s32 4294967266, %v6031
      %v6037 = vadd.s32 %v6036, 127
      %v6038 = vshll.u32 %v6037, 23
      %v6039 = vor.u32 4788187, %v6038
      %v6040 = vand.u32 2147483647, %v6039
      %v6042 = vcvt.s32.f32 %v6035
      %v6043 = vmul.f32 %v6042, %v6040
      %v6044 = vxor.u32 %v6043, 2147483648
      %v6045 = vsel %vm5962, %v6044, %v6043
      %v6046 = vsub.s32 4, %v6022
      %v6047 = vsel %vm5962, %v6046, %v6022
      %v6048 = vsel %vm5961, %v1670, %v6045
      %v6049 = vsel %vm5961, 0, %v6047
      %v6050 = vcosq.f32.pop %v6048
      %v6051 = vsinq.f32.pop %v6048
      %vm6052 = vweird.f32 %v1670
      %v6053 = vadd.s32 %v6049, 3
      %v6054 = vand.u32 %v6053, 3
      %vm6055 = vcmp.lt.s32.totalorder %v6054, 2
      %vm6056 = vcmp.eq.s32.totalorder %v6054, 0
      %v6057 = vxor.u32 %v6051, 2147483648
      %v6058 = vsel %vm6056, %v6050, %v6057
      %vm6059 = vcmp.eq.s32.totalorder %v6054, 2
      %v6060 = vxor.u32 %v6050, 2147483648
      %v6061 = vsel %vm6059, %v6060, %v6051
      %v6062 = vsel %vm6055, %v6058, %v6061
      %v6063 = vsel %vm6052, nan, %v6062
      %v6064 = vand.u32 2147483647, %v1671
      %vm6065 = vcmp.le.f32.partialorder %v6064, 0.7853982
      %vm6066 = vcmp.lt.s32.totalorder %v1671, 0
      %v6067 = vand.u32 %v1671, 2139095040
      %v6068 = vshrl.u32 %v6067, 23
      %v6069 = vsub.s32 %v6068, 127
      %v6070 = vand.u32 2147483647, %v1671
      %v6071 = vand.u32 %v6070, 8388607
      %v6072 = vor.u32 %v6071, 8388608
      %v6073 = vsub.s32 0, %v6072
      %v6074 = vadd.s32 %v6069, 1
      %vm6075 = vcmp.gt.s32.totalorder %v6074, 0
      %v6076 = vsel %vm6075, %v6074, 0
      %v6077 = vshrl.u32 %v6076, 5
      %v6078 = vand.u32 %v6076, 31
      %v6079 = vsub.s32 32, %v6078
      %v6080 = vshrl.u32 683565275, %v6079
      %v6081 = vshll.u32 683565275, %v6078
      %v6082 = vshrl.u32 2475754826, %v6079
      %v6083 = vor.u32 %v6081, %v6082
      %v6084 = vshll.u32 2475754826, %v6078
      %v6085 = vshrl.u32 2131351028, %v6079
      %v6086 = vor.u32 %v6084, %v6085
      %v6087 = vshll.u32 2131351028, %v6078
      %v6088 = vshrl.u32 2102212464, %v6079
      %v6089 = vor.u32 %v6087, %v6088
      %v6090 = vshll.u32 2102212464, %v6078
      %v6091 = vshrl.u32 920167782, %v6079
      %v6092 = vor.u32 %v6090, %v6091
      %v6093 = vshll.u32 920167782, %v6078
      %v6094 = vshrl.u32 1326507024, %v6079
      %v6095 = vor.u32 %v6093, %v6094
      %vm6096 = vcmp.lt.s32.totalorder %v6077, 1
      %vm6097 = vcmp.lt.s32.totalorder %v6077, 2
      %vm6098 = vcmp.lt.s32.totalorder %v6077, 3
      %vm6099 = vcmp.lt.s32.totalorder %v6077, 4
      %v6100 = vsel %vm6096, %v6080, %v6083
      %v6101 = vsel %vm6099, %v6089, 2102212464
      %v6102 = vsel %vm6098, %v6086, %v6101
      %v6103 = vsel %vm6097, %v6100, %v6102
      %v6104 = vsel %vm6096, %v6083, %v6086
      %v6105 = vsel %vm6099, %v6092, 920167782
      %v6106 = vsel %vm6098, %v6089, %v6105
      %v6107 = vsel %vm6097, %v6104, %v6106
      %v6108 = vsel %vm6096, %v6086, %v6089
      %v6109 = vsel %vm6099, %v6095, 1326507024
      %v6110 = vsel %vm6098, %v6092, %v6109
      %v6111 = vsel %vm6097, %v6108, %v6110
      %v6112 = vshll.u32 %v6072, 8
      %v6113 = vmul.u32.u64.compose %v6112, %v6111
      %v6114 = vextract.low.u32 %v6113
      %v6115 = vextract.high.u32 %v6113
      %v6116 = vmul.u32.u64.compose %v6112, %v6107
      %v6117 = vextract.low.u32 %v6116
      %v6118 = vextract.high.u32 %v6116
      %v6119 = vmul.u32 %v6112, %v6103
      %v6120 = vadd.s32 %v6115, %v6117
      %vm6121 = vc.u32 %v6115, %v6117
      %v6122 = vadd.s32 %v6118, 1
      %v6123 = vsel %vm6121, %v6122, %v6118
      %v6124 = vadd.s32 %v6119, %v6123
      %v6125 = vadd.s32 %v6124, 536870912
      %v6126 = vshrl.u32 %v6125, 30
      %v6127 = vshll.u32 %v6126, 30
      %v6128 = vsub.s32 %v6124, %v6127
      %vm6129 = vcmp.lt.s32.totalorder %v6128, 0
      %v6130 = vsub.s32 0, %v6128
      %v6131 = vsel %vm6129, %v6130, %v6128
      %v6132 = vclz %v6131
      %v6133 = vsub.s32 %v6132, 2
      %vm6134 = vcmp.gt.s32.totalorder 0, %v6133
      %v6135 = vsel %vm6134, 0, %v6133
      %v6136 = vsub.s32 32, %v6135
      %v6137 = vshll.u32 %v6128, %v6135
      %v6138 = vshrl.u32 %v6120, %v6136
      %v6139 = vor.u32 %v6137, %v6138
      %v6140 = vsub.s32 4294967266, %v6135
      %v6141 = vadd.s32 %v6140, 127
      %v6142 = vshll.u32 %v6141, 23
      %v6143 = vor.u32 4788187, %v6142
      %v6144 = vand.u32 2147483647, %v6143
      %v6146 = vcvt.s32.f32 %v6139
      %v6147 = vmul.f32 %v6146, %v6144
      %v6148 = vxor.u32 %v6147, 2147483648
      %v6149 = vsel %vm6066, %v6148, %v6147
      %v6150 = vsub.s32 4, %v6126
      %v6151 = vsel %vm6066, %v6150, %v6126
      %v6152 = vsel %vm6065, %v1671, %v6149
      %v6153 = vsel %vm6065, 0, %v6151
      %v6154 = vcosq.f32.pop %v6152
      %v6155 = vsinq.f32.pop %v6152
      %vm6156 = vweird.f32 %v1671
      %v6157 = vadd.s32 %v6153, 3
      %v6158 = vand.u32 %v6157, 3
      %vm6159 = vcmp.lt.s32.totalorder %v6158, 2
      %vm6160 = vcmp.eq.s32.totalorder %v6158, 0
      %v6161 = vxor.u32 %v6155, 2147483648
      %v6162 = vsel %vm6160, %v6154, %v6161
      %vm6163 = vcmp.eq.s32.totalorder %v6158, 2
      %v6164 = vxor.u32 %v6154, 2147483648
      %v6165 = vsel %vm6163, %v6164, %v6155
      %v6166 = vsel %vm6159, %v6162, %v6165
      %v6167 = vsel %vm6156, nan, %v6166
      %v6168 = vand.u32 2147483647, %v1672
      %vm6169 = vcmp.le.f32.partialorder %v6168, 0.7853982
      %vm6170 = vcmp.lt.s32.totalorder %v1672, 0
      %v6171 = vand.u32 %v1672, 2139095040
      %v6172 = vshrl.u32 %v6171, 23
      %v6173 = vsub.s32 %v6172, 127
      %v6174 = vand.u32 2147483647, %v1672
      %v6175 = vand.u32 %v6174, 8388607
      %v6176 = vor.u32 %v6175, 8388608
      %v6177 = vsub.s32 0, %v6176
      %v6178 = vadd.s32 %v6173, 1
      %vm6179 = vcmp.gt.s32.totalorder %v6178, 0
      %v6180 = vsel %vm6179, %v6178, 0
      %v6181 = vshrl.u32 %v6180, 5
      %v6182 = vand.u32 %v6180, 31
      %v6183 = vsub.s32 32, %v6182
      %v6184 = vshrl.u32 683565275, %v6183
      %v6185 = vshll.u32 683565275, %v6182
      %v6186 = vshrl.u32 2475754826, %v6183
      %v6187 = vor.u32 %v6185, %v6186
      %v6188 = vshll.u32 2475754826, %v6182
      %v6189 = vshrl.u32 2131351028, %v6183
      %v6190 = vor.u32 %v6188, %v6189
      %v6191 = vshll.u32 2131351028, %v6182
      %v6192 = vshrl.u32 2102212464, %v6183
      %v6193 = vor.u32 %v6191, %v6192
      %v6194 = vshll.u32 2102212464, %v6182
      %v6195 = vshrl.u32 920167782, %v6183
      %v6196 = vor.u32 %v6194, %v6195
      %v6197 = vshll.u32 920167782, %v6182
      %v6198 = vshrl.u32 1326507024, %v6183
      %v6199 = vor.u32 %v6197, %v6198
      %vm6200 = vcmp.lt.s32.totalorder %v6181, 1
      %vm6201 = vcmp.lt.s32.totalorder %v6181, 2
      %vm6202 = vcmp.lt.s32.totalorder %v6181, 3
      %vm6203 = vcmp.lt.s32.totalorder %v6181, 4
      %v6204 = vsel %vm6200, %v6184, %v6187
      %v6205 = vsel %vm6203, %v6193, 2102212464
      %v6206 = vsel %vm6202, %v6190, %v6205
      %v6207 = vsel %vm6201, %v6204, %v6206
      %v6208 = vsel %vm6200, %v6187, %v6190
      %v6209 = vsel %vm6203, %v6196, 920167782
      %v6210 = vsel %vm6202, %v6193, %v6209
      %v6211 = vsel %vm6201, %v6208, %v6210
      %v6212 = vsel %vm6200, %v6190, %v6193
      %v6213 = vsel %vm6203, %v6199, 1326507024
      %v6214 = vsel %vm6202, %v6196, %v6213
      %v6215 = vsel %vm6201, %v6212, %v6214
      %v6216 = vshll.u32 %v6176, 8
      %v6217 = vmul.u32.u64.compose %v6216, %v6215
      %v6218 = vextract.low.u32 %v6217
      %v6219 = vextract.high.u32 %v6217
      %v6220 = vmul.u32.u64.compose %v6216, %v6211
      %v6221 = vextract.low.u32 %v6220
      %v6222 = vextract.high.u32 %v6220
      %v6223 = vmul.u32 %v6216, %v6207
      %v6224 = vadd.s32 %v6219, %v6221
      %vm6225 = vc.u32 %v6219, %v6221
      %v6226 = vadd.s32 %v6222, 1
      %v6227 = vsel %vm6225, %v6226, %v6222
      %v6228 = vadd.s32 %v6223, %v6227
      %v6229 = vadd.s32 %v6228, 536870912
      %v6230 = vshrl.u32 %v6229, 30
      %v6231 = vshll.u32 %v6230, 30
      %v6232 = vsub.s32 %v6228, %v6231
      %vm6233 = vcmp.lt.s32.totalorder %v6232, 0
      %v6234 = vsub.s32 0, %v6232
      %v6235 = vsel %vm6233, %v6234, %v6232
      %v6236 = vclz %v6235
      %v6237 = vsub.s32 %v6236, 2
      %vm6238 = vcmp.gt.s32.totalorder 0, %v6237
      %v6239 = vsel %vm6238, 0, %v6237
      %v6240 = vsub.s32 32, %v6239
      %v6241 = vshll.u32 %v6232, %v6239
      %v6242 = vshrl.u32 %v6224, %v6240
      %v6243 = vor.u32 %v6241, %v6242
      %v6244 = vsub.s32 4294967266, %v6239
      %v6245 = vadd.s32 %v6244, 127
      %v6246 = vshll.u32 %v6245, 23
      %v6247 = vor.u32 4788187, %v6246
      %v6248 = vand.u32 2147483647, %v6247
      %v6250 = vcvt.s32.f32 %v6243
      %v6251 = vmul.f32 %v6250, %v6248
      %v6252 = vxor.u32 %v6251, 2147483648
      %v6253 = vsel %vm6170, %v6252, %v6251
      %v6254 = vsub.s32 4, %v6230
      %v6255 = vsel %vm6170, %v6254, %v6230
      %v6256 = vsel %vm6169, %v1672, %v6253
      %v6257 = vsel %vm6169, 0, %v6255
      %v6258 = vcosq.f32.pop %v6256
      %v6259 = vsinq.f32.pop %v6256
      %vm6260 = vweird.f32 %v1672
      %v6261 = vadd.s32 %v6257, 3
      %v6262 = vand.u32 %v6261, 3
      %vm6263 = vcmp.lt.s32.totalorder %v6262, 2
      %vm6264 = vcmp.eq.s32.totalorder %v6262, 0
      %v6265 = vxor.u32 %v6259, 2147483648
      %v6266 = vsel %vm6264, %v6258, %v6265
      %vm6267 = vcmp.eq.s32.totalorder %v6262, 2
      %v6268 = vxor.u32 %v6258, 2147483648
      %v6269 = vsel %vm6267, %v6268, %v6259
      %v6270 = vsel %vm6263, %v6266, %v6269
      %v6271 = vsel %vm6260, nan, %v6270
      %v6272 = vand.u32 2147483647, %v1673
      %vm6273 = vcmp.le.f32.partialorder %v6272, 0.7853982
      %vm6274 = vcmp.lt.s32.totalorder %v1673, 0
      %v6275 = vand.u32 %v1673, 2139095040
      %v6276 = vshrl.u32 %v6275, 23
      %v6277 = vsub.s32 %v6276, 127
      %v6278 = vand.u32 2147483647, %v1673
      %v6279 = vand.u32 %v6278, 8388607
      %v6280 = vor.u32 %v6279, 8388608
      %v6281 = vsub.s32 0, %v6280
      %v6282 = vadd.s32 %v6277, 1
      %vm6283 = vcmp.gt.s32.totalorder %v6282, 0
      %v6284 = vsel %vm6283, %v6282, 0
      %v6285 = vshrl.u32 %v6284, 5
      %v6286 = vand.u32 %v6284, 31
      %v6287 = vsub.s32 32, %v6286
      %v6288 = vshrl.u32 683565275, %v6287
      %v6289 = vshll.u32 683565275, %v6286
      %v6290 = vshrl.u32 2475754826, %v6287
      %v6291 = vor.u32 %v6289, %v6290
      %v6292 = vshll.u32 2475754826, %v6286
      %v6293 = vshrl.u32 2131351028, %v6287
      %v6294 = vor.u32 %v6292, %v6293
      %v6295 = vshll.u32 2131351028, %v6286
      %v6296 = vshrl.u32 2102212464, %v6287
      %v6297 = vor.u32 %v6295, %v6296
      %v6298 = vshll.u32 2102212464, %v6286
      %v6299 = vshrl.u32 920167782, %v6287
      %v6300 = vor.u32 %v6298, %v6299
      %v6301 = vshll.u32 920167782, %v6286
      %v6302 = vshrl.u32 1326507024, %v6287
      %v6303 = vor.u32 %v6301, %v6302
      %vm6304 = vcmp.lt.s32.totalorder %v6285, 1
      %vm6305 = vcmp.lt.s32.totalorder %v6285, 2
      %vm6306 = vcmp.lt.s32.totalorder %v6285, 3
      %vm6307 = vcmp.lt.s32.totalorder %v6285, 4
      %v6308 = vsel %vm6304, %v6288, %v6291
      %v6309 = vsel %vm6307, %v6297, 2102212464
      %v6310 = vsel %vm6306, %v6294, %v6309
      %v6311 = vsel %vm6305, %v6308, %v6310
      %v6312 = vsel %vm6304, %v6291, %v6294
      %v6313 = vsel %vm6307, %v6300, 920167782
      %v6314 = vsel %vm6306, %v6297, %v6313
      %v6315 = vsel %vm6305, %v6312, %v6314
      %v6316 = vsel %vm6304, %v6294, %v6297
      %v6317 = vsel %vm6307, %v6303, 1326507024
      %v6318 = vsel %vm6306, %v6300, %v6317
      %v6319 = vsel %vm6305, %v6316, %v6318
      %v6320 = vshll.u32 %v6280, 8
      %v6321 = vmul.u32.u64.compose %v6320, %v6319
      %v6322 = vextract.low.u32 %v6321
      %v6323 = vextract.high.u32 %v6321
      %v6324 = vmul.u32.u64.compose %v6320, %v6315
      %v6325 = vextract.low.u32 %v6324
      %v6326 = vextract.high.u32 %v6324
      %v6327 = vmul.u32 %v6320, %v6311
      %v6328 = vadd.s32 %v6323, %v6325
      %vm6329 = vc.u32 %v6323, %v6325
      %v6330 = vadd.s32 %v6326, 1
      %v6331 = vsel %vm6329, %v6330, %v6326
      %v6332 = vadd.s32 %v6327, %v6331
      %v6333 = vadd.s32 %v6332, 536870912
      %v6334 = vshrl.u32 %v6333, 30
      %v6335 = vshll.u32 %v6334, 30
      %v6336 = vsub.s32 %v6332, %v6335
      %vm6337 = vcmp.lt.s32.totalorder %v6336, 0
      %v6338 = vsub.s32 0, %v6336
      %v6339 = vsel %vm6337, %v6338, %v6336
      %v6340 = vclz %v6339
      %v6341 = vsub.s32 %v6340, 2
      %vm6342 = vcmp.gt.s32.totalorder 0, %v6341
      %v6343 = vsel %vm6342, 0, %v6341
      %v6344 = vsub.s32 32, %v6343
      %v6345 = vshll.u32 %v6336, %v6343
      %v6346 = vshrl.u32 %v6328, %v6344
      %v6347 = vor.u32 %v6345, %v6346
      %v6348 = vsub.s32 4294967266, %v6343
      %v6349 = vadd.s32 %v6348, 127
      %v6350 = vshll.u32 %v6349, 23
      %v6351 = vor.u32 4788187, %v6350
      %v6352 = vand.u32 2147483647, %v6351
      %v6354 = vcvt.s32.f32 %v6347
      %v6355 = vmul.f32 %v6354, %v6352
      %v6356 = vxor.u32 %v6355, 2147483648
      %v6357 = vsel %vm6274, %v6356, %v6355
      %v6358 = vsub.s32 4, %v6334
      %v6359 = vsel %vm6274, %v6358, %v6334
      %v6360 = vsel %vm6273, %v1673, %v6357
      %v6361 = vsel %vm6273, 0, %v6359
      %v6362 = vcosq.f32.pop %v6360
      %v6363 = vsinq.f32.pop %v6360
      %vm6364 = vweird.f32 %v1673
      %v6365 = vadd.s32 %v6361, 3
      %v6366 = vand.u32 %v6365, 3
      %vm6367 = vcmp.lt.s32.totalorder %v6366, 2
      %vm6368 = vcmp.eq.s32.totalorder %v6366, 0
      %v6369 = vxor.u32 %v6363, 2147483648
      %v6370 = vsel %vm6368, %v6362, %v6369
      %vm6371 = vcmp.eq.s32.totalorder %v6366, 2
      %v6372 = vxor.u32 %v6362, 2147483648
      %v6373 = vsel %vm6371, %v6372, %v6363
      %v6374 = vsel %vm6367, %v6370, %v6373
      %v6375 = vsel %vm6364, nan, %v6374
      %v6376 = vand.u32 2147483647, %v1674
      %vm6377 = vcmp.le.f32.partialorder %v6376, 0.7853982
      %vm6378 = vcmp.lt.s32.totalorder %v1674, 0
      %v6379 = vand.u32 %v1674, 2139095040
      %v6380 = vshrl.u32 %v6379, 23
      %v6381 = vsub.s32 %v6380, 127
      %v6382 = vand.u32 2147483647, %v1674
      %v6383 = vand.u32 %v6382, 8388607
      %v6384 = vor.u32 %v6383, 8388608
      %v6385 = vsub.s32 0, %v6384
      %v6386 = vadd.s32 %v6381, 1
      %vm6387 = vcmp.gt.s32.totalorder %v6386, 0
      %v6388 = vsel %vm6387, %v6386, 0
      %v6389 = vshrl.u32 %v6388, 5
      %v6390 = vand.u32 %v6388, 31
      %v6391 = vsub.s32 32, %v6390
      %v6392 = vshrl.u32 683565275, %v6391
      %v6393 = vshll.u32 683565275, %v6390
      %v6394 = vshrl.u32 2475754826, %v6391
      %v6395 = vor.u32 %v6393, %v6394
      %v6396 = vshll.u32 2475754826, %v6390
      %v6397 = vshrl.u32 2131351028, %v6391
      %v6398 = vor.u32 %v6396, %v6397
      %v6399 = vshll.u32 2131351028, %v6390
      %v6400 = vshrl.u32 2102212464, %v6391
      %v6401 = vor.u32 %v6399, %v6400
      %v6402 = vshll.u32 2102212464, %v6390
      %v6403 = vshrl.u32 920167782, %v6391
      %v6404 = vor.u32 %v6402, %v6403
      %v6405 = vshll.u32 920167782, %v6390
      %v6406 = vshrl.u32 1326507024, %v6391
      %v6407 = vor.u32 %v6405, %v6406
      %vm6408 = vcmp.lt.s32.totalorder %v6389, 1
      %vm6409 = vcmp.lt.s32.totalorder %v6389, 2
      %vm6410 = vcmp.lt.s32.totalorder %v6389, 3
      %vm6411 = vcmp.lt.s32.totalorder %v6389, 4
      %v6412 = vsel %vm6408, %v6392, %v6395
      %v6413 = vsel %vm6411, %v6401, 2102212464
      %v6414 = vsel %vm6410, %v6398, %v6413
      %v6415 = vsel %vm6409, %v6412, %v6414
      %v6416 = vsel %vm6408, %v6395, %v6398
      %v6417 = vsel %vm6411, %v6404, 920167782
      %v6418 = vsel %vm6410, %v6401, %v6417
      %v6419 = vsel %vm6409, %v6416, %v6418
      %v6420 = vsel %vm6408, %v6398, %v6401
      %v6421 = vsel %vm6411, %v6407, 1326507024
      %v6422 = vsel %vm6410, %v6404, %v6421
      %v6423 = vsel %vm6409, %v6420, %v6422
      %v6424 = vshll.u32 %v6384, 8
      %v6425 = vmul.u32.u64.compose %v6424, %v6423
      %v6426 = vextract.low.u32 %v6425
      %v6427 = vextract.high.u32 %v6425
      %v6428 = vmul.u32.u64.compose %v6424, %v6419
      %v6429 = vextract.low.u32 %v6428
      %v6430 = vextract.high.u32 %v6428
      %v6431 = vmul.u32 %v6424, %v6415
      %v6432 = vadd.s32 %v6427, %v6429
      %vm6433 = vc.u32 %v6427, %v6429
      %v6434 = vadd.s32 %v6430, 1
      %v6435 = vsel %vm6433, %v6434, %v6430
      %v6436 = vadd.s32 %v6431, %v6435
      %v6437 = vadd.s32 %v6436, 536870912
      %v6438 = vshrl.u32 %v6437, 30
      %v6439 = vshll.u32 %v6438, 30
      %v6440 = vsub.s32 %v6436, %v6439
      %vm6441 = vcmp.lt.s32.totalorder %v6440, 0
      %v6442 = vsub.s32 0, %v6440
      %v6443 = vsel %vm6441, %v6442, %v6440
      %v6444 = vclz %v6443
      %v6445 = vsub.s32 %v6444, 2
      %vm6446 = vcmp.gt.s32.totalorder 0, %v6445
      %v6447 = vsel %vm6446, 0, %v6445
      %v6448 = vsub.s32 32, %v6447
      %v6449 = vshll.u32 %v6440, %v6447
      %v6450 = vshrl.u32 %v6432, %v6448
      %v6451 = vor.u32 %v6449, %v6450
      %v6452 = vsub.s32 4294967266, %v6447
      %v6453 = vadd.s32 %v6452, 127
      %v6454 = vshll.u32 %v6453, 23
      %v6455 = vor.u32 4788187, %v6454
      %v6456 = vand.u32 2147483647, %v6455
      %v6458 = vcvt.s32.f32 %v6451
      %v6459 = vmul.f32 %v6458, %v6456
      %v6460 = vxor.u32 %v6459, 2147483648
      %v6461 = vsel %vm6378, %v6460, %v6459
      %v6462 = vsub.s32 4, %v6438
      %v6463 = vsel %vm6378, %v6462, %v6438
      %v6464 = vsel %vm6377, %v1674, %v6461
      %v6465 = vsel %vm6377, 0, %v6463
      %v6466 = vcosq.f32.pop %v6464
      %v6467 = vsinq.f32.pop %v6464
      %vm6468 = vweird.f32 %v1674
      %v6469 = vadd.s32 %v6465, 3
      %v6470 = vand.u32 %v6469, 3
      %vm6471 = vcmp.lt.s32.totalorder %v6470, 2
      %vm6472 = vcmp.eq.s32.totalorder %v6470, 0
      %v6473 = vxor.u32 %v6467, 2147483648
      %v6474 = vsel %vm6472, %v6466, %v6473
      %vm6475 = vcmp.eq.s32.totalorder %v6470, 2
      %v6476 = vxor.u32 %v6466, 2147483648
      %v6477 = vsel %vm6475, %v6476, %v6467
      %v6478 = vsel %vm6471, %v6474, %v6477
      %v6479 = vsel %vm6468, nan, %v6478
      %v6480 = vand.u32 2147483647, %v1675
      %vm6481 = vcmp.le.f32.partialorder %v6480, 0.7853982
      %vm6482 = vcmp.lt.s32.totalorder %v1675, 0
      %v6483 = vand.u32 %v1675, 2139095040
      %v6484 = vshrl.u32 %v6483, 23
      %v6485 = vsub.s32 %v6484, 127
      %v6486 = vand.u32 2147483647, %v1675
      %v6487 = vand.u32 %v6486, 8388607
      %v6488 = vor.u32 %v6487, 8388608
      %v6489 = vsub.s32 0, %v6488
      %v6490 = vadd.s32 %v6485, 1
      %vm6491 = vcmp.gt.s32.totalorder %v6490, 0
      %v6492 = vsel %vm6491, %v6490, 0
      %v6493 = vshrl.u32 %v6492, 5
      %v6494 = vand.u32 %v6492, 31
      %v6495 = vsub.s32 32, %v6494
      %v6496 = vshrl.u32 683565275, %v6495
      %v6497 = vshll.u32 683565275, %v6494
      %v6498 = vshrl.u32 2475754826, %v6495
      %v6499 = vor.u32 %v6497, %v6498
      %v6500 = vshll.u32 2475754826, %v6494
      %v6501 = vshrl.u32 2131351028, %v6495
      %v6502 = vor.u32 %v6500, %v6501
      %v6503 = vshll.u32 2131351028, %v6494
      %v6504 = vshrl.u32 2102212464, %v6495
      %v6505 = vor.u32 %v6503, %v6504
      %v6506 = vshll.u32 2102212464, %v6494
      %v6507 = vshrl.u32 920167782, %v6495
      %v6508 = vor.u32 %v6506, %v6507
      %v6509 = vshll.u32 920167782, %v6494
      %v6510 = vshrl.u32 1326507024, %v6495
      %v6511 = vor.u32 %v6509, %v6510
      %vm6512 = vcmp.lt.s32.totalorder %v6493, 1
      %vm6513 = vcmp.lt.s32.totalorder %v6493, 2
      %vm6514 = vcmp.lt.s32.totalorder %v6493, 3
      %vm6515 = vcmp.lt.s32.totalorder %v6493, 4
      %v6516 = vsel %vm6512, %v6496, %v6499
      %v6517 = vsel %vm6515, %v6505, 2102212464
      %v6518 = vsel %vm6514, %v6502, %v6517
      %v6519 = vsel %vm6513, %v6516, %v6518
      %v6520 = vsel %vm6512, %v6499, %v6502
      %v6521 = vsel %vm6515, %v6508, 920167782
      %v6522 = vsel %vm6514, %v6505, %v6521
      %v6523 = vsel %vm6513, %v6520, %v6522
      %v6524 = vsel %vm6512, %v6502, %v6505
      %v6525 = vsel %vm6515, %v6511, 1326507024
      %v6526 = vsel %vm6514, %v6508, %v6525
      %v6527 = vsel %vm6513, %v6524, %v6526
      %v6528 = vshll.u32 %v6488, 8
      %v6529 = vmul.u32.u64.compose %v6528, %v6527
      %v6530 = vextract.low.u32 %v6529
      %v6531 = vextract.high.u32 %v6529
      %v6532 = vmul.u32.u64.compose %v6528, %v6523
      %v6533 = vextract.low.u32 %v6532
      %v6534 = vextract.high.u32 %v6532
      %v6535 = vmul.u32 %v6528, %v6519
      %v6536 = vadd.s32 %v6531, %v6533
      %vm6537 = vc.u32 %v6531, %v6533
      %v6538 = vadd.s32 %v6534, 1
      %v6539 = vsel %vm6537, %v6538, %v6534
      %v6540 = vadd.s32 %v6535, %v6539
      %v6541 = vadd.s32 %v6540, 536870912
      %v6542 = vshrl.u32 %v6541, 30
      %v6543 = vshll.u32 %v6542, 30
      %v6544 = vsub.s32 %v6540, %v6543
      %vm6545 = vcmp.lt.s32.totalorder %v6544, 0
      %v6546 = vsub.s32 0, %v6544
      %v6547 = vsel %vm6545, %v6546, %v6544
      %v6548 = vclz %v6547
      %v6549 = vsub.s32 %v6548, 2
      %vm6550 = vcmp.gt.s32.totalorder 0, %v6549
      %v6551 = vsel %vm6550, 0, %v6549
      %v6552 = vsub.s32 32, %v6551
      %v6553 = vshll.u32 %v6544, %v6551
      %v6554 = vshrl.u32 %v6536, %v6552
      %v6555 = vor.u32 %v6553, %v6554
      %v6556 = vsub.s32 4294967266, %v6551
      %v6557 = vadd.s32 %v6556, 127
      %v6558 = vshll.u32 %v6557, 23
      %v6559 = vor.u32 4788187, %v6558
      %v6560 = vand.u32 2147483647, %v6559
      %v6562 = vcvt.s32.f32 %v6555
      %v6563 = vmul.f32 %v6562, %v6560
      %v6564 = vxor.u32 %v6563, 2147483648
      %v6565 = vsel %vm6482, %v6564, %v6563
      %v6566 = vsub.s32 4, %v6542
      %v6567 = vsel %vm6482, %v6566, %v6542
      %v6568 = vsel %vm6481, %v1675, %v6565
      %v6569 = vsel %vm6481, 0, %v6567
      %v6570 = vcosq.f32.pop %v6568
      %v6571 = vsinq.f32.pop %v6568
      %vm6572 = vweird.f32 %v1675
      %v6573 = vadd.s32 %v6569, 3
      %v6574 = vand.u32 %v6573, 3
      %vm6575 = vcmp.lt.s32.totalorder %v6574, 2
      %vm6576 = vcmp.eq.s32.totalorder %v6574, 0
      %v6577 = vxor.u32 %v6571, 2147483648
      %v6578 = vsel %vm6576, %v6570, %v6577
      %vm6579 = vcmp.eq.s32.totalorder %v6574, 2
      %v6580 = vxor.u32 %v6570, 2147483648
      %v6581 = vsel %vm6579, %v6580, %v6571
      %v6582 = vsel %vm6575, %v6578, %v6581
      %v6583 = vsel %vm6572, nan, %v6582
      %v6584 = vand.u32 2147483647, %v1676
      %vm6585 = vcmp.le.f32.partialorder %v6584, 0.7853982
      %vm6586 = vcmp.lt.s32.totalorder %v1676, 0
      %v6587 = vand.u32 %v1676, 2139095040
      %v6588 = vshrl.u32 %v6587, 23
      %v6589 = vsub.s32 %v6588, 127
      %v6590 = vand.u32 2147483647, %v1676
      %v6591 = vand.u32 %v6590, 8388607
      %v6592 = vor.u32 %v6591, 8388608
      %v6593 = vsub.s32 0, %v6592
      %v6594 = vadd.s32 %v6589, 1
      %vm6595 = vcmp.gt.s32.totalorder %v6594, 0
      %v6596 = vsel %vm6595, %v6594, 0
      %v6597 = vshrl.u32 %v6596, 5
      %v6598 = vand.u32 %v6596, 31
      %v6599 = vsub.s32 32, %v6598
      %v6600 = vshrl.u32 683565275, %v6599
      %v6601 = vshll.u32 683565275, %v6598
      %v6602 = vshrl.u32 2475754826, %v6599
      %v6603 = vor.u32 %v6601, %v6602
      %v6604 = vshll.u32 2475754826, %v6598
      %v6605 = vshrl.u32 2131351028, %v6599
      %v6606 = vor.u32 %v6604, %v6605
      %v6607 = vshll.u32 2131351028, %v6598
      %v6608 = vshrl.u32 2102212464, %v6599
      %v6609 = vor.u32 %v6607, %v6608
      %v6610 = vshll.u32 2102212464, %v6598
      %v6611 = vshrl.u32 920167782, %v6599
      %v6612 = vor.u32 %v6610, %v6611
      %v6613 = vshll.u32 920167782, %v6598
      %v6614 = vshrl.u32 1326507024, %v6599
      %v6615 = vor.u32 %v6613, %v6614
      %vm6616 = vcmp.lt.s32.totalorder %v6597, 1
      %vm6617 = vcmp.lt.s32.totalorder %v6597, 2
      %vm6618 = vcmp.lt.s32.totalorder %v6597, 3
      %vm6619 = vcmp.lt.s32.totalorder %v6597, 4
      %v6620 = vsel %vm6616, %v6600, %v6603
      %v6621 = vsel %vm6619, %v6609, 2102212464
      %v6622 = vsel %vm6618, %v6606, %v6621
      %v6623 = vsel %vm6617, %v6620, %v6622
      %v6624 = vsel %vm6616, %v6603, %v6606
      %v6625 = vsel %vm6619, %v6612, 920167782
      %v6626 = vsel %vm6618, %v6609, %v6625
      %v6627 = vsel %vm6617, %v6624, %v6626
      %v6628 = vsel %vm6616, %v6606, %v6609
      %v6629 = vsel %vm6619, %v6615, 1326507024
      %v6630 = vsel %vm6618, %v6612, %v6629
      %v6631 = vsel %vm6617, %v6628, %v6630
      %v6632 = vshll.u32 %v6592, 8
      %v6633 = vmul.u32.u64.compose %v6632, %v6631
      %v6634 = vextract.low.u32 %v6633
      %v6635 = vextract.high.u32 %v6633
      %v6636 = vmul.u32.u64.compose %v6632, %v6627
      %v6637 = vextract.low.u32 %v6636
      %v6638 = vextract.high.u32 %v6636
      %v6639 = vmul.u32 %v6632, %v6623
      %v6640 = vadd.s32 %v6635, %v6637
      %vm6641 = vc.u32 %v6635, %v6637
      %v6642 = vadd.s32 %v6638, 1
      %v6643 = vsel %vm6641, %v6642, %v6638
      %v6644 = vadd.s32 %v6639, %v6643
      %v6645 = vadd.s32 %v6644, 536870912
      %v6646 = vshrl.u32 %v6645, 30
      %v6647 = vshll.u32 %v6646, 30
      %v6648 = vsub.s32 %v6644, %v6647
      %vm6649 = vcmp.lt.s32.totalorder %v6648, 0
      %v6650 = vsub.s32 0, %v6648
      %v6651 = vsel %vm6649, %v6650, %v6648
      %v6652 = vclz %v6651
      %v6653 = vsub.s32 %v6652, 2
      %vm6654 = vcmp.gt.s32.totalorder 0, %v6653
      %v6655 = vsel %vm6654, 0, %v6653
      %v6656 = vsub.s32 32, %v6655
      %v6657 = vshll.u32 %v6648, %v6655
      %v6658 = vshrl.u32 %v6640, %v6656
      %v6659 = vor.u32 %v6657, %v6658
      %v6660 = vsub.s32 4294967266, %v6655
      %v6661 = vadd.s32 %v6660, 127
      %v6662 = vshll.u32 %v6661, 23
      %v6663 = vor.u32 4788187, %v6662
      %v6664 = vand.u32 2147483647, %v6663
      %v6666 = vcvt.s32.f32 %v6659
      %v6667 = vmul.f32 %v6666, %v6664
      %v6668 = vxor.u32 %v6667, 2147483648
      %v6669 = vsel %vm6586, %v6668, %v6667
      %v6670 = vsub.s32 4, %v6646
      %v6671 = vsel %vm6586, %v6670, %v6646
      %v6672 = vsel %vm6585, %v1676, %v6669
      %v6673 = vsel %vm6585, 0, %v6671
      %v6674 = vcosq.f32.pop %v6672
      %v6675 = vsinq.f32.pop %v6672
      %vm6676 = vweird.f32 %v1676
      %v6677 = vadd.s32 %v6673, 3
      %v6678 = vand.u32 %v6677, 3
      %vm6679 = vcmp.lt.s32.totalorder %v6678, 2
      %vm6680 = vcmp.eq.s32.totalorder %v6678, 0
      %v6681 = vxor.u32 %v6675, 2147483648
      %v6682 = vsel %vm6680, %v6674, %v6681
      %vm6683 = vcmp.eq.s32.totalorder %v6678, 2
      %v6684 = vxor.u32 %v6674, 2147483648
      %v6685 = vsel %vm6683, %v6684, %v6675
      %v6686 = vsel %vm6679, %v6682, %v6685
      %v6687 = vsel %vm6676, nan, %v6686
      %v6688 = vand.u32 2147483647, %v1677
      %vm6689 = vcmp.le.f32.partialorder %v6688, 0.7853982
      %vm6690 = vcmp.lt.s32.totalorder %v1677, 0
      %v6691 = vand.u32 %v1677, 2139095040
      %v6692 = vshrl.u32 %v6691, 23
      %v6693 = vsub.s32 %v6692, 127
      %v6694 = vand.u32 2147483647, %v1677
      %v6695 = vand.u32 %v6694, 8388607
      %v6696 = vor.u32 %v6695, 8388608
      %v6697 = vsub.s32 0, %v6696
      %v6698 = vadd.s32 %v6693, 1
      %vm6699 = vcmp.gt.s32.totalorder %v6698, 0
      %v6700 = vsel %vm6699, %v6698, 0
      %v6701 = vshrl.u32 %v6700, 5
      %v6702 = vand.u32 %v6700, 31
      %v6703 = vsub.s32 32, %v6702
      %v6704 = vshrl.u32 683565275, %v6703
      %v6705 = vshll.u32 683565275, %v6702
      %v6706 = vshrl.u32 2475754826, %v6703
      %v6707 = vor.u32 %v6705, %v6706
      %v6708 = vshll.u32 2475754826, %v6702
      %v6709 = vshrl.u32 2131351028, %v6703
      %v6710 = vor.u32 %v6708, %v6709
      %v6711 = vshll.u32 2131351028, %v6702
      %v6712 = vshrl.u32 2102212464, %v6703
      %v6713 = vor.u32 %v6711, %v6712
      %v6714 = vshll.u32 2102212464, %v6702
      %v6715 = vshrl.u32 920167782, %v6703
      %v6716 = vor.u32 %v6714, %v6715
      %v6717 = vshll.u32 920167782, %v6702
      %v6718 = vshrl.u32 1326507024, %v6703
      %v6719 = vor.u32 %v6717, %v6718
      %vm6720 = vcmp.lt.s32.totalorder %v6701, 1
      %vm6721 = vcmp.lt.s32.totalorder %v6701, 2
      %vm6722 = vcmp.lt.s32.totalorder %v6701, 3
      %vm6723 = vcmp.lt.s32.totalorder %v6701, 4
      %v6724 = vsel %vm6720, %v6704, %v6707
      %v6725 = vsel %vm6723, %v6713, 2102212464
      %v6726 = vsel %vm6722, %v6710, %v6725
      %v6727 = vsel %vm6721, %v6724, %v6726
      %v6728 = vsel %vm6720, %v6707, %v6710
      %v6729 = vsel %vm6723, %v6716, 920167782
      %v6730 = vsel %vm6722, %v6713, %v6729
      %v6731 = vsel %vm6721, %v6728, %v6730
      %v6732 = vsel %vm6720, %v6710, %v6713
      %v6733 = vsel %vm6723, %v6719, 1326507024
      %v6734 = vsel %vm6722, %v6716, %v6733
      %v6735 = vsel %vm6721, %v6732, %v6734
      %v6736 = vshll.u32 %v6696, 8
      %v6737 = vmul.u32.u64.compose %v6736, %v6735
      %v6738 = vextract.low.u32 %v6737
      %v6739 = vextract.high.u32 %v6737
      %v6740 = vmul.u32.u64.compose %v6736, %v6731
      %v6741 = vextract.low.u32 %v6740
      %v6742 = vextract.high.u32 %v6740
      %v6743 = vmul.u32 %v6736, %v6727
      %v6744 = vadd.s32 %v6739, %v6741
      %vm6745 = vc.u32 %v6739, %v6741
      %v6746 = vadd.s32 %v6742, 1
      %v6747 = vsel %vm6745, %v6746, %v6742
      %v6748 = vadd.s32 %v6743, %v6747
      %v6749 = vadd.s32 %v6748, 536870912
      %v6750 = vshrl.u32 %v6749, 30
      %v6751 = vshll.u32 %v6750, 30
      %v6752 = vsub.s32 %v6748, %v6751
      %vm6753 = vcmp.lt.s32.totalorder %v6752, 0
      %v6754 = vsub.s32 0, %v6752
      %v6755 = vsel %vm6753, %v6754, %v6752
      %v6756 = vclz %v6755
      %v6757 = vsub.s32 %v6756, 2
      %vm6758 = vcmp.gt.s32.totalorder 0, %v6757
      %v6759 = vsel %vm6758, 0, %v6757
      %v6760 = vsub.s32 32, %v6759
      %v6761 = vshll.u32 %v6752, %v6759
      %v6762 = vshrl.u32 %v6744, %v6760
      %v6763 = vor.u32 %v6761, %v6762
      %v6764 = vsub.s32 4294967266, %v6759
      %v6765 = vadd.s32 %v6764, 127
      %v6766 = vshll.u32 %v6765, 23
      %v6767 = vor.u32 4788187, %v6766
      %v6768 = vand.u32 2147483647, %v6767
      %v6770 = vcvt.s32.f32 %v6763
      %v6771 = vmul.f32 %v6770, %v6768
      %v6772 = vxor.u32 %v6771, 2147483648
      %v6773 = vsel %vm6690, %v6772, %v6771
      %v6774 = vsub.s32 4, %v6750
      %v6775 = vsel %vm6690, %v6774, %v6750
      %v6776 = vsel %vm6689, %v1677, %v6773
      %v6777 = vsel %vm6689, 0, %v6775
      %v6778 = vcosq.f32.pop %v6776
      %v6779 = vsinq.f32.pop %v6776
      %vm6780 = vweird.f32 %v1677
      %v6781 = vadd.s32 %v6777, 3
      %v6782 = vand.u32 %v6781, 3
      %vm6783 = vcmp.lt.s32.totalorder %v6782, 2
      %vm6784 = vcmp.eq.s32.totalorder %v6782, 0
      %v6785 = vxor.u32 %v6779, 2147483648
      %v6786 = vsel %vm6784, %v6778, %v6785
      %vm6787 = vcmp.eq.s32.totalorder %v6782, 2
      %v6788 = vxor.u32 %v6778, 2147483648
      %v6789 = vsel %vm6787, %v6788, %v6779
      %v6790 = vsel %vm6783, %v6786, %v6789
      %v6791 = vsel %vm6780, nan, %v6790
      %v6792 = vand.u32 2147483647, %v1678
      %vm6793 = vcmp.le.f32.partialorder %v6792, 0.7853982
      %vm6794 = vcmp.lt.s32.totalorder %v1678, 0
      %v6795 = vand.u32 %v1678, 2139095040
      %v6796 = vshrl.u32 %v6795, 23
      %v6797 = vsub.s32 %v6796, 127
      %v6798 = vand.u32 2147483647, %v1678
      %v6799 = vand.u32 %v6798, 8388607
      %v6800 = vor.u32 %v6799, 8388608
      %v6801 = vsub.s32 0, %v6800
      %v6802 = vadd.s32 %v6797, 1
      %vm6803 = vcmp.gt.s32.totalorder %v6802, 0
      %v6804 = vsel %vm6803, %v6802, 0
      %v6805 = vshrl.u32 %v6804, 5
      %v6806 = vand.u32 %v6804, 31
      %v6807 = vsub.s32 32, %v6806
      %v6808 = vshrl.u32 683565275, %v6807
      %v6809 = vshll.u32 683565275, %v6806
      %v6810 = vshrl.u32 2475754826, %v6807
      %v6811 = vor.u32 %v6809, %v6810
      %v6812 = vshll.u32 2475754826, %v6806
      %v6813 = vshrl.u32 2131351028, %v6807
      %v6814 = vor.u32 %v6812, %v6813
      %v6815 = vshll.u32 2131351028, %v6806
      %v6816 = vshrl.u32 2102212464, %v6807
      %v6817 = vor.u32 %v6815, %v6816
      %v6818 = vshll.u32 2102212464, %v6806
      %v6819 = vshrl.u32 920167782, %v6807
      %v6820 = vor.u32 %v6818, %v6819
      %v6821 = vshll.u32 920167782, %v6806
      %v6822 = vshrl.u32 1326507024, %v6807
      %v6823 = vor.u32 %v6821, %v6822
      %vm6824 = vcmp.lt.s32.totalorder %v6805, 1
      %vm6825 = vcmp.lt.s32.totalorder %v6805, 2
      %vm6826 = vcmp.lt.s32.totalorder %v6805, 3
      %vm6827 = vcmp.lt.s32.totalorder %v6805, 4
      %v6828 = vsel %vm6824, %v6808, %v6811
      %v6829 = vsel %vm6827, %v6817, 2102212464
      %v6830 = vsel %vm6826, %v6814, %v6829
      %v6831 = vsel %vm6825, %v6828, %v6830
      %v6832 = vsel %vm6824, %v6811, %v6814
      %v6833 = vsel %vm6827, %v6820, 920167782
      %v6834 = vsel %vm6826, %v6817, %v6833
      %v6835 = vsel %vm6825, %v6832, %v6834
      %v6836 = vsel %vm6824, %v6814, %v6817
      %v6837 = vsel %vm6827, %v6823, 1326507024
      %v6838 = vsel %vm6826, %v6820, %v6837
      %v6839 = vsel %vm6825, %v6836, %v6838
      %v6840 = vshll.u32 %v6800, 8
      %v6841 = vmul.u32.u64.compose %v6840, %v6839
      %v6842 = vextract.low.u32 %v6841
      %v6843 = vextract.high.u32 %v6841
      %v6844 = vmul.u32.u64.compose %v6840, %v6835
      %v6845 = vextract.low.u32 %v6844
      %v6846 = vextract.high.u32 %v6844
      %v6847 = vmul.u32 %v6840, %v6831
      %v6848 = vadd.s32 %v6843, %v6845
      %vm6849 = vc.u32 %v6843, %v6845
      %v6850 = vadd.s32 %v6846, 1
      %v6851 = vsel %vm6849, %v6850, %v6846
      %v6852 = vadd.s32 %v6847, %v6851
      %v6853 = vadd.s32 %v6852, 536870912
      %v6854 = vshrl.u32 %v6853, 30
      %v6855 = vshll.u32 %v6854, 30
      %v6856 = vsub.s32 %v6852, %v6855
      %vm6857 = vcmp.lt.s32.totalorder %v6856, 0
      %v6858 = vsub.s32 0, %v6856
      %v6859 = vsel %vm6857, %v6858, %v6856
      %v6860 = vclz %v6859
      %v6861 = vsub.s32 %v6860, 2
      %vm6862 = vcmp.gt.s32.totalorder 0, %v6861
      %v6863 = vsel %vm6862, 0, %v6861
      %v6864 = vsub.s32 32, %v6863
      %v6865 = vshll.u32 %v6856, %v6863
      %v6866 = vshrl.u32 %v6848, %v6864
      %v6867 = vor.u32 %v6865, %v6866
      %v6868 = vsub.s32 4294967266, %v6863
      %v6869 = vadd.s32 %v6868, 127
      %v6870 = vshll.u32 %v6869, 23
      %v6871 = vor.u32 4788187, %v6870
      %v6872 = vand.u32 2147483647, %v6871
      %v6874 = vcvt.s32.f32 %v6867
      %v6875 = vmul.f32 %v6874, %v6872
      %v6876 = vxor.u32 %v6875, 2147483648
      %v6877 = vsel %vm6794, %v6876, %v6875
      %v6878 = vsub.s32 4, %v6854
      %v6879 = vsel %vm6794, %v6878, %v6854
      %v6880 = vsel %vm6793, %v1678, %v6877
      %v6881 = vsel %vm6793, 0, %v6879
      %v6882 = vcosq.f32.pop %v6880
      %v6883 = vsinq.f32.pop %v6880
      %vm6884 = vweird.f32 %v1678
      %v6885 = vadd.s32 %v6881, 3
      %v6886 = vand.u32 %v6885, 3
      %vm6887 = vcmp.lt.s32.totalorder %v6886, 2
      %vm6888 = vcmp.eq.s32.totalorder %v6886, 0
      %v6889 = vxor.u32 %v6883, 2147483648
      %v6890 = vsel %vm6888, %v6882, %v6889
      %vm6891 = vcmp.eq.s32.totalorder %v6886, 2
      %v6892 = vxor.u32 %v6882, 2147483648
      %v6893 = vsel %vm6891, %v6892, %v6883
      %v6894 = vsel %vm6887, %v6890, %v6893
      %v6895 = vsel %vm6884, nan, %v6894
      %v6896 = vand.u32 2147483647, %v1679
      %vm6897 = vcmp.le.f32.partialorder %v6896, 0.7853982
      %vm6898 = vcmp.lt.s32.totalorder %v1679, 0
      %v6899 = vand.u32 %v1679, 2139095040
      %v6900 = vshrl.u32 %v6899, 23
      %v6901 = vsub.s32 %v6900, 127
      %v6902 = vand.u32 2147483647, %v1679
      %v6903 = vand.u32 %v6902, 8388607
      %v6904 = vor.u32 %v6903, 8388608
      %v6905 = vsub.s32 0, %v6904
      %v6906 = vadd.s32 %v6901, 1
      %vm6907 = vcmp.gt.s32.totalorder %v6906, 0
      %v6908 = vsel %vm6907, %v6906, 0
      %v6909 = vshrl.u32 %v6908, 5
      %v6910 = vand.u32 %v6908, 31
      %v6911 = vsub.s32 32, %v6910
      %v6912 = vshrl.u32 683565275, %v6911
      %v6913 = vshll.u32 683565275, %v6910
      %v6914 = vshrl.u32 2475754826, %v6911
      %v6915 = vor.u32 %v6913, %v6914
      %v6916 = vshll.u32 2475754826, %v6910
      %v6917 = vshrl.u32 2131351028, %v6911
      %v6918 = vor.u32 %v6916, %v6917
      %v6919 = vshll.u32 2131351028, %v6910
      %v6920 = vshrl.u32 2102212464, %v6911
      %v6921 = vor.u32 %v6919, %v6920
      %v6922 = vshll.u32 2102212464, %v6910
      %v6923 = vshrl.u32 920167782, %v6911
      %v6924 = vor.u32 %v6922, %v6923
      %v6925 = vshll.u32 920167782, %v6910
      %v6926 = vshrl.u32 1326507024, %v6911
      %v6927 = vor.u32 %v6925, %v6926
      %vm6928 = vcmp.lt.s32.totalorder %v6909, 1
      %vm6929 = vcmp.lt.s32.totalorder %v6909, 2
      %vm6930 = vcmp.lt.s32.totalorder %v6909, 3
      %vm6931 = vcmp.lt.s32.totalorder %v6909, 4
      %v6932 = vsel %vm6928, %v6912, %v6915
      %v6933 = vsel %vm6931, %v6921, 2102212464
      %v6934 = vsel %vm6930, %v6918, %v6933
      %v6935 = vsel %vm6929, %v6932, %v6934
      %v6936 = vsel %vm6928, %v6915, %v6918
      %v6937 = vsel %vm6931, %v6924, 920167782
      %v6938 = vsel %vm6930, %v6921, %v6937
      %v6939 = vsel %vm6929, %v6936, %v6938
      %v6940 = vsel %vm6928, %v6918, %v6921
      %v6941 = vsel %vm6931, %v6927, 1326507024
      %v6942 = vsel %vm6930, %v6924, %v6941
      %v6943 = vsel %vm6929, %v6940, %v6942
      %v6944 = vshll.u32 %v6904, 8
      %v6945 = vmul.u32.u64.compose %v6944, %v6943
      %v6946 = vextract.low.u32 %v6945
      %v6947 = vextract.high.u32 %v6945
      %v6948 = vmul.u32.u64.compose %v6944, %v6939
      %v6949 = vextract.low.u32 %v6948
      %v6950 = vextract.high.u32 %v6948
      %v6951 = vmul.u32 %v6944, %v6935
      %v6952 = vadd.s32 %v6947, %v6949
      %vm6953 = vc.u32 %v6947, %v6949
      %v6954 = vadd.s32 %v6950, 1
      %v6955 = vsel %vm6953, %v6954, %v6950
      %v6956 = vadd.s32 %v6951, %v6955
      %v6957 = vadd.s32 %v6956, 536870912
      %v6958 = vshrl.u32 %v6957, 30
      %v6959 = vshll.u32 %v6958, 30
      %v6960 = vsub.s32 %v6956, %v6959
      %vm6961 = vcmp.lt.s32.totalorder %v6960, 0
      %v6962 = vsub.s32 0, %v6960
      %v6963 = vsel %vm6961, %v6962, %v6960
      %v6964 = vclz %v6963
      %v6965 = vsub.s32 %v6964, 2
      %vm6966 = vcmp.gt.s32.totalorder 0, %v6965
      %v6967 = vsel %vm6966, 0, %v6965
      %v6968 = vsub.s32 32, %v6967
      %v6969 = vshll.u32 %v6960, %v6967
      %v6970 = vshrl.u32 %v6952, %v6968
      %v6971 = vor.u32 %v6969, %v6970
      %v6972 = vsub.s32 4294967266, %v6967
      %v6973 = vadd.s32 %v6972, 127
      %v6974 = vshll.u32 %v6973, 23
      %v6975 = vor.u32 4788187, %v6974
      %v6976 = vand.u32 2147483647, %v6975
      %v6978 = vcvt.s32.f32 %v6971
      %v6979 = vmul.f32 %v6978, %v6976
      %v6980 = vxor.u32 %v6979, 2147483648
      %v6981 = vsel %vm6898, %v6980, %v6979
      %v6982 = vsub.s32 4, %v6958
      %v6983 = vsel %vm6898, %v6982, %v6958
      %v6984 = vsel %vm6897, %v1679, %v6981
      %v6985 = vsel %vm6897, 0, %v6983
      %v6986 = vcosq.f32.pop %v6984
      %v6987 = vsinq.f32.pop %v6984
      %vm6988 = vweird.f32 %v1679
      %v6989 = vadd.s32 %v6985, 3
      %v6990 = vand.u32 %v6989, 3
      %vm6991 = vcmp.lt.s32.totalorder %v6990, 2
      %vm6992 = vcmp.eq.s32.totalorder %v6990, 0
      %v6993 = vxor.u32 %v6987, 2147483648
      %v6994 = vsel %vm6992, %v6986, %v6993
      %vm6995 = vcmp.eq.s32.totalorder %v6990, 2
      %v6996 = vxor.u32 %v6986, 2147483648
      %v6997 = vsel %vm6995, %v6996, %v6987
      %v6998 = vsel %vm6991, %v6994, %v6997
      %v6999 = vsel %vm6988, nan, %v6998
      %v7000 = vand.u32 2147483647, %v1680
      %vm7001 = vcmp.le.f32.partialorder %v7000, 0.7853982
      %vm7002 = vcmp.lt.s32.totalorder %v1680, 0
      %v7003 = vand.u32 %v1680, 2139095040
      %v7004 = vshrl.u32 %v7003, 23
      %v7005 = vsub.s32 %v7004, 127
      %v7006 = vand.u32 2147483647, %v1680
      %v7007 = vand.u32 %v7006, 8388607
      %v7008 = vor.u32 %v7007, 8388608
      %v7009 = vsub.s32 0, %v7008
      %v7010 = vadd.s32 %v7005, 1
      %vm7011 = vcmp.gt.s32.totalorder %v7010, 0
      %v7012 = vsel %vm7011, %v7010, 0
      %v7013 = vshrl.u32 %v7012, 5
      %v7014 = vand.u32 %v7012, 31
      %v7015 = vsub.s32 32, %v7014
      %v7016 = vshrl.u32 683565275, %v7015
      %v7017 = vshll.u32 683565275, %v7014
      %v7018 = vshrl.u32 2475754826, %v7015
      %v7019 = vor.u32 %v7017, %v7018
      %v7020 = vshll.u32 2475754826, %v7014
      %v7021 = vshrl.u32 2131351028, %v7015
      %v7022 = vor.u32 %v7020, %v7021
      %v7023 = vshll.u32 2131351028, %v7014
      %v7024 = vshrl.u32 2102212464, %v7015
      %v7025 = vor.u32 %v7023, %v7024
      %v7026 = vshll.u32 2102212464, %v7014
      %v7027 = vshrl.u32 920167782, %v7015
      %v7028 = vor.u32 %v7026, %v7027
      %v7029 = vshll.u32 920167782, %v7014
      %v7030 = vshrl.u32 1326507024, %v7015
      %v7031 = vor.u32 %v7029, %v7030
      %vm7032 = vcmp.lt.s32.totalorder %v7013, 1
      %vm7033 = vcmp.lt.s32.totalorder %v7013, 2
      %vm7034 = vcmp.lt.s32.totalorder %v7013, 3
      %vm7035 = vcmp.lt.s32.totalorder %v7013, 4
      %v7036 = vsel %vm7032, %v7016, %v7019
      %v7037 = vsel %vm7035, %v7025, 2102212464
      %v7038 = vsel %vm7034, %v7022, %v7037
      %v7039 = vsel %vm7033, %v7036, %v7038
      %v7040 = vsel %vm7032, %v7019, %v7022
      %v7041 = vsel %vm7035, %v7028, 920167782
      %v7042 = vsel %vm7034, %v7025, %v7041
      %v7043 = vsel %vm7033, %v7040, %v7042
      %v7044 = vsel %vm7032, %v7022, %v7025
      %v7045 = vsel %vm7035, %v7031, 1326507024
      %v7046 = vsel %vm7034, %v7028, %v7045
      %v7047 = vsel %vm7033, %v7044, %v7046
      %v7048 = vshll.u32 %v7008, 8
      %v7049 = vmul.u32.u64.compose %v7048, %v7047
      %v7050 = vextract.low.u32 %v7049
      %v7051 = vextract.high.u32 %v7049
      %v7052 = vmul.u32.u64.compose %v7048, %v7043
      %v7053 = vextract.low.u32 %v7052
      %v7054 = vextract.high.u32 %v7052
      %v7055 = vmul.u32 %v7048, %v7039
      %v7056 = vadd.s32 %v7051, %v7053
      %vm7057 = vc.u32 %v7051, %v7053
      %v7058 = vadd.s32 %v7054, 1
      %v7059 = vsel %vm7057, %v7058, %v7054
      %v7060 = vadd.s32 %v7055, %v7059
      %v7061 = vadd.s32 %v7060, 536870912
      %v7062 = vshrl.u32 %v7061, 30
      %v7063 = vshll.u32 %v7062, 30
      %v7064 = vsub.s32 %v7060, %v7063
      %vm7065 = vcmp.lt.s32.totalorder %v7064, 0
      %v7066 = vsub.s32 0, %v7064
      %v7067 = vsel %vm7065, %v7066, %v7064
      %v7068 = vclz %v7067
      %v7069 = vsub.s32 %v7068, 2
      %vm7070 = vcmp.gt.s32.totalorder 0, %v7069
      %v7071 = vsel %vm7070, 0, %v7069
      %v7072 = vsub.s32 32, %v7071
      %v7073 = vshll.u32 %v7064, %v7071
      %v7074 = vshrl.u32 %v7056, %v7072
      %v7075 = vor.u32 %v7073, %v7074
      %v7076 = vsub.s32 4294967266, %v7071
      %v7077 = vadd.s32 %v7076, 127
      %v7078 = vshll.u32 %v7077, 23
      %v7079 = vor.u32 4788187, %v7078
      %v7080 = vand.u32 2147483647, %v7079
      %v7082 = vcvt.s32.f32 %v7075
      %v7083 = vmul.f32 %v7082, %v7080
      %v7084 = vxor.u32 %v7083, 2147483648
      %v7085 = vsel %vm7002, %v7084, %v7083
      %v7086 = vsub.s32 4, %v7062
      %v7087 = vsel %vm7002, %v7086, %v7062
      %v7088 = vsel %vm7001, %v1680, %v7085
      %v7089 = vsel %vm7001, 0, %v7087
      %v7090 = vcosq.f32.pop %v7088
      %v7091 = vsinq.f32.pop %v7088
      %vm7092 = vweird.f32 %v1680
      %v7093 = vadd.s32 %v7089, 3
      %v7094 = vand.u32 %v7093, 3
      %vm7095 = vcmp.lt.s32.totalorder %v7094, 2
      %vm7096 = vcmp.eq.s32.totalorder %v7094, 0
      %v7097 = vxor.u32 %v7091, 2147483648
      %v7098 = vsel %vm7096, %v7090, %v7097
      %vm7099 = vcmp.eq.s32.totalorder %v7094, 2
      %v7100 = vxor.u32 %v7090, 2147483648
      %v7101 = vsel %vm7099, %v7100, %v7091
      %v7102 = vsel %vm7095, %v7098, %v7101
      %v7103 = vsel %vm7092, nan, %v7102
      %v7104 = vand.u32 2147483647, %v1681
      %vm7105 = vcmp.le.f32.partialorder %v7104, 0.7853982
      %vm7106 = vcmp.lt.s32.totalorder %v1681, 0
      %v7107 = vand.u32 %v1681, 2139095040
      %v7108 = vshrl.u32 %v7107, 23
      %v7109 = vsub.s32 %v7108, 127
      %v7110 = vand.u32 2147483647, %v1681
      %v7111 = vand.u32 %v7110, 8388607
      %v7112 = vor.u32 %v7111, 8388608
      %v7113 = vsub.s32 0, %v7112
      %v7114 = vadd.s32 %v7109, 1
      %vm7115 = vcmp.gt.s32.totalorder %v7114, 0
      %v7116 = vsel %vm7115, %v7114, 0
      %v7117 = vshrl.u32 %v7116, 5
      %v7118 = vand.u32 %v7116, 31
      %v7119 = vsub.s32 32, %v7118
      %v7120 = vshrl.u32 683565275, %v7119
      %v7121 = vshll.u32 683565275, %v7118
      %v7122 = vshrl.u32 2475754826, %v7119
      %v7123 = vor.u32 %v7121, %v7122
      %v7124 = vshll.u32 2475754826, %v7118
      %v7125 = vshrl.u32 2131351028, %v7119
      %v7126 = vor.u32 %v7124, %v7125
      %v7127 = vshll.u32 2131351028, %v7118
      %v7128 = vshrl.u32 2102212464, %v7119
      %v7129 = vor.u32 %v7127, %v7128
      %v7130 = vshll.u32 2102212464, %v7118
      %v7131 = vshrl.u32 920167782, %v7119
      %v7132 = vor.u32 %v7130, %v7131
      %v7133 = vshll.u32 920167782, %v7118
      %v7134 = vshrl.u32 1326507024, %v7119
      %v7135 = vor.u32 %v7133, %v7134
      %vm7136 = vcmp.lt.s32.totalorder %v7117, 1
      %vm7137 = vcmp.lt.s32.totalorder %v7117, 2
      %vm7138 = vcmp.lt.s32.totalorder %v7117, 3
      %vm7139 = vcmp.lt.s32.totalorder %v7117, 4
      %v7140 = vsel %vm7136, %v7120, %v7123
      %v7141 = vsel %vm7139, %v7129, 2102212464
      %v7142 = vsel %vm7138, %v7126, %v7141
      %v7143 = vsel %vm7137, %v7140, %v7142
      %v7144 = vsel %vm7136, %v7123, %v7126
      %v7145 = vsel %vm7139, %v7132, 920167782
      %v7146 = vsel %vm7138, %v7129, %v7145
      %v7147 = vsel %vm7137, %v7144, %v7146
      %v7148 = vsel %vm7136, %v7126, %v7129
      %v7149 = vsel %vm7139, %v7135, 1326507024
      %v7150 = vsel %vm7138, %v7132, %v7149
      %v7151 = vsel %vm7137, %v7148, %v7150
      %v7152 = vshll.u32 %v7112, 8
      %v7153 = vmul.u32.u64.compose %v7152, %v7151
      %v7154 = vextract.low.u32 %v7153
      %v7155 = vextract.high.u32 %v7153
      %v7156 = vmul.u32.u64.compose %v7152, %v7147
      %v7157 = vextract.low.u32 %v7156
      %v7158 = vextract.high.u32 %v7156
      %v7159 = vmul.u32 %v7152, %v7143
      %v7160 = vadd.s32 %v7155, %v7157
      %vm7161 = vc.u32 %v7155, %v7157
      %v7162 = vadd.s32 %v7158, 1
      %v7163 = vsel %vm7161, %v7162, %v7158
      %v7164 = vadd.s32 %v7159, %v7163
      %v7165 = vadd.s32 %v7164, 536870912
      %v7166 = vshrl.u32 %v7165, 30
      %v7167 = vshll.u32 %v7166, 30
      %v7168 = vsub.s32 %v7164, %v7167
      %vm7169 = vcmp.lt.s32.totalorder %v7168, 0
      %v7170 = vsub.s32 0, %v7168
      %v7171 = vsel %vm7169, %v7170, %v7168
      %v7172 = vclz %v7171
      %v7173 = vsub.s32 %v7172, 2
      %vm7174 = vcmp.gt.s32.totalorder 0, %v7173
      %v7175 = vsel %vm7174, 0, %v7173
      %v7176 = vsub.s32 32, %v7175
      %v7177 = vshll.u32 %v7168, %v7175
      %v7178 = vshrl.u32 %v7160, %v7176
      %v7179 = vor.u32 %v7177, %v7178
      %v7180 = vsub.s32 4294967266, %v7175
      %v7181 = vadd.s32 %v7180, 127
      %v7182 = vshll.u32 %v7181, 23
      %v7183 = vor.u32 4788187, %v7182
      %v7184 = vand.u32 2147483647, %v7183
      %v7186 = vcvt.s32.f32 %v7179
      %v7187 = vmul.f32 %v7186, %v7184
      %v7188 = vxor.u32 %v7187, 2147483648
      %v7189 = vsel %vm7106, %v7188, %v7187
      %v7190 = vsub.s32 4, %v7166
      %v7191 = vsel %vm7106, %v7190, %v7166
      %v7192 = vsel %vm7105, %v1681, %v7189
      %v7193 = vsel %vm7105, 0, %v7191
      %v7194 = vcosq.f32.pop %v7192
      %v7195 = vsinq.f32.pop %v7192
      %vm7196 = vweird.f32 %v1681
      %v7197 = vadd.s32 %v7193, 3
      %v7198 = vand.u32 %v7197, 3
      %vm7199 = vcmp.lt.s32.totalorder %v7198, 2
      %vm7200 = vcmp.eq.s32.totalorder %v7198, 0
      %v7201 = vxor.u32 %v7195, 2147483648
      %v7202 = vsel %vm7200, %v7194, %v7201
      %vm7203 = vcmp.eq.s32.totalorder %v7198, 2
      %v7204 = vxor.u32 %v7194, 2147483648
      %v7205 = vsel %vm7203, %v7204, %v7195
      %v7206 = vsel %vm7199, %v7202, %v7205
      %v7207 = vsel %vm7196, nan, %v7206
      %v7208 = vand.u32 2147483647, %v1682
      %vm7209 = vcmp.le.f32.partialorder %v7208, 0.7853982
      %vm7210 = vcmp.lt.s32.totalorder %v1682, 0
      %v7211 = vand.u32 %v1682, 2139095040
      %v7212 = vshrl.u32 %v7211, 23
      %v7213 = vsub.s32 %v7212, 127
      %v7214 = vand.u32 2147483647, %v1682
      %v7215 = vand.u32 %v7214, 8388607
      %v7216 = vor.u32 %v7215, 8388608
      %v7217 = vsub.s32 0, %v7216
      %v7218 = vadd.s32 %v7213, 1
      %vm7219 = vcmp.gt.s32.totalorder %v7218, 0
      %v7220 = vsel %vm7219, %v7218, 0
      %v7221 = vshrl.u32 %v7220, 5
      %v7222 = vand.u32 %v7220, 31
      %v7223 = vsub.s32 32, %v7222
      %v7224 = vshrl.u32 683565275, %v7223
      %v7225 = vshll.u32 683565275, %v7222
      %v7226 = vshrl.u32 2475754826, %v7223
      %v7227 = vor.u32 %v7225, %v7226
      %v7228 = vshll.u32 2475754826, %v7222
      %v7229 = vshrl.u32 2131351028, %v7223
      %v7230 = vor.u32 %v7228, %v7229
      %v7231 = vshll.u32 2131351028, %v7222
      %v7232 = vshrl.u32 2102212464, %v7223
      %v7233 = vor.u32 %v7231, %v7232
      %v7234 = vshll.u32 2102212464, %v7222
      %v7235 = vshrl.u32 920167782, %v7223
      %v7236 = vor.u32 %v7234, %v7235
      %v7237 = vshll.u32 920167782, %v7222
      %v7238 = vshrl.u32 1326507024, %v7223
      %v7239 = vor.u32 %v7237, %v7238
      %vm7240 = vcmp.lt.s32.totalorder %v7221, 1
      %vm7241 = vcmp.lt.s32.totalorder %v7221, 2
      %vm7242 = vcmp.lt.s32.totalorder %v7221, 3
      %vm7243 = vcmp.lt.s32.totalorder %v7221, 4
      %v7244 = vsel %vm7240, %v7224, %v7227
      %v7245 = vsel %vm7243, %v7233, 2102212464
      %v7246 = vsel %vm7242, %v7230, %v7245
      %v7247 = vsel %vm7241, %v7244, %v7246
      %v7248 = vsel %vm7240, %v7227, %v7230
      %v7249 = vsel %vm7243, %v7236, 920167782
      %v7250 = vsel %vm7242, %v7233, %v7249
      %v7251 = vsel %vm7241, %v7248, %v7250
      %v7252 = vsel %vm7240, %v7230, %v7233
      %v7253 = vsel %vm7243, %v7239, 1326507024
      %v7254 = vsel %vm7242, %v7236, %v7253
      %v7255 = vsel %vm7241, %v7252, %v7254
      %v7256 = vshll.u32 %v7216, 8
      %v7257 = vmul.u32.u64.compose %v7256, %v7255
      %v7258 = vextract.low.u32 %v7257
      %v7259 = vextract.high.u32 %v7257
      %v7260 = vmul.u32.u64.compose %v7256, %v7251
      %v7261 = vextract.low.u32 %v7260
      %v7262 = vextract.high.u32 %v7260
      %v7263 = vmul.u32 %v7256, %v7247
      %v7264 = vadd.s32 %v7259, %v7261
      %vm7265 = vc.u32 %v7259, %v7261
      %v7266 = vadd.s32 %v7262, 1
      %v7267 = vsel %vm7265, %v7266, %v7262
      %v7268 = vadd.s32 %v7263, %v7267
      %v7269 = vadd.s32 %v7268, 536870912
      %v7270 = vshrl.u32 %v7269, 30
      %v7271 = vshll.u32 %v7270, 30
      %v7272 = vsub.s32 %v7268, %v7271
      %vm7273 = vcmp.lt.s32.totalorder %v7272, 0
      %v7274 = vsub.s32 0, %v7272
      %v7275 = vsel %vm7273, %v7274, %v7272
      %v7276 = vclz %v7275
      %v7277 = vsub.s32 %v7276, 2
      %vm7278 = vcmp.gt.s32.totalorder 0, %v7277
      %v7279 = vsel %vm7278, 0, %v7277
      %v7280 = vsub.s32 32, %v7279
      %v7281 = vshll.u32 %v7272, %v7279
      %v7282 = vshrl.u32 %v7264, %v7280
      %v7283 = vor.u32 %v7281, %v7282
      %v7284 = vsub.s32 4294967266, %v7279
      %v7285 = vadd.s32 %v7284, 127
      %v7286 = vshll.u32 %v7285, 23
      %v7287 = vor.u32 4788187, %v7286
      %v7288 = vand.u32 2147483647, %v7287
      %v7290 = vcvt.s32.f32 %v7283
      %v7291 = vmul.f32 %v7290, %v7288
      %v7292 = vxor.u32 %v7291, 2147483648
      %v7293 = vsel %vm7210, %v7292, %v7291
      %v7294 = vsub.s32 4, %v7270
      %v7295 = vsel %vm7210, %v7294, %v7270
      %v7296 = vsel %vm7209, %v1682, %v7293
      %v7297 = vsel %vm7209, 0, %v7295
      %v7298 = vcosq.f32.pop %v7296
      %v7299 = vsinq.f32.pop %v7296
      %vm7300 = vweird.f32 %v1682
      %v7301 = vadd.s32 %v7297, 3
      %v7302 = vand.u32 %v7301, 3
      %vm7303 = vcmp.lt.s32.totalorder %v7302, 2
      %vm7304 = vcmp.eq.s32.totalorder %v7302, 0
      %v7305 = vxor.u32 %v7299, 2147483648
      %v7306 = vsel %vm7304, %v7298, %v7305
      %vm7307 = vcmp.eq.s32.totalorder %v7302, 2
      %v7308 = vxor.u32 %v7298, 2147483648
      %v7309 = vsel %vm7307, %v7308, %v7299
      %v7310 = vsel %vm7303, %v7306, %v7309
      %v7311 = vsel %vm7300, nan, %v7310
      %v7312 = vand.u32 2147483647, %v1683
      %vm7313 = vcmp.le.f32.partialorder %v7312, 0.7853982
      %vm7314 = vcmp.lt.s32.totalorder %v1683, 0
      %v7315 = vand.u32 %v1683, 2139095040
      %v7316 = vshrl.u32 %v7315, 23
      %v7317 = vsub.s32 %v7316, 127
      %v7318 = vand.u32 2147483647, %v1683
      %v7319 = vand.u32 %v7318, 8388607
      %v7320 = vor.u32 %v7319, 8388608
      %v7321 = vsub.s32 0, %v7320
      %v7322 = vadd.s32 %v7317, 1
      %vm7323 = vcmp.gt.s32.totalorder %v7322, 0
      %v7324 = vsel %vm7323, %v7322, 0
      %v7325 = vshrl.u32 %v7324, 5
      %v7326 = vand.u32 %v7324, 31
      %v7327 = vsub.s32 32, %v7326
      %v7328 = vshrl.u32 683565275, %v7327
      %v7329 = vshll.u32 683565275, %v7326
      %v7330 = vshrl.u32 2475754826, %v7327
      %v7331 = vor.u32 %v7329, %v7330
      %v7332 = vshll.u32 2475754826, %v7326
      %v7333 = vshrl.u32 2131351028, %v7327
      %v7334 = vor.u32 %v7332, %v7333
      %v7335 = vshll.u32 2131351028, %v7326
      %v7336 = vshrl.u32 2102212464, %v7327
      %v7337 = vor.u32 %v7335, %v7336
      %v7338 = vshll.u32 2102212464, %v7326
      %v7339 = vshrl.u32 920167782, %v7327
      %v7340 = vor.u32 %v7338, %v7339
      %v7341 = vshll.u32 920167782, %v7326
      %v7342 = vshrl.u32 1326507024, %v7327
      %v7343 = vor.u32 %v7341, %v7342
      %vm7344 = vcmp.lt.s32.totalorder %v7325, 1
      %vm7345 = vcmp.lt.s32.totalorder %v7325, 2
      %vm7346 = vcmp.lt.s32.totalorder %v7325, 3
      %vm7347 = vcmp.lt.s32.totalorder %v7325, 4
      %v7348 = vsel %vm7344, %v7328, %v7331
      %v7349 = vsel %vm7347, %v7337, 2102212464
      %v7350 = vsel %vm7346, %v7334, %v7349
      %v7351 = vsel %vm7345, %v7348, %v7350
      %v7352 = vsel %vm7344, %v7331, %v7334
      %v7353 = vsel %vm7347, %v7340, 920167782
      %v7354 = vsel %vm7346, %v7337, %v7353
      %v7355 = vsel %vm7345, %v7352, %v7354
      %v7356 = vsel %vm7344, %v7334, %v7337
      %v7357 = vsel %vm7347, %v7343, 1326507024
      %v7358 = vsel %vm7346, %v7340, %v7357
      %v7359 = vsel %vm7345, %v7356, %v7358
      %v7360 = vshll.u32 %v7320, 8
      %v7361 = vmul.u32.u64.compose %v7360, %v7359
      %v7362 = vextract.low.u32 %v7361
      %v7363 = vextract.high.u32 %v7361
      %v7364 = vmul.u32.u64.compose %v7360, %v7355
      %v7365 = vextract.low.u32 %v7364
      %v7366 = vextract.high.u32 %v7364
      %v7367 = vmul.u32 %v7360, %v7351
      %v7368 = vadd.s32 %v7363, %v7365
      %vm7369 = vc.u32 %v7363, %v7365
      %v7370 = vadd.s32 %v7366, 1
      %v7371 = vsel %vm7369, %v7370, %v7366
      %v7372 = vadd.s32 %v7367, %v7371
      %v7373 = vadd.s32 %v7372, 536870912
      %v7374 = vshrl.u32 %v7373, 30
      %v7375 = vshll.u32 %v7374, 30
      %v7376 = vsub.s32 %v7372, %v7375
      %vm7377 = vcmp.lt.s32.totalorder %v7376, 0
      %v7378 = vsub.s32 0, %v7376
      %v7379 = vsel %vm7377, %v7378, %v7376
      %v7380 = vclz %v7379
      %v7381 = vsub.s32 %v7380, 2
      %vm7382 = vcmp.gt.s32.totalorder 0, %v7381
      %v7383 = vsel %vm7382, 0, %v7381
      %v7384 = vsub.s32 32, %v7383
      %v7385 = vshll.u32 %v7376, %v7383
      %v7386 = vshrl.u32 %v7368, %v7384
      %v7387 = vor.u32 %v7385, %v7386
      %v7388 = vsub.s32 4294967266, %v7383
      %v7389 = vadd.s32 %v7388, 127
      %v7390 = vshll.u32 %v7389, 23
      %v7391 = vor.u32 4788187, %v7390
      %v7392 = vand.u32 2147483647, %v7391
      %v7394 = vcvt.s32.f32 %v7387
      %v7395 = vmul.f32 %v7394, %v7392
      %v7396 = vxor.u32 %v7395, 2147483648
      %v7397 = vsel %vm7314, %v7396, %v7395
      %v7398 = vsub.s32 4, %v7374
      %v7399 = vsel %vm7314, %v7398, %v7374
      %v7400 = vsel %vm7313, %v1683, %v7397
      %v7401 = vsel %vm7313, 0, %v7399
      %v7402 = vcosq.f32.pop %v7400
      %v7403 = vsinq.f32.pop %v7400
      %vm7404 = vweird.f32 %v1683
      %v7405 = vadd.s32 %v7401, 3
      %v7406 = vand.u32 %v7405, 3
      %vm7407 = vcmp.lt.s32.totalorder %v7406, 2
      %vm7408 = vcmp.eq.s32.totalorder %v7406, 0
      %v7409 = vxor.u32 %v7403, 2147483648
      %v7410 = vsel %vm7408, %v7402, %v7409
      %vm7411 = vcmp.eq.s32.totalorder %v7406, 2
      %v7412 = vxor.u32 %v7402, 2147483648
      %v7413 = vsel %vm7411, %v7412, %v7403
      %v7414 = vsel %vm7407, %v7410, %v7413
      %v7415 = vsel %vm7404, nan, %v7414
      %v7416 = vand.u32 2147483647, %v1684
      %vm7417 = vcmp.le.f32.partialorder %v7416, 0.7853982
      %vm7418 = vcmp.lt.s32.totalorder %v1684, 0
      %v7419 = vand.u32 %v1684, 2139095040
      %v7420 = vshrl.u32 %v7419, 23
      %v7421 = vsub.s32 %v7420, 127
      %v7422 = vand.u32 2147483647, %v1684
      %v7423 = vand.u32 %v7422, 8388607
      %v7424 = vor.u32 %v7423, 8388608
      %v7425 = vsub.s32 0, %v7424
      %v7426 = vadd.s32 %v7421, 1
      %vm7427 = vcmp.gt.s32.totalorder %v7426, 0
      %v7428 = vsel %vm7427, %v7426, 0
      %v7429 = vshrl.u32 %v7428, 5
      %v7430 = vand.u32 %v7428, 31
      %v7431 = vsub.s32 32, %v7430
      %v7432 = vshrl.u32 683565275, %v7431
      %v7433 = vshll.u32 683565275, %v7430
      %v7434 = vshrl.u32 2475754826, %v7431
      %v7435 = vor.u32 %v7433, %v7434
      %v7436 = vshll.u32 2475754826, %v7430
      %v7437 = vshrl.u32 2131351028, %v7431
      %v7438 = vor.u32 %v7436, %v7437
      %v7439 = vshll.u32 2131351028, %v7430
      %v7440 = vshrl.u32 2102212464, %v7431
      %v7441 = vor.u32 %v7439, %v7440
      %v7442 = vshll.u32 2102212464, %v7430
      %v7443 = vshrl.u32 920167782, %v7431
      %v7444 = vor.u32 %v7442, %v7443
      %v7445 = vshll.u32 920167782, %v7430
      %v7446 = vshrl.u32 1326507024, %v7431
      %v7447 = vor.u32 %v7445, %v7446
      %vm7448 = vcmp.lt.s32.totalorder %v7429, 1
      %vm7449 = vcmp.lt.s32.totalorder %v7429, 2
      %vm7450 = vcmp.lt.s32.totalorder %v7429, 3
      %vm7451 = vcmp.lt.s32.totalorder %v7429, 4
      %v7452 = vsel %vm7448, %v7432, %v7435
      %v7453 = vsel %vm7451, %v7441, 2102212464
      %v7454 = vsel %vm7450, %v7438, %v7453
      %v7455 = vsel %vm7449, %v7452, %v7454
      %v7456 = vsel %vm7448, %v7435, %v7438
      %v7457 = vsel %vm7451, %v7444, 920167782
      %v7458 = vsel %vm7450, %v7441, %v7457
      %v7459 = vsel %vm7449, %v7456, %v7458
      %v7460 = vsel %vm7448, %v7438, %v7441
      %v7461 = vsel %vm7451, %v7447, 1326507024
      %v7462 = vsel %vm7450, %v7444, %v7461
      %v7463 = vsel %vm7449, %v7460, %v7462
      %v7464 = vshll.u32 %v7424, 8
      %v7465 = vmul.u32.u64.compose %v7464, %v7463
      %v7466 = vextract.low.u32 %v7465
      %v7467 = vextract.high.u32 %v7465
      %v7468 = vmul.u32.u64.compose %v7464, %v7459
      %v7469 = vextract.low.u32 %v7468
      %v7470 = vextract.high.u32 %v7468
      %v7471 = vmul.u32 %v7464, %v7455
      %v7472 = vadd.s32 %v7467, %v7469
      %vm7473 = vc.u32 %v7467, %v7469
      %v7474 = vadd.s32 %v7470, 1
      %v7475 = vsel %vm7473, %v7474, %v7470
      %v7476 = vadd.s32 %v7471, %v7475
      %v7477 = vadd.s32 %v7476, 536870912
      %v7478 = vshrl.u32 %v7477, 30
      %v7479 = vshll.u32 %v7478, 30
      %v7480 = vsub.s32 %v7476, %v7479
      %vm7481 = vcmp.lt.s32.totalorder %v7480, 0
      %v7482 = vsub.s32 0, %v7480
      %v7483 = vsel %vm7481, %v7482, %v7480
      %v7484 = vclz %v7483
      %v7485 = vsub.s32 %v7484, 2
      %vm7486 = vcmp.gt.s32.totalorder 0, %v7485
      %v7487 = vsel %vm7486, 0, %v7485
      %v7488 = vsub.s32 32, %v7487
      %v7489 = vshll.u32 %v7480, %v7487
      %v7490 = vshrl.u32 %v7472, %v7488
      %v7491 = vor.u32 %v7489, %v7490
      %v7492 = vsub.s32 4294967266, %v7487
      %v7493 = vadd.s32 %v7492, 127
      %v7494 = vshll.u32 %v7493, 23
      %v7495 = vor.u32 4788187, %v7494
      %v7496 = vand.u32 2147483647, %v7495
      %v7498 = vcvt.s32.f32 %v7491
      %v7499 = vmul.f32 %v7498, %v7496
      %v7500 = vxor.u32 %v7499, 2147483648
      %v7501 = vsel %vm7418, %v7500, %v7499
      %v7502 = vsub.s32 4, %v7478
      %v7503 = vsel %vm7418, %v7502, %v7478
      %v7504 = vsel %vm7417, %v1684, %v7501
      %v7505 = vsel %vm7417, 0, %v7503
      %v7506 = vcosq.f32.pop %v7504
      %v7507 = vsinq.f32.pop %v7504
      %vm7508 = vweird.f32 %v1684
      %v7509 = vadd.s32 %v7505, 3
      %v7510 = vand.u32 %v7509, 3
      %vm7511 = vcmp.lt.s32.totalorder %v7510, 2
      %vm7512 = vcmp.eq.s32.totalorder %v7510, 0
      %v7513 = vxor.u32 %v7507, 2147483648
      %v7514 = vsel %vm7512, %v7506, %v7513
      %vm7515 = vcmp.eq.s32.totalorder %v7510, 2
      %v7516 = vxor.u32 %v7506, 2147483648
      %v7517 = vsel %vm7515, %v7516, %v7507
      %v7518 = vsel %vm7511, %v7514, %v7517
      %v7519 = vsel %vm7508, nan, %v7518
      %v7520 = vand.u32 2147483647, %v1685
      %vm7521 = vcmp.le.f32.partialorder %v7520, 0.7853982
      %vm7522 = vcmp.lt.s32.totalorder %v1685, 0
      %v7523 = vand.u32 %v1685, 2139095040
      %v7524 = vshrl.u32 %v7523, 23
      %v7525 = vsub.s32 %v7524, 127
      %v7526 = vand.u32 2147483647, %v1685
      %v7527 = vand.u32 %v7526, 8388607
      %v7528 = vor.u32 %v7527, 8388608
      %v7529 = vsub.s32 0, %v7528
      %v7530 = vadd.s32 %v7525, 1
      %vm7531 = vcmp.gt.s32.totalorder %v7530, 0
      %v7532 = vsel %vm7531, %v7530, 0
      %v7533 = vshrl.u32 %v7532, 5
      %v7534 = vand.u32 %v7532, 31
      %v7535 = vsub.s32 32, %v7534
      %v7536 = vshrl.u32 683565275, %v7535
      %v7537 = vshll.u32 683565275, %v7534
      %v7538 = vshrl.u32 2475754826, %v7535
      %v7539 = vor.u32 %v7537, %v7538
      %v7540 = vshll.u32 2475754826, %v7534
      %v7541 = vshrl.u32 2131351028, %v7535
      %v7542 = vor.u32 %v7540, %v7541
      %v7543 = vshll.u32 2131351028, %v7534
      %v7544 = vshrl.u32 2102212464, %v7535
      %v7545 = vor.u32 %v7543, %v7544
      %v7546 = vshll.u32 2102212464, %v7534
      %v7547 = vshrl.u32 920167782, %v7535
      %v7548 = vor.u32 %v7546, %v7547
      %v7549 = vshll.u32 920167782, %v7534
      %v7550 = vshrl.u32 1326507024, %v7535
      %v7551 = vor.u32 %v7549, %v7550
      %vm7552 = vcmp.lt.s32.totalorder %v7533, 1
      %vm7553 = vcmp.lt.s32.totalorder %v7533, 2
      %vm7554 = vcmp.lt.s32.totalorder %v7533, 3
      %vm7555 = vcmp.lt.s32.totalorder %v7533, 4
      %v7556 = vsel %vm7552, %v7536, %v7539
      %v7557 = vsel %vm7555, %v7545, 2102212464
      %v7558 = vsel %vm7554, %v7542, %v7557
      %v7559 = vsel %vm7553, %v7556, %v7558
      %v7560 = vsel %vm7552, %v7539, %v7542
      %v7561 = vsel %vm7555, %v7548, 920167782
      %v7562 = vsel %vm7554, %v7545, %v7561
      %v7563 = vsel %vm7553, %v7560, %v7562
      %v7564 = vsel %vm7552, %v7542, %v7545
      %v7565 = vsel %vm7555, %v7551, 1326507024
      %v7566 = vsel %vm7554, %v7548, %v7565
      %v7567 = vsel %vm7553, %v7564, %v7566
      %v7568 = vshll.u32 %v7528, 8
      %v7569 = vmul.u32.u64.compose %v7568, %v7567
      %v7570 = vextract.low.u32 %v7569
      %v7571 = vextract.high.u32 %v7569
      %v7572 = vmul.u32.u64.compose %v7568, %v7563
      %v7573 = vextract.low.u32 %v7572
      %v7574 = vextract.high.u32 %v7572
      %v7575 = vmul.u32 %v7568, %v7559
      %v7576 = vadd.s32 %v7571, %v7573
      %vm7577 = vc.u32 %v7571, %v7573
      %v7578 = vadd.s32 %v7574, 1
      %v7579 = vsel %vm7577, %v7578, %v7574
      %v7580 = vadd.s32 %v7575, %v7579
      %v7581 = vadd.s32 %v7580, 536870912
      %v7582 = vshrl.u32 %v7581, 30
      %v7583 = vshll.u32 %v7582, 30
      %v7584 = vsub.s32 %v7580, %v7583
      %vm7585 = vcmp.lt.s32.totalorder %v7584, 0
      %v7586 = vsub.s32 0, %v7584
      %v7587 = vsel %vm7585, %v7586, %v7584
      %v7588 = vclz %v7587
      %v7589 = vsub.s32 %v7588, 2
      %vm7590 = vcmp.gt.s32.totalorder 0, %v7589
      %v7591 = vsel %vm7590, 0, %v7589
      %v7592 = vsub.s32 32, %v7591
      %v7593 = vshll.u32 %v7584, %v7591
      %v7594 = vshrl.u32 %v7576, %v7592
      %v7595 = vor.u32 %v7593, %v7594
      %v7596 = vsub.s32 4294967266, %v7591
      %v7597 = vadd.s32 %v7596, 127
      %v7598 = vshll.u32 %v7597, 23
      %v7599 = vor.u32 4788187, %v7598
      %v7600 = vand.u32 2147483647, %v7599
      %v7602 = vcvt.s32.f32 %v7595
      %v7603 = vmul.f32 %v7602, %v7600
      %v7604 = vxor.u32 %v7603, 2147483648
      %v7605 = vsel %vm7522, %v7604, %v7603
      %v7606 = vsub.s32 4, %v7582
      %v7607 = vsel %vm7522, %v7606, %v7582
      %v7608 = vsel %vm7521, %v1685, %v7605
      %v7609 = vsel %vm7521, 0, %v7607
      %v7610 = vcosq.f32.pop %v7608
      %v7611 = vsinq.f32.pop %v7608
      %vm7612 = vweird.f32 %v1685
      %v7613 = vadd.s32 %v7609, 3
      %v7614 = vand.u32 %v7613, 3
      %vm7615 = vcmp.lt.s32.totalorder %v7614, 2
      %vm7616 = vcmp.eq.s32.totalorder %v7614, 0
      %v7617 = vxor.u32 %v7611, 2147483648
      %v7618 = vsel %vm7616, %v7610, %v7617
      %vm7619 = vcmp.eq.s32.totalorder %v7614, 2
      %v7620 = vxor.u32 %v7610, 2147483648
      %v7621 = vsel %vm7619, %v7620, %v7611
      %v7622 = vsel %vm7615, %v7618, %v7621
      %v7623 = vsel %vm7612, nan, %v7622
      %v7624 = vand.u32 2147483647, %v1686
      %vm7625 = vcmp.le.f32.partialorder %v7624, 0.7853982
      %vm7626 = vcmp.lt.s32.totalorder %v1686, 0
      %v7627 = vand.u32 %v1686, 2139095040
      %v7628 = vshrl.u32 %v7627, 23
      %v7629 = vsub.s32 %v7628, 127
      %v7630 = vand.u32 2147483647, %v1686
      %v7631 = vand.u32 %v7630, 8388607
      %v7632 = vor.u32 %v7631, 8388608
      %v7633 = vsub.s32 0, %v7632
      %v7634 = vadd.s32 %v7629, 1
      %vm7635 = vcmp.gt.s32.totalorder %v7634, 0
      %v7636 = vsel %vm7635, %v7634, 0
      %v7637 = vshrl.u32 %v7636, 5
      %v7638 = vand.u32 %v7636, 31
      %v7639 = vsub.s32 32, %v7638
      %v7640 = vshrl.u32 683565275, %v7639
      %v7641 = vshll.u32 683565275, %v7638
      %v7642 = vshrl.u32 2475754826, %v7639
      %v7643 = vor.u32 %v7641, %v7642
      %v7644 = vshll.u32 2475754826, %v7638
      %v7645 = vshrl.u32 2131351028, %v7639
      %v7646 = vor.u32 %v7644, %v7645
      %v7647 = vshll.u32 2131351028, %v7638
      %v7648 = vshrl.u32 2102212464, %v7639
      %v7649 = vor.u32 %v7647, %v7648
      %v7650 = vshll.u32 2102212464, %v7638
      %v7651 = vshrl.u32 920167782, %v7639
      %v7652 = vor.u32 %v7650, %v7651
      %v7653 = vshll.u32 920167782, %v7638
      %v7654 = vshrl.u32 1326507024, %v7639
      %v7655 = vor.u32 %v7653, %v7654
      %vm7656 = vcmp.lt.s32.totalorder %v7637, 1
      %vm7657 = vcmp.lt.s32.totalorder %v7637, 2
      %vm7658 = vcmp.lt.s32.totalorder %v7637, 3
      %vm7659 = vcmp.lt.s32.totalorder %v7637, 4
      %v7660 = vsel %vm7656, %v7640, %v7643
      %v7661 = vsel %vm7659, %v7649, 2102212464
      %v7662 = vsel %vm7658, %v7646, %v7661
      %v7663 = vsel %vm7657, %v7660, %v7662
      %v7664 = vsel %vm7656, %v7643, %v7646
      %v7665 = vsel %vm7659, %v7652, 920167782
      %v7666 = vsel %vm7658, %v7649, %v7665
      %v7667 = vsel %vm7657, %v7664, %v7666
      %v7668 = vsel %vm7656, %v7646, %v7649
      %v7669 = vsel %vm7659, %v7655, 1326507024
      %v7670 = vsel %vm7658, %v7652, %v7669
      %v7671 = vsel %vm7657, %v7668, %v7670
      %v7672 = vshll.u32 %v7632, 8
      %v7673 = vmul.u32.u64.compose %v7672, %v7671
      %v7674 = vextract.low.u32 %v7673
      %v7675 = vextract.high.u32 %v7673
      %v7676 = vmul.u32.u64.compose %v7672, %v7667
      %v7677 = vextract.low.u32 %v7676
      %v7678 = vextract.high.u32 %v7676
      %v7679 = vmul.u32 %v7672, %v7663
      %v7680 = vadd.s32 %v7675, %v7677
      %vm7681 = vc.u32 %v7675, %v7677
      %v7682 = vadd.s32 %v7678, 1
      %v7683 = vsel %vm7681, %v7682, %v7678
      %v7684 = vadd.s32 %v7679, %v7683
      %v7685 = vadd.s32 %v7684, 536870912
      %v7686 = vshrl.u32 %v7685, 30
      %v7687 = vshll.u32 %v7686, 30
      %v7688 = vsub.s32 %v7684, %v7687
      %vm7689 = vcmp.lt.s32.totalorder %v7688, 0
      %v7690 = vsub.s32 0, %v7688
      %v7691 = vsel %vm7689, %v7690, %v7688
      %v7692 = vclz %v7691
      %v7693 = vsub.s32 %v7692, 2
      %vm7694 = vcmp.gt.s32.totalorder 0, %v7693
      %v7695 = vsel %vm7694, 0, %v7693
      %v7696 = vsub.s32 32, %v7695
      %v7697 = vshll.u32 %v7688, %v7695
      %v7698 = vshrl.u32 %v7680, %v7696
      %v7699 = vor.u32 %v7697, %v7698
      %v7700 = vsub.s32 4294967266, %v7695
      %v7701 = vadd.s32 %v7700, 127
      %v7702 = vshll.u32 %v7701, 23
      %v7703 = vor.u32 4788187, %v7702
      %v7704 = vand.u32 2147483647, %v7703
      %v7706 = vcvt.s32.f32 %v7699
      %v7707 = vmul.f32 %v7706, %v7704
      %v7708 = vxor.u32 %v7707, 2147483648
      %v7709 = vsel %vm7626, %v7708, %v7707
      %v7710 = vsub.s32 4, %v7686
      %v7711 = vsel %vm7626, %v7710, %v7686
      %v7712 = vsel %vm7625, %v1686, %v7709
      %v7713 = vsel %vm7625, 0, %v7711
      %v7714 = vcosq.f32.pop %v7712
      %v7715 = vsinq.f32.pop %v7712
      %vm7716 = vweird.f32 %v1686
      %v7717 = vadd.s32 %v7713, 3
      %v7718 = vand.u32 %v7717, 3
      %vm7719 = vcmp.lt.s32.totalorder %v7718, 2
      %vm7720 = vcmp.eq.s32.totalorder %v7718, 0
      %v7721 = vxor.u32 %v7715, 2147483648
      %v7722 = vsel %vm7720, %v7714, %v7721
      %vm7723 = vcmp.eq.s32.totalorder %v7718, 2
      %v7724 = vxor.u32 %v7714, 2147483648
      %v7725 = vsel %vm7723, %v7724, %v7715
      %v7726 = vsel %vm7719, %v7722, %v7725
      %v7727 = vsel %vm7716, nan, %v7726
      %v7728 = vand.u32 2147483647, %v1687
      %vm7729 = vcmp.le.f32.partialorder %v7728, 0.7853982
      %vm7730 = vcmp.lt.s32.totalorder %v1687, 0
      %v7731 = vand.u32 %v1687, 2139095040
      %v7732 = vshrl.u32 %v7731, 23
      %v7733 = vsub.s32 %v7732, 127
      %v7734 = vand.u32 2147483647, %v1687
      %v7735 = vand.u32 %v7734, 8388607
      %v7736 = vor.u32 %v7735, 8388608
      %v7737 = vsub.s32 0, %v7736
      %v7738 = vadd.s32 %v7733, 1
      %vm7739 = vcmp.gt.s32.totalorder %v7738, 0
      %v7740 = vsel %vm7739, %v7738, 0
      %v7741 = vshrl.u32 %v7740, 5
      %v7742 = vand.u32 %v7740, 31
      %v7743 = vsub.s32 32, %v7742
      %v7744 = vshrl.u32 683565275, %v7743
      %v7745 = vshll.u32 683565275, %v7742
      %v7746 = vshrl.u32 2475754826, %v7743
      %v7747 = vor.u32 %v7745, %v7746
      %v7748 = vshll.u32 2475754826, %v7742
      %v7749 = vshrl.u32 2131351028, %v7743
      %v7750 = vor.u32 %v7748, %v7749
      %v7751 = vshll.u32 2131351028, %v7742
      %v7752 = vshrl.u32 2102212464, %v7743
      %v7753 = vor.u32 %v7751, %v7752
      %v7754 = vshll.u32 2102212464, %v7742
      %v7755 = vshrl.u32 920167782, %v7743
      %v7756 = vor.u32 %v7754, %v7755
      %v7757 = vshll.u32 920167782, %v7742
      %v7758 = vshrl.u32 1326507024, %v7743
      %v7759 = vor.u32 %v7757, %v7758
      %vm7760 = vcmp.lt.s32.totalorder %v7741, 1
      %vm7761 = vcmp.lt.s32.totalorder %v7741, 2
      %vm7762 = vcmp.lt.s32.totalorder %v7741, 3
      %vm7763 = vcmp.lt.s32.totalorder %v7741, 4
      %v7764 = vsel %vm7760, %v7744, %v7747
      %v7765 = vsel %vm7763, %v7753, 2102212464
      %v7766 = vsel %vm7762, %v7750, %v7765
      %v7767 = vsel %vm7761, %v7764, %v7766
      %v7768 = vsel %vm7760, %v7747, %v7750
      %v7769 = vsel %vm7763, %v7756, 920167782
      %v7770 = vsel %vm7762, %v7753, %v7769
      %v7771 = vsel %vm7761, %v7768, %v7770
      %v7772 = vsel %vm7760, %v7750, %v7753
      %v7773 = vsel %vm7763, %v7759, 1326507024
      %v7774 = vsel %vm7762, %v7756, %v7773
      %v7775 = vsel %vm7761, %v7772, %v7774
      %v7776 = vshll.u32 %v7736, 8
      %v7777 = vmul.u32.u64.compose %v7776, %v7775
      %v7778 = vextract.low.u32 %v7777
      %v7779 = vextract.high.u32 %v7777
      %v7780 = vmul.u32.u64.compose %v7776, %v7771
      %v7781 = vextract.low.u32 %v7780
      %v7782 = vextract.high.u32 %v7780
      %v7783 = vmul.u32 %v7776, %v7767
      %v7784 = vadd.s32 %v7779, %v7781
      %vm7785 = vc.u32 %v7779, %v7781
      %v7786 = vadd.s32 %v7782, 1
      %v7787 = vsel %vm7785, %v7786, %v7782
      %v7788 = vadd.s32 %v7783, %v7787
      %v7789 = vadd.s32 %v7788, 536870912
      %v7790 = vshrl.u32 %v7789, 30
      %v7791 = vshll.u32 %v7790, 30
      %v7792 = vsub.s32 %v7788, %v7791
      %vm7793 = vcmp.lt.s32.totalorder %v7792, 0
      %v7794 = vsub.s32 0, %v7792
      %v7795 = vsel %vm7793, %v7794, %v7792
      %v7796 = vclz %v7795
      %v7797 = vsub.s32 %v7796, 2
      %vm7798 = vcmp.gt.s32.totalorder 0, %v7797
      %v7799 = vsel %vm7798, 0, %v7797
      %v7800 = vsub.s32 32, %v7799
      %v7801 = vshll.u32 %v7792, %v7799
      %v7802 = vshrl.u32 %v7784, %v7800
      %v7803 = vor.u32 %v7801, %v7802
      %v7804 = vsub.s32 4294967266, %v7799
      %v7805 = vadd.s32 %v7804, 127
      %v7806 = vshll.u32 %v7805, 23
      %v7807 = vor.u32 4788187, %v7806
      %v7808 = vand.u32 2147483647, %v7807
      %v7810 = vcvt.s32.f32 %v7803
      %v7811 = vmul.f32 %v7810, %v7808
      %v7812 = vxor.u32 %v7811, 2147483648
      %v7813 = vsel %vm7730, %v7812, %v7811
      %v7814 = vsub.s32 4, %v7790
      %v7815 = vsel %vm7730, %v7814, %v7790
      %v7816 = vsel %vm7729, %v1687, %v7813
      %v7817 = vsel %vm7729, 0, %v7815
      %v7818 = vcosq.f32.pop %v7816
      %v7819 = vsinq.f32.pop %v7816
      %vm7820 = vweird.f32 %v1687
      %v7821 = vadd.s32 %v7817, 3
      %v7822 = vand.u32 %v7821, 3
      %vm7823 = vcmp.lt.s32.totalorder %v7822, 2
      %vm7824 = vcmp.eq.s32.totalorder %v7822, 0
      %v7825 = vxor.u32 %v7819, 2147483648
      %v7826 = vsel %vm7824, %v7818, %v7825
      %vm7827 = vcmp.eq.s32.totalorder %v7822, 2
      %v7828 = vxor.u32 %v7818, 2147483648
      %v7829 = vsel %vm7827, %v7828, %v7819
      %v7830 = vsel %vm7823, %v7826, %v7829
      %v7831 = vsel %vm7820, nan, %v7830
      %v7832 = vand.u32 2147483647, %v1688
      %vm7833 = vcmp.le.f32.partialorder %v7832, 0.7853982
      %vm7834 = vcmp.lt.s32.totalorder %v1688, 0
      %v7835 = vand.u32 %v1688, 2139095040
      %v7836 = vshrl.u32 %v7835, 23
      %v7837 = vsub.s32 %v7836, 127
      %v7838 = vand.u32 2147483647, %v1688
      %v7839 = vand.u32 %v7838, 8388607
      %v7840 = vor.u32 %v7839, 8388608
      %v7841 = vsub.s32 0, %v7840
      %v7842 = vadd.s32 %v7837, 1
      %vm7843 = vcmp.gt.s32.totalorder %v7842, 0
      %v7844 = vsel %vm7843, %v7842, 0
      %v7845 = vshrl.u32 %v7844, 5
      %v7846 = vand.u32 %v7844, 31
      %v7847 = vsub.s32 32, %v7846
      %v7848 = vshrl.u32 683565275, %v7847
      %v7849 = vshll.u32 683565275, %v7846
      %v7850 = vshrl.u32 2475754826, %v7847
      %v7851 = vor.u32 %v7849, %v7850
      %v7852 = vshll.u32 2475754826, %v7846
      %v7853 = vshrl.u32 2131351028, %v7847
      %v7854 = vor.u32 %v7852, %v7853
      %v7855 = vshll.u32 2131351028, %v7846
      %v7856 = vshrl.u32 2102212464, %v7847
      %v7857 = vor.u32 %v7855, %v7856
      %v7858 = vshll.u32 2102212464, %v7846
      %v7859 = vshrl.u32 920167782, %v7847
      %v7860 = vor.u32 %v7858, %v7859
      %v7861 = vshll.u32 920167782, %v7846
      %v7862 = vshrl.u32 1326507024, %v7847
      %v7863 = vor.u32 %v7861, %v7862
      %vm7864 = vcmp.lt.s32.totalorder %v7845, 1
      %vm7865 = vcmp.lt.s32.totalorder %v7845, 2
      %vm7866 = vcmp.lt.s32.totalorder %v7845, 3
      %vm7867 = vcmp.lt.s32.totalorder %v7845, 4
      %v7868 = vsel %vm7864, %v7848, %v7851
      %v7869 = vsel %vm7867, %v7857, 2102212464
      %v7870 = vsel %vm7866, %v7854, %v7869
      %v7871 = vsel %vm7865, %v7868, %v7870
      %v7872 = vsel %vm7864, %v7851, %v7854
      %v7873 = vsel %vm7867, %v7860, 920167782
      %v7874 = vsel %vm7866, %v7857, %v7873
      %v7875 = vsel %vm7865, %v7872, %v7874
      %v7876 = vsel %vm7864, %v7854, %v7857
      %v7877 = vsel %vm7867, %v7863, 1326507024
      %v7878 = vsel %vm7866, %v7860, %v7877
      %v7879 = vsel %vm7865, %v7876, %v7878
      %v7880 = vshll.u32 %v7840, 8
      %v7881 = vmul.u32.u64.compose %v7880, %v7879
      %v7882 = vextract.low.u32 %v7881
      %v7883 = vextract.high.u32 %v7881
      %v7884 = vmul.u32.u64.compose %v7880, %v7875
      %v7885 = vextract.low.u32 %v7884
      %v7886 = vextract.high.u32 %v7884
      %v7887 = vmul.u32 %v7880, %v7871
      %v7888 = vadd.s32 %v7883, %v7885
      %vm7889 = vc.u32 %v7883, %v7885
      %v7890 = vadd.s32 %v7886, 1
      %v7891 = vsel %vm7889, %v7890, %v7886
      %v7892 = vadd.s32 %v7887, %v7891
      %v7893 = vadd.s32 %v7892, 536870912
      %v7894 = vshrl.u32 %v7893, 30
      %v7895 = vshll.u32 %v7894, 30
      %v7896 = vsub.s32 %v7892, %v7895
      %vm7897 = vcmp.lt.s32.totalorder %v7896, 0
      %v7898 = vsub.s32 0, %v7896
      %v7899 = vsel %vm7897, %v7898, %v7896
      %v7900 = vclz %v7899
      %v7901 = vsub.s32 %v7900, 2
      %vm7902 = vcmp.gt.s32.totalorder 0, %v7901
      %v7903 = vsel %vm7902, 0, %v7901
      %v7904 = vsub.s32 32, %v7903
      %v7905 = vshll.u32 %v7896, %v7903
      %v7906 = vshrl.u32 %v7888, %v7904
      %v7907 = vor.u32 %v7905, %v7906
      %v7908 = vsub.s32 4294967266, %v7903
      %v7909 = vadd.s32 %v7908, 127
      %v7910 = vshll.u32 %v7909, 23
      %v7911 = vor.u32 4788187, %v7910
      %v7912 = vand.u32 2147483647, %v7911
      %v7914 = vcvt.s32.f32 %v7907
      %v7915 = vmul.f32 %v7914, %v7912
      %v7916 = vxor.u32 %v7915, 2147483648
      %v7917 = vsel %vm7834, %v7916, %v7915
      %v7918 = vsub.s32 4, %v7894
      %v7919 = vsel %vm7834, %v7918, %v7894
      %v7920 = vsel %vm7833, %v1688, %v7917
      %v7921 = vsel %vm7833, 0, %v7919
      %v7922 = vcosq.f32.pop %v7920
      %v7923 = vsinq.f32.pop %v7920
      %vm7924 = vweird.f32 %v1688
      %v7925 = vadd.s32 %v7921, 3
      %v7926 = vand.u32 %v7925, 3
      %vm7927 = vcmp.lt.s32.totalorder %v7926, 2
      %vm7928 = vcmp.eq.s32.totalorder %v7926, 0
      %v7929 = vxor.u32 %v7923, 2147483648
      %v7930 = vsel %vm7928, %v7922, %v7929
      %vm7931 = vcmp.eq.s32.totalorder %v7926, 2
      %v7932 = vxor.u32 %v7922, 2147483648
      %v7933 = vsel %vm7931, %v7932, %v7923
      %v7934 = vsel %vm7927, %v7930, %v7933
      %v7935 = vsel %vm7924, nan, %v7934
      %v7936 = vand.u32 2147483647, %v1689
      %vm7937 = vcmp.le.f32.partialorder %v7936, 0.7853982
      %vm7938 = vcmp.lt.s32.totalorder %v1689, 0
      %v7939 = vand.u32 %v1689, 2139095040
      %v7940 = vshrl.u32 %v7939, 23
      %v7941 = vsub.s32 %v7940, 127
      %v7942 = vand.u32 2147483647, %v1689
      %v7943 = vand.u32 %v7942, 8388607
      %v7944 = vor.u32 %v7943, 8388608
      %v7945 = vsub.s32 0, %v7944
      %v7946 = vadd.s32 %v7941, 1
      %vm7947 = vcmp.gt.s32.totalorder %v7946, 0
      %v7948 = vsel %vm7947, %v7946, 0
      %v7949 = vshrl.u32 %v7948, 5
      %v7950 = vand.u32 %v7948, 31
      %v7951 = vsub.s32 32, %v7950
      %v7952 = vshrl.u32 683565275, %v7951
      %v7953 = vshll.u32 683565275, %v7950
      %v7954 = vshrl.u32 2475754826, %v7951
      %v7955 = vor.u32 %v7953, %v7954
      %v7956 = vshll.u32 2475754826, %v7950
      %v7957 = vshrl.u32 2131351028, %v7951
      %v7958 = vor.u32 %v7956, %v7957
      %v7959 = vshll.u32 2131351028, %v7950
      %v7960 = vshrl.u32 2102212464, %v7951
      %v7961 = vor.u32 %v7959, %v7960
      %v7962 = vshll.u32 2102212464, %v7950
      %v7963 = vshrl.u32 920167782, %v7951
      %v7964 = vor.u32 %v7962, %v7963
      %v7965 = vshll.u32 920167782, %v7950
      %v7966 = vshrl.u32 1326507024, %v7951
      %v7967 = vor.u32 %v7965, %v7966
      %vm7968 = vcmp.lt.s32.totalorder %v7949, 1
      %vm7969 = vcmp.lt.s32.totalorder %v7949, 2
      %vm7970 = vcmp.lt.s32.totalorder %v7949, 3
      %vm7971 = vcmp.lt.s32.totalorder %v7949, 4
      %v7972 = vsel %vm7968, %v7952, %v7955
      %v7973 = vsel %vm7971, %v7961, 2102212464
      %v7974 = vsel %vm7970, %v7958, %v7973
      %v7975 = vsel %vm7969, %v7972, %v7974
      %v7976 = vsel %vm7968, %v7955, %v7958
      %v7977 = vsel %vm7971, %v7964, 920167782
      %v7978 = vsel %vm7970, %v7961, %v7977
      %v7979 = vsel %vm7969, %v7976, %v7978
      %v7980 = vsel %vm7968, %v7958, %v7961
      %v7981 = vsel %vm7971, %v7967, 1326507024
      %v7982 = vsel %vm7970, %v7964, %v7981
      %v7983 = vsel %vm7969, %v7980, %v7982
      %v7984 = vshll.u32 %v7944, 8
      %v7985 = vmul.u32.u64.compose %v7984, %v7983
      %v7986 = vextract.low.u32 %v7985
      %v7987 = vextract.high.u32 %v7985
      %v7988 = vmul.u32.u64.compose %v7984, %v7979
      %v7989 = vextract.low.u32 %v7988
      %v7990 = vextract.high.u32 %v7988
      %v7991 = vmul.u32 %v7984, %v7975
      %v7992 = vadd.s32 %v7987, %v7989
      %vm7993 = vc.u32 %v7987, %v7989
      %v7994 = vadd.s32 %v7990, 1
      %v7995 = vsel %vm7993, %v7994, %v7990
      %v7996 = vadd.s32 %v7991, %v7995
      %v7997 = vadd.s32 %v7996, 536870912
      %v7998 = vshrl.u32 %v7997, 30
      %v7999 = vshll.u32 %v7998, 30
      %v8000 = vsub.s32 %v7996, %v7999
      %vm8001 = vcmp.lt.s32.totalorder %v8000, 0
      %v8002 = vsub.s32 0, %v8000
      %v8003 = vsel %vm8001, %v8002, %v8000
      %v8004 = vclz %v8003
      %v8005 = vsub.s32 %v8004, 2
      %vm8006 = vcmp.gt.s32.totalorder 0, %v8005
      %v8007 = vsel %vm8006, 0, %v8005
      %v8008 = vsub.s32 32, %v8007
      %v8009 = vshll.u32 %v8000, %v8007
      %v8010 = vshrl.u32 %v7992, %v8008
      %v8011 = vor.u32 %v8009, %v8010
      %v8012 = vsub.s32 4294967266, %v8007
      %v8013 = vadd.s32 %v8012, 127
      %v8014 = vshll.u32 %v8013, 23
      %v8015 = vor.u32 4788187, %v8014
      %v8016 = vand.u32 2147483647, %v8015
      %v8018 = vcvt.s32.f32 %v8011
      %v8019 = vmul.f32 %v8018, %v8016
      %v8020 = vxor.u32 %v8019, 2147483648
      %v8021 = vsel %vm7938, %v8020, %v8019
      %v8022 = vsub.s32 4, %v7998
      %v8023 = vsel %vm7938, %v8022, %v7998
      %v8024 = vsel %vm7937, %v1689, %v8021
      %v8025 = vsel %vm7937, 0, %v8023
      %v8026 = vcosq.f32.pop %v8024
      %v8027 = vsinq.f32.pop %v8024
      %vm8028 = vweird.f32 %v1689
      %v8029 = vadd.s32 %v8025, 3
      %v8030 = vand.u32 %v8029, 3
      %vm8031 = vcmp.lt.s32.totalorder %v8030, 2
      %vm8032 = vcmp.eq.s32.totalorder %v8030, 0
      %v8033 = vxor.u32 %v8027, 2147483648
      %v8034 = vsel %vm8032, %v8026, %v8033
      %vm8035 = vcmp.eq.s32.totalorder %v8030, 2
      %v8036 = vxor.u32 %v8026, 2147483648
      %v8037 = vsel %vm8035, %v8036, %v8027
      %v8038 = vsel %vm8031, %v8034, %v8037
      %v8039 = vsel %vm8028, nan, %v8038
      %v8040 = vand.u32 2147483647, %v1690
      %vm8041 = vcmp.le.f32.partialorder %v8040, 0.7853982
      %vm8042 = vcmp.lt.s32.totalorder %v1690, 0
      %v8043 = vand.u32 %v1690, 2139095040
      %v8044 = vshrl.u32 %v8043, 23
      %v8045 = vsub.s32 %v8044, 127
      %v8046 = vand.u32 2147483647, %v1690
      %v8047 = vand.u32 %v8046, 8388607
      %v8048 = vor.u32 %v8047, 8388608
      %v8049 = vsub.s32 0, %v8048
      %v8050 = vadd.s32 %v8045, 1
      %vm8051 = vcmp.gt.s32.totalorder %v8050, 0
      %v8052 = vsel %vm8051, %v8050, 0
      %v8053 = vshrl.u32 %v8052, 5
      %v8054 = vand.u32 %v8052, 31
      %v8055 = vsub.s32 32, %v8054
      %v8056 = vshrl.u32 683565275, %v8055
      %v8057 = vshll.u32 683565275, %v8054
      %v8058 = vshrl.u32 2475754826, %v8055
      %v8059 = vor.u32 %v8057, %v8058
      %v8060 = vshll.u32 2475754826, %v8054
      %v8061 = vshrl.u32 2131351028, %v8055
      %v8062 = vor.u32 %v8060, %v8061
      %v8063 = vshll.u32 2131351028, %v8054
      %v8064 = vshrl.u32 2102212464, %v8055
      %v8065 = vor.u32 %v8063, %v8064
      %v8066 = vshll.u32 2102212464, %v8054
      %v8067 = vshrl.u32 920167782, %v8055
      %v8068 = vor.u32 %v8066, %v8067
      %v8069 = vshll.u32 920167782, %v8054
      %v8070 = vshrl.u32 1326507024, %v8055
      %v8071 = vor.u32 %v8069, %v8070
      %vm8072 = vcmp.lt.s32.totalorder %v8053, 1
      %vm8073 = vcmp.lt.s32.totalorder %v8053, 2
      %vm8074 = vcmp.lt.s32.totalorder %v8053, 3
      %vm8075 = vcmp.lt.s32.totalorder %v8053, 4
      %v8076 = vsel %vm8072, %v8056, %v8059
      %v8077 = vsel %vm8075, %v8065, 2102212464
      %v8078 = vsel %vm8074, %v8062, %v8077
      %v8079 = vsel %vm8073, %v8076, %v8078
      %v8080 = vsel %vm8072, %v8059, %v8062
      %v8081 = vsel %vm8075, %v8068, 920167782
      %v8082 = vsel %vm8074, %v8065, %v8081
      %v8083 = vsel %vm8073, %v8080, %v8082
      %v8084 = vsel %vm8072, %v8062, %v8065
      %v8085 = vsel %vm8075, %v8071, 1326507024
      %v8086 = vsel %vm8074, %v8068, %v8085
      %v8087 = vsel %vm8073, %v8084, %v8086
      %v8088 = vshll.u32 %v8048, 8
      %v8089 = vmul.u32.u64.compose %v8088, %v8087
      %v8090 = vextract.low.u32 %v8089
      %v8091 = vextract.high.u32 %v8089
      %v8092 = vmul.u32.u64.compose %v8088, %v8083
      %v8093 = vextract.low.u32 %v8092
      %v8094 = vextract.high.u32 %v8092
      %v8095 = vmul.u32 %v8088, %v8079
      %v8096 = vadd.s32 %v8091, %v8093
      %vm8097 = vc.u32 %v8091, %v8093
      %v8098 = vadd.s32 %v8094, 1
      %v8099 = vsel %vm8097, %v8098, %v8094
      %v8100 = vadd.s32 %v8095, %v8099
      %v8101 = vadd.s32 %v8100, 536870912
      %v8102 = vshrl.u32 %v8101, 30
      %v8103 = vshll.u32 %v8102, 30
      %v8104 = vsub.s32 %v8100, %v8103
      %vm8105 = vcmp.lt.s32.totalorder %v8104, 0
      %v8106 = vsub.s32 0, %v8104
      %v8107 = vsel %vm8105, %v8106, %v8104
      %v8108 = vclz %v8107
      %v8109 = vsub.s32 %v8108, 2
      %vm8110 = vcmp.gt.s32.totalorder 0, %v8109
      %v8111 = vsel %vm8110, 0, %v8109
      %v8112 = vsub.s32 32, %v8111
      %v8113 = vshll.u32 %v8104, %v8111
      %v8114 = vshrl.u32 %v8096, %v8112
      %v8115 = vor.u32 %v8113, %v8114
      %v8116 = vsub.s32 4294967266, %v8111
      %v8117 = vadd.s32 %v8116, 127
      %v8118 = vshll.u32 %v8117, 23
      %v8119 = vor.u32 4788187, %v8118
      %v8120 = vand.u32 2147483647, %v8119
      %v8122 = vcvt.s32.f32 %v8115
      %v8123 = vmul.f32 %v8122, %v8120
      %v8124 = vxor.u32 %v8123, 2147483648
      %v8125 = vsel %vm8042, %v8124, %v8123
      %v8126 = vsub.s32 4, %v8102
      %v8127 = vsel %vm8042, %v8126, %v8102
      %v8128 = vsel %vm8041, %v1690, %v8125
      %v8129 = vsel %vm8041, 0, %v8127
      %v8130 = vcosq.f32.pop %v8128
      %v8131 = vsinq.f32.pop %v8128
      %vm8132 = vweird.f32 %v1690
      %v8133 = vadd.s32 %v8129, 3
      %v8134 = vand.u32 %v8133, 3
      %vm8135 = vcmp.lt.s32.totalorder %v8134, 2
      %vm8136 = vcmp.eq.s32.totalorder %v8134, 0
      %v8137 = vxor.u32 %v8131, 2147483648
      %v8138 = vsel %vm8136, %v8130, %v8137
      %vm8139 = vcmp.eq.s32.totalorder %v8134, 2
      %v8140 = vxor.u32 %v8130, 2147483648
      %v8141 = vsel %vm8139, %v8140, %v8131
      %v8142 = vsel %vm8135, %v8138, %v8141
      %v8143 = vsel %vm8132, nan, %v8142
      %v8144 = vand.u32 2147483647, %v1691
      %vm8145 = vcmp.le.f32.partialorder %v8144, 0.7853982
      %vm8146 = vcmp.lt.s32.totalorder %v1691, 0
      %v8147 = vand.u32 %v1691, 2139095040
      %v8148 = vshrl.u32 %v8147, 23
      %v8149 = vsub.s32 %v8148, 127
      %v8150 = vand.u32 2147483647, %v1691
      %v8151 = vand.u32 %v8150, 8388607
      %v8152 = vor.u32 %v8151, 8388608
      %v8153 = vsub.s32 0, %v8152
      %v8154 = vadd.s32 %v8149, 1
      %vm8155 = vcmp.gt.s32.totalorder %v8154, 0
      %v8156 = vsel %vm8155, %v8154, 0
      %v8157 = vshrl.u32 %v8156, 5
      %v8158 = vand.u32 %v8156, 31
      %v8159 = vsub.s32 32, %v8158
      %v8160 = vshrl.u32 683565275, %v8159
      %v8161 = vshll.u32 683565275, %v8158
      %v8162 = vshrl.u32 2475754826, %v8159
      %v8163 = vor.u32 %v8161, %v8162
      %v8164 = vshll.u32 2475754826, %v8158
      %v8165 = vshrl.u32 2131351028, %v8159
      %v8166 = vor.u32 %v8164, %v8165
      %v8167 = vshll.u32 2131351028, %v8158
      %v8168 = vshrl.u32 2102212464, %v8159
      %v8169 = vor.u32 %v8167, %v8168
      %v8170 = vshll.u32 2102212464, %v8158
      %v8171 = vshrl.u32 920167782, %v8159
      %v8172 = vor.u32 %v8170, %v8171
      %v8173 = vshll.u32 920167782, %v8158
      %v8174 = vshrl.u32 1326507024, %v8159
      %v8175 = vor.u32 %v8173, %v8174
      %vm8176 = vcmp.lt.s32.totalorder %v8157, 1
      %vm8177 = vcmp.lt.s32.totalorder %v8157, 2
      %vm8178 = vcmp.lt.s32.totalorder %v8157, 3
      %vm8179 = vcmp.lt.s32.totalorder %v8157, 4
      %v8180 = vsel %vm8176, %v8160, %v8163
      %v8181 = vsel %vm8179, %v8169, 2102212464
      %v8182 = vsel %vm8178, %v8166, %v8181
      %v8183 = vsel %vm8177, %v8180, %v8182
      %v8184 = vsel %vm8176, %v8163, %v8166
      %v8185 = vsel %vm8179, %v8172, 920167782
      %v8186 = vsel %vm8178, %v8169, %v8185
      %v8187 = vsel %vm8177, %v8184, %v8186
      %v8188 = vsel %vm8176, %v8166, %v8169
      %v8189 = vsel %vm8179, %v8175, 1326507024
      %v8190 = vsel %vm8178, %v8172, %v8189
      %v8191 = vsel %vm8177, %v8188, %v8190
      %v8192 = vshll.u32 %v8152, 8
      %v8193 = vmul.u32.u64.compose %v8192, %v8191
      %v8194 = vextract.low.u32 %v8193
      %v8195 = vextract.high.u32 %v8193
      %v8196 = vmul.u32.u64.compose %v8192, %v8187
      %v8197 = vextract.low.u32 %v8196
      %v8198 = vextract.high.u32 %v8196
      %v8199 = vmul.u32 %v8192, %v8183
      %v8200 = vadd.s32 %v8195, %v8197
      %vm8201 = vc.u32 %v8195, %v8197
      %v8202 = vadd.s32 %v8198, 1
      %v8203 = vsel %vm8201, %v8202, %v8198
      %v8204 = vadd.s32 %v8199, %v8203
      %v8205 = vadd.s32 %v8204, 536870912
      %v8206 = vshrl.u32 %v8205, 30
      %v8207 = vshll.u32 %v8206, 30
      %v8208 = vsub.s32 %v8204, %v8207
      %vm8209 = vcmp.lt.s32.totalorder %v8208, 0
      %v8210 = vsub.s32 0, %v8208
      %v8211 = vsel %vm8209, %v8210, %v8208
      %v8212 = vclz %v8211
      %v8213 = vsub.s32 %v8212, 2
      %vm8214 = vcmp.gt.s32.totalorder 0, %v8213
      %v8215 = vsel %vm8214, 0, %v8213
      %v8216 = vsub.s32 32, %v8215
      %v8217 = vshll.u32 %v8208, %v8215
      %v8218 = vshrl.u32 %v8200, %v8216
      %v8219 = vor.u32 %v8217, %v8218
      %v8220 = vsub.s32 4294967266, %v8215
      %v8221 = vadd.s32 %v8220, 127
      %v8222 = vshll.u32 %v8221, 23
      %v8223 = vor.u32 4788187, %v8222
      %v8224 = vand.u32 2147483647, %v8223
      %v8226 = vcvt.s32.f32 %v8219
      %v8227 = vmul.f32 %v8226, %v8224
      %v8228 = vxor.u32 %v8227, 2147483648
      %v8229 = vsel %vm8146, %v8228, %v8227
      %v8230 = vsub.s32 4, %v8206
      %v8231 = vsel %vm8146, %v8230, %v8206
      %v8232 = vsel %vm8145, %v1691, %v8229
      %v8233 = vsel %vm8145, 0, %v8231
      %v8234 = vcosq.f32.pop %v8232
      %v8235 = vsinq.f32.pop %v8232
      %vm8236 = vweird.f32 %v1691
      %v8237 = vadd.s32 %v8233, 3
      %v8238 = vand.u32 %v8237, 3
      %vm8239 = vcmp.lt.s32.totalorder %v8238, 2
      %vm8240 = vcmp.eq.s32.totalorder %v8238, 0
      %v8241 = vxor.u32 %v8235, 2147483648
      %v8242 = vsel %vm8240, %v8234, %v8241
      %vm8243 = vcmp.eq.s32.totalorder %v8238, 2
      %v8244 = vxor.u32 %v8234, 2147483648
      %v8245 = vsel %vm8243, %v8244, %v8235
      %v8246 = vsel %vm8239, %v8242, %v8245
      %v8247 = vsel %vm8236, nan, %v8246
      %v8248 = vand.u32 2147483647, %v1692
      %vm8249 = vcmp.le.f32.partialorder %v8248, 0.7853982
      %vm8250 = vcmp.lt.s32.totalorder %v1692, 0
      %v8251 = vand.u32 %v1692, 2139095040
      %v8252 = vshrl.u32 %v8251, 23
      %v8253 = vsub.s32 %v8252, 127
      %v8254 = vand.u32 2147483647, %v1692
      %v8255 = vand.u32 %v8254, 8388607
      %v8256 = vor.u32 %v8255, 8388608
      %v8257 = vsub.s32 0, %v8256
      %v8258 = vadd.s32 %v8253, 1
      %vm8259 = vcmp.gt.s32.totalorder %v8258, 0
      %v8260 = vsel %vm8259, %v8258, 0
      %v8261 = vshrl.u32 %v8260, 5
      %v8262 = vand.u32 %v8260, 31
      %v8263 = vsub.s32 32, %v8262
      %v8264 = vshrl.u32 683565275, %v8263
      %v8265 = vshll.u32 683565275, %v8262
      %v8266 = vshrl.u32 2475754826, %v8263
      %v8267 = vor.u32 %v8265, %v8266
      %v8268 = vshll.u32 2475754826, %v8262
      %v8269 = vshrl.u32 2131351028, %v8263
      %v8270 = vor.u32 %v8268, %v8269
      %v8271 = vshll.u32 2131351028, %v8262
      %v8272 = vshrl.u32 2102212464, %v8263
      %v8273 = vor.u32 %v8271, %v8272
      %v8274 = vshll.u32 2102212464, %v8262
      %v8275 = vshrl.u32 920167782, %v8263
      %v8276 = vor.u32 %v8274, %v8275
      %v8277 = vshll.u32 920167782, %v8262
      %v8278 = vshrl.u32 1326507024, %v8263
      %v8279 = vor.u32 %v8277, %v8278
      %vm8280 = vcmp.lt.s32.totalorder %v8261, 1
      %vm8281 = vcmp.lt.s32.totalorder %v8261, 2
      %vm8282 = vcmp.lt.s32.totalorder %v8261, 3
      %vm8283 = vcmp.lt.s32.totalorder %v8261, 4
      %v8284 = vsel %vm8280, %v8264, %v8267
      %v8285 = vsel %vm8283, %v8273, 2102212464
      %v8286 = vsel %vm8282, %v8270, %v8285
      %v8287 = vsel %vm8281, %v8284, %v8286
      %v8288 = vsel %vm8280, %v8267, %v8270
      %v8289 = vsel %vm8283, %v8276, 920167782
      %v8290 = vsel %vm8282, %v8273, %v8289
      %v8291 = vsel %vm8281, %v8288, %v8290
      %v8292 = vsel %vm8280, %v8270, %v8273
      %v8293 = vsel %vm8283, %v8279, 1326507024
      %v8294 = vsel %vm8282, %v8276, %v8293
      %v8295 = vsel %vm8281, %v8292, %v8294
      %v8296 = vshll.u32 %v8256, 8
      %v8297 = vmul.u32.u64.compose %v8296, %v8295
      %v8298 = vextract.low.u32 %v8297
      %v8299 = vextract.high.u32 %v8297
      %v8300 = vmul.u32.u64.compose %v8296, %v8291
      %v8301 = vextract.low.u32 %v8300
      %v8302 = vextract.high.u32 %v8300
      %v8303 = vmul.u32 %v8296, %v8287
      %v8304 = vadd.s32 %v8299, %v8301
      %vm8305 = vc.u32 %v8299, %v8301
      %v8306 = vadd.s32 %v8302, 1
      %v8307 = vsel %vm8305, %v8306, %v8302
      %v8308 = vadd.s32 %v8303, %v8307
      %v8309 = vadd.s32 %v8308, 536870912
      %v8310 = vshrl.u32 %v8309, 30
      %v8311 = vshll.u32 %v8310, 30
      %v8312 = vsub.s32 %v8308, %v8311
      %vm8313 = vcmp.lt.s32.totalorder %v8312, 0
      %v8314 = vsub.s32 0, %v8312
      %v8315 = vsel %vm8313, %v8314, %v8312
      %v8316 = vclz %v8315
      %v8317 = vsub.s32 %v8316, 2
      %vm8318 = vcmp.gt.s32.totalorder 0, %v8317
      %v8319 = vsel %vm8318, 0, %v8317
      %v8320 = vsub.s32 32, %v8319
      %v8321 = vshll.u32 %v8312, %v8319
      %v8322 = vshrl.u32 %v8304, %v8320
      %v8323 = vor.u32 %v8321, %v8322
      %v8324 = vsub.s32 4294967266, %v8319
      %v8325 = vadd.s32 %v8324, 127
      %v8326 = vshll.u32 %v8325, 23
      %v8327 = vor.u32 4788187, %v8326
      %v8328 = vand.u32 2147483647, %v8327
      %v8330 = vcvt.s32.f32 %v8323
      %v8331 = vmul.f32 %v8330, %v8328
      %v8332 = vxor.u32 %v8331, 2147483648
      %v8333 = vsel %vm8250, %v8332, %v8331
      %v8334 = vsub.s32 4, %v8310
      %v8335 = vsel %vm8250, %v8334, %v8310
      %v8336 = vsel %vm8249, %v1692, %v8333
      %v8337 = vsel %vm8249, 0, %v8335
      %v8338 = vcosq.f32.pop %v8336
      %v8339 = vsinq.f32.pop %v8336
      %vm8340 = vweird.f32 %v1692
      %v8341 = vadd.s32 %v8337, 3
      %v8342 = vand.u32 %v8341, 3
      %vm8343 = vcmp.lt.s32.totalorder %v8342, 2
      %vm8344 = vcmp.eq.s32.totalorder %v8342, 0
      %v8345 = vxor.u32 %v8339, 2147483648
      %v8346 = vsel %vm8344, %v8338, %v8345
      %vm8347 = vcmp.eq.s32.totalorder %v8342, 2
      %v8348 = vxor.u32 %v8338, 2147483648
      %v8349 = vsel %vm8347, %v8348, %v8339
      %v8350 = vsel %vm8343, %v8346, %v8349
      %v8351 = vsel %vm8340, nan, %v8350
      %v8352 = vsel %vm1695, %v1799, %v1629
      %v8353 = vsel %vm1695, %v1903, %v1630
      %v8354 = vsel %vm1695, %v2007, %v1631
      %v8355 = vsel %vm1695, %v2111, %v1632
      %v8356 = vsel %vm1695, %v2215, %v1633
      %v8357 = vsel %vm1695, %v2319, %v1634
      %v8358 = vsel %vm1695, %v2423, %v1635
      %v8359 = vsel %vm1695, %v2527, %v1636
      %v8360 = vsel %vm1695, %v2631, %v1637
      %v8361 = vsel %vm1695, %v2735, %v1638
      %v8362 = vsel %vm1695, %v2839, %v1639
      %v8363 = vsel %vm1695, %v2943, %v1640
      %v8364 = vsel %vm1695, %v3047, %v1641
      %v8365 = vsel %vm1695, %v3151, %v1642
      %v8366 = vsel %vm1695, %v3255, %v1643
      %v8367 = vsel %vm1695, %v3359, %v1644
      %v8368 = vsel %vm1695, %v3463, %v1645
      %v8369 = vsel %vm1695, %v3567, %v1646
      %v8370 = vsel %vm1695, %v3671, %v1647
      %v8371 = vsel %vm1695, %v3775, %v1648
      %v8372 = vsel %vm1695, %v3879, %v1649
      %v8373 = vsel %vm1695, %v3983, %v1650
      %v8374 = vsel %vm1695, %v4087, %v1651
      %v8375 = vsel %vm1695, %v4191, %v1652
      %v8376 = vsel %vm1695, %v4295, %v1653
      %v8377 = vsel %vm1695, %v4399, %v1654
      %v8378 = vsel %vm1695, %v4503, %v1655
      %v8379 = vsel %vm1695, %v4607, %v1656
      %v8380 = vsel %vm1695, %v4711, %v1657
      %v8381 = vsel %vm1695, %v4815, %v1658
      %v8382 = vsel %vm1695, %v4919, %v1659
      %v8383 = vsel %vm1695, %v5023, %v1660
      %v8384 = vsel %vm1695, %v5127, %v1661
      %v8385 = vsel %vm1695, %v5231, %v1662
      %v8386 = vsel %vm1695, %v5335, %v1663
      %v8387 = vsel %vm1695, %v5439, %v1664
      %v8388 = vsel %vm1695, %v5543, %v1665
      %v8389 = vsel %vm1695, %v5647, %v1666
      %v8390 = vsel %vm1695, %v5751, %v1667
      %v8391 = vsel %vm1695, %v5855, %v1668
      %v8392 = vsel %vm1695, %v5959, %v1669
      %v8393 = vsel %vm1695, %v6063, %v1670
      %v8394 = vsel %vm1695, %v6167, %v1671
      %v8395 = vsel %vm1695, %v6271, %v1672
      %v8396 = vsel %vm1695, %v6375, %v1673
      %v8397 = vsel %vm1695, %v6479, %v1674
      %v8398 = vsel %vm1695, %v6583, %v1675
      %v8399 = vsel %vm1695, %v6687, %v1676
      %v8400 = vsel %vm1695, %v6791, %v1677
      %v8401 = vsel %vm1695, %v6895, %v1678
      %v8402 = vsel %vm1695, %v6999, %v1679
      %v8403 = vsel %vm1695, %v7103, %v1680
      %v8404 = vsel %vm1695, %v7207, %v1681
      %v8405 = vsel %vm1695, %v7311, %v1682
      %v8406 = vsel %vm1695, %v7415, %v1683
      %v8407 = vsel %vm1695, %v7519, %v1684
      %v8408 = vsel %vm1695, %v7623, %v1685
      %v8409 = vsel %vm1695, %v7727, %v1686
      %v8410 = vsel %vm1695, %v7831, %v1687
      %v8411 = vsel %vm1695, %v7935, %v1688
      %v8412 = vsel %vm1695, %v8039, %v1689
      %v8413 = vsel %vm1695, %v8143, %v1690
      %v8414 = vsel %vm1695, %v8247, %v1691
      %v8415 = vsel %vm1695, %v8351, %v1692
      %v8416 = vpack.c.bf16 %v8353, %v8352
      %v8417 = vpack.c.bf16 %v8355, %v8354
      %v8418 = vpack.c.bf16 %v8357, %v8356
      %v8419 = vpack.c.bf16 %v8359, %v8358
      %v8420 = vpack.c.bf16 %v8361, %v8360
      %v8421 = vpack.c.bf16 %v8363, %v8362
      %v8422 = vpack.c.bf16 %v8365, %v8364
      %v8423 = vpack.c.bf16 %v8367, %v8366
      %v8424 = vpack.c.bf16 %v8369, %v8368
      %v8425 = vpack.c.bf16 %v8371, %v8370
      %v8426 = vpack.c.bf16 %v8373, %v8372
      %v8427 = vpack.c.bf16 %v8375, %v8374
      %v8428 = vpack.c.bf16 %v8377, %v8376
      %v8429 = vpack.c.bf16 %v8379, %v8378
      %v8430 = vpack.c.bf16 %v8381, %v8380
      %v8431 = vpack.c.bf16 %v8383, %v8382
      %v8432 = vpack.c.bf16 %v8385, %v8384
      %v8433 = vpack.c.bf16 %v8387, %v8386
      %v8434 = vpack.c.bf16 %v8389, %v8388
      %v8435 = vpack.c.bf16 %v8391, %v8390
      %v8436 = vpack.c.bf16 %v8393, %v8392
      %v8437 = vpack.c.bf16 %v8395, %v8394
      %v8438 = vpack.c.bf16 %v8397, %v8396
      %v8439 = vpack.c.bf16 %v8399, %v8398
      %v8440 = vpack.c.bf16 %v8401, %v8400
      %v8441 = vpack.c.bf16 %v8403, %v8402
      %v8442 = vpack.c.bf16 %v8405, %v8404
      %v8443 = vpack.c.bf16 %v8407, %v8406
      %v8444 = vpack.c.bf16 %v8409, %v8408
      %v8445 = vpack.c.bf16 %v8411, %v8410
      %v8446 = vpack.c.bf16 %v8413, %v8412
      %v8447 = vpack.c.bf16 %v8415, %v8414
      %v8448 = vld [vmem:[%s3] sm:$0xff]
      %v8449 = vld [vmem:[%s3 + $0x8] sm:$0xff]
      %v8450 = vld [vmem:[%s3 + $0x10] sm:$0xff]
      %v8451 = vld [vmem:[%s3 + $0x18] sm:$0xff]
      %v8452 = vld [vmem:[%s3 + $0x20] sm:$0xff]
      %v8453 = vld [vmem:[%s3 + $0x28] sm:$0xff]
      %v8454 = vld [vmem:[%s3 + $0x30] sm:$0xff]
      %v8455 = vld [vmem:[%s3 + $0x38] sm:$0xff]
      %v8456 = vld [vmem:[%s4] sm:$0x3]
      %v8458 = vlaneseq
      %v8459 = vshrl.u32 %v8458, 7
      %v8460 = vsub.s32 0, %v8459
      %v8461 = vrot.slane %v8456, %v8460
      %v8462 = vlaneseq
      %v8463 = vshrl.u32 %v8462, 7
      %v8464 = vsub.s32 1, %v8463
      %v8465 = vrot.slane %v8456, %v8464
      %v8476 = vunpack.c.l.b16 %v8448
      %v8477 = vunpack.c.h.b16 %v8448
      %v8478 = vunpack.c.l.b16 %v8449
      %v8479 = vunpack.c.h.b16 %v8449
      %v8480 = vunpack.c.l.b16 %v8450
      %v8481 = vunpack.c.h.b16 %v8450
      %v8482 = vunpack.c.l.b16 %v8451
      %v8483 = vunpack.c.h.b16 %v8451
      %v8484 = vunpack.c.l.b16 %v8452
      %v8485 = vunpack.c.h.b16 %v8452
      %v8486 = vunpack.c.l.b16 %v8453
      %v8487 = vunpack.c.h.b16 %v8453
      %v8488 = vunpack.c.l.b16 %v8454
      %v8489 = vunpack.c.h.b16 %v8454
      %v8490 = vunpack.c.l.b16 %v8455
      %v8491 = vunpack.c.h.b16 %v8455
      %v8492 = vpack.c.b16 %v8478, %v8476
      %v8493 = vpack.c.b16 %v8479, %v8477
      %v8494 = vpack.c.b16 %v8482, %v8480
      %v8495 = vpack.c.b16 %v8483, %v8481
      %v8496 = vpack.c.b16 %v8486, %v8484
      %v8497 = vpack.c.b16 %v8487, %v8485
      %v8498 = vpack.c.b16 %v8490, %v8488
      %v8499 = vpack.c.b16 %v8491, %v8489
      %vm8508 = vcmask 523264
      %v8510 = vsel %vm8508, %v8416, 0
      %v8513 = vsel %vm8508, %v8417, 0
      %v8516 = vsel %vm8508, %v8418, 0
      %v8519 = vsel %vm8508, %v8419, 0
      %v8522 = vsel %vm8508, %v8420, 0
      %v8525 = vsel %vm8508, %v8421, 0
      %v8528 = vsel %vm8508, %v8422, 0
      %v8531 = vsel %vm8508, %v8423, 0
      %v8534 = vsel %vm8508, %v8424, 0
      %v8537 = vsel %vm8508, %v8425, 0
      %v8540 = vsel %vm8508, %v8426, 0
      %v8543 = vsel %vm8508, %v8427, 0
      %v8546 = vsel %vm8508, %v8428, 0
      %v8549 = vsel %vm8508, %v8429, 0
      %v8552 = vsel %vm8508, %v8430, 0
      %v8555 = vsel %vm8508, %v8431, 0
      %v8558 = vsel %vm8508, %v8432, 0
      %v8561 = vsel %vm8508, %v8433, 0
      %v8564 = vsel %vm8508, %v8434, 0
      %v8567 = vsel %vm8508, %v8435, 0
      %v8570 = vsel %vm8508, %v8436, 0
      %v8573 = vsel %vm8508, %v8437, 0
      %v8576 = vsel %vm8508, %v8438, 0
      %v8579 = vsel %vm8508, %v8439, 0
      %v8582 = vsel %vm8508, %v8440, 0
      %v8585 = vsel %vm8508, %v8441, 0
      %v8588 = vsel %vm8508, %v8442, 0
      %v8591 = vsel %vm8508, %v8443, 0
      %v8594 = vsel %vm8508, %v8444, 0
      %v8597 = vsel %vm8508, %v8445, 0
      %v8600 = vsel %vm8508, %v8446, 0
      %v8603 = vsel %vm8508, %v8447, 0
      %8605 = vmatprep.subr.bf16.mxu0 0
      %8606 = vmatpush1.bf16.msra.mxu0 0
      %8607 = vmatprep.subr.bf16.mxu0 0
      %8608 = vmatpush1.bf16.msra.mxu0 0
      %8609 = vmatprep.subr.bf16.mxu0 0
      %8610 = vmatpush1.bf16.msra.mxu0 0
      %8611 = vmatprep.subr.bf16.mxu0 0
      %8612 = vmatpush1.bf16.msra.mxu0 0
      %8613 = vmatprep.subr.bf16.mxu0 %v8499
      %8614 = vmatpush1.bf16.msra.mxu0 %v8498
      %8615 = vmatprep.subr.bf16.mxu0 %v8497
      %8616 = vmatpush1.bf16.msra.mxu0 %v8496
      %8617 = vmatprep.subr.bf16.mxu0 %v8495
      %8618 = vmatpush1.bf16.msra.mxu0 %v8494
      %8619 = vmatprep.subr.bf16.mxu0 %v8493
      %8620 = vmatpush1.bf16.msra.mxu0 %v8492
      %8621 = vmatprep.subr.bf16.mxu0 0
      %8622 = vmatpush2.bf16.msra.mxu0 0
      %8623 = vmatprep.subr.bf16.mxu0 0
      %8624 = vmatpush2.bf16.msra.mxu0 0
      %8625 = vmatprep.subr.bf16.mxu0 0
      %8626 = vmatpush2.bf16.msra.mxu0 0
      %8627 = vmatprep.subr.bf16.mxu0 0
      %8628 = vmatpush2.bf16.msra.mxu0 0
      %8629 = vmatprep.subr.bf16.mxu0 0
      %8630 = vmatpush2.bf16.msra.mxu0 0
      %8631 = vmatprep.subr.bf16.mxu0 0
      %8632 = vmatpush2.bf16.msra.mxu0 0
      %8633 = vmatprep.subr.bf16.mxu0 0
      %8634 = vmatpush2.bf16.msra.mxu0 0
      %8635 = vmatprep.subr.bf16.mxu0 0
      %8636 = vmatpush2.bf16.msra.mxu0 0
      %8637 = vmatprep.mubr.bf16.mxu0 0
      %8638 = vmatmul.mubr.bf16.gmra.mxu0 %v8510
      %v8639 = vpop.f32.mrf.mxu0
      %v8640 = vadd.f32 %v8461, %v8639
      %v8641 = vpop.f32.mrf.mxu0
      %v8642 = vadd.f32 %v8465, %v8641
      %v8643 = vpop.f32.mrf.mxu0
      %v8644 = vadd.f32 %v8461, %v8643
      %v8645 = vpop.f32.mrf.mxu0
      %v8646 = vadd.f32 %v8465, %v8645
      %8647 = vmatprep.mubr.bf16.mxu0 0
      %8648 = vmatmul.mubr.bf16.gmra.mxu0 %v8513
      %v8649 = vpop.f32.mrf.mxu0
      %v8650 = vadd.f32 %v8461, %v8649
      %v8651 = vpop.f32.mrf.mxu0
      %v8652 = vadd.f32 %v8465, %v8651
      %v8653 = vpop.f32.mrf.mxu0
      %v8654 = vadd.f32 %v8461, %v8653
      %v8655 = vpop.f32.mrf.mxu0
      %v8656 = vadd.f32 %v8465, %v8655
      %8657 = vmatprep.mubr.bf16.mxu0 0
      %8658 = vmatmul.mubr.bf16.gmra.mxu0 %v8516
      %v8659 = vpop.f32.mrf.mxu0
      %v8660 = vadd.f32 %v8461, %v8659
      %v8661 = vpop.f32.mrf.mxu0
      %v8662 = vadd.f32 %v8465, %v8661
      %v8663 = vpop.f32.mrf.mxu0
      %v8664 = vadd.f32 %v8461, %v8663
      %v8665 = vpop.f32.mrf.mxu0
      %v8666 = vadd.f32 %v8465, %v8665
      %8667 = vmatprep.mubr.bf16.mxu0 0
      %8668 = vmatmul.mubr.bf16.gmra.mxu0 %v8519
      %v8669 = vpop.f32.mrf.mxu0
      %v8670 = vadd.f32 %v8461, %v8669
      %v8671 = vpop.f32.mrf.mxu0
      %v8672 = vadd.f32 %v8465, %v8671
      %v8673 = vpop.f32.mrf.mxu0
      %v8674 = vadd.f32 %v8461, %v8673
      %v8675 = vpop.f32.mrf.mxu0
      %v8676 = vadd.f32 %v8465, %v8675
      %8677 = vmatprep.mubr.bf16.mxu0 0
      %8678 = vmatmul.mubr.bf16.gmra.mxu0 %v8522
      %v8679 = vpop.f32.mrf.mxu0
      %v8680 = vadd.f32 %v8461, %v8679
      %v8681 = vpop.f32.mrf.mxu0
      %v8682 = vadd.f32 %v8465, %v8681
      %v8683 = vpop.f32.mrf.mxu0
      %v8684 = vadd.f32 %v8461, %v8683
      %v8685 = vpop.f32.mrf.mxu0
      %v8686 = vadd.f32 %v8465, %v8685
      %8687 = vmatprep.mubr.bf16.mxu0 0
      %8688 = vmatmul.mubr.bf16.gmra.mxu0 %v8525
      %v8689 = vpop.f32.mrf.mxu0
      %v8690 = vadd.f32 %v8461, %v8689
      %v8691 = vpop.f32.mrf.mxu0
      %v8692 = vadd.f32 %v8465, %v8691
      %v8693 = vpop.f32.mrf.mxu0
      %v8694 = vadd.f32 %v8461, %v8693
      %v8695 = vpop.f32.mrf.mxu0
      %v8696 = vadd.f32 %v8465, %v8695
      %8697 = vmatprep.mubr.bf16.mxu0 0
      %8698 = vmatmul.mubr.bf16.gmra.mxu0 %v8528
      %v8699 = vpop.f32.mrf.mxu0
      %v8700 = vadd.f32 %v8461, %v8699
      %v8701 = vpop.f32.mrf.mxu0
      %v8702 = vadd.f32 %v8465, %v8701
      %v8703 = vpop.f32.mrf.mxu0
      %v8704 = vadd.f32 %v8461, %v8703
      %v8705 = vpop.f32.mrf.mxu0
      %v8706 = vadd.f32 %v8465, %v8705
      %8707 = vmatprep.mubr.bf16.mxu0 0
      %8708 = vmatmul.mubr.bf16.gmra.mxu0 %v8531
      %v8709 = vpop.f32.mrf.mxu0
      %v8710 = vadd.f32 %v8461, %v8709
      %v8711 = vpop.f32.mrf.mxu0
      %v8712 = vadd.f32 %v8465, %v8711
      %v8713 = vpop.f32.mrf.mxu0
      %v8714 = vadd.f32 %v8461, %v8713
      %v8715 = vpop.f32.mrf.mxu0
      %v8716 = vadd.f32 %v8465, %v8715
      %8717 = vmatprep.mubr.bf16.mxu0 0
      %8718 = vmatmul.mubr.bf16.gmra.mxu0 %v8534
      %v8719 = vpop.f32.mrf.mxu0
      %v8720 = vadd.f32 %v8461, %v8719
      %v8721 = vpop.f32.mrf.mxu0
      %v8722 = vadd.f32 %v8465, %v8721
      %v8723 = vpop.f32.mrf.mxu0
      %v8724 = vadd.f32 %v8461, %v8723
      %v8725 = vpop.f32.mrf.mxu0
      %v8726 = vadd.f32 %v8465, %v8725
      %8727 = vmatprep.mubr.bf16.mxu0 0
      %8728 = vmatmul.mubr.bf16.gmra.mxu0 %v8537
      %v8729 = vpop.f32.mrf.mxu0
      %v8730 = vadd.f32 %v8461, %v8729
      %v8731 = vpop.f32.mrf.mxu0
      %v8732 = vadd.f32 %v8465, %v8731
      %v8733 = vpop.f32.mrf.mxu0
      %v8734 = vadd.f32 %v8461, %v8733
      %v8735 = vpop.f32.mrf.mxu0
      %v8736 = vadd.f32 %v8465, %v8735
      %8737 = vmatprep.mubr.bf16.mxu0 0
      %8738 = vmatmul.mubr.bf16.gmra.mxu0 %v8540
      %v8739 = vpop.f32.mrf.mxu0
      %v8740 = vadd.f32 %v8461, %v8739
      %v8741 = vpop.f32.mrf.mxu0
      %v8742 = vadd.f32 %v8465, %v8741
      %v8743 = vpop.f32.mrf.mxu0
      %v8744 = vadd.f32 %v8461, %v8743
      %v8745 = vpop.f32.mrf.mxu0
      %v8746 = vadd.f32 %v8465, %v8745
      %8747 = vmatprep.mubr.bf16.mxu0 0
      %8748 = vmatmul.mubr.bf16.gmra.mxu0 %v8543
      %v8749 = vpop.f32.mrf.mxu0
      %v8750 = vadd.f32 %v8461, %v8749
      %v8751 = vpop.f32.mrf.mxu0
      %v8752 = vadd.f32 %v8465, %v8751
      %v8753 = vpop.f32.mrf.mxu0
      %v8754 = vadd.f32 %v8461, %v8753
      %v8755 = vpop.f32.mrf.mxu0
      %v8756 = vadd.f32 %v8465, %v8755
      %8757 = vmatprep.mubr.bf16.mxu0 0
      %8758 = vmatmul.mubr.bf16.gmra.mxu0 %v8546
      %v8759 = vpop.f32.mrf.mxu0
      %v8760 = vadd.f32 %v8461, %v8759
      %v8761 = vpop.f32.mrf.mxu0
      %v8762 = vadd.f32 %v8465, %v8761
      %v8763 = vpop.f32.mrf.mxu0
      %v8764 = vadd.f32 %v8461, %v8763
      %v8765 = vpop.f32.mrf.mxu0
      %v8766 = vadd.f32 %v8465, %v8765
      %8767 = vmatprep.mubr.bf16.mxu0 0
      %8768 = vmatmul.mubr.bf16.gmra.mxu0 %v8549
      %v8769 = vpop.f32.mrf.mxu0
      %v8770 = vadd.f32 %v8461, %v8769
      %v8771 = vpop.f32.mrf.mxu0
      %v8772 = vadd.f32 %v8465, %v8771
      %v8773 = vpop.f32.mrf.mxu0
      %v8774 = vadd.f32 %v8461, %v8773
      %v8775 = vpop.f32.mrf.mxu0
      %v8776 = vadd.f32 %v8465, %v8775
      %8777 = vmatprep.mubr.bf16.mxu0 0
      %8778 = vmatmul.mubr.bf16.gmra.mxu0 %v8552
      %v8779 = vpop.f32.mrf.mxu0
      %v8780 = vadd.f32 %v8461, %v8779
      %v8781 = vpop.f32.mrf.mxu0
      %v8782 = vadd.f32 %v8465, %v8781
      %v8783 = vpop.f32.mrf.mxu0
      %v8784 = vadd.f32 %v8461, %v8783
      %v8785 = vpop.f32.mrf.mxu0
      %v8786 = vadd.f32 %v8465, %v8785
      %8787 = vmatprep.mubr.bf16.mxu0 0
      %8788 = vmatmul.mubr.bf16.gmra.mxu0 %v8555
      %v8789 = vpop.f32.mrf.mxu0
      %v8790 = vadd.f32 %v8461, %v8789
      %v8791 = vpop.f32.mrf.mxu0
      %v8792 = vadd.f32 %v8465, %v8791
      %v8793 = vpop.f32.mrf.mxu0
      %v8794 = vadd.f32 %v8461, %v8793
      %v8795 = vpop.f32.mrf.mxu0
      %v8796 = vadd.f32 %v8465, %v8795
      %8797 = vmatprep.mubr.bf16.mxu0 0
      %8798 = vmatmul.mubr.bf16.gmra.mxu0 %v8558
      %v8799 = vpop.f32.mrf.mxu0
      %v8800 = vadd.f32 %v8461, %v8799
      %v8801 = vpop.f32.mrf.mxu0
      %v8802 = vadd.f32 %v8465, %v8801
      %v8803 = vpop.f32.mrf.mxu0
      %v8804 = vadd.f32 %v8461, %v8803
      %v8805 = vpop.f32.mrf.mxu0
      %v8806 = vadd.f32 %v8465, %v8805
      %8807 = vmatprep.mubr.bf16.mxu0 0
      %8808 = vmatmul.mubr.bf16.gmra.mxu0 %v8561
      %v8809 = vpop.f32.mrf.mxu0
      %v8810 = vadd.f32 %v8461, %v8809
      %v8811 = vpop.f32.mrf.mxu0
      %v8812 = vadd.f32 %v8465, %v8811
      %v8813 = vpop.f32.mrf.mxu0
      %v8814 = vadd.f32 %v8461, %v8813
      %v8815 = vpop.f32.mrf.mxu0
      %v8816 = vadd.f32 %v8465, %v8815
      %8817 = vmatprep.mubr.bf16.mxu0 0
      %8818 = vmatmul.mubr.bf16.gmra.mxu0 %v8564
      %v8819 = vpop.f32.mrf.mxu0
      %v8820 = vadd.f32 %v8461, %v8819
      %v8821 = vpop.f32.mrf.mxu0
      %v8822 = vadd.f32 %v8465, %v8821
      %v8823 = vpop.f32.mrf.mxu0
      %v8824 = vadd.f32 %v8461, %v8823
      %v8825 = vpop.f32.mrf.mxu0
      %v8826 = vadd.f32 %v8465, %v8825
      %8827 = vmatprep.mubr.bf16.mxu0 0
      %8828 = vmatmul.mubr.bf16.gmra.mxu0 %v8567
      %v8829 = vpop.f32.mrf.mxu0
      %v8830 = vadd.f32 %v8461, %v8829
      %v8831 = vpop.f32.mrf.mxu0
      %v8832 = vadd.f32 %v8465, %v8831
      %v8833 = vpop.f32.mrf.mxu0
      %v8834 = vadd.f32 %v8461, %v8833
      %v8835 = vpop.f32.mrf.mxu0
      %v8836 = vadd.f32 %v8465, %v8835
      %8837 = vmatprep.mubr.bf16.mxu0 0
      %8838 = vmatmul.mubr.bf16.gmra.mxu0 %v8570
      %v8839 = vpop.f32.mrf.mxu0
      %v8840 = vadd.f32 %v8461, %v8839
      %v8841 = vpop.f32.mrf.mxu0
      %v8842 = vadd.f32 %v8465, %v8841
      %v8843 = vpop.f32.mrf.mxu0
      %v8844 = vadd.f32 %v8461, %v8843
      %v8845 = vpop.f32.mrf.mxu0
      %v8846 = vadd.f32 %v8465, %v8845
      %8847 = vmatprep.mubr.bf16.mxu0 0
      %8848 = vmatmul.mubr.bf16.gmra.mxu0 %v8573
      %v8849 = vpop.f32.mrf.mxu0
      %v8850 = vadd.f32 %v8461, %v8849
      %v8851 = vpop.f32.mrf.mxu0
      %v8852 = vadd.f32 %v8465, %v8851
      %v8853 = vpop.f32.mrf.mxu0
      %v8854 = vadd.f32 %v8461, %v8853
      %v8855 = vpop.f32.mrf.mxu0
      %v8856 = vadd.f32 %v8465, %v8855
      %8857 = vmatprep.mubr.bf16.mxu0 0
      %8858 = vmatmul.mubr.bf16.gmra.mxu0 %v8576
      %v8859 = vpop.f32.mrf.mxu0
      %v8860 = vadd.f32 %v8461, %v8859
      %v8861 = vpop.f32.mrf.mxu0
      %v8862 = vadd.f32 %v8465, %v8861
      %v8863 = vpop.f32.mrf.mxu0
      %v8864 = vadd.f32 %v8461, %v8863
      %v8865 = vpop.f32.mrf.mxu0
      %v8866 = vadd.f32 %v8465, %v8865
      %8867 = vmatprep.mubr.bf16.mxu0 0
      %8868 = vmatmul.mubr.bf16.gmra.mxu0 %v8579
      %v8869 = vpop.f32.mrf.mxu0
      %v8870 = vadd.f32 %v8461, %v8869
      %v8871 = vpop.f32.mrf.mxu0
      %v8872 = vadd.f32 %v8465, %v8871
      %v8873 = vpop.f32.mrf.mxu0
      %v8874 = vadd.f32 %v8461, %v8873
      %v8875 = vpop.f32.mrf.mxu0
      %v8876 = vadd.f32 %v8465, %v8875
      %8877 = vmatprep.mubr.bf16.mxu0 0
      %8878 = vmatmul.mubr.bf16.gmra.mxu0 %v8582
      %v8879 = vpop.f32.mrf.mxu0
      %v8880 = vadd.f32 %v8461, %v8879
      %v8881 = vpop.f32.mrf.mxu0
      %v8882 = vadd.f32 %v8465, %v8881
      %v8883 = vpop.f32.mrf.mxu0
      %v8884 = vadd.f32 %v8461, %v8883
      %v8885 = vpop.f32.mrf.mxu0
      %v8886 = vadd.f32 %v8465, %v8885
      %8887 = vmatprep.mubr.bf16.mxu0 0
      %8888 = vmatmul.mubr.bf16.gmra.mxu0 %v8585
      %v8889 = vpop.f32.mrf.mxu0
      %v8890 = vadd.f32 %v8461, %v8889
      %v8891 = vpop.f32.mrf.mxu0
      %v8892 = vadd.f32 %v8465, %v8891
      %v8893 = vpop.f32.mrf.mxu0
      %v8894 = vadd.f32 %v8461, %v8893
      %v8895 = vpop.f32.mrf.mxu0
      %v8896 = vadd.f32 %v8465, %v8895
      %8897 = vmatprep.mubr.bf16.mxu0 0
      %8898 = vmatmul.mubr.bf16.gmra.mxu0 %v8588
      %v8899 = vpop.f32.mrf.mxu0
      %v8900 = vadd.f32 %v8461, %v8899
      %v8901 = vpop.f32.mrf.mxu0
      %v8902 = vadd.f32 %v8465, %v8901
      %v8903 = vpop.f32.mrf.mxu0
      %v8904 = vadd.f32 %v8461, %v8903
      %v8905 = vpop.f32.mrf.mxu0
      %v8906 = vadd.f32 %v8465, %v8905
      %8907 = vmatprep.mubr.bf16.mxu0 0
      %8908 = vmatmul.mubr.bf16.gmra.mxu0 %v8591
      %v8909 = vpop.f32.mrf.mxu0
      %v8910 = vadd.f32 %v8461, %v8909
      %v8911 = vpop.f32.mrf.mxu0
      %v8912 = vadd.f32 %v8465, %v8911
      %v8913 = vpop.f32.mrf.mxu0
      %v8914 = vadd.f32 %v8461, %v8913
      %v8915 = vpop.f32.mrf.mxu0
      %v8916 = vadd.f32 %v8465, %v8915
      %8917 = vmatprep.mubr.bf16.mxu0 0
      %8918 = vmatmul.mubr.bf16.gmra.mxu0 %v8594
      %v8919 = vpop.f32.mrf.mxu0
      %v8920 = vadd.f32 %v8461, %v8919
      %v8921 = vpop.f32.mrf.mxu0
      %v8922 = vadd.f32 %v8465, %v8921
      %v8923 = vpop.f32.mrf.mxu0
      %v8924 = vadd.f32 %v8461, %v8923
      %v8925 = vpop.f32.mrf.mxu0
      %v8926 = vadd.f32 %v8465, %v8925
      %8927 = vmatprep.mubr.bf16.mxu0 0
      %8928 = vmatmul.mubr.bf16.gmra.mxu0 %v8597
      %v8929 = vpop.f32.mrf.mxu0
      %v8930 = vadd.f32 %v8461, %v8929
      %v8931 = vpop.f32.mrf.mxu0
      %v8932 = vadd.f32 %v8465, %v8931
      %v8933 = vpop.f32.mrf.mxu0
      %v8934 = vadd.f32 %v8461, %v8933
      %v8935 = vpop.f32.mrf.mxu0
      %v8936 = vadd.f32 %v8465, %v8935
      %8937 = vmatprep.mubr.bf16.mxu0 0
      %8938 = vmatmul.mubr.bf16.gmra.mxu0 %v8600
      %v8939 = vpop.f32.mrf.mxu0
      %v8940 = vadd.f32 %v8461, %v8939
      %v8941 = vpop.f32.mrf.mxu0
      %v8942 = vadd.f32 %v8465, %v8941
      %v8943 = vpop.f32.mrf.mxu0
      %v8944 = vadd.f32 %v8461, %v8943
      %v8945 = vpop.f32.mrf.mxu0
      %v8946 = vadd.f32 %v8465, %v8945
      %8947 = vmatprep.mubr.bf16.mxu0 0
      %8948 = vmatmul.mubr.bf16.gmra.mxu0 %v8603
      %v8949 = vpop.f32.mrf.mxu0
      %v8950 = vadd.f32 %v8461, %v8949
      %v8951 = vpop.f32.mrf.mxu0
      %v8952 = vadd.f32 %v8465, %v8951
      %v8953 = vpop.f32.mrf.mxu0
      %v8954 = vadd.f32 %v8461, %v8953
      %v8955 = vpop.f32.mrf.mxu0
      %v8956 = vadd.f32 %v8465, %v8955
      %8957 = vdwg.mxu0
      %v8958 = vmax.f32 %v8640, 0.0
      %v8959 = vmax.f32 %v8642, 0.0
      %v8960 = vmax.f32 %v8644, 0.0
      %v8961 = vmax.f32 %v8646, 0.0
      %v8962 = vmax.f32 %v8650, 0.0
      %v8963 = vmax.f32 %v8652, 0.0
      %v8964 = vmax.f32 %v8654, 0.0
      %v8965 = vmax.f32 %v8656, 0.0
      %v8966 = vmax.f32 %v8660, 0.0
      %v8967 = vmax.f32 %v8662, 0.0
      %v8968 = vmax.f32 %v8664, 0.0
      %v8969 = vmax.f32 %v8666, 0.0
      %v8970 = vmax.f32 %v8670, 0.0
      %v8971 = vmax.f32 %v8672, 0.0
      %v8972 = vmax.f32 %v8674, 0.0
      %v8973 = vmax.f32 %v8676, 0.0
      %v8974 = vmax.f32 %v8680, 0.0
      %v8975 = vmax.f32 %v8682, 0.0
      %v8976 = vmax.f32 %v8684, 0.0
      %v8977 = vmax.f32 %v8686, 0.0
      %v8978 = vmax.f32 %v8690, 0.0
      %v8979 = vmax.f32 %v8692, 0.0
      %v8980 = vmax.f32 %v8694, 0.0
      %v8981 = vmax.f32 %v8696, 0.0
      %v8982 = vmax.f32 %v8700, 0.0
      %v8983 = vmax.f32 %v8702, 0.0
      %v8984 = vmax.f32 %v8704, 0.0
      %v8985 = vmax.f32 %v8706, 0.0
      %v8986 = vmax.f32 %v8710, 0.0
      %v8987 = vmax.f32 %v8712, 0.0
      %v8988 = vmax.f32 %v8714, 0.0
      %v8989 = vmax.f32 %v8716, 0.0
      %v8990 = vmax.f32 %v8720, 0.0
      %v8991 = vmax.f32 %v8722, 0.0
      %v8992 = vmax.f32 %v8724, 0.0
      %v8993 = vmax.f32 %v8726, 0.0
      %v8994 = vmax.f32 %v8730, 0.0
      %v8995 = vmax.f32 %v8732, 0.0
      %v8996 = vmax.f32 %v8734, 0.0
      %v8997 = vmax.f32 %v8736, 0.0
      %v8998 = vmax.f32 %v8740, 0.0
      %v8999 = vmax.f32 %v8742, 0.0
      %v9000 = vmax.f32 %v8744, 0.0
      %v9001 = vmax.f32 %v8746, 0.0
      %v9002 = vmax.f32 %v8750, 0.0
      %v9003 = vmax.f32 %v8752, 0.0
      %v9004 = vmax.f32 %v8754, 0.0
      %v9005 = vmax.f32 %v8756, 0.0
      %v9006 = vmax.f32 %v8760, 0.0
      %v9007 = vmax.f32 %v8762, 0.0
      %v9008 = vmax.f32 %v8764, 0.0
      %v9009 = vmax.f32 %v8766, 0.0
      %v9010 = vmax.f32 %v8770, 0.0
      %v9011 = vmax.f32 %v8772, 0.0
      %v9012 = vmax.f32 %v8774, 0.0
      %v9013 = vmax.f32 %v8776, 0.0
      %v9014 = vmax.f32 %v8780, 0.0
      %v9015 = vmax.f32 %v8782, 0.0
      %v9016 = vmax.f32 %v8784, 0.0
      %v9017 = vmax.f32 %v8786, 0.0
      %v9018 = vmax.f32 %v8790, 0.0
      %v9019 = vmax.f32 %v8792, 0.0
      %v9020 = vmax.f32 %v8794, 0.0
      %v9021 = vmax.f32 %v8796, 0.0
      %v9022 = vmax.f32 %v8800, 0.0
      %v9023 = vmax.f32 %v8802, 0.0
      %v9024 = vmax.f32 %v8804, 0.0
      %v9025 = vmax.f32 %v8806, 0.0
      %v9026 = vmax.f32 %v8810, 0.0
      %v9027 = vmax.f32 %v8812, 0.0
      %v9028 = vmax.f32 %v8814, 0.0
      %v9029 = vmax.f32 %v8816, 0.0
      %v9030 = vmax.f32 %v8820, 0.0
      %v9031 = vmax.f32 %v8822, 0.0
      %v9032 = vmax.f32 %v8824, 0.0
      %v9033 = vmax.f32 %v8826, 0.0
      %v9034 = vmax.f32 %v8830, 0.0
      %v9035 = vmax.f32 %v8832, 0.0
      %v9036 = vmax.f32 %v8834, 0.0
      %v9037 = vmax.f32 %v8836, 0.0
      %v9038 = vmax.f32 %v8840, 0.0
      %v9039 = vmax.f32 %v8842, 0.0
      %v9040 = vmax.f32 %v8844, 0.0
      %v9041 = vmax.f32 %v8846, 0.0
      %v9042 = vmax.f32 %v8850, 0.0
      %v9043 = vmax.f32 %v8852, 0.0
      %v9044 = vmax.f32 %v8854, 0.0
      %v9045 = vmax.f32 %v8856, 0.0
      %v9046 = vmax.f32 %v8860, 0.0
      %v9047 = vmax.f32 %v8862, 0.0
      %v9048 = vmax.f32 %v8864, 0.0
      %v9049 = vmax.f32 %v8866, 0.0
      %v9050 = vmax.f32 %v8870, 0.0
      %v9051 = vmax.f32 %v8872, 0.0
      %v9052 = vmax.f32 %v8874, 0.0
      %v9053 = vmax.f32 %v8876, 0.0
      %v9054 = vmax.f32 %v8880, 0.0
      %v9055 = vmax.f32 %v8882, 0.0
      %v9056 = vmax.f32 %v8884, 0.0
      %v9057 = vmax.f32 %v8886, 0.0
      %v9058 = vmax.f32 %v8890, 0.0
      %v9059 = vmax.f32 %v8892, 0.0
      %v9060 = vmax.f32 %v8894, 0.0
      %v9061 = vmax.f32 %v8896, 0.0
      %v9062 = vmax.f32 %v8900, 0.0
      %v9063 = vmax.f32 %v8902, 0.0
      %v9064 = vmax.f32 %v8904, 0.0
      %v9065 = vmax.f32 %v8906, 0.0
      %v9066 = vmax.f32 %v8910, 0.0
      %v9067 = vmax.f32 %v8912, 0.0
      %v9068 = vmax.f32 %v8914, 0.0
      %v9069 = vmax.f32 %v8916, 0.0
      %v9070 = vmax.f32 %v8920, 0.0
      %v9071 = vmax.f32 %v8922, 0.0
      %v9072 = vmax.f32 %v8924, 0.0
      %v9073 = vmax.f32 %v8926, 0.0
      %v9074 = vmax.f32 %v8930, 0.0
      %v9075 = vmax.f32 %v8932, 0.0
      %v9076 = vmax.f32 %v8934, 0.0
      %v9077 = vmax.f32 %v8936, 0.0
      %v9078 = vmax.f32 %v8940, 0.0
      %v9079 = vmax.f32 %v8942, 0.0
      %v9080 = vmax.f32 %v8944, 0.0
      %v9081 = vmax.f32 %v8946, 0.0
      %v9082 = vmax.f32 %v8950, 0.0
      %v9083 = vmax.f32 %v8952, 0.0
      %v9084 = vmax.f32 %v8954, 0.0
      %v9085 = vmax.f32 %v8956, 0.0
      %v9086 = vpack.c.bf16 %v8960, %v8958
      %v9087 = vpack.c.bf16 %v8961, %v8959
      %v9088 = vpack.c.bf16 %v8964, %v8962
      %v9089 = vpack.c.bf16 %v8965, %v8963
      %v9090 = vpack.c.bf16 %v8968, %v8966
      %v9091 = vpack.c.bf16 %v8969, %v8967
      %v9092 = vpack.c.bf16 %v8972, %v8970
      %v9093 = vpack.c.bf16 %v8973, %v8971
      %v9094 = vpack.c.bf16 %v8976, %v8974
      %v9095 = vpack.c.bf16 %v8977, %v8975
      %v9096 = vpack.c.bf16 %v8980, %v8978
      %v9097 = vpack.c.bf16 %v8981, %v8979
      %v9098 = vpack.c.bf16 %v8984, %v8982
      %v9099 = vpack.c.bf16 %v8985, %v8983
      %v9100 = vpack.c.bf16 %v8988, %v8986
      %v9101 = vpack.c.bf16 %v8989, %v8987
      %v9102 = vpack.c.bf16 %v8992, %v8990
      %v9103 = vpack.c.bf16 %v8993, %v8991
      %v9104 = vpack.c.bf16 %v8996, %v8994
      %v9105 = vpack.c.bf16 %v8997, %v8995
      %v9106 = vpack.c.bf16 %v9000, %v8998
      %v9107 = vpack.c.bf16 %v9001, %v8999
      %v9108 = vpack.c.bf16 %v9004, %v9002
      %v9109 = vpack.c.bf16 %v9005, %v9003
      %v9110 = vpack.c.bf16 %v9008, %v9006
      %v9111 = vpack.c.bf16 %v9009, %v9007
      %v9112 = vpack.c.bf16 %v9012, %v9010
      %v9113 = vpack.c.bf16 %v9013, %v9011
      %v9114 = vpack.c.bf16 %v9016, %v9014
      %v9115 = vpack.c.bf16 %v9017, %v9015
      %v9116 = vpack.c.bf16 %v9020, %v9018
      %v9117 = vpack.c.bf16 %v9021, %v9019
      %v9118 = vpack.c.bf16 %v9024, %v9022
      %v9119 = vpack.c.bf16 %v9025, %v9023
      %v9120 = vpack.c.bf16 %v9028, %v9026
      %v9121 = vpack.c.bf16 %v9029, %v9027
      %v9122 = vpack.c.bf16 %v9032, %v9030
      %v9123 = vpack.c.bf16 %v9033, %v9031
      %v9124 = vpack.c.bf16 %v9036, %v9034
      %v9125 = vpack.c.bf16 %v9037, %v9035
      %v9126 = vpack.c.bf16 %v9040, %v9038
      %v9127 = vpack.c.bf16 %v9041, %v9039
      %v9128 = vpack.c.bf16 %v9044, %v9042
      %v9129 = vpack.c.bf16 %v9045, %v9043
      %v9130 = vpack.c.bf16 %v9048, %v9046
      %v9131 = vpack.c.bf16 %v9049, %v9047
      %v9132 = vpack.c.bf16 %v9052, %v9050
      %v9133 = vpack.c.bf16 %v9053, %v9051
      %v9134 = vpack.c.bf16 %v9056, %v9054
      %v9135 = vpack.c.bf16 %v9057, %v9055
      %v9136 = vpack.c.bf16 %v9060, %v9058
      %v9137 = vpack.c.bf16 %v9061, %v9059
      %v9138 = vpack.c.bf16 %v9064, %v9062
      %v9139 = vpack.c.bf16 %v9065, %v9063
      %v9140 = vpack.c.bf16 %v9068, %v9066
      %v9141 = vpack.c.bf16 %v9069, %v9067
      %v9142 = vpack.c.bf16 %v9072, %v9070
      %v9143 = vpack.c.bf16 %v9073, %v9071
      %v9144 = vpack.c.bf16 %v9076, %v9074
      %v9145 = vpack.c.bf16 %v9077, %v9075
      %v9146 = vpack.c.bf16 %v9080, %v9078
      %v9147 = vpack.c.bf16 %v9081, %v9079
      %v9148 = vpack.c.bf16 %v9084, %v9082
      %v9149 = vpack.c.bf16 %v9085, %v9083
      %v9150 = vld [vmem:[%s5] sm:$0xff]
      %v9151 = vld [vmem:[%s5 + $0x8] sm:$0xff]
      %v9152 = vld [vmem:[%s5 + $0x10] sm:$0xff]
      %v9153 = vld [vmem:[%s5 + $0x18] sm:$0xff]
      %v9154 = vld [vmem:[%s5 + $0x20] sm:$0xff]
      %v9155 = vld [vmem:[%s5 + $0x28] sm:$0xff]
      %v9156 = vld [vmem:[%s5 + $0x30] sm:$0xff]
      %v9157 = vld [vmem:[%s5 + $0x38] sm:$0xff]
      %v9158 = vld [vmem:[%s5 + $0x40] sm:$0xff]
      %v9159 = vld [vmem:[%s5 + $0x48] sm:$0xff]
      %v9160 = vld [vmem:[%s5 + $0x50] sm:$0xff]
      %v9161 = vld [vmem:[%s5 + $0x58] sm:$0xff]
      %v9162 = vld [vmem:[%s5 + $0x60] sm:$0xff]
      %v9163 = vld [vmem:[%s5 + $0x68] sm:$0xff]
      %v9164 = vld [vmem:[%s5 + $0x70] sm:$0xff]
      %v9165 = vld [vmem:[%s5 + $0x78] sm:$0xff]
      %v9166 = vld [vmem:[%s5 + $0x80] sm:$0xff]
      %v9167 = vld [vmem:[%s5 + $0x88] sm:$0xff]
      %v9168 = vld [vmem:[%s5 + $0x90] sm:$0xff]
      %v9169 = vld [vmem:[%s5 + $0x98] sm:$0xff]
      %v9170 = vld [vmem:[%s5 + $0xa0] sm:$0xff]
      %v9171 = vld [vmem:[%s5 + $0xa8] sm:$0xff]
      %v9172 = vld [vmem:[%s5 + $0xb0] sm:$0xff]
      %v9173 = vld [vmem:[%s5 + $0xb8] sm:$0xff]
      %v9174 = vld [vmem:[%s5 + $0xc0] sm:$0xff]
      %v9175 = vld [vmem:[%s5 + $0xc8] sm:$0xff]
      %v9176 = vld [vmem:[%s5 + $0xd0] sm:$0xff]
      %v9177 = vld [vmem:[%s5 + $0xd8] sm:$0xff]
      %v9178 = vld [vmem:[%s5 + $0xe0] sm:$0xff]
      %v9179 = vld [vmem:[%s5 + $0xe8] sm:$0xff]
      %v9180 = vld [vmem:[%s5 + $0xf0] sm:$0xff]
      %v9181 = vld [vmem:[%s5 + $0xf8] sm:$0xff]
      %v9182 = vld [vmem:[%s6] sm:$0x3]
      %v9184 = vlaneseq
      %v9185 = vshrl.u32 %v9184, 7
      %v9186 = vsub.s32 0, %v9185
      %v9187 = vrot.slane %v9182, %v9186
      %v9188 = vlaneseq
      %v9189 = vshrl.u32 %v9188, 7
      %v9190 = vsub.s32 1, %v9189
      %v9191 = vrot.slane %v9182, %v9190
      %v9226 = vunpack.c.l.b16 %v9150
      %v9227 = vunpack.c.h.b16 %v9150
      %v9228 = vunpack.c.l.b16 %v9151
      %v9229 = vunpack.c.h.b16 %v9151
      %v9230 = vunpack.c.l.b16 %v9152
      %v9231 = vunpack.c.h.b16 %v9152
      %v9232 = vunpack.c.l.b16 %v9153
      %v9233 = vunpack.c.h.b16 %v9153
      %v9234 = vunpack.c.l.b16 %v9154
      %v9235 = vunpack.c.h.b16 %v9154
      %v9236 = vunpack.c.l.b16 %v9155
      %v9237 = vunpack.c.h.b16 %v9155
      %v9238 = vunpack.c.l.b16 %v9156
      %v9239 = vunpack.c.h.b16 %v9156
      %v9240 = vunpack.c.l.b16 %v9157
      %v9241 = vunpack.c.h.b16 %v9157
      %v9242 = vunpack.c.l.b16 %v9158
      %v9243 = vunpack.c.h.b16 %v9158
      %v9244 = vunpack.c.l.b16 %v9159
      %v9245 = vunpack.c.h.b16 %v9159
      %v9246 = vunpack.c.l.b16 %v9160
      %v9247 = vunpack.c.h.b16 %v9160
      %v9248 = vunpack.c.l.b16 %v9161
      %v9249 = vunpack.c.h.b16 %v9161
      %v9250 = vunpack.c.l.b16 %v9162
      %v9251 = vunpack.c.h.b16 %v9162
      %v9252 = vunpack.c.l.b16 %v9163
      %v9253 = vunpack.c.h.b16 %v9163
      %v9254 = vunpack.c.l.b16 %v9164
      %v9255 = vunpack.c.h.b16 %v9164
      %v9256 = vunpack.c.l.b16 %v9165
      %v9257 = vunpack.c.h.b16 %v9165
      %v9258 = vunpack.c.l.b16 %v9166
      %v9259 = vunpack.c.h.b16 %v9166
      %v9260 = vunpack.c.l.b16 %v9167
      %v9261 = vunpack.c.h.b16 %v9167
      %v9262 = vunpack.c.l.b16 %v9168
      %v9263 = vunpack.c.h.b16 %v9168
      %v9264 = vunpack.c.l.b16 %v9169
      %v9265 = vunpack.c.h.b16 %v9169
      %v9266 = vunpack.c.l.b16 %v9170
      %v9267 = vunpack.c.h.b16 %v9170
      %v9268 = vunpack.c.l.b16 %v9171
      %v9269 = vunpack.c.h.b16 %v9171
      %v9270 = vunpack.c.l.b16 %v9172
      %v9271 = vunpack.c.h.b16 %v9172
      %v9272 = vunpack.c.l.b16 %v9173
      %v9273 = vunpack.c.h.b16 %v9173
      %v9274 = vunpack.c.l.b16 %v9174
      %v9275 = vunpack.c.h.b16 %v9174
      %v9276 = vunpack.c.l.b16 %v9175
      %v9277 = vunpack.c.h.b16 %v9175
      %v9278 = vunpack.c.l.b16 %v9176
      %v9279 = vunpack.c.h.b16 %v9176
      %v9280 = vunpack.c.l.b16 %v9177
      %v9281 = vunpack.c.h.b16 %v9177
      %v9282 = vunpack.c.l.b16 %v9178
      %v9283 = vunpack.c.h.b16 %v9178
      %v9284 = vunpack.c.l.b16 %v9179
      %v9285 = vunpack.c.h.b16 %v9179
      %v9286 = vunpack.c.l.b16 %v9180
      %v9287 = vunpack.c.h.b16 %v9180
      %v9288 = vunpack.c.l.b16 %v9181
      %v9289 = vunpack.c.h.b16 %v9181
      %v9290 = vpack.c.b16 %v9228, %v9226
      %v9291 = vpack.c.b16 %v9229, %v9227
      %v9292 = vpack.c.b16 %v9232, %v9230
      %v9293 = vpack.c.b16 %v9233, %v9231
      %v9294 = vpack.c.b16 %v9236, %v9234
      %v9295 = vpack.c.b16 %v9237, %v9235
      %v9296 = vpack.c.b16 %v9240, %v9238
      %v9297 = vpack.c.b16 %v9241, %v9239
      %v9298 = vpack.c.b16 %v9244, %v9242
      %v9299 = vpack.c.b16 %v9245, %v9243
      %v9300 = vpack.c.b16 %v9248, %v9246
      %v9301 = vpack.c.b16 %v9249, %v9247
      %v9302 = vpack.c.b16 %v9252, %v9250
      %v9303 = vpack.c.b16 %v9253, %v9251
      %v9304 = vpack.c.b16 %v9256, %v9254
      %v9305 = vpack.c.b16 %v9257, %v9255
      %v9306 = vpack.c.b16 %v9260, %v9258
      %v9307 = vpack.c.b16 %v9261, %v9259
      %v9308 = vpack.c.b16 %v9264, %v9262
      %v9309 = vpack.c.b16 %v9265, %v9263
      %v9310 = vpack.c.b16 %v9268, %v9266
      %v9311 = vpack.c.b16 %v9269, %v9267
      %v9312 = vpack.c.b16 %v9272, %v9270
      %v9313 = vpack.c.b16 %v9273, %v9271
      %v9314 = vpack.c.b16 %v9276, %v9274
      %v9315 = vpack.c.b16 %v9277, %v9275
      %v9316 = vpack.c.b16 %v9280, %v9278
      %v9317 = vpack.c.b16 %v9281, %v9279
      %v9318 = vpack.c.b16 %v9284, %v9282
      %v9319 = vpack.c.b16 %v9285, %v9283
      %v9320 = vpack.c.b16 %v9288, %v9286
      %v9321 = vpack.c.b16 %v9289, %v9287
      %9354 = vmatprep.subr.bf16.mxu0 %v9305
      %9355 = vmatpush1.bf16.msra.mxu0 %v9304
      %9356 = vmatprep.subr.bf16.mxu0 %v9303
      %9357 = vmatpush1.bf16.msra.mxu0 %v9302
      %9358 = vmatprep.subr.bf16.mxu0 %v9301
      %9359 = vmatpush1.bf16.msra.mxu0 %v9300
      %9360 = vmatprep.subr.bf16.mxu0 %v9299
      %9361 = vmatpush1.bf16.msra.mxu0 %v9298
      %9362 = vmatprep.subr.bf16.mxu0 %v9297
      %9363 = vmatpush1.bf16.msra.mxu0 %v9296
      %9364 = vmatprep.subr.bf16.mxu0 %v9295
      %9365 = vmatpush1.bf16.msra.mxu0 %v9294
      %9366 = vmatprep.subr.bf16.mxu0 %v9293
      %9367 = vmatpush1.bf16.msra.mxu0 %v9292
      %9368 = vmatprep.subr.bf16.mxu0 %v9291
      %9369 = vmatpush1.bf16.msra.mxu0 %v9290
      %9370 = vmatprep.subr.bf16.mxu0 %v9321
      %9371 = vmatpush2.bf16.msra.mxu0 %v9320
      %9372 = vmatprep.subr.bf16.mxu0 %v9319
      %9373 = vmatpush2.bf16.msra.mxu0 %v9318
      %9374 = vmatprep.subr.bf16.mxu0 %v9317
      %9375 = vmatpush2.bf16.msra.mxu0 %v9316
      %9376 = vmatprep.subr.bf16.mxu0 %v9315
      %9377 = vmatpush2.bf16.msra.mxu0 %v9314
      %9378 = vmatprep.subr.bf16.mxu0 %v9313
      %9379 = vmatpush2.bf16.msra.mxu0 %v9312
      %9380 = vmatprep.subr.bf16.mxu0 %v9311
      %9381 = vmatpush2.bf16.msra.mxu0 %v9310
      %9382 = vmatprep.subr.bf16.mxu0 %v9309
      %9383 = vmatpush2.bf16.msra.mxu0 %v9308
      %9384 = vmatprep.subr.bf16.mxu0 %v9307
      %9385 = vmatpush2.bf16.msra.mxu0 %v9306
      %9386 = vmatprep.mubr.bf16.mxu0 %v9087
      %9387 = vmatmul.mubr.bf16.gmra.mxu0 %v9086
      %v9388 = vpop.f32.mrf.mxu0
      %v9389 = vadd.f32 %v9187, %v9388
      %v9390 = vpop.f32.mrf.mxu0
      %v9391 = vadd.f32 %v9191, %v9390
      %v9392 = vpop.f32.mrf.mxu0
      %v9393 = vadd.f32 %v9187, %v9392
      %v9394 = vpop.f32.mrf.mxu0
      %v9395 = vadd.f32 %v9191, %v9394
      %9396 = vmatprep.mubr.bf16.mxu0 %v9089
      %9397 = vmatmul.mubr.bf16.gmra.mxu0 %v9088
      %v9398 = vpop.f32.mrf.mxu0
      %v9399 = vadd.f32 %v9187, %v9398
      %v9400 = vpop.f32.mrf.mxu0
      %v9401 = vadd.f32 %v9191, %v9400
      %v9402 = vpop.f32.mrf.mxu0
      %v9403 = vadd.f32 %v9187, %v9402
      %v9404 = vpop.f32.mrf.mxu0
      %v9405 = vadd.f32 %v9191, %v9404
      %9406 = vmatprep.mubr.bf16.mxu0 %v9091
      %9407 = vmatmul.mubr.bf16.gmra.mxu0 %v9090
      %v9408 = vpop.f32.mrf.mxu0
      %v9409 = vadd.f32 %v9187, %v9408
      %v9410 = vpop.f32.mrf.mxu0
      %v9411 = vadd.f32 %v9191, %v9410
      %v9412 = vpop.f32.mrf.mxu0
      %v9413 = vadd.f32 %v9187, %v9412
      %v9414 = vpop.f32.mrf.mxu0
      %v9415 = vadd.f32 %v9191, %v9414
      %9416 = vmatprep.mubr.bf16.mxu0 %v9093
      %9417 = vmatmul.mubr.bf16.gmra.mxu0 %v9092
      %v9418 = vpop.f32.mrf.mxu0
      %v9419 = vadd.f32 %v9187, %v9418
      %v9420 = vpop.f32.mrf.mxu0
      %v9421 = vadd.f32 %v9191, %v9420
      %v9422 = vpop.f32.mrf.mxu0
      %v9423 = vadd.f32 %v9187, %v9422
      %v9424 = vpop.f32.mrf.mxu0
      %v9425 = vadd.f32 %v9191, %v9424
      %9426 = vmatprep.mubr.bf16.mxu0 %v9095
      %9427 = vmatmul.mubr.bf16.gmra.mxu0 %v9094
      %v9428 = vpop.f32.mrf.mxu0
      %v9429 = vadd.f32 %v9187, %v9428
      %v9430 = vpop.f32.mrf.mxu0
      %v9431 = vadd.f32 %v9191, %v9430
      %v9432 = vpop.f32.mrf.mxu0
      %v9433 = vadd.f32 %v9187, %v9432
      %v9434 = vpop.f32.mrf.mxu0
      %v9435 = vadd.f32 %v9191, %v9434
      %9436 = vmatprep.mubr.bf16.mxu0 %v9097
      %9437 = vmatmul.mubr.bf16.gmra.mxu0 %v9096
      %v9438 = vpop.f32.mrf.mxu0
      %v9439 = vadd.f32 %v9187, %v9438
      %v9440 = vpop.f32.mrf.mxu0
      %v9441 = vadd.f32 %v9191, %v9440
      %v9442 = vpop.f32.mrf.mxu0
      %v9443 = vadd.f32 %v9187, %v9442
      %v9444 = vpop.f32.mrf.mxu0
      %v9445 = vadd.f32 %v9191, %v9444
      %9446 = vmatprep.mubr.bf16.mxu0 %v9099
      %9447 = vmatmul.mubr.bf16.gmra.mxu0 %v9098
      %v9448 = vpop.f32.mrf.mxu0
      %v9449 = vadd.f32 %v9187, %v9448
      %v9450 = vpop.f32.mrf.mxu0
      %v9451 = vadd.f32 %v9191, %v9450
      %v9452 = vpop.f32.mrf.mxu0
      %v9453 = vadd.f32 %v9187, %v9452
      %v9454 = vpop.f32.mrf.mxu0
      %v9455 = vadd.f32 %v9191, %v9454
      %9456 = vmatprep.mubr.bf16.mxu0 %v9101
      %9457 = vmatmul.mubr.bf16.gmra.mxu0 %v9100
      %v9458 = vpop.f32.mrf.mxu0
      %v9459 = vadd.f32 %v9187, %v9458
      %v9460 = vpop.f32.mrf.mxu0
      %v9461 = vadd.f32 %v9191, %v9460
      %v9462 = vpop.f32.mrf.mxu0
      %v9463 = vadd.f32 %v9187, %v9462
      %v9464 = vpop.f32.mrf.mxu0
      %v9465 = vadd.f32 %v9191, %v9464
      %9466 = vmatprep.mubr.bf16.mxu0 %v9103
      %9467 = vmatmul.mubr.bf16.gmra.mxu0 %v9102
      %v9468 = vpop.f32.mrf.mxu0
      %v9469 = vadd.f32 %v9187, %v9468
      %v9470 = vpop.f32.mrf.mxu0
      %v9471 = vadd.f32 %v9191, %v9470
      %v9472 = vpop.f32.mrf.mxu0
      %v9473 = vadd.f32 %v9187, %v9472
      %v9474 = vpop.f32.mrf.mxu0
      %v9475 = vadd.f32 %v9191, %v9474
      %9476 = vmatprep.mubr.bf16.mxu0 %v9105
      %9477 = vmatmul.mubr.bf16.gmra.mxu0 %v9104
      %v9478 = vpop.f32.mrf.mxu0
      %v9479 = vadd.f32 %v9187, %v9478
      %v9480 = vpop.f32.mrf.mxu0
      %v9481 = vadd.f32 %v9191, %v9480
      %v9482 = vpop.f32.mrf.mxu0
      %v9483 = vadd.f32 %v9187, %v9482
      %v9484 = vpop.f32.mrf.mxu0
      %v9485 = vadd.f32 %v9191, %v9484
      %9486 = vmatprep.mubr.bf16.mxu0 %v9107
      %9487 = vmatmul.mubr.bf16.gmra.mxu0 %v9106
      %v9488 = vpop.f32.mrf.mxu0
      %v9489 = vadd.f32 %v9187, %v9488
      %v9490 = vpop.f32.mrf.mxu0
      %v9491 = vadd.f32 %v9191, %v9490
      %v9492 = vpop.f32.mrf.mxu0
      %v9493 = vadd.f32 %v9187, %v9492
      %v9494 = vpop.f32.mrf.mxu0
      %v9495 = vadd.f32 %v9191, %v9494
      %9496 = vmatprep.mubr.bf16.mxu0 %v9109
      %9497 = vmatmul.mubr.bf16.gmra.mxu0 %v9108
      %v9498 = vpop.f32.mrf.mxu0
      %v9499 = vadd.f32 %v9187, %v9498
      %v9500 = vpop.f32.mrf.mxu0
      %v9501 = vadd.f32 %v9191, %v9500
      %v9502 = vpop.f32.mrf.mxu0
      %v9503 = vadd.f32 %v9187, %v9502
      %v9504 = vpop.f32.mrf.mxu0
      %v9505 = vadd.f32 %v9191, %v9504
      %9506 = vmatprep.mubr.bf16.mxu0 %v9111
      %9507 = vmatmul.mubr.bf16.gmra.mxu0 %v9110
      %v9508 = vpop.f32.mrf.mxu0
      %v9509 = vadd.f32 %v9187, %v9508
      %v9510 = vpop.f32.mrf.mxu0
      %v9511 = vadd.f32 %v9191, %v9510
      %v9512 = vpop.f32.mrf.mxu0
      %v9513 = vadd.f32 %v9187, %v9512
      %v9514 = vpop.f32.mrf.mxu0
      %v9515 = vadd.f32 %v9191, %v9514
      %9516 = vmatprep.mubr.bf16.mxu0 %v9113
      %9517 = vmatmul.mubr.bf16.gmra.mxu0 %v9112
      %v9518 = vpop.f32.mrf.mxu0
      %v9519 = vadd.f32 %v9187, %v9518
      %v9520 = vpop.f32.mrf.mxu0
      %v9521 = vadd.f32 %v9191, %v9520
      %v9522 = vpop.f32.mrf.mxu0
      %v9523 = vadd.f32 %v9187, %v9522
      %v9524 = vpop.f32.mrf.mxu0
      %v9525 = vadd.f32 %v9191, %v9524
      %9526 = vmatprep.mubr.bf16.mxu0 %v9115
      %9527 = vmatmul.mubr.bf16.gmra.mxu0 %v9114
      %v9528 = vpop.f32.mrf.mxu0
      %v9529 = vadd.f32 %v9187, %v9528
      %v9530 = vpop.f32.mrf.mxu0
      %v9531 = vadd.f32 %v9191, %v9530
      %v9532 = vpop.f32.mrf.mxu0
      %v9533 = vadd.f32 %v9187, %v9532
      %v9534 = vpop.f32.mrf.mxu0
      %v9535 = vadd.f32 %v9191, %v9534
      %9536 = vmatprep.mubr.bf16.mxu0 %v9117
      %9537 = vmatmul.mubr.bf16.gmra.mxu0 %v9116
      %v9538 = vpop.f32.mrf.mxu0
      %v9539 = vadd.f32 %v9187, %v9538
      %v9540 = vpop.f32.mrf.mxu0
      %v9541 = vadd.f32 %v9191, %v9540
      %v9542 = vpop.f32.mrf.mxu0
      %v9543 = vadd.f32 %v9187, %v9542
      %v9544 = vpop.f32.mrf.mxu0
      %v9545 = vadd.f32 %v9191, %v9544
      %9546 = vmatprep.mubr.bf16.mxu0 %v9119
      %9547 = vmatmul.mubr.bf16.gmra.mxu0 %v9118
      %v9548 = vpop.f32.mrf.mxu0
      %v9549 = vadd.f32 %v9187, %v9548
      %v9550 = vpop.f32.mrf.mxu0
      %v9551 = vadd.f32 %v9191, %v9550
      %v9552 = vpop.f32.mrf.mxu0
      %v9553 = vadd.f32 %v9187, %v9552
      %v9554 = vpop.f32.mrf.mxu0
      %v9555 = vadd.f32 %v9191, %v9554
      %9556 = vmatprep.mubr.bf16.mxu0 %v9121
      %9557 = vmatmul.mubr.bf16.gmra.mxu0 %v9120
      %v9558 = vpop.f32.mrf.mxu0
      %v9559 = vadd.f32 %v9187, %v9558
      %v9560 = vpop.f32.mrf.mxu0
      %v9561 = vadd.f32 %v9191, %v9560
      %v9562 = vpop.f32.mrf.mxu0
      %v9563 = vadd.f32 %v9187, %v9562
      %v9564 = vpop.f32.mrf.mxu0
      %v9565 = vadd.f32 %v9191, %v9564
      %9566 = vmatprep.mubr.bf16.mxu0 %v9123
      %9567 = vmatmul.mubr.bf16.gmra.mxu0 %v9122
      %v9568 = vpop.f32.mrf.mxu0
      %v9569 = vadd.f32 %v9187, %v9568
      %v9570 = vpop.f32.mrf.mxu0
      %v9571 = vadd.f32 %v9191, %v9570
      %v9572 = vpop.f32.mrf.mxu0
      %v9573 = vadd.f32 %v9187, %v9572
      %v9574 = vpop.f32.mrf.mxu0
      %v9575 = vadd.f32 %v9191, %v9574
      %9576 = vmatprep.mubr.bf16.mxu0 %v9125
      %9577 = vmatmul.mubr.bf16.gmra.mxu0 %v9124
      %v9578 = vpop.f32.mrf.mxu0
      %v9579 = vadd.f32 %v9187, %v9578
      %v9580 = vpop.f32.mrf.mxu0
      %v9581 = vadd.f32 %v9191, %v9580
      %v9582 = vpop.f32.mrf.mxu0
      %v9583 = vadd.f32 %v9187, %v9582
      %v9584 = vpop.f32.mrf.mxu0
      %v9585 = vadd.f32 %v9191, %v9584
      %9586 = vmatprep.mubr.bf16.mxu0 %v9127
      %9587 = vmatmul.mubr.bf16.gmra.mxu0 %v9126
      %v9588 = vpop.f32.mrf.mxu0
      %v9589 = vadd.f32 %v9187, %v9588
      %v9590 = vpop.f32.mrf.mxu0
      %v9591 = vadd.f32 %v9191, %v9590
      %v9592 = vpop.f32.mrf.mxu0
      %v9593 = vadd.f32 %v9187, %v9592
      %v9594 = vpop.f32.mrf.mxu0
      %v9595 = vadd.f32 %v9191, %v9594
      %9596 = vmatprep.mubr.bf16.mxu0 %v9129
      %9597 = vmatmul.mubr.bf16.gmra.mxu0 %v9128
      %v9598 = vpop.f32.mrf.mxu0
      %v9599 = vadd.f32 %v9187, %v9598
      %v9600 = vpop.f32.mrf.mxu0
      %v9601 = vadd.f32 %v9191, %v9600
      %v9602 = vpop.f32.mrf.mxu0
      %v9603 = vadd.f32 %v9187, %v9602
      %v9604 = vpop.f32.mrf.mxu0
      %v9605 = vadd.f32 %v9191, %v9604
      %9606 = vmatprep.mubr.bf16.mxu0 %v9131
      %9607 = vmatmul.mubr.bf16.gmra.mxu0 %v9130
      %v9608 = vpop.f32.mrf.mxu0
      %v9609 = vadd.f32 %v9187, %v9608
      %v9610 = vpop.f32.mrf.mxu0
      %v9611 = vadd.f32 %v9191, %v9610
      %v9612 = vpop.f32.mrf.mxu0
      %v9613 = vadd.f32 %v9187, %v9612
      %v9614 = vpop.f32.mrf.mxu0
      %v9615 = vadd.f32 %v9191, %v9614
      %9616 = vmatprep.mubr.bf16.mxu0 %v9133
      %9617 = vmatmul.mubr.bf16.gmra.mxu0 %v9132
      %v9618 = vpop.f32.mrf.mxu0
      %v9619 = vadd.f32 %v9187, %v9618
      %v9620 = vpop.f32.mrf.mxu0
      %v9621 = vadd.f32 %v9191, %v9620
      %v9622 = vpop.f32.mrf.mxu0
      %v9623 = vadd.f32 %v9187, %v9622
      %v9624 = vpop.f32.mrf.mxu0
      %v9625 = vadd.f32 %v9191, %v9624
      %9626 = vmatprep.mubr.bf16.mxu0 %v9135
      %9627 = vmatmul.mubr.bf16.gmra.mxu0 %v9134
      %v9628 = vpop.f32.mrf.mxu0
      %v9629 = vadd.f32 %v9187, %v9628
      %v9630 = vpop.f32.mrf.mxu0
      %v9631 = vadd.f32 %v9191, %v9630
      %v9632 = vpop.f32.mrf.mxu0
      %v9633 = vadd.f32 %v9187, %v9632
      %v9634 = vpop.f32.mrf.mxu0
      %v9635 = vadd.f32 %v9191, %v9634
      %9636 = vmatprep.mubr.bf16.mxu0 %v9137
      %9637 = vmatmul.mubr.bf16.gmra.mxu0 %v9136
      %v9638 = vpop.f32.mrf.mxu0
      %v9639 = vadd.f32 %v9187, %v9638
      %v9640 = vpop.f32.mrf.mxu0
      %v9641 = vadd.f32 %v9191, %v9640
      %v9642 = vpop.f32.mrf.mxu0
      %v9643 = vadd.f32 %v9187, %v9642
      %v9644 = vpop.f32.mrf.mxu0
      %v9645 = vadd.f32 %v9191, %v9644
      %9646 = vmatprep.mubr.bf16.mxu0 %v9139
      %9647 = vmatmul.mubr.bf16.gmra.mxu0 %v9138
      %v9648 = vpop.f32.mrf.mxu0
      %v9649 = vadd.f32 %v9187, %v9648
      %v9650 = vpop.f32.mrf.mxu0
      %v9651 = vadd.f32 %v9191, %v9650
      %v9652 = vpop.f32.mrf.mxu0
      %v9653 = vadd.f32 %v9187, %v9652
      %v9654 = vpop.f32.mrf.mxu0
      %v9655 = vadd.f32 %v9191, %v9654
      %9656 = vmatprep.mubr.bf16.mxu0 %v9141
      %9657 = vmatmul.mubr.bf16.gmra.mxu0 %v9140
      %v9658 = vpop.f32.mrf.mxu0
      %v9659 = vadd.f32 %v9187, %v9658
      %v9660 = vpop.f32.mrf.mxu0
      %v9661 = vadd.f32 %v9191, %v9660
      %v9662 = vpop.f32.mrf.mxu0
      %v9663 = vadd.f32 %v9187, %v9662
      %v9664 = vpop.f32.mrf.mxu0
      %v9665 = vadd.f32 %v9191, %v9664
      %9666 = vmatprep.mubr.bf16.mxu0 %v9143
      %9667 = vmatmul.mubr.bf16.gmra.mxu0 %v9142
      %v9668 = vpop.f32.mrf.mxu0
      %v9669 = vadd.f32 %v9187, %v9668
      %v9670 = vpop.f32.mrf.mxu0
      %v9671 = vadd.f32 %v9191, %v9670
      %v9672 = vpop.f32.mrf.mxu0
      %v9673 = vadd.f32 %v9187, %v9672
      %v9674 = vpop.f32.mrf.mxu0
      %v9675 = vadd.f32 %v9191, %v9674
      %9676 = vmatprep.mubr.bf16.mxu0 %v9145
      %9677 = vmatmul.mubr.bf16.gmra.mxu0 %v9144
      %v9678 = vpop.f32.mrf.mxu0
      %v9679 = vadd.f32 %v9187, %v9678
      %v9680 = vpop.f32.mrf.mxu0
      %v9681 = vadd.f32 %v9191, %v9680
      %v9682 = vpop.f32.mrf.mxu0
      %v9683 = vadd.f32 %v9187, %v9682
      %v9684 = vpop.f32.mrf.mxu0
      %v9685 = vadd.f32 %v9191, %v9684
      %9686 = vmatprep.mubr.bf16.mxu0 %v9147
      %9687 = vmatmul.mubr.bf16.gmra.mxu0 %v9146
      %v9688 = vpop.f32.mrf.mxu0
      %v9689 = vadd.f32 %v9187, %v9688
      %v9690 = vpop.f32.mrf.mxu0
      %v9691 = vadd.f32 %v9191, %v9690
      %v9692 = vpop.f32.mrf.mxu0
      %v9693 = vadd.f32 %v9187, %v9692
      %v9694 = vpop.f32.mrf.mxu0
      %v9695 = vadd.f32 %v9191, %v9694
      %9696 = vmatprep.mubr.bf16.mxu0 %v9149
      %9697 = vmatmul.mubr.bf16.gmra.mxu0 %v9148
      %v9698 = vpop.f32.mrf.mxu0
      %v9699 = vadd.f32 %v9187, %v9698
      %v9700 = vpop.f32.mrf.mxu0
      %v9701 = vadd.f32 %v9191, %v9700
      %v9702 = vpop.f32.mrf.mxu0
      %v9703 = vadd.f32 %v9187, %v9702
      %v9704 = vpop.f32.mrf.mxu0
      %v9705 = vadd.f32 %v9191, %v9704
      %9706 = vdwg.mxu0
      %v9707 = vmax.f32 %v9389, 0.0
      %v9708 = vmax.f32 %v9391, 0.0
      %v9709 = vmax.f32 %v9393, 0.0
      %v9710 = vmax.f32 %v9395, 0.0
      %v9711 = vmax.f32 %v9399, 0.0
      %v9712 = vmax.f32 %v9401, 0.0
      %v9713 = vmax.f32 %v9403, 0.0
      %v9714 = vmax.f32 %v9405, 0.0
      %v9715 = vmax.f32 %v9409, 0.0
      %v9716 = vmax.f32 %v9411, 0.0
      %v9717 = vmax.f32 %v9413, 0.0
      %v9718 = vmax.f32 %v9415, 0.0
      %v9719 = vmax.f32 %v9419, 0.0
      %v9720 = vmax.f32 %v9421, 0.0
      %v9721 = vmax.f32 %v9423, 0.0
      %v9722 = vmax.f32 %v9425, 0.0
      %v9723 = vmax.f32 %v9429, 0.0
      %v9724 = vmax.f32 %v9431, 0.0
      %v9725 = vmax.f32 %v9433, 0.0
      %v9726 = vmax.f32 %v9435, 0.0
      %v9727 = vmax.f32 %v9439, 0.0
      %v9728 = vmax.f32 %v9441, 0.0
      %v9729 = vmax.f32 %v9443, 0.0
      %v9730 = vmax.f32 %v9445, 0.0
      %v9731 = vmax.f32 %v9449, 0.0
      %v9732 = vmax.f32 %v9451, 0.0
      %v9733 = vmax.f32 %v9453, 0.0
      %v9734 = vmax.f32 %v9455, 0.0
      %v9735 = vmax.f32 %v9459, 0.0
      %v9736 = vmax.f32 %v9461, 0.0
      %v9737 = vmax.f32 %v9463, 0.0
      %v9738 = vmax.f32 %v9465, 0.0
      %v9739 = vmax.f32 %v9469, 0.0
      %v9740 = vmax.f32 %v9471, 0.0
      %v9741 = vmax.f32 %v9473, 0.0
      %v9742 = vmax.f32 %v9475, 0.0
      %v9743 = vmax.f32 %v9479, 0.0
      %v9744 = vmax.f32 %v9481, 0.0
      %v9745 = vmax.f32 %v9483, 0.0
      %v9746 = vmax.f32 %v9485, 0.0
      %v9747 = vmax.f32 %v9489, 0.0
      %v9748 = vmax.f32 %v9491, 0.0
      %v9749 = vmax.f32 %v9493, 0.0
      %v9750 = vmax.f32 %v9495, 0.0
      %v9751 = vmax.f32 %v9499, 0.0
      %v9752 = vmax.f32 %v9501, 0.0
      %v9753 = vmax.f32 %v9503, 0.0
      %v9754 = vmax.f32 %v9505, 0.0
      %v9755 = vmax.f32 %v9509, 0.0
      %v9756 = vmax.f32 %v9511, 0.0
      %v9757 = vmax.f32 %v9513, 0.0
      %v9758 = vmax.f32 %v9515, 0.0
      %v9759 = vmax.f32 %v9519, 0.0
      %v9760 = vmax.f32 %v9521, 0.0
      %v9761 = vmax.f32 %v9523, 0.0
      %v9762 = vmax.f32 %v9525, 0.0
      %v9763 = vmax.f32 %v9529, 0.0
      %v9764 = vmax.f32 %v9531, 0.0
      %v9765 = vmax.f32 %v9533, 0.0
      %v9766 = vmax.f32 %v9535, 0.0
      %v9767 = vmax.f32 %v9539, 0.0
      %v9768 = vmax.f32 %v9541, 0.0
      %v9769 = vmax.f32 %v9543, 0.0
      %v9770 = vmax.f32 %v9545, 0.0
      %v9771 = vmax.f32 %v9549, 0.0
      %v9772 = vmax.f32 %v9551, 0.0
      %v9773 = vmax.f32 %v9553, 0.0
      %v9774 = vmax.f32 %v9555, 0.0
      %v9775 = vmax.f32 %v9559, 0.0
      %v9776 = vmax.f32 %v9561, 0.0
      %v9777 = vmax.f32 %v9563, 0.0
      %v9778 = vmax.f32 %v9565, 0.0
      %v9779 = vmax.f32 %v9569, 0.0
      %v9780 = vmax.f32 %v9571, 0.0
      %v9781 = vmax.f32 %v9573, 0.0
      %v9782 = vmax.f32 %v9575, 0.0
      %v9783 = vmax.f32 %v9579, 0.0
      %v9784 = vmax.f32 %v9581, 0.0
      %v9785 = vmax.f32 %v9583, 0.0
      %v9786 = vmax.f32 %v9585, 0.0
      %v9787 = vmax.f32 %v9589, 0.0
      %v9788 = vmax.f32 %v9591, 0.0
      %v9789 = vmax.f32 %v9593, 0.0
      %v9790 = vmax.f32 %v9595, 0.0
      %v9791 = vmax.f32 %v9599, 0.0
      %v9792 = vmax.f32 %v9601, 0.0
      %v9793 = vmax.f32 %v9603, 0.0
      %v9794 = vmax.f32 %v9605, 0.0
      %v9795 = vmax.f32 %v9609, 0.0
      %v9796 = vmax.f32 %v9611, 0.0
      %v9797 = vmax.f32 %v9613, 0.0
      %v9798 = vmax.f32 %v9615, 0.0
      %v9799 = vmax.f32 %v9619, 0.0
      %v9800 = vmax.f32 %v9621, 0.0
      %v9801 = vmax.f32 %v9623, 0.0
      %v9802 = vmax.f32 %v9625, 0.0
      %v9803 = vmax.f32 %v9629, 0.0
      %v9804 = vmax.f32 %v9631, 0.0
      %v9805 = vmax.f32 %v9633, 0.0
      %v9806 = vmax.f32 %v9635, 0.0
      %v9807 = vmax.f32 %v9639, 0.0
      %v9808 = vmax.f32 %v9641, 0.0
      %v9809 = vmax.f32 %v9643, 0.0
      %v9810 = vmax.f32 %v9645, 0.0
      %v9811 = vmax.f32 %v9649, 0.0
      %v9812 = vmax.f32 %v9651, 0.0
      %v9813 = vmax.f32 %v9653, 0.0
      %v9814 = vmax.f32 %v9655, 0.0
      %v9815 = vmax.f32 %v9659, 0.0
      %v9816 = vmax.f32 %v9661, 0.0
      %v9817 = vmax.f32 %v9663, 0.0
      %v9818 = vmax.f32 %v9665, 0.0
      %v9819 = vmax.f32 %v9669, 0.0
      %v9820 = vmax.f32 %v9671, 0.0
      %v9821 = vmax.f32 %v9673, 0.0
      %v9822 = vmax.f32 %v9675, 0.0
      %v9823 = vmax.f32 %v9679, 0.0
      %v9824 = vmax.f32 %v9681, 0.0
      %v9825 = vmax.f32 %v9683, 0.0
      %v9826 = vmax.f32 %v9685, 0.0
      %v9827 = vmax.f32 %v9689, 0.0
      %v9828 = vmax.f32 %v9691, 0.0
      %v9829 = vmax.f32 %v9693, 0.0
      %v9830 = vmax.f32 %v9695, 0.0
      %v9831 = vmax.f32 %v9699, 0.0
      %v9832 = vmax.f32 %v9701, 0.0
      %v9833 = vmax.f32 %v9703, 0.0
      %v9834 = vmax.f32 %v9705, 0.0
      %v9835 = vpack.c.bf16 %v9709, %v9707
      %v9836 = vpack.c.bf16 %v9710, %v9708
      %v9837 = vpack.c.bf16 %v9713, %v9711
      %v9838 = vpack.c.bf16 %v9714, %v9712
      %v9839 = vpack.c.bf16 %v9717, %v9715
      %v9840 = vpack.c.bf16 %v9718, %v9716
      %v9841 = vpack.c.bf16 %v9721, %v9719
      %v9842 = vpack.c.bf16 %v9722, %v9720
      %v9843 = vpack.c.bf16 %v9725, %v9723
      %v9844 = vpack.c.bf16 %v9726, %v9724
      %v9845 = vpack.c.bf16 %v9729, %v9727
      %v9846 = vpack.c.bf16 %v9730, %v9728
      %v9847 = vpack.c.bf16 %v9733, %v9731
      %v9848 = vpack.c.bf16 %v9734, %v9732
      %v9849 = vpack.c.bf16 %v9737, %v9735
      %v9850 = vpack.c.bf16 %v9738, %v9736
      %v9851 = vpack.c.bf16 %v9741, %v9739
      %v9852 = vpack.c.bf16 %v9742, %v9740
      %v9853 = vpack.c.bf16 %v9745, %v9743
      %v9854 = vpack.c.bf16 %v9746, %v9744
      %v9855 = vpack.c.bf16 %v9749, %v9747
      %v9856 = vpack.c.bf16 %v9750, %v9748
      %v9857 = vpack.c.bf16 %v9753, %v9751
      %v9858 = vpack.c.bf16 %v9754, %v9752
      %v9859 = vpack.c.bf16 %v9757, %v9755
      %v9860 = vpack.c.bf16 %v9758, %v9756
      %v9861 = vpack.c.bf16 %v9761, %v9759
      %v9862 = vpack.c.bf16 %v9762, %v9760
      %v9863 = vpack.c.bf16 %v9765, %v9763
      %v9864 = vpack.c.bf16 %v9766, %v9764
      %v9865 = vpack.c.bf16 %v9769, %v9767
      %v9866 = vpack.c.bf16 %v9770, %v9768
      %v9867 = vpack.c.bf16 %v9773, %v9771
      %v9868 = vpack.c.bf16 %v9774, %v9772
      %v9869 = vpack.c.bf16 %v9777, %v9775
      %v9870 = vpack.c.bf16 %v9778, %v9776
      %v9871 = vpack.c.bf16 %v9781, %v9779
      %v9872 = vpack.c.bf16 %v9782, %v9780
      %v9873 = vpack.c.bf16 %v9785, %v9783
      %v9874 = vpack.c.bf16 %v9786, %v9784
      %v9875 = vpack.c.bf16 %v9789, %v9787
      %v9876 = vpack.c.bf16 %v9790, %v9788
      %v9877 = vpack.c.bf16 %v9793, %v9791
      %v9878 = vpack.c.bf16 %v9794, %v9792
      %v9879 = vpack.c.bf16 %v9797, %v9795
      %v9880 = vpack.c.bf16 %v9798, %v9796
      %v9881 = vpack.c.bf16 %v9801, %v9799
      %v9882 = vpack.c.bf16 %v9802, %v9800
      %v9883 = vpack.c.bf16 %v9805, %v9803
      %v9884 = vpack.c.bf16 %v9806, %v9804
      %v9885 = vpack.c.bf16 %v9809, %v9807
      %v9886 = vpack.c.bf16 %v9810, %v9808
      %v9887 = vpack.c.bf16 %v9813, %v9811
      %v9888 = vpack.c.bf16 %v9814, %v9812
      %v9889 = vpack.c.bf16 %v9817, %v9815
      %v9890 = vpack.c.bf16 %v9818, %v9816
      %v9891 = vpack.c.bf16 %v9821, %v9819
      %v9892 = vpack.c.bf16 %v9822, %v9820
      %v9893 = vpack.c.bf16 %v9825, %v9823
      %v9894 = vpack.c.bf16 %v9826, %v9824
      %v9895 = vpack.c.bf16 %v9829, %v9827
      %v9896 = vpack.c.bf16 %v9830, %v9828
      %v9897 = vpack.c.bf16 %v9833, %v9831
      %v9898 = vpack.c.bf16 %v9834, %v9832
      %v9899 = vld [vmem:[%s7] sm:$0xff]
      %v9900 = vld [vmem:[%s7 + $0x8] sm:$0xff]
      %v9901 = vld [vmem:[%s7 + $0x10] sm:$0xff]
      %v9902 = vld [vmem:[%s7 + $0x18] sm:$0xff]
      %v9903 = vld [vmem:[%s7 + $0x20] sm:$0xff]
      %v9904 = vld [vmem:[%s7 + $0x28] sm:$0xff]
      %v9905 = vld [vmem:[%s7 + $0x30] sm:$0xff]
      %v9906 = vld [vmem:[%s7 + $0x38] sm:$0xff]
      %v9907 = vld [vmem:[%s7 + $0x40] sm:$0xff]
      %v9908 = vld [vmem:[%s7 + $0x48] sm:$0xff]
      %v9909 = vld [vmem:[%s7 + $0x50] sm:$0xff]
      %v9910 = vld [vmem:[%s7 + $0x58] sm:$0xff]
      %v9911 = vld [vmem:[%s7 + $0x60] sm:$0xff]
      %v9912 = vld [vmem:[%s7 + $0x68] sm:$0xff]
      %v9913 = vld [vmem:[%s7 + $0x70] sm:$0xff]
      %v9914 = vld [vmem:[%s7 + $0x78] sm:$0xff]
      %v9915 = vld [vmem:[%s7 + $0x80] sm:$0xff]
      %v9916 = vld [vmem:[%s7 + $0x88] sm:$0xff]
      %v9917 = vld [vmem:[%s7 + $0x90] sm:$0xff]
      %v9918 = vld [vmem:[%s7 + $0x98] sm:$0xff]
      %v9919 = vld [vmem:[%s7 + $0xa0] sm:$0xff]
      %v9920 = vld [vmem:[%s7 + $0xa8] sm:$0xff]
      %v9921 = vld [vmem:[%s7 + $0xb0] sm:$0xff]
      %v9922 = vld [vmem:[%s7 + $0xb8] sm:$0xff]
      %v9923 = vld [vmem:[%s7 + $0xc0] sm:$0xff]
      %v9924 = vld [vmem:[%s7 + $0xc8] sm:$0xff]
      %v9925 = vld [vmem:[%s7 + $0xd0] sm:$0xff]
      %v9926 = vld [vmem:[%s7 + $0xd8] sm:$0xff]
      %v9927 = vld [vmem:[%s7 + $0xe0] sm:$0xff]
      %v9928 = vld [vmem:[%s7 + $0xe8] sm:$0xff]
      %v9929 = vld [vmem:[%s7 + $0xf0] sm:$0xff]
      %v9930 = vld [vmem:[%s7 + $0xf8] sm:$0xff]
      %v9931 = vld [vmem:[%s8] sm:$0x3]
      %v9933 = vlaneseq
      %v9934 = vshrl.u32 %v9933, 7
      %v9935 = vsub.s32 0, %v9934
      %v9936 = vrot.slane %v9931, %v9935
      %v9937 = vlaneseq
      %v9938 = vshrl.u32 %v9937, 7
      %v9939 = vsub.s32 1, %v9938
      %v9940 = vrot.slane %v9931, %v9939
      %v9975 = vunpack.c.l.b16 %v9899
      %v9976 = vunpack.c.h.b16 %v9899
      %v9977 = vunpack.c.l.b16 %v9900
      %v9978 = vunpack.c.h.b16 %v9900
      %v9979 = vunpack.c.l.b16 %v9901
      %v9980 = vunpack.c.h.b16 %v9901
      %v9981 = vunpack.c.l.b16 %v9902
      %v9982 = vunpack.c.h.b16 %v9902
      %v9983 = vunpack.c.l.b16 %v9903
      %v9984 = vunpack.c.h.b16 %v9903
      %v9985 = vunpack.c.l.b16 %v9904
      %v9986 = vunpack.c.h.b16 %v9904
      %v9987 = vunpack.c.l.b16 %v9905
      %v9988 = vunpack.c.h.b16 %v9905
      %v9989 = vunpack.c.l.b16 %v9906
      %v9990 = vunpack.c.h.b16 %v9906
      %v9991 = vunpack.c.l.b16 %v9907
      %v9992 = vunpack.c.h.b16 %v9907
      %v9993 = vunpack.c.l.b16 %v9908
      %v9994 = vunpack.c.h.b16 %v9908
      %v9995 = vunpack.c.l.b16 %v9909
      %v9996 = vunpack.c.h.b16 %v9909
      %v9997 = vunpack.c.l.b16 %v9910
      %v9998 = vunpack.c.h.b16 %v9910
      %v9999 = vunpack.c.l.b16 %v9911
      %v10000 = vunpack.c.h.b16 %v9911
      %v10001 = vunpack.c.l.b16 %v9912
      %v10002 = vunpack.c.h.b16 %v9912
      %v10003 = vunpack.c.l.b16 %v9913
      %v10004 = vunpack.c.h.b16 %v9913
      %v10005 = vunpack.c.l.b16 %v9914
      %v10006 = vunpack.c.h.b16 %v9914
      %v10007 = vunpack.c.l.b16 %v9915
      %v10008 = vunpack.c.h.b16 %v9915
      %v10009 = vunpack.c.l.b16 %v9916
      %v10010 = vunpack.c.h.b16 %v9916
      %v10011 = vunpack.c.l.b16 %v9917
      %v10012 = vunpack.c.h.b16 %v9917
      %v10013 = vunpack.c.l.b16 %v9918
      %v10014 = vunpack.c.h.b16 %v9918
      %v10015 = vunpack.c.l.b16 %v9919
      %v10016 = vunpack.c.h.b16 %v9919
      %v10017 = vunpack.c.l.b16 %v9920
      %v10018 = vunpack.c.h.b16 %v9920
      %v10019 = vunpack.c.l.b16 %v9921
      %v10020 = vunpack.c.h.b16 %v9921
      %v10021 = vunpack.c.l.b16 %v9922
      %v10022 = vunpack.c.h.b16 %v9922
      %v10023 = vunpack.c.l.b16 %v9923
      %v10024 = vunpack.c.h.b16 %v9923
      %v10025 = vunpack.c.l.b16 %v9924
      %v10026 = vunpack.c.h.b16 %v9924
      %v10027 = vunpack.c.l.b16 %v9925
      %v10028 = vunpack.c.h.b16 %v9925
      %v10029 = vunpack.c.l.b16 %v9926
      %v10030 = vunpack.c.h.b16 %v9926
      %v10031 = vunpack.c.l.b16 %v9927
      %v10032 = vunpack.c.h.b16 %v9927
      %v10033 = vunpack.c.l.b16 %v9928
      %v10034 = vunpack.c.h.b16 %v9928
      %v10035 = vunpack.c.l.b16 %v9929
      %v10036 = vunpack.c.h.b16 %v9929
      %v10037 = vunpack.c.l.b16 %v9930
      %v10038 = vunpack.c.h.b16 %v9930
      %v10039 = vpack.c.b16 %v9977, %v9975
      %v10040 = vpack.c.b16 %v9978, %v9976
      %v10041 = vpack.c.b16 %v9981, %v9979
      %v10042 = vpack.c.b16 %v9982, %v9980
      %v10043 = vpack.c.b16 %v9985, %v9983
      %v10044 = vpack.c.b16 %v9986, %v9984
      %v10045 = vpack.c.b16 %v9989, %v9987
      %v10046 = vpack.c.b16 %v9990, %v9988
      %v10047 = vpack.c.b16 %v9993, %v9991
      %v10048 = vpack.c.b16 %v9994, %v9992
      %v10049 = vpack.c.b16 %v9997, %v9995
      %v10050 = vpack.c.b16 %v9998, %v9996
      %v10051 = vpack.c.b16 %v10001, %v9999
      %v10052 = vpack.c.b16 %v10002, %v10000
      %v10053 = vpack.c.b16 %v10005, %v10003
      %v10054 = vpack.c.b16 %v10006, %v10004
      %v10055 = vpack.c.b16 %v10009, %v10007
      %v10056 = vpack.c.b16 %v10010, %v10008
      %v10057 = vpack.c.b16 %v10013, %v10011
      %v10058 = vpack.c.b16 %v10014, %v10012
      %v10059 = vpack.c.b16 %v10017, %v10015
      %v10060 = vpack.c.b16 %v10018, %v10016
      %v10061 = vpack.c.b16 %v10021, %v10019
      %v10062 = vpack.c.b16 %v10022, %v10020
      %v10063 = vpack.c.b16 %v10025, %v10023
      %v10064 = vpack.c.b16 %v10026, %v10024
      %v10065 = vpack.c.b16 %v10029, %v10027
      %v10066 = vpack.c.b16 %v10030, %v10028
      %v10067 = vpack.c.b16 %v10033, %v10031
      %v10068 = vpack.c.b16 %v10034, %v10032
      %v10069 = vpack.c.b16 %v10037, %v10035
      %v10070 = vpack.c.b16 %v10038, %v10036
      %10103 = vmatprep.subr.bf16.mxu0 %v10054
      %10104 = vmatpush1.bf16.msra.mxu0 %v10053
      %10105 = vmatprep.subr.bf16.mxu0 %v10052
      %10106 = vmatpush1.bf16.msra.mxu0 %v10051
      %10107 = vmatprep.subr.bf16.mxu0 %v10050
      %10108 = vmatpush1.bf16.msra.mxu0 %v10049
      %10109 = vmatprep.subr.bf16.mxu0 %v10048
      %10110 = vmatpush1.bf16.msra.mxu0 %v10047
      %10111 = vmatprep.subr.bf16.mxu0 %v10046
      %10112 = vmatpush1.bf16.msra.mxu0 %v10045
      %10113 = vmatprep.subr.bf16.mxu0 %v10044
      %10114 = vmatpush1.bf16.msra.mxu0 %v10043
      %10115 = vmatprep.subr.bf16.mxu0 %v10042
      %10116 = vmatpush1.bf16.msra.mxu0 %v10041
      %10117 = vmatprep.subr.bf16.mxu0 %v10040
      %10118 = vmatpush1.bf16.msra.mxu0 %v10039
      %10119 = vmatprep.subr.bf16.mxu0 %v10070
      %10120 = vmatpush2.bf16.msra.mxu0 %v10069
      %10121 = vmatprep.subr.bf16.mxu0 %v10068
      %10122 = vmatpush2.bf16.msra.mxu0 %v10067
      %10123 = vmatprep.subr.bf16.mxu0 %v10066
      %10124 = vmatpush2.bf16.msra.mxu0 %v10065
      %10125 = vmatprep.subr.bf16.mxu0 %v10064
      %10126 = vmatpush2.bf16.msra.mxu0 %v10063
      %10127 = vmatprep.subr.bf16.mxu0 %v10062
      %10128 = vmatpush2.bf16.msra.mxu0 %v10061
      %10129 = vmatprep.subr.bf16.mxu0 %v10060
      %10130 = vmatpush2.bf16.msra.mxu0 %v10059
      %10131 = vmatprep.subr.bf16.mxu0 %v10058
      %10132 = vmatpush2.bf16.msra.mxu0 %v10057
      %10133 = vmatprep.subr.bf16.mxu0 %v10056
      %10134 = vmatpush2.bf16.msra.mxu0 %v10055
      %10135 = vmatprep.mubr.bf16.mxu0 %v9836
      %10136 = vmatmul.mubr.bf16.gmra.mxu0 %v9835
      %v10137 = vpop.f32.mrf.mxu0
      %v10138 = vadd.f32 %v9936, %v10137
      %v10139 = vpop.f32.mrf.mxu0
      %v10140 = vadd.f32 %v9940, %v10139
      %v10141 = vpop.f32.mrf.mxu0
      %v10142 = vadd.f32 %v9936, %v10141
      %v10143 = vpop.f32.mrf.mxu0
      %v10144 = vadd.f32 %v9940, %v10143
      %10145 = vmatprep.mubr.bf16.mxu0 %v9838
      %10146 = vmatmul.mubr.bf16.gmra.mxu0 %v9837
      %v10147 = vpop.f32.mrf.mxu0
      %v10148 = vadd.f32 %v9936, %v10147
      %v10149 = vpop.f32.mrf.mxu0
      %v10150 = vadd.f32 %v9940, %v10149
      %v10151 = vpop.f32.mrf.mxu0
      %v10152 = vadd.f32 %v9936, %v10151
      %v10153 = vpop.f32.mrf.mxu0
      %v10154 = vadd.f32 %v9940, %v10153
      %10155 = vmatprep.mubr.bf16.mxu0 %v9840
      %10156 = vmatmul.mubr.bf16.gmra.mxu0 %v9839
      %v10157 = vpop.f32.mrf.mxu0
      %v10158 = vadd.f32 %v9936, %v10157
      %v10159 = vpop.f32.mrf.mxu0
      %v10160 = vadd.f32 %v9940, %v10159
      %v10161 = vpop.f32.mrf.mxu0
      %v10162 = vadd.f32 %v9936, %v10161
      %v10163 = vpop.f32.mrf.mxu0
      %v10164 = vadd.f32 %v9940, %v10163
      %10165 = vmatprep.mubr.bf16.mxu0 %v9842
      %10166 = vmatmul.mubr.bf16.gmra.mxu0 %v9841
      %v10167 = vpop.f32.mrf.mxu0
      %v10168 = vadd.f32 %v9936, %v10167
      %v10169 = vpop.f32.mrf.mxu0
      %v10170 = vadd.f32 %v9940, %v10169
      %v10171 = vpop.f32.mrf.mxu0
      %v10172 = vadd.f32 %v9936, %v10171
      %v10173 = vpop.f32.mrf.mxu0
      %v10174 = vadd.f32 %v9940, %v10173
      %10175 = vmatprep.mubr.bf16.mxu0 %v9844
      %10176 = vmatmul.mubr.bf16.gmra.mxu0 %v9843
      %v10177 = vpop.f32.mrf.mxu0
      %v10178 = vadd.f32 %v9936, %v10177
      %v10179 = vpop.f32.mrf.mxu0
      %v10180 = vadd.f32 %v9940, %v10179
      %v10181 = vpop.f32.mrf.mxu0
      %v10182 = vadd.f32 %v9936, %v10181
      %v10183 = vpop.f32.mrf.mxu0
      %v10184 = vadd.f32 %v9940, %v10183
      %10185 = vmatprep.mubr.bf16.mxu0 %v9846
      %10186 = vmatmul.mubr.bf16.gmra.mxu0 %v9845
      %v10187 = vpop.f32.mrf.mxu0
      %v10188 = vadd.f32 %v9936, %v10187
      %v10189 = vpop.f32.mrf.mxu0
      %v10190 = vadd.f32 %v9940, %v10189
      %v10191 = vpop.f32.mrf.mxu0
      %v10192 = vadd.f32 %v9936, %v10191
      %v10193 = vpop.f32.mrf.mxu0
      %v10194 = vadd.f32 %v9940, %v10193
      %10195 = vmatprep.mubr.bf16.mxu0 %v9848
      %10196 = vmatmul.mubr.bf16.gmra.mxu0 %v9847
      %v10197 = vpop.f32.mrf.mxu0
      %v10198 = vadd.f32 %v9936, %v10197
      %v10199 = vpop.f32.mrf.mxu0
      %v10200 = vadd.f32 %v9940, %v10199
      %v10201 = vpop.f32.mrf.mxu0
      %v10202 = vadd.f32 %v9936, %v10201
      %v10203 = vpop.f32.mrf.mxu0
      %v10204 = vadd.f32 %v9940, %v10203
      %10205 = vmatprep.mubr.bf16.mxu0 %v9850
      %10206 = vmatmul.mubr.bf16.gmra.mxu0 %v9849
      %v10207 = vpop.f32.mrf.mxu0
      %v10208 = vadd.f32 %v9936, %v10207
      %v10209 = vpop.f32.mrf.mxu0
      %v10210 = vadd.f32 %v9940, %v10209
      %v10211 = vpop.f32.mrf.mxu0
      %v10212 = vadd.f32 %v9936, %v10211
      %v10213 = vpop.f32.mrf.mxu0
      %v10214 = vadd.f32 %v9940, %v10213
      %10215 = vmatprep.mubr.bf16.mxu0 %v9852
      %10216 = vmatmul.mubr.bf16.gmra.mxu0 %v9851
      %v10217 = vpop.f32.mrf.mxu0
      %v10218 = vadd.f32 %v9936, %v10217
      %v10219 = vpop.f32.mrf.mxu0
      %v10220 = vadd.f32 %v9940, %v10219
      %v10221 = vpop.f32.mrf.mxu0
      %v10222 = vadd.f32 %v9936, %v10221
      %v10223 = vpop.f32.mrf.mxu0
      %v10224 = vadd.f32 %v9940, %v10223
      %10225 = vmatprep.mubr.bf16.mxu0 %v9854
      %10226 = vmatmul.mubr.bf16.gmra.mxu0 %v9853
      %v10227 = vpop.f32.mrf.mxu0
      %v10228 = vadd.f32 %v9936, %v10227
      %v10229 = vpop.f32.mrf.mxu0
      %v10230 = vadd.f32 %v9940, %v10229
      %v10231 = vpop.f32.mrf.mxu0
      %v10232 = vadd.f32 %v9936, %v10231
      %v10233 = vpop.f32.mrf.mxu0
      %v10234 = vadd.f32 %v9940, %v10233
      %10235 = vmatprep.mubr.bf16.mxu0 %v9856
      %10236 = vmatmul.mubr.bf16.gmra.mxu0 %v9855
      %v10237 = vpop.f32.mrf.mxu0
      %v10238 = vadd.f32 %v9936, %v10237
      %v10239 = vpop.f32.mrf.mxu0
      %v10240 = vadd.f32 %v9940, %v10239
      %v10241 = vpop.f32.mrf.mxu0
      %v10242 = vadd.f32 %v9936, %v10241
      %v10243 = vpop.f32.mrf.mxu0
      %v10244 = vadd.f32 %v9940, %v10243
      %10245 = vmatprep.mubr.bf16.mxu0 %v9858
      %10246 = vmatmul.mubr.bf16.gmra.mxu0 %v9857
      %v10247 = vpop.f32.mrf.mxu0
      %v10248 = vadd.f32 %v9936, %v10247
      %v10249 = vpop.f32.mrf.mxu0
      %v10250 = vadd.f32 %v9940, %v10249
      %v10251 = vpop.f32.mrf.mxu0
      %v10252 = vadd.f32 %v9936, %v10251
      %v10253 = vpop.f32.mrf.mxu0
      %v10254 = vadd.f32 %v9940, %v10253
      %10255 = vmatprep.mubr.bf16.mxu0 %v9860
      %10256 = vmatmul.mubr.bf16.gmra.mxu0 %v9859
      %v10257 = vpop.f32.mrf.mxu0
      %v10258 = vadd.f32 %v9936, %v10257
      %v10259 = vpop.f32.mrf.mxu0
      %v10260 = vadd.f32 %v9940, %v10259
      %v10261 = vpop.f32.mrf.mxu0
      %v10262 = vadd.f32 %v9936, %v10261
      %v10263 = vpop.f32.mrf.mxu0
      %v10264 = vadd.f32 %v9940, %v10263
      %10265 = vmatprep.mubr.bf16.mxu0 %v9862
      %10266 = vmatmul.mubr.bf16.gmra.mxu0 %v9861
      %v10267 = vpop.f32.mrf.mxu0
      %v10268 = vadd.f32 %v9936, %v10267
      %v10269 = vpop.f32.mrf.mxu0
      %v10270 = vadd.f32 %v9940, %v10269
      %v10271 = vpop.f32.mrf.mxu0
      %v10272 = vadd.f32 %v9936, %v10271
      %v10273 = vpop.f32.mrf.mxu0
      %v10274 = vadd.f32 %v9940, %v10273
      %10275 = vmatprep.mubr.bf16.mxu0 %v9864
      %10276 = vmatmul.mubr.bf16.gmra.mxu0 %v9863
      %v10277 = vpop.f32.mrf.mxu0
      %v10278 = vadd.f32 %v9936, %v10277
      %v10279 = vpop.f32.mrf.mxu0
      %v10280 = vadd.f32 %v9940, %v10279
      %v10281 = vpop.f32.mrf.mxu0
      %v10282 = vadd.f32 %v9936, %v10281
      %v10283 = vpop.f32.mrf.mxu0
      %v10284 = vadd.f32 %v9940, %v10283
      %10285 = vmatprep.mubr.bf16.mxu0 %v9866
      %10286 = vmatmul.mubr.bf16.gmra.mxu0 %v9865
      %v10287 = vpop.f32.mrf.mxu0
      %v10288 = vadd.f32 %v9936, %v10287
      %v10289 = vpop.f32.mrf.mxu0
      %v10290 = vadd.f32 %v9940, %v10289
      %v10291 = vpop.f32.mrf.mxu0
      %v10292 = vadd.f32 %v9936, %v10291
      %v10293 = vpop.f32.mrf.mxu0
      %v10294 = vadd.f32 %v9940, %v10293
      %10295 = vmatprep.mubr.bf16.mxu0 %v9868
      %10296 = vmatmul.mubr.bf16.gmra.mxu0 %v9867
      %v10297 = vpop.f32.mrf.mxu0
      %v10298 = vadd.f32 %v9936, %v10297
      %v10299 = vpop.f32.mrf.mxu0
      %v10300 = vadd.f32 %v9940, %v10299
      %v10301 = vpop.f32.mrf.mxu0
      %v10302 = vadd.f32 %v9936, %v10301
      %v10303 = vpop.f32.mrf.mxu0
      %v10304 = vadd.f32 %v9940, %v10303
      %10305 = vmatprep.mubr.bf16.mxu0 %v9870
      %10306 = vmatmul.mubr.bf16.gmra.mxu0 %v9869
      %v10307 = vpop.f32.mrf.mxu0
      %v10308 = vadd.f32 %v9936, %v10307
      %v10309 = vpop.f32.mrf.mxu0
      %v10310 = vadd.f32 %v9940, %v10309
      %v10311 = vpop.f32.mrf.mxu0
      %v10312 = vadd.f32 %v9936, %v10311
      %v10313 = vpop.f32.mrf.mxu0
      %v10314 = vadd.f32 %v9940, %v10313
      %10315 = vmatprep.mubr.bf16.mxu0 %v9872
      %10316 = vmatmul.mubr.bf16.gmra.mxu0 %v9871
      %v10317 = vpop.f32.mrf.mxu0
      %v10318 = vadd.f32 %v9936, %v10317
      %v10319 = vpop.f32.mrf.mxu0
      %v10320 = vadd.f32 %v9940, %v10319
      %v10321 = vpop.f32.mrf.mxu0
      %v10322 = vadd.f32 %v9936, %v10321
      %v10323 = vpop.f32.mrf.mxu0
      %v10324 = vadd.f32 %v9940, %v10323
      %10325 = vmatprep.mubr.bf16.mxu0 %v9874
      %10326 = vmatmul.mubr.bf16.gmra.mxu0 %v9873
      %v10327 = vpop.f32.mrf.mxu0
      %v10328 = vadd.f32 %v9936, %v10327
      %v10329 = vpop.f32.mrf.mxu0
      %v10330 = vadd.f32 %v9940, %v10329
      %v10331 = vpop.f32.mrf.mxu0
      %v10332 = vadd.f32 %v9936, %v10331
      %v10333 = vpop.f32.mrf.mxu0
      %v10334 = vadd.f32 %v9940, %v10333
      %10335 = vmatprep.mubr.bf16.mxu0 %v9876
      %10336 = vmatmul.mubr.bf16.gmra.mxu0 %v9875
      %v10337 = vpop.f32.mrf.mxu0
      %v10338 = vadd.f32 %v9936, %v10337
      %v10339 = vpop.f32.mrf.mxu0
      %v10340 = vadd.f32 %v9940, %v10339
      %v10341 = vpop.f32.mrf.mxu0
      %v10342 = vadd.f32 %v9936, %v10341
      %v10343 = vpop.f32.mrf.mxu0
      %v10344 = vadd.f32 %v9940, %v10343
      %10345 = vmatprep.mubr.bf16.mxu0 %v9878
      %10346 = vmatmul.mubr.bf16.gmra.mxu0 %v9877
      %v10347 = vpop.f32.mrf.mxu0
      %v10348 = vadd.f32 %v9936, %v10347
      %v10349 = vpop.f32.mrf.mxu0
      %v10350 = vadd.f32 %v9940, %v10349
      %v10351 = vpop.f32.mrf.mxu0
      %v10352 = vadd.f32 %v9936, %v10351
      %v10353 = vpop.f32.mrf.mxu0
      %v10354 = vadd.f32 %v9940, %v10353
      %10355 = vmatprep.mubr.bf16.mxu0 %v9880
      %10356 = vmatmul.mubr.bf16.gmra.mxu0 %v9879
      %v10357 = vpop.f32.mrf.mxu0
      %v10358 = vadd.f32 %v9936, %v10357
      %v10359 = vpop.f32.mrf.mxu0
      %v10360 = vadd.f32 %v9940, %v10359
      %v10361 = vpop.f32.mrf.mxu0
      %v10362 = vadd.f32 %v9936, %v10361
      %v10363 = vpop.f32.mrf.mxu0
      %v10364 = vadd.f32 %v9940, %v10363
      %10365 = vmatprep.mubr.bf16.mxu0 %v9882
      %10366 = vmatmul.mubr.bf16.gmra.mxu0 %v9881
      %v10367 = vpop.f32.mrf.mxu0
      %v10368 = vadd.f32 %v9936, %v10367
      %v10369 = vpop.f32.mrf.mxu0
      %v10370 = vadd.f32 %v9940, %v10369
      %v10371 = vpop.f32.mrf.mxu0
      %v10372 = vadd.f32 %v9936, %v10371
      %v10373 = vpop.f32.mrf.mxu0
      %v10374 = vadd.f32 %v9940, %v10373
      %10375 = vmatprep.mubr.bf16.mxu0 %v9884
      %10376 = vmatmul.mubr.bf16.gmra.mxu0 %v9883
      %v10377 = vpop.f32.mrf.mxu0
      %v10378 = vadd.f32 %v9936, %v10377
      %v10379 = vpop.f32.mrf.mxu0
      %v10380 = vadd.f32 %v9940, %v10379
      %v10381 = vpop.f32.mrf.mxu0
      %v10382 = vadd.f32 %v9936, %v10381
      %v10383 = vpop.f32.mrf.mxu0
      %v10384 = vadd.f32 %v9940, %v10383
      %10385 = vmatprep.mubr.bf16.mxu0 %v9886
      %10386 = vmatmul.mubr.bf16.gmra.mxu0 %v9885
      %v10387 = vpop.f32.mrf.mxu0
      %v10388 = vadd.f32 %v9936, %v10387
      %v10389 = vpop.f32.mrf.mxu0
      %v10390 = vadd.f32 %v9940, %v10389
      %v10391 = vpop.f32.mrf.mxu0
      %v10392 = vadd.f32 %v9936, %v10391
      %v10393 = vpop.f32.mrf.mxu0
      %v10394 = vadd.f32 %v9940, %v10393
      %10395 = vmatprep.mubr.bf16.mxu0 %v9888
      %10396 = vmatmul.mubr.bf16.gmra.mxu0 %v9887
      %v10397 = vpop.f32.mrf.mxu0
      %v10398 = vadd.f32 %v9936, %v10397
      %v10399 = vpop.f32.mrf.mxu0
      %v10400 = vadd.f32 %v9940, %v10399
      %v10401 = vpop.f32.mrf.mxu0
      %v10402 = vadd.f32 %v9936, %v10401
      %v10403 = vpop.f32.mrf.mxu0
      %v10404 = vadd.f32 %v9940, %v10403
      %10405 = vmatprep.mubr.bf16.mxu0 %v9890
      %10406 = vmatmul.mubr.bf16.gmra.mxu0 %v9889
      %v10407 = vpop.f32.mrf.mxu0
      %v10408 = vadd.f32 %v9936, %v10407
      %v10409 = vpop.f32.mrf.mxu0
      %v10410 = vadd.f32 %v9940, %v10409
      %v10411 = vpop.f32.mrf.mxu0
      %v10412 = vadd.f32 %v9936, %v10411
      %v10413 = vpop.f32.mrf.mxu0
      %v10414 = vadd.f32 %v9940, %v10413
      %10415 = vmatprep.mubr.bf16.mxu0 %v9892
      %10416 = vmatmul.mubr.bf16.gmra.mxu0 %v9891
      %v10417 = vpop.f32.mrf.mxu0
      %v10418 = vadd.f32 %v9936, %v10417
      %v10419 = vpop.f32.mrf.mxu0
      %v10420 = vadd.f32 %v9940, %v10419
      %v10421 = vpop.f32.mrf.mxu0
      %v10422 = vadd.f32 %v9936, %v10421
      %v10423 = vpop.f32.mrf.mxu0
      %v10424 = vadd.f32 %v9940, %v10423
      %10425 = vmatprep.mubr.bf16.mxu0 %v9894
      %10426 = vmatmul.mubr.bf16.gmra.mxu0 %v9893
      %v10427 = vpop.f32.mrf.mxu0
      %v10428 = vadd.f32 %v9936, %v10427
      %v10429 = vpop.f32.mrf.mxu0
      %v10430 = vadd.f32 %v9940, %v10429
      %v10431 = vpop.f32.mrf.mxu0
      %v10432 = vadd.f32 %v9936, %v10431
      %v10433 = vpop.f32.mrf.mxu0
      %v10434 = vadd.f32 %v9940, %v10433
      %10435 = vmatprep.mubr.bf16.mxu0 %v9896
      %10436 = vmatmul.mubr.bf16.gmra.mxu0 %v9895
      %v10437 = vpop.f32.mrf.mxu0
      %v10438 = vadd.f32 %v9936, %v10437
      %v10439 = vpop.f32.mrf.mxu0
      %v10440 = vadd.f32 %v9940, %v10439
      %v10441 = vpop.f32.mrf.mxu0
      %v10442 = vadd.f32 %v9936, %v10441
      %v10443 = vpop.f32.mrf.mxu0
      %v10444 = vadd.f32 %v9940, %v10443
      %10445 = vmatprep.mubr.bf16.mxu0 %v9898
      %10446 = vmatmul.mubr.bf16.gmra.mxu0 %v9897
      %v10447 = vpop.f32.mrf.mxu0
      %v10448 = vadd.f32 %v9936, %v10447
      %v10449 = vpop.f32.mrf.mxu0
      %v10450 = vadd.f32 %v9940, %v10449
      %v10451 = vpop.f32.mrf.mxu0
      %v10452 = vadd.f32 %v9936, %v10451
      %v10453 = vpop.f32.mrf.mxu0
      %v10454 = vadd.f32 %v9940, %v10453
      %10455 = vdwg.mxu0
      %v10456 = vmax.f32 %v10138, 0.0
      %v10457 = vmax.f32 %v10140, 0.0
      %v10458 = vmax.f32 %v10142, 0.0
      %v10459 = vmax.f32 %v10144, 0.0
      %v10460 = vmax.f32 %v10148, 0.0
      %v10461 = vmax.f32 %v10150, 0.0
      %v10462 = vmax.f32 %v10152, 0.0
      %v10463 = vmax.f32 %v10154, 0.0
      %v10464 = vmax.f32 %v10158, 0.0
      %v10465 = vmax.f32 %v10160, 0.0
      %v10466 = vmax.f32 %v10162, 0.0
      %v10467 = vmax.f32 %v10164, 0.0
      %v10468 = vmax.f32 %v10168, 0.0
      %v10469 = vmax.f32 %v10170, 0.0
      %v10470 = vmax.f32 %v10172, 0.0
      %v10471 = vmax.f32 %v10174, 0.0
      %v10472 = vmax.f32 %v10178, 0.0
      %v10473 = vmax.f32 %v10180, 0.0
      %v10474 = vmax.f32 %v10182, 0.0
      %v10475 = vmax.f32 %v10184, 0.0
      %v10476 = vmax.f32 %v10188, 0.0
      %v10477 = vmax.f32 %v10190, 0.0
      %v10478 = vmax.f32 %v10192, 0.0
      %v10479 = vmax.f32 %v10194, 0.0
      %v10480 = vmax.f32 %v10198, 0.0
      %v10481 = vmax.f32 %v10200, 0.0
      %v10482 = vmax.f32 %v10202, 0.0
      %v10483 = vmax.f32 %v10204, 0.0
      %v10484 = vmax.f32 %v10208, 0.0
      %v10485 = vmax.f32 %v10210, 0.0
      %v10486 = vmax.f32 %v10212, 0.0
      %v10487 = vmax.f32 %v10214, 0.0
      %v10488 = vmax.f32 %v10218, 0.0
      %v10489 = vmax.f32 %v10220, 0.0
      %v10490 = vmax.f32 %v10222, 0.0
      %v10491 = vmax.f32 %v10224, 0.0
      %v10492 = vmax.f32 %v10228, 0.0
      %v10493 = vmax.f32 %v10230, 0.0
      %v10494 = vmax.f32 %v10232, 0.0
      %v10495 = vmax.f32 %v10234, 0.0
      %v10496 = vmax.f32 %v10238, 0.0
      %v10497 = vmax.f32 %v10240, 0.0
      %v10498 = vmax.f32 %v10242, 0.0
      %v10499 = vmax.f32 %v10244, 0.0
      %v10500 = vmax.f32 %v10248, 0.0
      %v10501 = vmax.f32 %v10250, 0.0
      %v10502 = vmax.f32 %v10252, 0.0
      %v10503 = vmax.f32 %v10254, 0.0
      %v10504 = vmax.f32 %v10258, 0.0
      %v10505 = vmax.f32 %v10260, 0.0
      %v10506 = vmax.f32 %v10262, 0.0
      %v10507 = vmax.f32 %v10264, 0.0
      %v10508 = vmax.f32 %v10268, 0.0
      %v10509 = vmax.f32 %v10270, 0.0
      %v10510 = vmax.f32 %v10272, 0.0
      %v10511 = vmax.f32 %v10274, 0.0
      %v10512 = vmax.f32 %v10278, 0.0
      %v10513 = vmax.f32 %v10280, 0.0
      %v10514 = vmax.f32 %v10282, 0.0
      %v10515 = vmax.f32 %v10284, 0.0
      %v10516 = vmax.f32 %v10288, 0.0
      %v10517 = vmax.f32 %v10290, 0.0
      %v10518 = vmax.f32 %v10292, 0.0
      %v10519 = vmax.f32 %v10294, 0.0
      %v10520 = vmax.f32 %v10298, 0.0
      %v10521 = vmax.f32 %v10300, 0.0
      %v10522 = vmax.f32 %v10302, 0.0
      %v10523 = vmax.f32 %v10304, 0.0
      %v10524 = vmax.f32 %v10308, 0.0
      %v10525 = vmax.f32 %v10310, 0.0
      %v10526 = vmax.f32 %v10312, 0.0
      %v10527 = vmax.f32 %v10314, 0.0
      %v10528 = vmax.f32 %v10318, 0.0
      %v10529 = vmax.f32 %v10320, 0.0
      %v10530 = vmax.f32 %v10322, 0.0
      %v10531 = vmax.f32 %v10324, 0.0
      %v10532 = vmax.f32 %v10328, 0.0
      %v10533 = vmax.f32 %v10330, 0.0
      %v10534 = vmax.f32 %v10332, 0.0
      %v10535 = vmax.f32 %v10334, 0.0
      %v10536 = vmax.f32 %v10338, 0.0
      %v10537 = vmax.f32 %v10340, 0.0
      %v10538 = vmax.f32 %v10342, 0.0
      %v10539 = vmax.f32 %v10344, 0.0
      %v10540 = vmax.f32 %v10348, 0.0
      %v10541 = vmax.f32 %v10350, 0.0
      %v10542 = vmax.f32 %v10352, 0.0
      %v10543 = vmax.f32 %v10354, 0.0
      %v10544 = vmax.f32 %v10358, 0.0
      %v10545 = vmax.f32 %v10360, 0.0
      %v10546 = vmax.f32 %v10362, 0.0
      %v10547 = vmax.f32 %v10364, 0.0
      %v10548 = vmax.f32 %v10368, 0.0
      %v10549 = vmax.f32 %v10370, 0.0
      %v10550 = vmax.f32 %v10372, 0.0
      %v10551 = vmax.f32 %v10374, 0.0
      %v10552 = vmax.f32 %v10378, 0.0
      %v10553 = vmax.f32 %v10380, 0.0
      %v10554 = vmax.f32 %v10382, 0.0
      %v10555 = vmax.f32 %v10384, 0.0
      %v10556 = vmax.f32 %v10388, 0.0
      %v10557 = vmax.f32 %v10390, 0.0
      %v10558 = vmax.f32 %v10392, 0.0
      %v10559 = vmax.f32 %v10394, 0.0
      %v10560 = vmax.f32 %v10398, 0.0
      %v10561 = vmax.f32 %v10400, 0.0
      %v10562 = vmax.f32 %v10402, 0.0
      %v10563 = vmax.f32 %v10404, 0.0
      %v10564 = vmax.f32 %v10408, 0.0
      %v10565 = vmax.f32 %v10410, 0.0
      %v10566 = vmax.f32 %v10412, 0.0
      %v10567 = vmax.f32 %v10414, 0.0
      %v10568 = vmax.f32 %v10418, 0.0
      %v10569 = vmax.f32 %v10420, 0.0
      %v10570 = vmax.f32 %v10422, 0.0
      %v10571 = vmax.f32 %v10424, 0.0
      %v10572 = vmax.f32 %v10428, 0.0
      %v10573 = vmax.f32 %v10430, 0.0
      %v10574 = vmax.f32 %v10432, 0.0
      %v10575 = vmax.f32 %v10434, 0.0
      %v10576 = vmax.f32 %v10438, 0.0
      %v10577 = vmax.f32 %v10440, 0.0
      %v10578 = vmax.f32 %v10442, 0.0
      %v10579 = vmax.f32 %v10444, 0.0
      %v10580 = vmax.f32 %v10448, 0.0
      %v10581 = vmax.f32 %v10450, 0.0
      %v10582 = vmax.f32 %v10452, 0.0
      %v10583 = vmax.f32 %v10454, 0.0
      %v10584 = vpack.c.bf16 %v10458, %v10456
      %v10585 = vpack.c.bf16 %v10459, %v10457
      %v10586 = vpack.c.bf16 %v10462, %v10460
      %v10587 = vpack.c.bf16 %v10463, %v10461
      %v10588 = vpack.c.bf16 %v10466, %v10464
      %v10589 = vpack.c.bf16 %v10467, %v10465
      %v10590 = vpack.c.bf16 %v10470, %v10468
      %v10591 = vpack.c.bf16 %v10471, %v10469
      %v10592 = vpack.c.bf16 %v10474, %v10472
      %v10593 = vpack.c.bf16 %v10475, %v10473
      %v10594 = vpack.c.bf16 %v10478, %v10476
      %v10595 = vpack.c.bf16 %v10479, %v10477
      %v10596 = vpack.c.bf16 %v10482, %v10480
      %v10597 = vpack.c.bf16 %v10483, %v10481
      %v10598 = vpack.c.bf16 %v10486, %v10484
      %v10599 = vpack.c.bf16 %v10487, %v10485
      %v10600 = vpack.c.bf16 %v10490, %v10488
      %v10601 = vpack.c.bf16 %v10491, %v10489
      %v10602 = vpack.c.bf16 %v10494, %v10492
      %v10603 = vpack.c.bf16 %v10495, %v10493
      %v10604 = vpack.c.bf16 %v10498, %v10496
      %v10605 = vpack.c.bf16 %v10499, %v10497
      %v10606 = vpack.c.bf16 %v10502, %v10500
      %v10607 = vpack.c.bf16 %v10503, %v10501
      %v10608 = vpack.c.bf16 %v10506, %v10504
      %v10609 = vpack.c.bf16 %v10507, %v10505
      %v10610 = vpack.c.bf16 %v10510, %v10508
      %v10611 = vpack.c.bf16 %v10511, %v10509
      %v10612 = vpack.c.bf16 %v10514, %v10512
      %v10613 = vpack.c.bf16 %v10515, %v10513
      %v10614 = vpack.c.bf16 %v10518, %v10516
      %v10615 = vpack.c.bf16 %v10519, %v10517
      %v10616 = vpack.c.bf16 %v10522, %v10520
      %v10617 = vpack.c.bf16 %v10523, %v10521
      %v10618 = vpack.c.bf16 %v10526, %v10524
      %v10619 = vpack.c.bf16 %v10527, %v10525
      %v10620 = vpack.c.bf16 %v10530, %v10528
      %v10621 = vpack.c.bf16 %v10531, %v10529
      %v10622 = vpack.c.bf16 %v10534, %v10532
      %v10623 = vpack.c.bf16 %v10535, %v10533
      %v10624 = vpack.c.bf16 %v10538, %v10536
      %v10625 = vpack.c.bf16 %v10539, %v10537
      %v10626 = vpack.c.bf16 %v10542, %v10540
      %v10627 = vpack.c.bf16 %v10543, %v10541
      %v10628 = vpack.c.bf16 %v10546, %v10544
      %v10629 = vpack.c.bf16 %v10547, %v10545
      %v10630 = vpack.c.bf16 %v10550, %v10548
      %v10631 = vpack.c.bf16 %v10551, %v10549
      %v10632 = vpack.c.bf16 %v10554, %v10552
      %v10633 = vpack.c.bf16 %v10555, %v10553
      %v10634 = vpack.c.bf16 %v10558, %v10556
      %v10635 = vpack.c.bf16 %v10559, %v10557
      %v10636 = vpack.c.bf16 %v10562, %v10560
      %v10637 = vpack.c.bf16 %v10563, %v10561
      %v10638 = vpack.c.bf16 %v10566, %v10564
      %v10639 = vpack.c.bf16 %v10567, %v10565
      %v10640 = vpack.c.bf16 %v10570, %v10568
      %v10641 = vpack.c.bf16 %v10571, %v10569
      %v10642 = vpack.c.bf16 %v10574, %v10572
      %v10643 = vpack.c.bf16 %v10575, %v10573
      %v10644 = vpack.c.bf16 %v10578, %v10576
      %v10645 = vpack.c.bf16 %v10579, %v10577
      %v10646 = vpack.c.bf16 %v10582, %v10580
      %v10647 = vpack.c.bf16 %v10583, %v10581
      %v10648 = vld [vmem:[%s9] sm:$0xf]
      %v10649 = vld [vmem:[%s9 + $0x4] sm:$0xf]
      %v10650 = vld [vmem:[%s9 + $0x8] sm:$0xf]
      %v10651 = vld [vmem:[%s9 + $0xc] sm:$0xf]
      %v10652 = vld [vmem:[%s9 + $0x10] sm:$0xf]
      %v10653 = vld [vmem:[%s9 + $0x14] sm:$0xf]
      %v10654 = vld [vmem:[%s9 + $0x18] sm:$0xf]
      %v10655 = vld [vmem:[%s9 + $0x1c] sm:$0xf]
      %v10656 = vld [vmem:[%s9 + $0x20] sm:$0xf]
      %v10657 = vld [vmem:[%s9 + $0x24] sm:$0xf]
      %v10658 = vld [vmem:[%s9 + $0x28] sm:$0xf]
      %v10659 = vld [vmem:[%s9 + $0x2c] sm:$0xf]
      %v10660 = vld [vmem:[%s9 + $0x30] sm:$0xf]
      %v10661 = vld [vmem:[%s9 + $0x34] sm:$0xf]
      %v10662 = vld [vmem:[%s9 + $0x38] sm:$0xf]
      %v10663 = vld [vmem:[%s9 + $0x3c] sm:$0xf]
      %v10664 = vld [vmem:[%s9 + $0x40] sm:$0xf]
      %v10665 = vld [vmem:[%s9 + $0x44] sm:$0xf]
      %v10666 = vld [vmem:[%s9 + $0x48] sm:$0xf]
      %v10667 = vld [vmem:[%s9 + $0x4c] sm:$0xf]
      %v10668 = vld [vmem:[%s9 + $0x50] sm:$0xf]
      %v10669 = vld [vmem:[%s9 + $0x54] sm:$0xf]
      %v10670 = vld [vmem:[%s9 + $0x58] sm:$0xf]
      %v10671 = vld [vmem:[%s9 + $0x5c] sm:$0xf]
      %v10672 = vld [vmem:[%s9 + $0x60] sm:$0xf]
      %v10673 = vld [vmem:[%s9 + $0x64] sm:$0xf]
      %v10674 = vld [vmem:[%s9 + $0x68] sm:$0xf]
      %v10675 = vld [vmem:[%s9 + $0x6c] sm:$0xf]
      %v10676 = vld [vmem:[%s9 + $0x70] sm:$0xf]
      %v10677 = vld [vmem:[%s9 + $0x74] sm:$0xf]
      %v10678 = vld [vmem:[%s9 + $0x78] sm:$0xf]
      %v10679 = vld [vmem:[%s9 + $0x7c] sm:$0xf]
      %v10680 = vld [vmem:[%s10] sm:$0x1]
      %v10682 = vlaneseq
      %v10683 = vshrl.u32 %v10682, 7
      %v10684 = vsub.s32 0, %v10683
      %v10685 = vrot.slane %v10680, %v10684
      %v10719 = vunpack.c.l.b16 %v10648
      %v10720 = vunpack.c.l.b16 %v10649
      %v10721 = vunpack.c.l.b16 %v10650
      %v10722 = vunpack.c.l.b16 %v10651
      %v10723 = vunpack.c.l.b16 %v10652
      %v10724 = vunpack.c.l.b16 %v10653
      %v10725 = vunpack.c.l.b16 %v10654
      %v10726 = vunpack.c.l.b16 %v10655
      %v10727 = vunpack.c.l.b16 %v10656
      %v10728 = vunpack.c.l.b16 %v10657
      %v10729 = vunpack.c.l.b16 %v10658
      %v10730 = vunpack.c.l.b16 %v10659
      %v10731 = vunpack.c.l.b16 %v10660
      %v10732 = vunpack.c.l.b16 %v10661
      %v10733 = vunpack.c.l.b16 %v10662
      %v10734 = vunpack.c.l.b16 %v10663
      %v10735 = vunpack.c.l.b16 %v10664
      %v10736 = vunpack.c.l.b16 %v10665
      %v10737 = vunpack.c.l.b16 %v10666
      %v10738 = vunpack.c.l.b16 %v10667
      %v10739 = vunpack.c.l.b16 %v10668
      %v10740 = vunpack.c.l.b16 %v10669
      %v10741 = vunpack.c.l.b16 %v10670
      %v10742 = vunpack.c.l.b16 %v10671
      %v10743 = vunpack.c.l.b16 %v10672
      %v10744 = vunpack.c.l.b16 %v10673
      %v10745 = vunpack.c.l.b16 %v10674
      %v10746 = vunpack.c.l.b16 %v10675
      %v10747 = vunpack.c.l.b16 %v10676
      %v10748 = vunpack.c.l.b16 %v10677
      %v10749 = vunpack.c.l.b16 %v10678
      %v10750 = vunpack.c.l.b16 %v10679
      %v10751 = vpack.c.b16 %v10720, %v10719
      %v10752 = vpack.c.b16 %v10722, %v10721
      %v10753 = vpack.c.b16 %v10724, %v10723
      %v10754 = vpack.c.b16 %v10726, %v10725
      %v10755 = vpack.c.b16 %v10728, %v10727
      %v10756 = vpack.c.b16 %v10730, %v10729
      %v10757 = vpack.c.b16 %v10732, %v10731
      %v10758 = vpack.c.b16 %v10734, %v10733
      %v10759 = vpack.c.b16 %v10736, %v10735
      %v10760 = vpack.c.b16 %v10738, %v10737
      %v10761 = vpack.c.b16 %v10740, %v10739
      %v10762 = vpack.c.b16 %v10742, %v10741
      %v10763 = vpack.c.b16 %v10744, %v10743
      %v10764 = vpack.c.b16 %v10746, %v10745
      %v10765 = vpack.c.b16 %v10748, %v10747
      %v10766 = vpack.c.b16 %v10750, %v10749
      %10783 = vmatprep.subr.bf16.mxu0 0
      %10784 = vmatpush1.bf16.msra.mxu0 %v10758
      %10785 = vmatprep.subr.bf16.mxu0 0
      %10786 = vmatpush1.bf16.msra.mxu0 %v10757
      %10787 = vmatprep.subr.bf16.mxu0 0
      %10788 = vmatpush1.bf16.msra.mxu0 %v10756
      %10789 = vmatprep.subr.bf16.mxu0 0
      %10790 = vmatpush1.bf16.msra.mxu0 %v10755
      %10791 = vmatprep.subr.bf16.mxu0 0
      %10792 = vmatpush1.bf16.msra.mxu0 %v10754
      %10793 = vmatprep.subr.bf16.mxu0 0
      %10794 = vmatpush1.bf16.msra.mxu0 %v10753
      %10795 = vmatprep.subr.bf16.mxu0 0
      %10796 = vmatpush1.bf16.msra.mxu0 %v10752
      %10797 = vmatprep.subr.bf16.mxu0 0
      %10798 = vmatpush1.bf16.msra.mxu0 %v10751
      %10799 = vmatprep.subr.bf16.mxu0 0
      %10800 = vmatpush2.bf16.msra.mxu0 %v10766
      %10801 = vmatprep.subr.bf16.mxu0 0
      %10802 = vmatpush2.bf16.msra.mxu0 %v10765
      %10803 = vmatprep.subr.bf16.mxu0 0
      %10804 = vmatpush2.bf16.msra.mxu0 %v10764
      %10805 = vmatprep.subr.bf16.mxu0 0
      %10806 = vmatpush2.bf16.msra.mxu0 %v10763
      %10807 = vmatprep.subr.bf16.mxu0 0
      %10808 = vmatpush2.bf16.msra.mxu0 %v10762
      %10809 = vmatprep.subr.bf16.mxu0 0
      %10810 = vmatpush2.bf16.msra.mxu0 %v10761
      %10811 = vmatprep.subr.bf16.mxu0 0
      %10812 = vmatpush2.bf16.msra.mxu0 %v10760
      %10813 = vmatprep.subr.bf16.mxu0 0
      %10814 = vmatpush2.bf16.msra.mxu0 %v10759
      %10815 = vmatprep.mubr.bf16.mxu0 %v10585
      %10816 = vmatmul.mubr.bf16.gmra.mxu0 %v10584
      %v10817 = vpop.f32.mrf.mxu0
      %v10818 = vadd.f32 %v10685, %v10817
      %v10819 = vpop.f32.mrf.mxu0
      %v10820 = vpop.f32.mrf.mxu0
      %v10821 = vadd.f32 %v10685, %v10820
      %v10822 = vpop.f32.mrf.mxu0
      %10823 = vmatprep.mubr.bf16.mxu0 %v10587
      %10824 = vmatmul.mubr.bf16.gmra.mxu0 %v10586
      %v10825 = vpop.f32.mrf.mxu0
      %v10826 = vadd.f32 %v10685, %v10825
      %v10827 = vpop.f32.mrf.mxu0
      %v10828 = vpop.f32.mrf.mxu0
      %v10829 = vadd.f32 %v10685, %v10828
      %v10830 = vpop.f32.mrf.mxu0
      %10831 = vmatprep.mubr.bf16.mxu0 %v10589
      %10832 = vmatmul.mubr.bf16.gmra.mxu0 %v10588
      %v10833 = vpop.f32.mrf.mxu0
      %v10834 = vadd.f32 %v10685, %v10833
      %v10835 = vpop.f32.mrf.mxu0
      %v10836 = vpop.f32.mrf.mxu0
      %v10837 = vadd.f32 %v10685, %v10836
      %v10838 = vpop.f32.mrf.mxu0
      %10839 = vmatprep.mubr.bf16.mxu0 %v10591
      %10840 = vmatmul.mubr.bf16.gmra.mxu0 %v10590
      %v10841 = vpop.f32.mrf.mxu0
      %v10842 = vadd.f32 %v10685, %v10841
      %v10843 = vpop.f32.mrf.mxu0
      %v10844 = vpop.f32.mrf.mxu0
      %v10845 = vadd.f32 %v10685, %v10844
      %v10846 = vpop.f32.mrf.mxu0
      %10847 = vmatprep.mubr.bf16.mxu0 %v10593
      %10848 = vmatmul.mubr.bf16.gmra.mxu0 %v10592
      %v10849 = vpop.f32.mrf.mxu0
      %v10850 = vadd.f32 %v10685, %v10849
      %v10851 = vpop.f32.mrf.mxu0
      %v10852 = vpop.f32.mrf.mxu0
      %v10853 = vadd.f32 %v10685, %v10852
      %v10854 = vpop.f32.mrf.mxu0
      %10855 = vmatprep.mubr.bf16.mxu0 %v10595
      %10856 = vmatmul.mubr.bf16.gmra.mxu0 %v10594
      %v10857 = vpop.f32.mrf.mxu0
      %v10858 = vadd.f32 %v10685, %v10857
      %v10859 = vpop.f32.mrf.mxu0
      %v10860 = vpop.f32.mrf.mxu0
      %v10861 = vadd.f32 %v10685, %v10860
      %v10862 = vpop.f32.mrf.mxu0
      %10863 = vmatprep.mubr.bf16.mxu0 %v10597
      %10864 = vmatmul.mubr.bf16.gmra.mxu0 %v10596
      %v10865 = vpop.f32.mrf.mxu0
      %v10866 = vadd.f32 %v10685, %v10865
      %v10867 = vpop.f32.mrf.mxu0
      %v10868 = vpop.f32.mrf.mxu0
      %v10869 = vadd.f32 %v10685, %v10868
      %v10870 = vpop.f32.mrf.mxu0
      %10871 = vmatprep.mubr.bf16.mxu0 %v10599
      %10872 = vmatmul.mubr.bf16.gmra.mxu0 %v10598
      %v10873 = vpop.f32.mrf.mxu0
      %v10874 = vadd.f32 %v10685, %v10873
      %v10875 = vpop.f32.mrf.mxu0
      %v10876 = vpop.f32.mrf.mxu0
      %v10877 = vadd.f32 %v10685, %v10876
      %v10878 = vpop.f32.mrf.mxu0
      %10879 = vmatprep.mubr.bf16.mxu0 %v10601
      %10880 = vmatmul.mubr.bf16.gmra.mxu0 %v10600
      %v10881 = vpop.f32.mrf.mxu0
      %v10882 = vadd.f32 %v10685, %v10881
      %v10883 = vpop.f32.mrf.mxu0
      %v10884 = vpop.f32.mrf.mxu0
      %v10885 = vadd.f32 %v10685, %v10884
      %v10886 = vpop.f32.mrf.mxu0
      %10887 = vmatprep.mubr.bf16.mxu0 %v10603
      %10888 = vmatmul.mubr.bf16.gmra.mxu0 %v10602
      %v10889 = vpop.f32.mrf.mxu0
      %v10890 = vadd.f32 %v10685, %v10889
      %v10891 = vpop.f32.mrf.mxu0
      %v10892 = vpop.f32.mrf.mxu0
      %v10893 = vadd.f32 %v10685, %v10892
      %v10894 = vpop.f32.mrf.mxu0
      %10895 = vmatprep.mubr.bf16.mxu0 %v10605
      %10896 = vmatmul.mubr.bf16.gmra.mxu0 %v10604
      %v10897 = vpop.f32.mrf.mxu0
      %v10898 = vadd.f32 %v10685, %v10897
      %v10899 = vpop.f32.mrf.mxu0
      %v10900 = vpop.f32.mrf.mxu0
      %v10901 = vadd.f32 %v10685, %v10900
      %v10902 = vpop.f32.mrf.mxu0
      %10903 = vmatprep.mubr.bf16.mxu0 %v10607
      %10904 = vmatmul.mubr.bf16.gmra.mxu0 %v10606
      %v10905 = vpop.f32.mrf.mxu0
      %v10906 = vadd.f32 %v10685, %v10905
      %v10907 = vpop.f32.mrf.mxu0
      %v10908 = vpop.f32.mrf.mxu0
      %v10909 = vadd.f32 %v10685, %v10908
      %v10910 = vpop.f32.mrf.mxu0
      %10911 = vmatprep.mubr.bf16.mxu0 %v10609
      %10912 = vmatmul.mubr.bf16.gmra.mxu0 %v10608
      %v10913 = vpop.f32.mrf.mxu0
      %v10914 = vadd.f32 %v10685, %v10913
      %v10915 = vpop.f32.mrf.mxu0
      %v10916 = vpop.f32.mrf.mxu0
      %v10917 = vadd.f32 %v10685, %v10916
      %v10918 = vpop.f32.mrf.mxu0
      %10919 = vmatprep.mubr.bf16.mxu0 %v10611
      %10920 = vmatmul.mubr.bf16.gmra.mxu0 %v10610
      %v10921 = vpop.f32.mrf.mxu0
      %v10922 = vadd.f32 %v10685, %v10921
      %v10923 = vpop.f32.mrf.mxu0
      %v10924 = vpop.f32.mrf.mxu0
      %v10925 = vadd.f32 %v10685, %v10924
      %v10926 = vpop.f32.mrf.mxu0
      %10927 = vmatprep.mubr.bf16.mxu0 %v10613
      %10928 = vmatmul.mubr.bf16.gmra.mxu0 %v10612
      %v10929 = vpop.f32.mrf.mxu0
      %v10930 = vadd.f32 %v10685, %v10929
      %v10931 = vpop.f32.mrf.mxu0
      %v10932 = vpop.f32.mrf.mxu0
      %v10933 = vadd.f32 %v10685, %v10932
      %v10934 = vpop.f32.mrf.mxu0
      %10935 = vmatprep.mubr.bf16.mxu0 %v10615
      %10936 = vmatmul.mubr.bf16.gmra.mxu0 %v10614
      %v10937 = vpop.f32.mrf.mxu0
      %v10938 = vadd.f32 %v10685, %v10937
      %v10939 = vpop.f32.mrf.mxu0
      %v10940 = vpop.f32.mrf.mxu0
      %v10941 = vadd.f32 %v10685, %v10940
      %v10942 = vpop.f32.mrf.mxu0
      %10943 = vmatprep.mubr.bf16.mxu0 %v10617
      %10944 = vmatmul.mubr.bf16.gmra.mxu0 %v10616
      %v10945 = vpop.f32.mrf.mxu0
      %v10946 = vadd.f32 %v10685, %v10945
      %v10947 = vpop.f32.mrf.mxu0
      %v10948 = vpop.f32.mrf.mxu0
      %v10949 = vadd.f32 %v10685, %v10948
      %v10950 = vpop.f32.mrf.mxu0
      %10951 = vmatprep.mubr.bf16.mxu0 %v10619
      %10952 = vmatmul.mubr.bf16.gmra.mxu0 %v10618
      %v10953 = vpop.f32.mrf.mxu0
      %v10954 = vadd.f32 %v10685, %v10953
      %v10955 = vpop.f32.mrf.mxu0
      %v10956 = vpop.f32.mrf.mxu0
      %v10957 = vadd.f32 %v10685, %v10956
      %v10958 = vpop.f32.mrf.mxu0
      %10959 = vmatprep.mubr.bf16.mxu0 %v10621
      %10960 = vmatmul.mubr.bf16.gmra.mxu0 %v10620
      %v10961 = vpop.f32.mrf.mxu0
      %v10962 = vadd.f32 %v10685, %v10961
      %v10963 = vpop.f32.mrf.mxu0
      %v10964 = vpop.f32.mrf.mxu0
      %v10965 = vadd.f32 %v10685, %v10964
      %v10966 = vpop.f32.mrf.mxu0
      %10967 = vmatprep.mubr.bf16.mxu0 %v10623
      %10968 = vmatmul.mubr.bf16.gmra.mxu0 %v10622
      %v10969 = vpop.f32.mrf.mxu0
      %v10970 = vadd.f32 %v10685, %v10969
      %v10971 = vpop.f32.mrf.mxu0
      %v10972 = vpop.f32.mrf.mxu0
      %v10973 = vadd.f32 %v10685, %v10972
      %v10974 = vpop.f32.mrf.mxu0
      %10975 = vmatprep.mubr.bf16.mxu0 %v10625
      %10976 = vmatmul.mubr.bf16.gmra.mxu0 %v10624
      %v10977 = vpop.f32.mrf.mxu0
      %v10978 = vadd.f32 %v10685, %v10977
      %v10979 = vpop.f32.mrf.mxu0
      %v10980 = vpop.f32.mrf.mxu0
      %v10981 = vadd.f32 %v10685, %v10980
      %v10982 = vpop.f32.mrf.mxu0
      %10983 = vmatprep.mubr.bf16.mxu0 %v10627
      %10984 = vmatmul.mubr.bf16.gmra.mxu0 %v10626
      %v10985 = vpop.f32.mrf.mxu0
      %v10986 = vadd.f32 %v10685, %v10985
      %v10987 = vpop.f32.mrf.mxu0
      %v10988 = vpop.f32.mrf.mxu0
      %v10989 = vadd.f32 %v10685, %v10988
      %v10990 = vpop.f32.mrf.mxu0
      %10991 = vmatprep.mubr.bf16.mxu0 %v10629
      %10992 = vmatmul.mubr.bf16.gmra.mxu0 %v10628
      %v10993 = vpop.f32.mrf.mxu0
      %v10994 = vadd.f32 %v10685, %v10993
      %v10995 = vpop.f32.mrf.mxu0
      %v10996 = vpop.f32.mrf.mxu0
      %v10997 = vadd.f32 %v10685, %v10996
      %v10998 = vpop.f32.mrf.mxu0
      %10999 = vmatprep.mubr.bf16.mxu0 %v10631
      %11000 = vmatmul.mubr.bf16.gmra.mxu0 %v10630
      %v11001 = vpop.f32.mrf.mxu0
      %v11002 = vadd.f32 %v10685, %v11001
      %v11003 = vpop.f32.mrf.mxu0
      %v11004 = vpop.f32.mrf.mxu0
      %v11005 = vadd.f32 %v10685, %v11004
      %v11006 = vpop.f32.mrf.mxu0
      %11007 = vmatprep.mubr.bf16.mxu0 %v10633
      %11008 = vmatmul.mubr.bf16.gmra.mxu0 %v10632
      %v11009 = vpop.f32.mrf.mxu0
      %v11010 = vadd.f32 %v10685, %v11009
      %v11011 = vpop.f32.mrf.mxu0
      %v11012 = vpop.f32.mrf.mxu0
      %v11013 = vadd.f32 %v10685, %v11012
      %v11014 = vpop.f32.mrf.mxu0
      %11015 = vmatprep.mubr.bf16.mxu0 %v10635
      %11016 = vmatmul.mubr.bf16.gmra.mxu0 %v10634
      %v11017 = vpop.f32.mrf.mxu0
      %v11018 = vadd.f32 %v10685, %v11017
      %v11019 = vpop.f32.mrf.mxu0
      %v11020 = vpop.f32.mrf.mxu0
      %v11021 = vadd.f32 %v10685, %v11020
      %v11022 = vpop.f32.mrf.mxu0
      %11023 = vmatprep.mubr.bf16.mxu0 %v10637
      %11024 = vmatmul.mubr.bf16.gmra.mxu0 %v10636
      %v11025 = vpop.f32.mrf.mxu0
      %v11026 = vadd.f32 %v10685, %v11025
      %v11027 = vpop.f32.mrf.mxu0
      %v11028 = vpop.f32.mrf.mxu0
      %v11029 = vadd.f32 %v10685, %v11028
      %v11030 = vpop.f32.mrf.mxu0
      %11031 = vmatprep.mubr.bf16.mxu0 %v10639
      %11032 = vmatmul.mubr.bf16.gmra.mxu0 %v10638
      %v11033 = vpop.f32.mrf.mxu0
      %v11034 = vadd.f32 %v10685, %v11033
      %v11035 = vpop.f32.mrf.mxu0
      %v11036 = vpop.f32.mrf.mxu0
      %v11037 = vadd.f32 %v10685, %v11036
      %v11038 = vpop.f32.mrf.mxu0
      %11039 = vmatprep.mubr.bf16.mxu0 %v10641
      %11040 = vmatmul.mubr.bf16.gmra.mxu0 %v10640
      %v11041 = vpop.f32.mrf.mxu0
      %v11042 = vadd.f32 %v10685, %v11041
      %v11043 = vpop.f32.mrf.mxu0
      %v11044 = vpop.f32.mrf.mxu0
      %v11045 = vadd.f32 %v10685, %v11044
      %v11046 = vpop.f32.mrf.mxu0
      %11047 = vmatprep.mubr.bf16.mxu0 %v10643
      %11048 = vmatmul.mubr.bf16.gmra.mxu0 %v10642
      %v11049 = vpop.f32.mrf.mxu0
      %v11050 = vadd.f32 %v10685, %v11049
      %v11051 = vpop.f32.mrf.mxu0
      %v11052 = vpop.f32.mrf.mxu0
      %v11053 = vadd.f32 %v10685, %v11052
      %v11054 = vpop.f32.mrf.mxu0
      %11055 = vmatprep.mubr.bf16.mxu0 %v10645
      %11056 = vmatmul.mubr.bf16.gmra.mxu0 %v10644
      %v11057 = vpop.f32.mrf.mxu0
      %v11058 = vadd.f32 %v10685, %v11057
      %v11059 = vpop.f32.mrf.mxu0
      %v11060 = vpop.f32.mrf.mxu0
      %v11061 = vadd.f32 %v10685, %v11060
      %v11062 = vpop.f32.mrf.mxu0
      %11063 = vmatprep.mubr.bf16.mxu0 %v10647
      %11064 = vmatmul.mubr.bf16.gmra.mxu0 %v10646
      %v11065 = vpop.f32.mrf.mxu0
      %v11066 = vadd.f32 %v10685, %v11065
      %v11067 = vpop.f32.mrf.mxu0
      %v11068 = vpop.f32.mrf.mxu0
      %v11069 = vadd.f32 %v10685, %v11068
      %v11070 = vpop.f32.mrf.mxu0
      %11071 = vdwg.mxu0
      %vm11072 = vcmask 31744
      %11073 = vst.msk [vmem:[%s388] sm:$0xff] %vm11072, %v10818
      %11074 = vst.msk [vmem:[%s388 + $0x8] sm:$0xff] %vm11072, %v10821
      %11075 = vst.msk [vmem:[%s388 + $0x10] sm:$0xff] %vm11072, %v10826
      %11076 = vst.msk [vmem:[%s388 + $0x18] sm:$0xff] %vm11072, %v10829
      %11077 = vst.msk [vmem:[%s388 + $0x20] sm:$0xff] %vm11072, %v10834
      %11078 = vst.msk [vmem:[%s388 + $0x28] sm:$0xff] %vm11072, %v10837
      %11079 = vst.msk [vmem:[%s388 + $0x30] sm:$0xff] %vm11072, %v10842
      %11080 = vst.msk [vmem:[%s388 + $0x38] sm:$0xff] %vm11072, %v10845
      %11081 = vst.msk [vmem:[%s388 + $0x40] sm:$0xff] %vm11072, %v10850
      %11082 = vst.msk [vmem:[%s388 + $0x48] sm:$0xff] %vm11072, %v10853
      %11083 = vst.msk [vmem:[%s388 + $0x50] sm:$0xff] %vm11072, %v10858
      %11084 = vst.msk [vmem:[%s388 + $0x58] sm:$0xff] %vm11072, %v10861
      %11085 = vst.msk [vmem:[%s388 + $0x60] sm:$0xff] %vm11072, %v10866
      %11086 = vst.msk [vmem:[%s388 + $0x68] sm:$0xff] %vm11072, %v10869
      %11087 = vst.msk [vmem:[%s388 + $0x70] sm:$0xff] %vm11072, %v10874
      %11088 = vst.msk [vmem:[%s388 + $0x78] sm:$0xff] %vm11072, %v10877
      %11089 = vst.msk [vmem:[%s388 + $0x80] sm:$0xff] %vm11072, %v10882
      %11090 = vst.msk [vmem:[%s388 + $0x88] sm:$0xff] %vm11072, %v10885
      %11091 = vst.msk [vmem:[%s388 + $0x90] sm:$0xff] %vm11072, %v10890
      %11092 = vst.msk [vmem:[%s388 + $0x98] sm:$0xff] %vm11072, %v10893
      %11093 = vst.msk [vmem:[%s388 + $0xa0] sm:$0xff] %vm11072, %v10898
      %11094 = vst.msk [vmem:[%s388 + $0xa8] sm:$0xff] %vm11072, %v10901
      %11095 = vst.msk [vmem:[%s388 + $0xb0] sm:$0xff] %vm11072, %v10906
      %11096 = vst.msk [vmem:[%s388 + $0xb8] sm:$0xff] %vm11072, %v10909
      %11097 = vst.msk [vmem:[%s388 + $0xc0] sm:$0xff] %vm11072, %v10914
      %11098 = vst.msk [vmem:[%s388 + $0xc8] sm:$0xff] %vm11072, %v10917
      %11099 = vst.msk [vmem:[%s388 + $0xd0] sm:$0xff] %vm11072, %v10922
      %11100 = vst.msk [vmem:[%s388 + $0xd8] sm:$0xff] %vm11072, %v10925
      %11101 = vst.msk [vmem:[%s388 + $0xe0] sm:$0xff] %vm11072, %v10930
      %11102 = vst.msk [vmem:[%s388 + $0xe8] sm:$0xff] %vm11072, %v10933
      %11103 = vst.msk [vmem:[%s388 + $0xf0] sm:$0xff] %vm11072, %v10938
      %11104 = vst.msk [vmem:[%s388 + $0xf8] sm:$0xff] %vm11072, %v10941
      %11105 = vst.msk [vmem:[%s388 + $0x100] sm:$0xff] %vm11072, %v10946
      %11106 = vst.msk [vmem:[%s388 + $0x108] sm:$0xff] %vm11072, %v10949
      %11107 = vst.msk [vmem:[%s388 + $0x110] sm:$0xff] %vm11072, %v10954
      %11108 = vst.msk [vmem:[%s388 + $0x118] sm:$0xff] %vm11072, %v10957
      %11109 = vst.msk [vmem:[%s388 + $0x120] sm:$0xff] %vm11072, %v10962
      %11110 = vst.msk [vmem:[%s388 + $0x128] sm:$0xff] %vm11072, %v10965
      %11111 = vst.msk [vmem:[%s388 + $0x130] sm:$0xff] %vm11072, %v10970
      %11112 = vst.msk [vmem:[%s388 + $0x138] sm:$0xff] %vm11072, %v10973
      %11113 = vst.msk [vmem:[%s388 + $0x140] sm:$0xff] %vm11072, %v10978
      %11114 = vst.msk [vmem:[%s388 + $0x148] sm:$0xff] %vm11072, %v10981
      %11115 = vst.msk [vmem:[%s388 + $0x150] sm:$0xff] %vm11072, %v10986
      %11116 = vst.msk [vmem:[%s388 + $0x158] sm:$0xff] %vm11072, %v10989
      %11117 = vst.msk [vmem:[%s388 + $0x160] sm:$0xff] %vm11072, %v10994
      %11118 = vst.msk [vmem:[%s388 + $0x168] sm:$0xff] %vm11072, %v10997
      %11119 = vst.msk [vmem:[%s388 + $0x170] sm:$0xff] %vm11072, %v11002
      %11120 = vst.msk [vmem:[%s388 + $0x178] sm:$0xff] %vm11072, %v11005
      %11121 = vst.msk [vmem:[%s388 + $0x180] sm:$0xff] %vm11072, %v11010
      %11122 = vst.msk [vmem:[%s388 + $0x188] sm:$0xff] %vm11072, %v11013
      %11123 = vst.msk [vmem:[%s388 + $0x190] sm:$0xff] %vm11072, %v11018
      %11124 = vst.msk [vmem:[%s388 + $0x198] sm:$0xff] %vm11072, %v11021
      %11125 = vst.msk [vmem:[%s388 + $0x1a0] sm:$0xff] %vm11072, %v11026
      %11126 = vst.msk [vmem:[%s388 + $0x1a8] sm:$0xff] %vm11072, %v11029
      %11127 = vst.msk [vmem:[%s388 + $0x1b0] sm:$0xff] %vm11072, %v11034
      %11128 = vst.msk [vmem:[%s388 + $0x1b8] sm:$0xff] %vm11072, %v11037
      %11129 = vst.msk [vmem:[%s388 + $0x1c0] sm:$0xff] %vm11072, %v11042
      %11130 = vst.msk [vmem:[%s388 + $0x1c8] sm:$0xff] %vm11072, %v11045
      %11131 = vst.msk [vmem:[%s388 + $0x1d0] sm:$0xff] %vm11072, %v11050
      %11132 = vst.msk [vmem:[%s388 + $0x1d8] sm:$0xff] %vm11072, %v11053
      %11133 = vst.msk [vmem:[%s388 + $0x1e0] sm:$0xff] %vm11072, %v11058
      %11134 = vst.msk [vmem:[%s388 + $0x1e8] sm:$0xff] %vm11072, %v11061
      %11135 = vst.msk [vmem:[%s388 + $0x1f0] sm:$0xff] %vm11072, %v11066
      %11136 = vst.msk [vmem:[%s388 + $0x1f8] sm:$0xff] %vm11072, %v11069
      %s11137 = smul.u32 64, %s22
      %p11138 = scmp.lt.s32.totalorder %s11137, 127
      %s11139 = scalar_select %p11138, %s11137, 127
      %s11140 = smul.addr %s11139, 8
      %s11141 = scalar_lea.vmem %s11, %s11140
      // Predicated region
      $region65: #{tpu_custom_call.1} parent=63 // pred_check
        %p11142 = pneg %p276
      $region66: #{tpu_custom_call.1} parent=63 // pred_check_branch
        %11144 = sbr.rel (%p11142) target = $region68
      $region67: #{tpu_custom_call.1} parent=63 // pred_region
        %s11145 = smul.u32 64, %s22
      $region68: #{tpu_custom_call.1} parent=63 // pred_fallthru
        _
    $region64: #{tpu_custom_call.1} parent=5 // pred_fallthru
      _
    %p11146 = scmp.le.s32.totalorder 2, %s17
    // Predicated region
    $region69: #{tpu_custom_call.1} parent=5 // pred_check
      %p11147 = pneg %p11146
    $region70: #{tpu_custom_call.1} parent=5 // pred_check_branch
      %11149 = sbr.rel (%p11147) target = $region72
    $region71: #{tpu_custom_call.1} parent=5 // pred_region
      %s11150 = ssub.s32 %s17, 2
      // Predicated region
      $region73: #{tpu_custom_call.1} parent=71 // pred_check
        %p11151 = pneg %p282
      $region74: #{tpu_custom_call.1} parent=71 // pred_check_branch
        %11153 = sbr.rel (%p11151) target = $region76
      $region75: #{tpu_custom_call.1} parent=71 // pred_region
        %s11154 = smul.u32 64, %s23
        %p11155 = scmp.lt.s32.totalorder %s11154, 127
        %s11156 = scalar_select %p11155, %s11154, 127
        %s11157 = smul.addr %s11156, 8
        %s11158 = scalar_lea.vmem %s11, %s11157
      $region76: #{tpu_custom_call.1} parent=71 // pred_fallthru
        _
    $region72: #{tpu_custom_call.1} parent=5 // pred_fallthru
      _
  $region6: #{tpu_custom_call.1} parent=0 // loop_footer
    %s21 = sadd.s32 1, %s17
  $region7: #{tpu_custom_call.1} parent=0 // loop_footer_branch
    %16 = sbr.rel target = $region3
  $region8: #{tpu_custom_call.1} parent=0 // loop_exit
    _

</llo_original>
